<compile_context>
chip_gen: v7x
topology: tpu7x:2x2x1
jax: 0.10.0
libtpu: 0.0.40
codegen_flags: <defaults>
</compile_context>

<pallas_src>
import jax
import jax.numpy as jnp
from jax.experimental import pallas as pl
from jax.experimental.pallas import tpu as pltpu

BN_EPS = 1e-3
LPAD = 16  # left pad (sublane axis) so interior scratch writes start aligned


def _inception_kernel(
    x_ref,                              # (1, H, W, Cin) bf16
    wpre_ref, spre_ref, bpre_ref,       # fused 1x1 (branch1 | branch2-red | branch3-red)
    w33_ref, s33_ref, b33_ref,          # fused block-diagonal 3x3 taps (branch2 | branch3)
    w4_ref, s4_ref, c4_ref,             # pool-proj 1x1 (branch4, Cout zero-padded)
    out_ref,                            # (1, H, W, ctot_pad) f32, ctot_pad % 128 == 0
    pad_ref, neg_ref,                   # persistent padded scratches (bf16)
):
    x = x_ref[0]                        # (H, W, Cin) bf16
    H, W, Cin = x.shape
    HW = H * W
    Wp = pad_ref.shape[1]               # LPAD + W + 1
    cr23 = w33_ref.shape[2]             # ch3x3red + ch5x5red
    ch1x1 = wpre_ref.shape[1] - cr23

    def bn_relu(y, s_ref, b_ref):
        # y: (HW, C) f32; s/b: (1, C) folded eval-mode BatchNorm scale/bias.
        return jnp.maximum(y * s_ref[...] + b_ref[...], 0.0)

    # ---- border (re)fill of the persistent padded scratches -----------------
    # The interior is fully overwritten every step; only the border cells that
    # the 3x3 taps actually read are refreshed (rows 0 and H+1, plus the single
    # column on each side of the interior).  Cheap, and correct regardless of
    # how the "parallel" batch axis is split across TensorCores.
    pdt = pad_ref.dtype
    pad_ref[0:1, :, :] = jnp.zeros((1, Wp, cr23), pdt)
    pad_ref[H + 1:H + 2, :, :] = jnp.zeros((1, Wp, cr23), pdt)
    pad_ref[1:H + 1, LPAD - 1:LPAD, :] = jnp.zeros((H, 1, cr23), pdt)
    pad_ref[1:H + 1, LPAD + W:LPAD + W + 1, :] = jnp.zeros((H, 1, cr23), pdt)

    ndt = neg_ref.dtype
    fmin = jnp.finfo(ndt).min           # effectively -inf for the maxpool padding
    neg_ref[0:1, :, :] = jnp.full((1, Wp, Cin), fmin, ndt)
    neg_ref[H + 1:H + 2, :, :] = jnp.full((1, Wp, Cin), fmin, ndt)
    neg_ref[1:H + 1, LPAD - 1:LPAD, :] = jnp.full((H, 1, Cin), fmin, ndt)
    neg_ref[1:H + 1, LPAD + W:LPAD + W + 1, :] = jnp.full((H, 1, Cin), fmin, ndt)

    # ---- fused 1x1 convs over the raw input: one wide MXU matmul (bf16) ------
    xm = x.reshape(HW, Cin)
    y_pre = bn_relu(
        jnp.dot(xm, wpre_ref[...], preferred_element_type=jnp.float32),
        spre_ref, bpre_ref)             # (HW, ch1x1 + cr23) f32
    b1 = y_pre[:, :ch1x1]               # branch1 output
    r23 = y_pre[:, ch1x1:]              # [branch2-reduce | branch3-reduce]

    # Interior writes (aligned sublane offset LPAD).
    pad_ref[1:H + 1, LPAD:LPAD + W, :] = r23.reshape(H, W, cr23).astype(pdt)
    neg_ref[1:H + 1, LPAD:LPAD + W, :] = x

    # ---- fused block-diagonal 3x3 conv (branch2 | branch3) -------------------
    # Accumulate over the 9 taps: 9 small bf16 matmuls into one f32 accumulator
    # (no im2col patches materialization, no 9-way lane concatenate).
    acc = None
    for dy in range(3):
        for dx in range(3):
            tap = pad_ref[dy:dy + H, LPAD - 1 + dx:LPAD - 1 + dx + W, :]
            p = jnp.dot(tap.reshape(HW, cr23), w33_ref[dy, dx, :, :],
                        preferred_element_type=jnp.float32)
            acc = p if acc is None else acc + p
    b23 = bn_relu(acc, s33_ref, b33_ref)          # [branch2 | branch3]

    # ---- branch4: separable 3x3 maxpool (stride 1, pad 1) -> 1x1 conv --------
    hmax = jnp.maximum(
        jnp.maximum(neg_ref[:, LPAD - 1:LPAD - 1 + W, :],
                    neg_ref[:, LPAD:LPAD + W, :]),
        neg_ref[:, LPAD + 1:LPAD + 1 + W, :])     # (H+2, W, Cin)
    mp = jnp.maximum(jnp.maximum(hmax[0:H], hmax[1:H + 1]), hmax[2:H + 2])
    b4 = bn_relu(
        jnp.dot(mp.reshape(HW, Cin), w4_ref[...],
                preferred_element_type=jnp.float32),
        s4_ref, c4_ref)                            # (HW, pool_proj_padded)

    # ---- channel concat (torch.cat along channels); lane-dense single store --
    out = jnp.concatenate([b1, b23, b4], axis=-1)  # (HW, ctot_pad)
    out_ref[0] = out.reshape(H, W, out.shape[-1]).astype(out_ref.dtype)


# ----------------------------- parameter helpers -----------------------------
def _fold_bn(gamma, beta, mean, var, eps=BN_EPS):
    scale = gamma / jnp.sqrt(var + eps)
    bias = beta - mean * scale
    return scale[None, :].astype(jnp.float32), bias[None, :].astype(jnp.float32)


def _init_basic_conv(key, cin, cout, k):
    """Deterministic params for BasicConv2d: conv (HWIO) + eval-mode BN."""
    k0, k1, k2, k3, k4 = jax.random.split(key, 5)
    w = jax.random.normal(k0, (k, k, cin, cout), jnp.float32) * 0.1
    gamma = 1.0 + 0.1 * jax.random.normal(k1, (cout,), jnp.float32)
    beta = 0.1 * jax.random.normal(k2, (cout,), jnp.float32)
    mean = 0.1 * jax.random.normal(k3, (cout,), jnp.float32)
    var = 0.5 + jnp.abs(jax.random.normal(k4, (cout,), jnp.float32))
    scale, bias = _fold_bn(gamma, beta, mean, var)
    return w, scale, bias


def init_inception_params(key, in_channels, ch1x1, ch3x3red, ch3x3,
                          ch5x5red, ch5x5, pool_proj):
    ks = jax.random.split(key, 6)
    p = {}
    p["b1"] = _init_basic_conv(ks[0], in_channels, ch1x1, 1)
    p["b2a"] = _init_basic_conv(ks[1], in_channels, ch3x3red, 1)
    p["b2b"] = _init_basic_conv(ks[2], ch3x3red, ch3x3, 3)
    p["b3a"] = _init_basic_conv(ks[3], in_channels, ch5x5red, 1)
    p["b3b"] = _init_basic_conv(ks[4], ch5x5red, ch5x5, 3)
    p["b4"] = _init_basic_conv(ks[5], in_channels, pool_proj, 1)
    return p


def _squeeze_1x1(w):
    # (1, 1, Cin, Cout) -> (Cin, Cout)
    return w.reshape(w.shape[2], w.shape[3])


def prepare_inception_params(params):
    """One-time weight fusion / padding / bf16 cast (hoisted out of the forward)."""
    w1, s1, c1 = params["b1"]
    w2a, s2a, c2a = params["b2a"]
    w2b, s2b, c2b = params["b2b"]
    w3a, s3a, c3a = params["b3a"]
    w3b, s3b, c3b = params["b3b"]
    w4, s4, c4 = params["b4"]

    cin = w1.shape[2]
    ch1x1 = w1.shape[-1]
    cr2, ch3x3 = w2b.shape[2], w2b.shape[3]
    cr3, ch5x5 = w3b.shape[2], w3b.shape[3]
    pool_proj = w4.shape[-1]
    cr23 = cr2 + cr3
    c23 = ch3x3 + ch5x5
    ctot = ch1x1 + c23 + pool_proj
    ctot_pad = ((ctot + 127) // 128) * 128          # lane-dense output width
    pool_pad = ctot_pad - ch1x1 - c23               # padded branch4 width (>= pool_proj)

    # Fused first-layer 1x1 weights: (Cin, ch1x1 + cr2 + cr3), bf16.
    w_pre = jnp.concatenate(
        [_squeeze_1x1(w1), _squeeze_1x1(w2a), _squeeze_1x1(w3a)],
        axis=1).astype(jnp.bfloat16)
    s_pre = jnp.concatenate([s1, s2a, s3a], axis=1)
    b_pre = jnp.concatenate([c1, c2a, c3a], axis=1)

    # Block-diagonal fused 3x3 weight, stored per tap: (3, 3, cr23, c23), bf16.
    # (On v5e the zero block wastes some MXU MACs; on v6e/v7x keeping it fused
    # is as good or better — kept fused for a single portable kernel.)
    w33 = jnp.zeros((3, 3, cr23, c23), jnp.float32)
    w33 = w33.at[:, :, :cr2, :ch3x3].set(w2b)
    w33 = w33.at[:, :, cr2:, ch3x3:].set(w3b)
    w33 = w33.astype(jnp.bfloat16)
    s33 = jnp.concatenate([s2b, s3b], axis=1)
    b33 = jnp.concatenate([c2b, c3b], axis=1)

    # Branch4 1x1 with Cout zero-padded so the concatenated output is lane-dense.
    w4p = jnp.zeros((cin, pool_pad), jnp.float32).at[:, :pool_proj].set(
        _squeeze_1x1(w4)).astype(jnp.bfloat16)
    s4p = jnp.zeros((1, pool_pad), jnp.float32).at[:, :pool_proj].set(s4)
    c4p = jnp.zeros((1, pool_pad), jnp.float32).at[:, :pool_proj].set(c4)

    return {
        "weight_args": [w_pre, s_pre, b_pre, w33, s33, b33, w4p, s4p, c4p],
        "ctot": int(ctot),
        "ctot_pad": int(ctot_pad),
    }


# --------------------------------- forward -----------------------------------
def inception_forward(x_nchw, prepared):
    """Pallas forward. Input NCHW (PyTorch convention), output NCHW (f32)."""
    wargs = prepared["weight_args"]
    ctot = prepared["ctot"]
    ctot_pad = prepared["ctot_pad"]

    x = jnp.transpose(x_nchw, (0, 2, 3, 1)).astype(jnp.bfloat16)   # NHWC bf16
    N, H, W, Cin = x.shape
    w_pre, _, _, w33, s33, _, w4p, _, _ = wargs
    cr23 = w33.shape[2]
    c23 = w33.shape[3]

    def whole(a):
        return pl.BlockSpec(a.shape, lambda n, _z=(0,) * a.ndim: _z)

    in_specs = [pl.BlockSpec((1, H, W, Cin), lambda n: (n, 0, 0, 0))]
    in_specs += [whole(a) for a in wargs]

    flops = 2 * N * H * W * (Cin * w_pre.shape[1]
                             + 9 * cr23 * c23
                             + Cin * w4p.shape[1])
    bytes_accessed = (int(x.size) * 2                          # bf16 input
                      + N * H * W * ctot_pad * 4               # f32 output
                      + sum(int(a.size) * a.dtype.itemsize for a in wargs))

    out = pl.pallas_call(
        _inception_kernel,
        out_shape=jax.ShapeDtypeStruct((N, H, W, ctot_pad), jnp.float32),
        grid=(N,),
        in_specs=in_specs,
        out_specs=pl.BlockSpec((1, H, W, ctot_pad), lambda n: (n, 0, 0, 0)),
        scratch_shapes=[
            pltpu.VMEM((H + 2, LPAD + W + 1, cr23), jnp.bfloat16),  # padded conv in
            pltpu.VMEM((H + 2, LPAD + W + 1, Cin), jnp.bfloat16),   # padded pool in
        ],
        compiler_params=pltpu.CompilerParams(
            dimension_semantics=("parallel",),
            vmem_limit_bytes=48 * 1024 * 1024),     # safe for v7x's 64 MiB/TC VMEM
        cost_estimate=pl.CostEstimate(
            flops=int(flops), transcendentals=0,
            bytes_accessed=int(bytes_accessed)),
    )(x, *wargs)

    # Drop the lane-padding channels, back to NCHW.
    return jnp.transpose(out[..., :ctot], (0, 3, 1, 2))


# ---------------- pure-JAX reference (for correctness check) ----------------
def _ref_basic_conv(x_nhwc, w_hwio, scale, bias, padding):
    y = jax.lax.conv_general_dilated(
        x_nhwc, w_hwio, (1, 1), padding,
        dimension_numbers=("NHWC", "HWIO", "NHWC"))
    y = y * scale + bias          # (1, C) broadcasts over (N, H, W, C)
    return jnp.maximum(y, 0.0)


def ref_inception(x_nchw, params):
    x = jnp.transpose(x_nchw, (0, 2, 3, 1)).astype(jnp.float32)
    w1, s1, c1 = params["b1"]
    w2a, s2a, c2a = params["b2a"]
    w2b, s2b, c2b = params["b2b"]
    w3a, s3a, c3a = params["b3a"]
    w3b, s3b, c3b = params["b3b"]
    w4, s4, c4 = params["b4"]

    b1 = _ref_basic_conv(x, w1, s1, c1, "VALID")
    b2 = _ref_basic_conv(_ref_basic_conv(x, w2a, s2a, c2a, "VALID"),
                         w2b, s2b, c2b, [(1, 1), (1, 1)])
    b3 = _ref_basic_conv(_ref_basic_conv(x, w3a, s3a, c3a, "VALID"),
                         w3b, s3b, c3b, [(1, 1), (1, 1)])
    mp = jax.lax.reduce_window(x, -jnp.inf, jax.lax.max,
                               (1, 3, 3, 1), (1, 1, 1, 1),
                               [(0, 0), (1, 1), (1, 1), (0, 0)])
    b4 = _ref_basic_conv(mp, w4, s4, c4, "VALID")

    out = jnp.concatenate([b1, b2, b3, b4], axis=-1)
    return jnp.transpose(out, (0, 3, 1, 2))


if __name__ == "__main__":
    # Small shapes consistent with the module: batch=2, in_channels=4, 16x16.
    in_channels, ch1x1, ch3x3red, ch3x3, ch5x5red, ch5x5, pool_proj = 4, 8, 6, 8, 6, 8, 8
    key = jax.random.PRNGKey(0)
    kx, kp = jax.random.split(key)
    x = jax.random.normal(kx, (2, in_channels, 16, 16), jnp.float32)   # NCHW
    params = init_inception_params(kp, in_channels, ch1x1, ch3x3red, ch3x3,
                                   ch5x5red, ch5x5, pool_proj)
    prepared = prepare_inception_params(params)    # one-time weight prep

    out = inception_forward(x, prepared)
    out = jax.block_until_ready(out)

    ref = jax.block_until_ready(ref_inception(x, params))
    assert out.shape == (2, ch1x1 + ch3x3 + ch5x5 + pool_proj, 16, 16), out.shape
    # Tolerance loosened vs. the pure-f32 version: matmul inputs are bf16
    # (accumulation stays f32), so ~0.2-0.4% relative rounding is expected.
    assert jnp.allclose(out, ref, rtol=2e-2, atol=2e-2), (
        float(jnp.max(jnp.abs(out - ref))))
    print("KERNEL_OK")
</pallas_src>

<mosaic_0001>
module attributes {stable_mosaic.version = 11 : i64} {
  func.func @_inception_kernel(%arg0: i32, %arg1: memref<1x16x16x4xbf16, #tpu.memory_space<vmem>>, %arg2: memref<4x20xbf16, #tpu.memory_space<vmem>>, %arg3: memref<1x20xf32, #tpu.memory_space<vmem>>, %arg4: memref<1x20xf32, #tpu.memory_space<vmem>>, %arg5: memref<3x3x12x16xbf16, #tpu.memory_space<vmem>>, %arg6: memref<1x16xf32, #tpu.memory_space<vmem>>, %arg7: memref<1x16xf32, #tpu.memory_space<vmem>>, %arg8: memref<4x104xbf16, #tpu.memory_space<vmem>>, %arg9: memref<1x104xf32, #tpu.memory_space<vmem>>, %arg10: memref<1x104xf32, #tpu.memory_space<vmem>>, %arg11: memref<1x16x16x128xf32, #tpu.memory_space<vmem>>, %arg12: memref<18x33x12xbf16, #tpu.memory_space<vmem>>, %arg13: memref<18x33x4xbf16, #tpu.memory_space<vmem>>) attributes {dimension_semantics = [#tpu.dimension_semantics<parallel>], iteration_bounds = array<i64: 2>, scalar_prefetch = 0 : i64, scratch_operands = 2 : i64, tpu.core_type = #tpu.core_type<tc>, window_params = [{transform_indices = @transform_0, window_bounds = array<i64: 1, 16, 16, 4>}, {pipeline_mode = #tpu.pipeline_mode<synchronous>, transform_indices = @transform_1, window_bounds = array<i64: 4, 20>}, {pipeline_mode = #tpu.pipeline_mode<synchronous>, transform_indices = @transform_2, window_bounds = array<i64: 1, 20>}, {pipeline_mode = #tpu.pipeline_mode<synchronous>, transform_indices = @transform_3, window_bounds = array<i64: 1, 20>}, {pipeline_mode = #tpu.pipeline_mode<synchronous>, transform_indices = @transform_4, window_bounds = array<i64: 3, 3, 12, 16>}, {pipeline_mode = #tpu.pipeline_mode<synchronous>, transform_indices = @transform_5, window_bounds = array<i64: 1, 16>}, {pipeline_mode = #tpu.pipeline_mode<synchronous>, transform_indices = @transform_6, window_bounds = array<i64: 1, 16>}, {pipeline_mode = #tpu.pipeline_mode<synchronous>, transform_indices = @transform_7, window_bounds = array<i64: 4, 104>}, {pipeline_mode = #tpu.pipeline_mode<synchronous>, transform_indices = @transform_8, window_bounds = array<i64: 1, 104>}, {pipeline_mode = #tpu.pipeline_mode<synchronous>, transform_indices = @transform_9, window_bounds = array<i64: 1, 104>}, {transform_indices = @transform_10, window_bounds = array<i64: 1, 16, 16, 128>}]} {
    %c0 = arith.constant 0 : index
    %c0_0 = arith.constant 0 : index
    %c0_1 = arith.constant 0 : index
    %c0_2 = arith.constant 0 : index
    %0 = vector.load %arg1[%c0, %c0_0, %c0_1, %c0_2] : memref<1x16x16x4xbf16, #tpu.memory_space<vmem>>, vector<1x16x16x4xbf16>
    %1 = vector.shape_cast %0 : vector<1x16x16x4xbf16> to vector<16x16x4xbf16>
    %cst = arith.constant 0.000000e+00 : bf16
    %2 = vector.broadcast %cst : bf16 to vector<1x33x12xbf16>
    %c0_3 = arith.constant 0 : index
    %c0_4 = arith.constant 0 : index
    %c0_5 = arith.constant 0 : index
    %3 = vector.load %arg12[%c0_3, %c0_4, %c0_5] : memref<18x33x12xbf16, #tpu.memory_space<vmem>>, vector<1x33x12xbf16>
    tpu.vector_store %arg12[%c0_3, %c0_4, %c0_5], %2 {strides = array<i32>} : memref<18x33x12xbf16, #tpu.memory_space<vmem>>, vector<1x33x12xbf16>,
    %cst_6 = arith.constant 0.000000e+00 : bf16
    %4 = vector.broadcast %cst_6 : bf16 to vector<1x33x12xbf16>
    %c17 = arith.constant 17 : index
    %c0_7 = arith.constant 0 : index
    %c0_8 = arith.constant 0 : index
    %5 = vector.load %arg12[%c17, %c0_7, %c0_8] : memref<18x33x12xbf16, #tpu.memory_space<vmem>>, vector<1x33x12xbf16>
    tpu.vector_store %arg12[%c17, %c0_7, %c0_8], %4 {strides = array<i32>} : memref<18x33x12xbf16, #tpu.memory_space<vmem>>, vector<1x33x12xbf16>,
    %cst_9 = arith.constant 0.000000e+00 : bf16
    %6 = vector.broadcast %cst_9 : bf16 to vector<16x1x12xbf16>
    %c1 = arith.constant 1 : index
    %c15 = arith.constant 15 : index
    %c0_10 = arith.constant 0 : index
    %7 = vector.load %arg12[%c1, %c15, %c0_10] : memref<18x33x12xbf16, #tpu.memory_space<vmem>>, vector<16x1x12xbf16>
    tpu.vector_store %arg12[%c1, %c15, %c0_10], %6 {strides = array<i32>} : memref<18x33x12xbf16, #tpu.memory_space<vmem>>, vector<16x1x12xbf16>,
    %cst_11 = arith.constant 0.000000e+00 : bf16
    %8 = vector.broadcast %cst_11 : bf16 to vector<16x1x12xbf16>
    %c1_12 = arith.constant 1 : index
    %c32 = arith.constant 32 : index
    %c0_13 = arith.constant 0 : index
    %9 = vector.load %arg12[%c1_12, %c32, %c0_13] : memref<18x33x12xbf16, #tpu.memory_space<vmem>>, vector<16x1x12xbf16>
    tpu.vector_store %arg12[%c1_12, %c32, %c0_13], %8 {strides = array<i32>} : memref<18x33x12xbf16, #tpu.memory_space<vmem>>, vector<16x1x12xbf16>,
    %cst_14 = arith.constant -3.389530e+38 : bf16
    %10 = vector.broadcast %cst_14 : bf16 to vector<1x33x4xbf16>
    %c0_15 = arith.constant 0 : index
    %c0_16 = arith.constant 0 : index
    %c0_17 = arith.constant 0 : index
    %11 = vector.load %arg13[%c0_15, %c0_16, %c0_17] : memref<18x33x4xbf16, #tpu.memory_space<vmem>>, vector<1x33x4xbf16>
    tpu.vector_store %arg13[%c0_15, %c0_16, %c0_17], %10 {strides = array<i32>} : memref<18x33x4xbf16, #tpu.memory_space<vmem>>, vector<1x33x4xbf16>,
    %cst_18 = arith.constant -3.389530e+38 : bf16
    %12 = vector.broadcast %cst_18 : bf16 to vector<1x33x4xbf16>
    %c17_19 = arith.constant 17 : index
    %c0_20 = arith.constant 0 : index
    %c0_21 = arith.constant 0 : index
    %13 = vector.load %arg13[%c17_19, %c0_20, %c0_21] : memref<18x33x4xbf16, #tpu.memory_space<vmem>>, vector<1x33x4xbf16>
    tpu.vector_store %arg13[%c17_19, %c0_20, %c0_21], %12 {strides = array<i32>} : memref<18x33x4xbf16, #tpu.memory_space<vmem>>, vector<1x33x4xbf16>,
    %cst_22 = arith.constant -3.389530e+38 : bf16
    %14 = vector.broadcast %cst_22 : bf16 to vector<16x1x4xbf16>
    %c1_23 = arith.constant 1 : index
    %c15_24 = arith.constant 15 : index
    %c0_25 = arith.constant 0 : index
    %15 = vector.load %arg13[%c1_23, %c15_24, %c0_25] : memref<18x33x4xbf16, #tpu.memory_space<vmem>>, vector<16x1x4xbf16>
    tpu.vector_store %arg13[%c1_23, %c15_24, %c0_25], %14 {strides = array<i32>} : memref<18x33x4xbf16, #tpu.memory_space<vmem>>, vector<16x1x4xbf16>,
    %cst_26 = arith.constant -3.389530e+38 : bf16
    %16 = vector.broadcast %cst_26 : bf16 to vector<16x1x4xbf16>
    %c1_27 = arith.constant 1 : index
    %c32_28 = arith.constant 32 : index
    %c0_29 = arith.constant 0 : index
    %17 = vector.load %arg13[%c1_27, %c32_28, %c0_29] : memref<18x33x4xbf16, #tpu.memory_space<vmem>>, vector<16x1x4xbf16>
    tpu.vector_store %arg13[%c1_27, %c32_28, %c0_29], %16 {strides = array<i32>} : memref<18x33x4xbf16, #tpu.memory_space<vmem>>, vector<16x1x4xbf16>,
    %18 = vector.shape_cast %1 : vector<16x16x4xbf16> to vector<256x4xbf16>
    %c0_30 = arith.constant 0 : index
    %c0_31 = arith.constant 0 : index
    %19 = vector.load %arg2[%c0_30, %c0_31] : memref<4x20xbf16, #tpu.memory_space<vmem>>, vector<4x20xbf16>
    %cst_32 = arith.constant dense<0.000000e+00> : vector<256x20xf32>
    %20 = tpu.matmul %18, %19, %cst_32 {dimension_numbers = #tpu.dot_dimension_numbers<[1], [0], [0], [1], [0, 0, 1, 1], [], []>} : vector<256x4xbf16>, vector<4x20xbf16>, vector<256x20xf32> -> vector<256x20xf32>
    %c0_33 = arith.constant 0 : index
    %c0_34 = arith.constant 0 : index
    %21 = vector.load %arg3[%c0_33, %c0_34] : memref<1x20xf32, #tpu.memory_space<vmem>>, vector<1x20xf32>
    %22 = vector.broadcast %21 : vector<1x20xf32> to vector<256x20xf32>
    %23 = arith.mulf %20, %22 : vector<256x20xf32>
    %c0_35 = arith.constant 0 : index
    %c0_36 = arith.constant 0 : index
    %24 = vector.load %arg4[%c0_35, %c0_36] : memref<1x20xf32, #tpu.memory_space<vmem>>, vector<1x20xf32>
    %25 = vector.broadcast %24 : vector<1x20xf32> to vector<256x20xf32>
    %26 = arith.addf %23, %25 : vector<256x20xf32>
    %cst_37 = arith.constant 0.000000e+00 : f32
    %27 = vector.broadcast %cst_37 : f32 to vector<256x20xf32>
    %28 = arith.maximumf %26, %27 : vector<256x20xf32>
    %29 = vector.extract_strided_slice %28 {offsets = [0, 0], sizes = [256, 8], strides = [1, 1]} : vector<256x20xf32> to vector<256x8xf32>
    %30 = vector.extract_strided_slice %28 {offsets = [0, 8], sizes = [256, 12], strides = [1, 1]} : vector<256x20xf32> to vector<256x12xf32>
    %31 = vector.shape_cast %30 : vector<256x12xf32> to vector<16x16x12xf32>
    %32 = arith.truncf %31 : vector<16x16x12xf32> to vector<16x16x12xbf16>
    %c1_38 = arith.constant 1 : index
    %c16 = arith.constant 16 : index
    %c0_39 = arith.constant 0 : index
    %33 = vector.load %arg12[%c1_38, %c16, %c0_39] : memref<18x33x12xbf16, #tpu.memory_space<vmem>>, vector<16x16x12xbf16>
    tpu.vector_store %arg12[%c1_38, %c16, %c0_39], %32 {strides = array<i32>} : memref<18x33x12xbf16, #tpu.memory_space<vmem>>, vector<16x16x12xbf16>,
    %c1_40 = arith.constant 1 : index
    %c16_41 = arith.constant 16 : index
    %c0_42 = arith.constant 0 : index
    %34 = vector.load %arg13[%c1_40, %c16_41, %c0_42] : memref<18x33x4xbf16, #tpu.memory_space<vmem>>, vector<16x16x4xbf16>
    tpu.vector_store %arg13[%c1_40, %c16_41, %c0_42], %1 {strides = array<i32>} : memref<18x33x4xbf16, #tpu.memory_space<vmem>>, vector<16x16x4xbf16>,
    %c0_43 = arith.constant 0 : index
    %c15_44 = arith.constant 15 : index
    %c0_45 = arith.constant 0 : index
    %35 = vector.load %arg12[%c0_43, %c15_44, %c0_45] : memref<18x33x12xbf16, #tpu.memory_space<vmem>>, vector<16x16x12xbf16>
    %36 = vector.shape_cast %35 : vector<16x16x12xbf16> to vector<256x12xbf16>
    %c0_46 = arith.constant 0 : index
    %c0_47 = arith.constant 0 : index
    %c0_48 = arith.constant 0 : index
    %c0_49 = arith.constant 0 : index
    %37 = vector.load %arg5[%c0_46, %c0_47, %c0_48, %c0_49] : memref<3x3x12x16xbf16, #tpu.memory_space<vmem>>, vector<1x1x12x16xbf16>
    %38 = vector.shape_cast %37 : vector<1x1x12x16xbf16> to vector<12x16xbf16>
    %cst_50 = arith.constant dense<0.000000e+00> : vector<256x16xf32>
    %39 = tpu.matmul %36, %38, %cst_50 {dimension_numbers = #tpu.dot_dimension_numbers<[1], [0], [0], [1], [0, 0, 1, 1], [], []>} : vector<256x12xbf16>, vector<12x16xbf16>, vector<256x16xf32> -> vector<256x16xf32>
    %c0_51 = arith.constant 0 : index
    %c16_52 = arith.constant 16 : index
    %c0_53 = arith.constant 0 : index
    %40 = vector.load %arg12[%c0_51, %c16_52, %c0_53] : memref<18x33x12xbf16, #tpu.memory_space<vmem>>, vector<16x16x12xbf16>
    %41 = vector.shape_cast %40 : vector<16x16x12xbf16> to vector<256x12xbf16>
    %c0_54 = arith.constant 0 : index
    %c1_55 = arith.constant 1 : index
    %c0_56 = arith.constant 0 : index
    %c0_57 = arith.constant 0 : index
    %42 = vector.load %arg5[%c0_54, %c1_55, %c0_56, %c0_57] : memref<3x3x12x16xbf16, #tpu.memory_space<vmem>>, vector<1x1x12x16xbf16>
    %43 = vector.shape_cast %42 : vector<1x1x12x16xbf16> to vector<12x16xbf16>
    %cst_58 = arith.constant dense<0.000000e+00> : vector<256x16xf32>
    %44 = tpu.matmul %41, %43, %cst_58 {dimension_numbers = #tpu.dot_dimension_numbers<[1], [0], [0], [1], [0, 0, 1, 1], [], []>} : vector<256x12xbf16>, vector<12x16xbf16>, vector<256x16xf32> -> vector<256x16xf32>
    %45 = arith.addf %39, %44 : vector<256x16xf32>
    %c0_59 = arith.constant 0 : index
    %c17_60 = arith.constant 17 : index
    %c0_61 = arith.constant 0 : index
    %46 = vector.load %arg12[%c0_59, %c17_60, %c0_61] : memref<18x33x12xbf16, #tpu.memory_space<vmem>>, vector<16x16x12xbf16>
    %47 = vector.shape_cast %46 : vector<16x16x12xbf16> to vector<256x12xbf16>
    %c0_62 = arith.constant 0 : index
    %c2 = arith.constant 2 : index
    %c0_63 = arith.constant 0 : index
    %c0_64 = arith.constant 0 : index
    %48 = vector.load %arg5[%c0_62, %c2, %c0_63, %c0_64] : memref<3x3x12x16xbf16, #tpu.memory_space<vmem>>, vector<1x1x12x16xbf16>
    %49 = vector.shape_cast %48 : vector<1x1x12x16xbf16> to vector<12x16xbf16>
    %cst_65 = arith.constant dense<0.000000e+00> : vector<256x16xf32>
    %50 = tpu.matmul %47, %49, %cst_65 {dimension_numbers = #tpu.dot_dimension_numbers<[1], [0], [0], [1], [0, 0, 1, 1], [], []>} : vector<256x12xbf16>, vector<12x16xbf16>, vector<256x16xf32> -> vector<256x16xf32>
    %51 = arith.addf %45, %50 : vector<256x16xf32>
    %c1_66 = arith.constant 1 : index
    %c15_67 = arith.constant 15 : index
    %c0_68 = arith.constant 0 : index
    %52 = vector.load %arg12[%c1_66, %c15_67, %c0_68] : memref<18x33x12xbf16, #tpu.memory_space<vmem>>, vector<16x16x12xbf16>
    %53 = vector.shape_cast %52 : vector<16x16x12xbf16> to vector<256x12xbf16>
    %c1_69 = arith.constant 1 : index
    %c0_70 = arith.constant 0 : index
    %c0_71 = arith.constant 0 : index
    %c0_72 = arith.constant 0 : index
    %54 = vector.load %arg5[%c1_69, %c0_70, %c0_71, %c0_72] : memref<3x3x12x16xbf16, #tpu.memory_space<vmem>>, vector<1x1x12x16xbf16>
    %55 = vector.shape_cast %54 : vector<1x1x12x16xbf16> to vector<12x16xbf16>
    %cst_73 = arith.constant dense<0.000000e+00> : vector<256x16xf32>
    %56 = tpu.matmul %53, %55, %cst_73 {dimension_numbers = #tpu.dot_dimension_numbers<[1], [0], [0], [1], [0, 0, 1, 1], [], []>} : vector<256x12xbf16>, vector<12x16xbf16>, vector<256x16xf32> -> vector<256x16xf32>
    %57 = arith.addf %51, %56 : vector<256x16xf32>
    %c1_74 = arith.constant 1 : index
    %c16_75 = arith.constant 16 : index
    %c0_76 = arith.constant 0 : index
    %58 = vector.load %arg12[%c1_74, %c16_75, %c0_76] : memref<18x33x12xbf16, #tpu.memory_space<vmem>>, vector<16x16x12xbf16>
    %59 = vector.shape_cast %58 : vector<16x16x12xbf16> to vector<256x12xbf16>
    %c1_77 = arith.constant 1 : index
    %c1_78 = arith.constant 1 : index
    %c0_79 = arith.constant 0 : index
    %c0_80 = arith.constant 0 : index
    %60 = vector.load %arg5[%c1_77, %c1_78, %c0_79, %c0_80] : memref<3x3x12x16xbf16, #tpu.memory_space<vmem>>, vector<1x1x12x16xbf16>
    %61 = vector.shape_cast %60 : vector<1x1x12x16xbf16> to vector<12x16xbf16>
    %cst_81 = arith.constant dense<0.000000e+00> : vector<256x16xf32>
    %62 = tpu.matmul %59, %61, %cst_81 {dimension_numbers = #tpu.dot_dimension_numbers<[1], [0], [0], [1], [0, 0, 1, 1], [], []>} : vector<256x12xbf16>, vector<12x16xbf16>, vector<256x16xf32> -> vector<256x16xf32>
    %63 = arith.addf %57, %62 : vector<256x16xf32>
    %c1_82 = arith.constant 1 : index
    %c17_83 = arith.constant 17 : index
    %c0_84 = arith.constant 0 : index
    %64 = vector.load %arg12[%c1_82, %c17_83, %c0_84] : memref<18x33x12xbf16, #tpu.memory_space<vmem>>, vector<16x16x12xbf16>
    %65 = vector.shape_cast %64 : vector<16x16x12xbf16> to vector<256x12xbf16>
    %c1_85 = arith.constant 1 : index
    %c2_86 = arith.constant 2 : index
    %c0_87 = arith.constant 0 : index
    %c0_88 = arith.constant 0 : index
    %66 = vector.load %arg5[%c1_85, %c2_86, %c0_87, %c0_88] : memref<3x3x12x16xbf16, #tpu.memory_space<vmem>>, vector<1x1x12x16xbf16>
    %67 = vector.shape_cast %66 : vector<1x1x12x16xbf16> to vector<12x16xbf16>
    %cst_89 = arith.constant dense<0.000000e+00> : vector<256x16xf32>
    %68 = tpu.matmul %65, %67, %cst_89 {dimension_numbers = #tpu.dot_dimension_numbers<[1], [0], [0], [1], [0, 0, 1, 1], [], []>} : vector<256x12xbf16>, vector<12x16xbf16>, vector<256x16xf32> -> vector<256x16xf32>
    %69 = arith.addf %63, %68 : vector<256x16xf32>
    %c2_90 = arith.constant 2 : index
    %c15_91 = arith.constant 15 : index
    %c0_92 = arith.constant 0 : index
    %70 = vector.load %arg12[%c2_90, %c15_91, %c0_92] : memref<18x33x12xbf16, #tpu.memory_space<vmem>>, vector<16x16x12xbf16>
    %71 = vector.shape_cast %70 : vector<16x16x12xbf16> to vector<256x12xbf16>
    %c2_93 = arith.constant 2 : index
    %c0_94 = arith.constant 0 : index
    %c0_95 = arith.constant 0 : index
    %c0_96 = arith.constant 0 : index
    %72 = vector.load %arg5[%c2_93, %c0_94, %c0_95, %c0_96] : memref<3x3x12x16xbf16, #tpu.memory_space<vmem>>, vector<1x1x12x16xbf16>
    %73 = vector.shape_cast %72 : vector<1x1x12x16xbf16> to vector<12x16xbf16>
    %cst_97 = arith.constant dense<0.000000e+00> : vector<256x16xf32>
    %74 = tpu.matmul %71, %73, %cst_97 {dimension_numbers = #tpu.dot_dimension_numbers<[1], [0], [0], [1], [0, 0, 1, 1], [], []>} : vector<256x12xbf16>, vector<12x16xbf16>, vector<256x16xf32> -> vector<256x16xf32>
    %75 = arith.addf %69, %74 : vector<256x16xf32>
    %c2_98 = arith.constant 2 : index
    %c16_99 = arith.constant 16 : index
    %c0_100 = arith.constant 0 : index
    %76 = vector.load %arg12[%c2_98, %c16_99, %c0_100] : memref<18x33x12xbf16, #tpu.memory_space<vmem>>, vector<16x16x12xbf16>
    %77 = vector.shape_cast %76 : vector<16x16x12xbf16> to vector<256x12xbf16>
    %c2_101 = arith.constant 2 : index
    %c1_102 = arith.constant 1 : index
    %c0_103 = arith.constant 0 : index
    %c0_104 = arith.constant 0 : index
    %78 = vector.load %arg5[%c2_101, %c1_102, %c0_103, %c0_104] : memref<3x3x12x16xbf16, #tpu.memory_space<vmem>>, vector<1x1x12x16xbf16>
    %79 = vector.shape_cast %78 : vector<1x1x12x16xbf16> to vector<12x16xbf16>
    %cst_105 = arith.constant dense<0.000000e+00> : vector<256x16xf32>
    %80 = tpu.matmul %77, %79, %cst_105 {dimension_numbers = #tpu.dot_dimension_numbers<[1], [0], [0], [1], [0, 0, 1, 1], [], []>} : vector<256x12xbf16>, vector<12x16xbf16>, vector<256x16xf32> -> vector<256x16xf32>
    %81 = arith.addf %75, %80 : vector<256x16xf32>
    %c2_106 = arith.constant 2 : index
    %c17_107 = arith.constant 17 : index
    %c0_108 = arith.constant 0 : index
    %82 = vector.load %arg12[%c2_106, %c17_107, %c0_108] : memref<18x33x12xbf16, #tpu.memory_space<vmem>>, vector<16x16x12xbf16>
    %83 = vector.shape_cast %82 : vector<16x16x12xbf16> to vector<256x12xbf16>
    %c2_109 = arith.constant 2 : index
    %c2_110 = arith.constant 2 : index
    %c0_111 = arith.constant 0 : index
    %c0_112 = arith.constant 0 : index
    %84 = vector.load %arg5[%c2_109, %c2_110, %c0_111, %c0_112] : memref<3x3x12x16xbf16, #tpu.memory_space<vmem>>, vector<1x1x12x16xbf16>
    %85 = vector.shape_cast %84 : vector<1x1x12x16xbf16> to vector<12x16xbf16>
    %cst_113 = arith.constant dense<0.000000e+00> : vector<256x16xf32>
    %86 = tpu.matmul %83, %85, %cst_113 {dimension_numbers = #tpu.dot_dimension_numbers<[1], [0], [0], [1], [0, 0, 1, 1], [], []>} : vector<256x12xbf16>, vector<12x16xbf16>, vector<256x16xf32> -> vector<256x16xf32>
    %87 = arith.addf %81, %86 : vector<256x16xf32>
    %c0_114 = arith.constant 0 : index
    %c0_115 = arith.constant 0 : index
    %88 = vector.load %arg6[%c0_114, %c0_115] : memref<1x16xf32, #tpu.memory_space<vmem>>, vector<1x16xf32>
    %89 = vector.broadcast %88 : vector<1x16xf32> to vector<256x16xf32>
    %90 = arith.mulf %87, %89 : vector<256x16xf32>
    %c0_116 = arith.constant 0 : index
    %c0_117 = arith.constant 0 : index
    %91 = vector.load %arg7[%c0_116, %c0_117] : memref<1x16xf32, #tpu.memory_space<vmem>>, vector<1x16xf32>
    %92 = vector.broadcast %91 : vector<1x16xf32> to vector<256x16xf32>
    %93 = arith.addf %90, %92 : vector<256x16xf32>
    %cst_118 = arith.constant 0.000000e+00 : f32
    %94 = vector.broadcast %cst_118 : f32 to vector<256x16xf32>
    %95 = arith.maximumf %93, %94 : vector<256x16xf32>
    %c0_119 = arith.constant 0 : index
    %c15_120 = arith.constant 15 : index
    %c0_121 = arith.constant 0 : index
    %96 = vector.load %arg13[%c0_119, %c15_120, %c0_121] : memref<18x33x4xbf16, #tpu.memory_space<vmem>>, vector<18x16x4xbf16>
    %c0_122 = arith.constant 0 : index
    %c16_123 = arith.constant 16 : index
    %c0_124 = arith.constant 0 : index
    %97 = vector.load %arg13[%c0_122, %c16_123, %c0_124] : memref<18x33x4xbf16, #tpu.memory_space<vmem>>, vector<18x16x4xbf16>
    %98 = arith.maximumf %96, %97 : vector<18x16x4xbf16>
    %c0_125 = arith.constant 0 : index
    %c17_126 = arith.constant 17 : index
    %c0_127 = arith.constant 0 : index
    %99 = vector.load %arg13[%c0_125, %c17_126, %c0_127] : memref<18x33x4xbf16, #tpu.memory_space<vmem>>, vector<18x16x4xbf16>
    %100 = arith.maximumf %98, %99 : vector<18x16x4xbf16>
    %101 = vector.extract_strided_slice %100 {offsets = [0, 0, 0], sizes = [16, 16, 4], strides = [1, 1, 1]} : vector<18x16x4xbf16> to vector<16x16x4xbf16>
    %102 = vector.extract_strided_slice %100 {offsets = [1, 0, 0], sizes = [16, 16, 4], strides = [1, 1, 1]} : vector<18x16x4xbf16> to vector<16x16x4xbf16>
    %103 = arith.maximumf %101, %102 : vector<16x16x4xbf16>
    %104 = vector.extract_strided_slice %100 {offsets = [2, 0, 0], sizes = [16, 16, 4], strides = [1, 1, 1]} : vector<18x16x4xbf16> to vector<16x16x4xbf16>
    %105 = arith.maximumf %103, %104 : vector<16x16x4xbf16>
    %106 = vector.shape_cast %105 : vector<16x16x4xbf16> to vector<256x4xbf16>
    %c0_128 = arith.constant 0 : index
    %c0_129 = arith.constant 0 : index
    %107 = vector.load %arg8[%c0_128, %c0_129] : memref<4x104xbf16, #tpu.memory_space<vmem>>, vector<4x104xbf16>
    %cst_130 = arith.constant dense<0.000000e+00> : vector<256x104xf32>
    %108 = tpu.matmul %106, %107, %cst_130 {dimension_numbers = #tpu.dot_dimension_numbers<[1], [0], [0], [1], [0, 0, 1, 1], [], []>} : vector<256x4xbf16>, vector<4x104xbf16>, vector<256x104xf32> -> vector<256x104xf32>
    %c0_131 = arith.constant 0 : index
    %c0_132 = arith.constant 0 : index
    %109 = vector.load %arg9[%c0_131, %c0_132] : memref<1x104xf32, #tpu.memory_space<vmem>>, vector<1x104xf32>
    %110 = vector.broadcast %109 : vector<1x104xf32> to vector<256x104xf32>
    %111 = arith.mulf %108, %110 : vector<256x104xf32>
    %c0_133 = arith.constant 0 : index
    %c0_134 = arith.constant 0 : index
    %112 = vector.load %arg10[%c0_133, %c0_134] : memref<1x104xf32, #tpu.memory_space<vmem>>, vector<1x104xf32>
    %113 = vector.broadcast %112 : vector<1x104xf32> to vector<256x104xf32>
    %114 = arith.addf %111, %113 : vector<256x104xf32>
    %cst_135 = arith.constant 0.000000e+00 : f32
    %115 = vector.broadcast %cst_135 : f32 to vector<256x104xf32>
    %116 = arith.maximumf %114, %115 : vector<256x104xf32>
    %117 = tpu.concatenate %29, %95, %116 in 1 : vector<256x8xf32>, vector<256x16xf32>, vector<256x104xf32> -> vector<256x128xf32>
    %118 = vector.shape_cast %117 : vector<256x128xf32> to vector<16x16x128xf32>
    %c0_136 = arith.constant 0 : index
    %c0_137 = arith.constant 0 : index
    %c0_138 = arith.constant 0 : index
    %c0_139 = arith.constant 0 : index
    %119 = vector.load %arg11[%c0_136, %c0_137, %c0_138, %c0_139] : memref<1x16x16x128xf32, #tpu.memory_space<vmem>>, vector<1x16x16x128xf32>
    %120 = vector.shape_cast %119 : vector<1x16x16x128xf32> to vector<16x16x128xf32>
    %121 = vector.shape_cast %118 : vector<16x16x128xf32> to vector<1x16x16x128xf32>
    tpu.vector_store %arg11[%c0_136, %c0_137, %c0_138, %c0_139], %121 {strides = array<i32>} : memref<1x16x16x128xf32, #tpu.memory_space<vmem>>, vector<1x16x16x128xf32>,
    return
  }
  func.func @transform_0(%arg0: i32) -> (i32, i32, i32, i32) {
    %c0_i32 = arith.constant 0 : i32
    %c0_i32_0 = arith.constant 0 : i32
    %c0_i32_1 = arith.constant 0 : i32
    %c0_i32_2 = arith.constant 0 : i32
    return %arg0, %c0_i32, %c0_i32_0, %c0_i32_1 : i32, i32, i32, i32
  }
  func.func @transform_1(%arg0: i32) -> (i32, i32) {
    %c0_i32 = arith.constant 0 : i32
    %c0_i32_0 = arith.constant 0 : i32
    %c0_i32_1 = arith.constant 0 : i32
    return %c0_i32, %c0_i32_0 : i32, i32
  }
  func.func @transform_2(%arg0: i32) -> (i32, i32) {
    %c0_i32 = arith.constant 0 : i32
    %c0_i32_0 = arith.constant 0 : i32
    %c0_i32_1 = arith.constant 0 : i32
    return %c0_i32, %c0_i32_0 : i32, i32
  }
  func.func @transform_3(%arg0: i32) -> (i32, i32) {
    %c0_i32 = arith.constant 0 : i32
    %c0_i32_0 = arith.constant 0 : i32
    %c0_i32_1 = arith.constant 0 : i32
    return %c0_i32, %c0_i32_0 : i32, i32
  }
  func.func @transform_4(%arg0: i32) -> (i32, i32, i32, i32) {
    %c0_i32 = arith.constant 0 : i32
    %c0_i32_0 = arith.constant 0 : i32
    %c0_i32_1 = arith.constant 0 : i32
    %c0_i32_2 = arith.constant 0 : i32
    %c0_i32_3 = arith.constant 0 : i32
    return %c0_i32, %c0_i32_0, %c0_i32_1, %c0_i32_2 : i32, i32, i32, i32
  }
  func.func @transform_5(%arg0: i32) -> (i32, i32) {
    %c0_i32 = arith.constant 0 : i32
    %c0_i32_0 = arith.constant 0 : i32
    %c0_i32_1 = arith.constant 0 : i32
    return %c0_i32, %c0_i32_0 : i32, i32
  }
  func.func @transform_6(%arg0: i32) -> (i32, i32) {
    %c0_i32 = arith.constant 0 : i32
    %c0_i32_0 = arith.constant 0 : i32
    %c0_i32_1 = arith.constant 0 : i32
    return %c0_i32, %c0_i32_0 : i32, i32
  }
  func.func @transform_7(%arg0: i32) -> (i32, i32) {
    %c0_i32 = arith.constant 0 : i32
    %c0_i32_0 = arith.constant 0 : i32
    %c0_i32_1 = arith.constant 0 : i32
    return %c0_i32, %c0_i32_0 : i32, i32
  }
  func.func @transform_8(%arg0: i32) -> (i32, i32) {
    %c0_i32 = arith.constant 0 : i32
    %c0_i32_0 = arith.constant 0 : i32
    %c0_i32_1 = arith.constant 0 : i32
    return %c0_i32, %c0_i32_0 : i32, i32
  }
  func.func @transform_9(%arg0: i32) -> (i32, i32) {
    %c0_i32 = arith.constant 0 : i32
    %c0_i32_0 = arith.constant 0 : i32
    %c0_i32_1 = arith.constant 0 : i32
    return %c0_i32, %c0_i32_0 : i32, i32
  }
  func.func @transform_10(%arg0: i32) -> (i32, i32, i32, i32) {
    %c0_i32 = arith.constant 0 : i32
    %c0_i32_0 = arith.constant 0 : i32
    %c0_i32_1 = arith.constant 0 : i32
    %c0_i32_2 = arith.constant 0 : i32
    return %arg0, %c0_i32, %c0_i32_0, %c0_i32_1 : i32, i32, i32, i32
  }
}

</mosaic_0001>

<llo_original>
// kernel: tpu_custom_call.1
$region0: #{tpu_custom_call.1}
  #allocation0 [shape = 'u32[]', space=smem, size = 0x4, offset = 0x4, fixed_abs, tag = 'smem constant byte address 0x4 - core index']
  #allocation1 [shape = 'u32[144,128]{1,0:T(1,128)}', space=vmem, size = 0x12000, scoped, tag = 'internal scratch']
  #allocation2 [shape = 'bf16[18,33,12]{2,1,0:T(8,128)(2,1)}', space=vmem, size = 0x2d000, scoped, tag = 'scratch operand']
  #allocation3 [shape = 'bf16[18,33,4]{2,1,0:T(8,128)(2,1)}', space=vmem, size = 0x2d000, scoped, tag = 'scratch operand']
  %s0 = inlined_call_operand.vmem [shape: bf16[2,16,16,4], index: 0, kind: input, shape index: {}]
  %s1 = inlined_call_operand.vmem [shape: bf16[4,20], index: 1, kind: input, shape index: {}]
  %s2 = inlined_call_operand.vmem [shape: f32[1,20], index: 2, kind: input, shape index: {}]
  %s3 = inlined_call_operand.vmem [shape: f32[1,20], index: 3, kind: input, shape index: {}]
  %s4 = inlined_call_operand.vmem [shape: bf16[3,3,12,16], index: 4, kind: input, shape index: {}]
  %s5 = inlined_call_operand.vmem [shape: f32[1,16], index: 5, kind: input, shape index: {}]
  %s6 = inlined_call_operand.vmem [shape: f32[1,16], index: 6, kind: input, shape index: {}]
  %s7 = inlined_call_operand.vmem [shape: bf16[4,104], index: 7, kind: input, shape index: {}]
  %s8 = inlined_call_operand.vmem [shape: f32[1,104], index: 8, kind: input, shape index: {}]
  %s9 = inlined_call_operand.vmem [shape: f32[1,104], index: 9, kind: input, shape index: {}]
  %s10 = inlined_call_operand.hbm [shape: f32[2,16,16,128], index: 10, kind: output, shape index: {}]
  %s11 = sld [smem:[#allocation0]]
  $region73: #{tpu_custom_call.1} parent=0
    _
  %s13 = ssub.s32 1, %s11
  %s14 = scalar_select 0, %s13, %s11
  $region1: #{tpu_custom_call.1} parent=0
    #allocation4 [shape = 'u8[262144]{0}', space=vmem, size = 0x40000, scoped, tag = 'output window, operand 0']
    #allocation5 [shape = 's32[2]{0}', space=sflag, size = 0x8, scoped, tag = 'scoped memory for tpu_custom_call.1']
    %15 = vsyncpa [#allocation5], 0
    %s16 = scalar_lea.sflag [#allocation5], 1
    %17 = vsyncpa %s16, 0
    loop: start=0, step=1, limit=4
    $region2: #{tpu_custom_call.1} parent=1 // loop_pre_header
      _
    $region3: #{tpu_custom_call.1} parent=1 // loop_header
      %s19 = sphi 0, %s23
      %p20 = scmp.ge.s32.totalorder %s19, 4
      %s29 = sphi 0, %s31
      %s32 = sphi 0, %s29
      %s33 = sphi 0, %s32
      %s49 = sphi 0, %s33
      %s53 = sphi 0, %s53
      %s55 = sphi 0, %s53
      %s56 = sphi 0, %s55
      %s70 = sphi 0, %s56
      %s74 = sphi 0, %s74
      %s76 = sphi 0, %s74
      %s77 = sphi 0, %s76
      %s91 = sphi 0, %s77
      %s95 = sphi 0, %s95
      %s97 = sphi 0, %s95
      %s98 = sphi 0, %s97
      %s112 = sphi 0, %s98
      %s116 = sphi 0, %s116
      %s118 = sphi 0, %s116
      %s119 = sphi 0, %s118
      %s133 = sphi 0, %s119
      %s137 = sphi 0, %s137
      %s139 = sphi 0, %s137
      %s140 = sphi 0, %s139
      %s154 = sphi 0, %s140
      %s158 = sphi 0, %s158
      %s160 = sphi 0, %s158
      %s161 = sphi 0, %s160
      %s175 = sphi 0, %s161
      %s179 = sphi 0, %s179
      %s181 = sphi 0, %s179
      %s182 = sphi 0, %s181
      %s196 = sphi 0, %s182
      %s200 = sphi 0, %s200
      %s202 = sphi 0, %s200
      %s203 = sphi 0, %s202
      %s217 = sphi 0, %s203
      %s221 = sphi 0, %s221
      %s223 = sphi 0, %s221
      %s224 = sphi 0, %s223
      %s238 = sphi 0, %s224
      %s244 = sphi 0, %s246
      %s247 = sphi 0, %s244
      %s248 = sphi 0, %s247
      %s264 = sphi 0, %s248
    $region4: #{tpu_custom_call.1} parent=1 // loop_header_branch
      %22 = sbr.rel (%p20) target = $region8
    $region5: #{tpu_custom_call.1} parent=1 // loop_body
      %s24 = ssub.s32 %s19, 1
      %s25 = ssub.s32 %s19, 2
      %s26 = sadd.s32 %s19, 1
      %s27 = ssub.s32 %s19, %s26
      %p28 = scmp.eq.s32.totalorder %s27, 0
      %s30 = sadd.s32 %s29, 1
      %s31 = scalar_select %p28, %s29, %s30
      %p34 = pneg %p28
      %p35 = scmp.eq.s32.totalorder %s19, 1
      %p36 = por %p34, %p35
      %p37 = scmp.ne.s32.totalorder %s29, %s32
      %p38 = scmp.eq.s32.totalorder %s19, 0
      %p39 = por %p37, %p38
      %p40 = scmp.ne.s32.totalorder %s29, %s32
      %p41 = scmp.eq.s32.totalorder %s24, 1
      %p42 = por %p40, %p41
      %p43 = scmp.ne.s32.totalorder %s32, %s33
      %p44 = scmp.eq.s32.totalorder %s24, 0
      %p45 = por %p43, %p44
      %p46 = scmp.ne.s32.totalorder %s32, %s33
      %p47 = scmp.eq.s32.totalorder %s25, 1
      %p48 = por %p46, %p47
      %p50 = scmp.ne.s32.totalorder %s33, %s49
      %p51 = scmp.eq.s32.totalorder %s25, 0
      %p52 = por %p50, %p51
      %s54 = sadd.s32 %s53, 1
      %p57 = scmp.eq.s32.totalorder %s19, 1
      %p58 = scmp.ne.s32.totalorder %s53, %s55
      %p59 = scmp.eq.s32.totalorder %s19, 0
      %p60 = por %p58, %p59
      %p61 = scmp.ne.s32.totalorder %s53, %s55
      %p62 = scmp.eq.s32.totalorder %s24, 1
      %p63 = por %p61, %p62
      %p64 = scmp.ne.s32.totalorder %s55, %s56
      %p65 = scmp.eq.s32.totalorder %s24, 0
      %p66 = por %p64, %p65
      %p67 = scmp.ne.s32.totalorder %s55, %s56
      %p68 = scmp.eq.s32.totalorder %s25, 1
      %p69 = por %p67, %p68
      %p71 = scmp.ne.s32.totalorder %s56, %s70
      %p72 = scmp.eq.s32.totalorder %s25, 0
      %p73 = por %p71, %p72
      %s75 = sadd.s32 %s74, 1
      %p78 = scmp.eq.s32.totalorder %s19, 1
      %p79 = scmp.ne.s32.totalorder %s74, %s76
      %p80 = scmp.eq.s32.totalorder %s19, 0
      %p81 = por %p79, %p80
      %p82 = scmp.ne.s32.totalorder %s74, %s76
      %p83 = scmp.eq.s32.totalorder %s24, 1
      %p84 = por %p82, %p83
      %p85 = scmp.ne.s32.totalorder %s76, %s77
      %p86 = scmp.eq.s32.totalorder %s24, 0
      %p87 = por %p85, %p86
      %p88 = scmp.ne.s32.totalorder %s76, %s77
      %p89 = scmp.eq.s32.totalorder %s25, 1
      %p90 = por %p88, %p89
      %p92 = scmp.ne.s32.totalorder %s77, %s91
      %p93 = scmp.eq.s32.totalorder %s25, 0
      %p94 = por %p92, %p93
      %s96 = sadd.s32 %s95, 1
      %p99 = scmp.eq.s32.totalorder %s19, 1
      %p100 = scmp.ne.s32.totalorder %s95, %s97
      %p101 = scmp.eq.s32.totalorder %s19, 0
      %p102 = por %p100, %p101
      %p103 = scmp.ne.s32.totalorder %s95, %s97
      %p104 = scmp.eq.s32.totalorder %s24, 1
      %p105 = por %p103, %p104
      %p106 = scmp.ne.s32.totalorder %s97, %s98
      %p107 = scmp.eq.s32.totalorder %s24, 0
      %p108 = por %p106, %p107
      %p109 = scmp.ne.s32.totalorder %s97, %s98
      %p110 = scmp.eq.s32.totalorder %s25, 1
      %p111 = por %p109, %p110
      %p113 = scmp.ne.s32.totalorder %s98, %s112
      %p114 = scmp.eq.s32.totalorder %s25, 0
      %p115 = por %p113, %p114
      %s117 = sadd.s32 %s116, 1
      %p120 = scmp.eq.s32.totalorder %s19, 1
      %p121 = scmp.ne.s32.totalorder %s116, %s118
      %p122 = scmp.eq.s32.totalorder %s19, 0
      %p123 = por %p121, %p122
      %p124 = scmp.ne.s32.totalorder %s116, %s118
      %p125 = scmp.eq.s32.totalorder %s24, 1
      %p126 = por %p124, %p125
      %p127 = scmp.ne.s32.totalorder %s118, %s119
      %p128 = scmp.eq.s32.totalorder %s24, 0
      %p129 = por %p127, %p128
      %p130 = scmp.ne.s32.totalorder %s118, %s119
      %p131 = scmp.eq.s32.totalorder %s25, 1
      %p132 = por %p130, %p131
      %p134 = scmp.ne.s32.totalorder %s119, %s133
      %p135 = scmp.eq.s32.totalorder %s25, 0
      %p136 = por %p134, %p135
      %s138 = sadd.s32 %s137, 1
      %p141 = scmp.eq.s32.totalorder %s19, 1
      %p142 = scmp.ne.s32.totalorder %s137, %s139
      %p143 = scmp.eq.s32.totalorder %s19, 0
      %p144 = por %p142, %p143
      %p145 = scmp.ne.s32.totalorder %s137, %s139
      %p146 = scmp.eq.s32.totalorder %s24, 1
      %p147 = por %p145, %p146
      %p148 = scmp.ne.s32.totalorder %s139, %s140
      %p149 = scmp.eq.s32.totalorder %s24, 0
      %p150 = por %p148, %p149
      %p151 = scmp.ne.s32.totalorder %s139, %s140
      %p152 = scmp.eq.s32.totalorder %s25, 1
      %p153 = por %p151, %p152
      %p155 = scmp.ne.s32.totalorder %s140, %s154
      %p156 = scmp.eq.s32.totalorder %s25, 0
      %p157 = por %p155, %p156
      %s159 = sadd.s32 %s158, 1
      %p162 = scmp.eq.s32.totalorder %s19, 1
      %p163 = scmp.ne.s32.totalorder %s158, %s160
      %p164 = scmp.eq.s32.totalorder %s19, 0
      %p165 = por %p163, %p164
      %p166 = scmp.ne.s32.totalorder %s158, %s160
      %p167 = scmp.eq.s32.totalorder %s24, 1
      %p168 = por %p166, %p167
      %p169 = scmp.ne.s32.totalorder %s160, %s161
      %p170 = scmp.eq.s32.totalorder %s24, 0
      %p171 = por %p169, %p170
      %p172 = scmp.ne.s32.totalorder %s160, %s161
      %p173 = scmp.eq.s32.totalorder %s25, 1
      %p174 = por %p172, %p173
      %p176 = scmp.ne.s32.totalorder %s161, %s175
      %p177 = scmp.eq.s32.totalorder %s25, 0
      %p178 = por %p176, %p177
      %s180 = sadd.s32 %s179, 1
      %p183 = scmp.eq.s32.totalorder %s19, 1
      %p184 = scmp.ne.s32.totalorder %s179, %s181
      %p185 = scmp.eq.s32.totalorder %s19, 0
      %p186 = por %p184, %p185
      %p187 = scmp.ne.s32.totalorder %s179, %s181
      %p188 = scmp.eq.s32.totalorder %s24, 1
      %p189 = por %p187, %p188
      %p190 = scmp.ne.s32.totalorder %s181, %s182
      %p191 = scmp.eq.s32.totalorder %s24, 0
      %p192 = por %p190, %p191
      %p193 = scmp.ne.s32.totalorder %s181, %s182
      %p194 = scmp.eq.s32.totalorder %s25, 1
      %p195 = por %p193, %p194
      %p197 = scmp.ne.s32.totalorder %s182, %s196
      %p198 = scmp.eq.s32.totalorder %s25, 0
      %p199 = por %p197, %p198
      %s201 = sadd.s32 %s200, 1
      %p204 = scmp.eq.s32.totalorder %s19, 1
      %p205 = scmp.ne.s32.totalorder %s200, %s202
      %p206 = scmp.eq.s32.totalorder %s19, 0
      %p207 = por %p205, %p206
      %p208 = scmp.ne.s32.totalorder %s200, %s202
      %p209 = scmp.eq.s32.totalorder %s24, 1
      %p210 = por %p208, %p209
      %p211 = scmp.ne.s32.totalorder %s202, %s203
      %p212 = scmp.eq.s32.totalorder %s24, 0
      %p213 = por %p211, %p212
      %p214 = scmp.ne.s32.totalorder %s202, %s203
      %p215 = scmp.eq.s32.totalorder %s25, 1
      %p216 = por %p214, %p215
      %p218 = scmp.ne.s32.totalorder %s203, %s217
      %p219 = scmp.eq.s32.totalorder %s25, 0
      %p220 = por %p218, %p219
      %s222 = sadd.s32 %s221, 1
      %p225 = scmp.eq.s32.totalorder %s19, 1
      %p226 = scmp.ne.s32.totalorder %s221, %s223
      %p227 = scmp.eq.s32.totalorder %s19, 0
      %p228 = por %p226, %p227
      %p229 = scmp.ne.s32.totalorder %s221, %s223
      %p230 = scmp.eq.s32.totalorder %s24, 1
      %p231 = por %p229, %p230
      %p232 = scmp.ne.s32.totalorder %s223, %s224
      %p233 = scmp.eq.s32.totalorder %s24, 0
      %p234 = por %p232, %p233
      %p235 = scmp.ne.s32.totalorder %s223, %s224
      %p236 = scmp.eq.s32.totalorder %s25, 1
      %p237 = por %p235, %p236
      %p239 = scmp.ne.s32.totalorder %s224, %s238
      %p240 = scmp.eq.s32.totalorder %s25, 0
      %p241 = por %p239, %p240
      %s242 = ssub.s32 %s19, %s26
      %p243 = scmp.eq.s32.totalorder %s242, 0
      %s245 = sadd.s32 %s244, 1
      %s246 = scalar_select %p243, %s244, %s245
      %p249 = pneg %p243
      %p250 = scmp.eq.s32.totalorder %s19, 1
      %p251 = por %p249, %p250
      %p252 = scmp.ne.s32.totalorder %s244, %s247
      %p253 = scmp.eq.s32.totalorder %s19, 0
      %p254 = por %p252, %p253
      %p255 = scmp.ne.s32.totalorder %s244, %s247
      %p256 = scmp.eq.s32.totalorder %s24, 1
      %p257 = por %p255, %p256
      %p258 = scmp.ne.s32.totalorder %s247, %s248
      %p259 = scmp.eq.s32.totalorder %s24, 0
      %p260 = por %p258, %p259
      %p261 = scmp.ne.s32.totalorder %s247, %s248
      %p262 = scmp.eq.s32.totalorder %s25, 1
      %p263 = por %p261, %p262
      %p265 = scmp.ne.s32.totalorder %s248, %s264
      %p266 = scmp.eq.s32.totalorder %s25, 0
      %p267 = por %p265, %p266
      %p268 = scmp.le.s32.totalorder 1, %s19
      %p269 = scmp.lt.s32.totalorder %s19, 3
      %p270 = pnand %p268, %p269
      %p271 = pneg %p270
      // Predicated region
      $region9: #{tpu_custom_call.1} parent=5 // pred_check
        _
      $region10: #{tpu_custom_call.1} parent=5 // pred_check_branch
        %273 = sbr.rel (%p270) target = $region12
      $region11: #{tpu_custom_call.1} parent=5 // pred_region
        %s274 = ssub.s32 %s19, 1
        // Predicated region
        $region13: #{tpu_custom_call.1} parent=11 // pred_check
          %p275 = pneg %p66
        $region14: #{tpu_custom_call.1} parent=11 // pred_check_branch
          %277 = sbr.rel (%p275) target = $region16
        $region15: #{tpu_custom_call.1} parent=11 // pred_region
          _
        $region16: #{tpu_custom_call.1} parent=11 // pred_fallthru
          _
        // Predicated region
        $region17: #{tpu_custom_call.1} parent=11 // pred_check
          %p278 = pneg %p87
        $region18: #{tpu_custom_call.1} parent=11 // pred_check_branch
          %280 = sbr.rel (%p278) target = $region20
        $region19: #{tpu_custom_call.1} parent=11 // pred_region
          _
        $region20: #{tpu_custom_call.1} parent=11 // pred_fallthru
          _
        // Predicated region
        $region21: #{tpu_custom_call.1} parent=11 // pred_check
          %p281 = pneg %p108
        $region22: #{tpu_custom_call.1} parent=11 // pred_check_branch
          %283 = sbr.rel (%p281) target = $region24
        $region23: #{tpu_custom_call.1} parent=11 // pred_region
          _
        $region24: #{tpu_custom_call.1} parent=11 // pred_fallthru
          _
        // Predicated region
        $region25: #{tpu_custom_call.1} parent=11 // pred_check
          %p284 = pneg %p129
        $region26: #{tpu_custom_call.1} parent=11 // pred_check_branch
          %286 = sbr.rel (%p284) target = $region28
        $region27: #{tpu_custom_call.1} parent=11 // pred_region
          _
        $region28: #{tpu_custom_call.1} parent=11 // pred_fallthru
          _
        // Predicated region
        $region29: #{tpu_custom_call.1} parent=11 // pred_check
          %p287 = pneg %p150
        $region30: #{tpu_custom_call.1} parent=11 // pred_check_branch
          %289 = sbr.rel (%p287) target = $region32
        $region31: #{tpu_custom_call.1} parent=11 // pred_region
          _
        $region32: #{tpu_custom_call.1} parent=11 // pred_fallthru
          _
        // Predicated region
        $region33: #{tpu_custom_call.1} parent=11 // pred_check
          %p290 = pneg %p171
        $region34: #{tpu_custom_call.1} parent=11 // pred_check_branch
          %292 = sbr.rel (%p290) target = $region36
        $region35: #{tpu_custom_call.1} parent=11 // pred_region
          _
        $region36: #{tpu_custom_call.1} parent=11 // pred_fallthru
          _
        // Predicated region
        $region37: #{tpu_custom_call.1} parent=11 // pred_check
          %p293 = pneg %p192
        $region38: #{tpu_custom_call.1} parent=11 // pred_check_branch
          %295 = sbr.rel (%p293) target = $region40
        $region39: #{tpu_custom_call.1} parent=11 // pred_region
          _
        $region40: #{tpu_custom_call.1} parent=11 // pred_fallthru
          _
        // Predicated region
        $region41: #{tpu_custom_call.1} parent=11 // pred_check
          %p296 = pneg %p213
        $region42: #{tpu_custom_call.1} parent=11 // pred_check_branch
          %298 = sbr.rel (%p296) target = $region44
        $region43: #{tpu_custom_call.1} parent=11 // pred_region
          _
        $region44: #{tpu_custom_call.1} parent=11 // pred_fallthru
          _
        // Predicated region
        $region45: #{tpu_custom_call.1} parent=11 // pred_check
          %p299 = pneg %p234
        $region46: #{tpu_custom_call.1} parent=11 // pred_check_branch
          %301 = sbr.rel (%p299) target = $region48
        $region47: #{tpu_custom_call.1} parent=11 // pred_region
          _
        $region48: #{tpu_custom_call.1} parent=11 // pred_fallthru
          _
      $region12: #{tpu_custom_call.1} parent=5 // pred_fallthru
        _
      %p302 = scmp.lt.s32.totalorder %s19, 2
      // Predicated region
      $region49: #{tpu_custom_call.1} parent=5 // pred_check
        %p303 = pneg %p302
      $region50: #{tpu_custom_call.1} parent=5 // pred_check_branch
        %305 = sbr.rel (%p303) target = $region52
      $region51: #{tpu_custom_call.1} parent=5 // pred_region
        // Predicated region
        $region53: #{tpu_custom_call.1} parent=51 // pred_check
          %p306 = pneg %p39
        $region54: #{tpu_custom_call.1} parent=51 // pred_check_branch
          %308 = sbr.rel (%p306) target = $region56
        $region55: #{tpu_custom_call.1} parent=51 // pred_region
          %p309 = scmp.lt.s32.totalorder %s19, 1
          %s310 = scalar_select %p309, %s19, 1
          %s311 = smul.addr %s310, 32
          %s312 = smul.addr %s311, 4
          %s313 = scalar_lea.vmem %s0, %s312
        $region56: #{tpu_custom_call.1} parent=51 // pred_fallthru
          _
      $region52: #{tpu_custom_call.1} parent=5 // pred_fallthru
        _
      %p314 = scmp.le.s32.totalorder 1, %s19
      %p315 = scmp.lt.s32.totalorder %s19, 3
      %p316 = pnand %p314, %p315
      %p317 = pneg %p316
      // Predicated region
      $region57: #{tpu_custom_call.1} parent=5 // pred_check
        _
      $region58: #{tpu_custom_call.1} parent=5 // pred_check_branch
        %319 = sbr.rel (%p316) target = $region60
      $region59: #{tpu_custom_call.1} parent=5 // pred_region
        %s320 = ssub.s32 %s19, 1
        %p321 = scmp.lt.s32.totalorder %s24, 1
        %s322 = scalar_select %p321, %s24, 1
        %s323 = smul.addr %s322, 32
        %s324 = smul.addr %s323, 4
        %s325 = scalar_lea.vmem %s0, %s324
        %p326 = pneg %p45
        %p327 = pneg %p42
        %p328 = pneg %p66
        %p329 = pneg %p63
        %p330 = pneg %p87
        %p331 = pneg %p84
        %p332 = pneg %p108
        %p333 = pneg %p105
        %p334 = pneg %p129
        %p335 = pneg %p126
        %p336 = pneg %p150
        %p337 = pneg %p147
        %p338 = pneg %p171
        %p339 = pneg %p168
        %p340 = pneg %p192
        %p341 = pneg %p189
        %p342 = pneg %p213
        %p343 = pneg %p210
        %p344 = pneg %p234
        %p345 = pneg %p231
        %p346 = pneg %p260
        %p347 = pneg %p257
        %s348 = sand.u32 %s247, 1
        %s349 = scalar_lea.sflag [#allocation5], %s348
        %s350 = sand.u32 %s247, 1
        %s351 = smul.addr %s350, 256
        %s352 = scalar_lea.vmem [#allocation4], %s351
        %p353 = scmp.lt.s32.totalorder %s24, 1
        %s354 = scalar_select %p353, %s24, 1
        %s355 = smul.addr %s354, 32
        %s356 = smul.addr %s355, 4
        %s357 = scalar_lea.vmem %s0, %s356
        %v360 = vld [vmem:[%s357] sm:$0xf]
        %v361 = vld [vmem:[%s357 + $0x4] sm:$0xf]
        %v362 = vld [vmem:[%s357 + $0x8] sm:$0xf]
        %v363 = vld [vmem:[%s357 + $0xc] sm:$0xf]
        %v364 = vld [vmem:[%s357 + $0x10] sm:$0xf]
        %v365 = vld [vmem:[%s357 + $0x14] sm:$0xf]
        %v366 = vld [vmem:[%s357 + $0x18] sm:$0xf]
        %v367 = vld [vmem:[%s357 + $0x1c] sm:$0xf]
        %v368 = vld [vmem:[%s357 + $0x20] sm:$0xf]
        %v369 = vld [vmem:[%s357 + $0x24] sm:$0xf]
        %v370 = vld [vmem:[%s357 + $0x28] sm:$0xf]
        %v371 = vld [vmem:[%s357 + $0x2c] sm:$0xf]
        %v372 = vld [vmem:[%s357 + $0x30] sm:$0xf]
        %v373 = vld [vmem:[%s357 + $0x34] sm:$0xf]
        %v374 = vld [vmem:[%s357 + $0x38] sm:$0xf]
        %v375 = vld [vmem:[%s357 + $0x3c] sm:$0xf]
        %v376 = vld [vmem:[%s357 + $0x40] sm:$0xf]
        %v377 = vld [vmem:[%s357 + $0x44] sm:$0xf]
        %v378 = vld [vmem:[%s357 + $0x48] sm:$0xf]
        %v379 = vld [vmem:[%s357 + $0x4c] sm:$0xf]
        %v380 = vld [vmem:[%s357 + $0x50] sm:$0xf]
        %v381 = vld [vmem:[%s357 + $0x54] sm:$0xf]
        %v382 = vld [vmem:[%s357 + $0x58] sm:$0xf]
        %v383 = vld [vmem:[%s357 + $0x5c] sm:$0xf]
        %v384 = vld [vmem:[%s357 + $0x60] sm:$0xf]
        %v385 = vld [vmem:[%s357 + $0x64] sm:$0xf]
        %v386 = vld [vmem:[%s357 + $0x68] sm:$0xf]
        %v387 = vld [vmem:[%s357 + $0x6c] sm:$0xf]
        %v388 = vld [vmem:[%s357 + $0x70] sm:$0xf]
        %v389 = vld [vmem:[%s357 + $0x74] sm:$0xf]
        %v390 = vld [vmem:[%s357 + $0x78] sm:$0xf]
        %v391 = vld [vmem:[%s357 + $0x7c] sm:$0xf]
        %vm392 = vcmask 93184
        %393 = vst.msk [vmem:[#allocation2] sm:$0xf] %vm392, 0
        %394 = vst.msk [vmem:[#allocation2 + $0x4] sm:$0xf] %vm392, 0
        %395 = vst.msk [vmem:[#allocation2 + $0x8] sm:$0xf] %vm392, 0
        %396 = vst.msk [vmem:[#allocation2 + $0xc] sm:$0xf] %vm392, 0
        %vm397 = vcmask 90112
        %vm398 = vsmask.f32 256
        %vm399 = vmand %vm397, %vm398
        %v400 = vld [vmem:[#allocation2 + $0x10] sm:$0x1]
        %v401 = vsel %vm399, 0, %v400
        %402 = vst [vmem:[#allocation2 + $0x10] sm:$0x1] %v401
        %s403 = scalar_lea.vmem [#allocation2], 340
        %404 = vst.msk [vmem:[%s403] sm:$0xf] %vm392, 0
        %405 = vst.msk [vmem:[%s403 + $0x4] sm:$0xf] %vm392, 0
        %406 = vst.msk [vmem:[%s403 + $0x8] sm:$0xf] %vm392, 0
        %407 = vst.msk [vmem:[%s403 + $0xc] sm:$0xf] %vm392, 0
        %v408 = vld [vmem:[%s403 + $0x10] sm:$0x1]
        %v409 = vsel %vm399, 0, %v408
        %410 = vst [vmem:[%s403 + $0x10] sm:$0x1] %v409
        %s411 = scalar_lea.vmem [#allocation2], 20
        %vm412 = vcmask 93187
        %vm413 = vsmask.f32 7950
        %vm414 = vmand %vm412, %vm413
        %v415 = vld [vmem:[%s411 + $0x4] sm:$0x8]
        %v416 = vsel %vm414, 0, %v415
        %417 = vst [vmem:[%s411 + $0x4] sm:$0x8] %v416
        %v418 = vld [vmem:[%s411 + $0x18] sm:$0x8]
        %v419 = vsel %vm414, 0, %v418
        %420 = vst [vmem:[%s411 + $0x18] sm:$0x8] %v419
        %v421 = vld [vmem:[%s411 + $0x2c] sm:$0x8]
        %v422 = vsel %vm414, 0, %v421
        %423 = vst [vmem:[%s411 + $0x2c] sm:$0x8] %v422
        %v424 = vld [vmem:[%s411 + $0x40] sm:$0x8]
        %v425 = vsel %vm414, 0, %v424
        %426 = vst [vmem:[%s411 + $0x40] sm:$0x8] %v425
        %v427 = vld [vmem:[%s411 + $0x54] sm:$0x8]
        %v428 = vsel %vm414, 0, %v427
        %429 = vst [vmem:[%s411 + $0x54] sm:$0x8] %v428
        %v430 = vld [vmem:[%s411 + $0x68] sm:$0x8]
        %v431 = vsel %vm414, 0, %v430
        %432 = vst [vmem:[%s411 + $0x68] sm:$0x8] %v431
        %v433 = vld [vmem:[%s411 + $0x7c] sm:$0x8]
        %v434 = vsel %vm414, 0, %v433
        %435 = vst [vmem:[%s411 + $0x7c] sm:$0x8] %v434
        %v436 = vld [vmem:[%s411 + $0x90] sm:$0x8]
        %v437 = vsel %vm414, 0, %v436
        %438 = vst [vmem:[%s411 + $0x90] sm:$0x8] %v437
        %v439 = vld [vmem:[%s411 + $0xa4] sm:$0x8]
        %v440 = vsel %vm414, 0, %v439
        %441 = vst [vmem:[%s411 + $0xa4] sm:$0x8] %v440
        %v442 = vld [vmem:[%s411 + $0xb8] sm:$0x8]
        %v443 = vsel %vm414, 0, %v442
        %444 = vst [vmem:[%s411 + $0xb8] sm:$0x8] %v443
        %v445 = vld [vmem:[%s411 + $0xcc] sm:$0x8]
        %v446 = vsel %vm414, 0, %v445
        %447 = vst [vmem:[%s411 + $0xcc] sm:$0x8] %v446
        %v448 = vld [vmem:[%s411 + $0xe0] sm:$0x8]
        %v449 = vsel %vm414, 0, %v448
        %450 = vst [vmem:[%s411 + $0xe0] sm:$0x8] %v449
        %v451 = vld [vmem:[%s411 + $0xf4] sm:$0x8]
        %v452 = vsel %vm414, 0, %v451
        %453 = vst [vmem:[%s411 + $0xf4] sm:$0x8] %v452
        %v454 = vld [vmem:[%s411 + $0x108] sm:$0x8]
        %v455 = vsel %vm414, 0, %v454
        %456 = vst [vmem:[%s411 + $0x108] sm:$0x8] %v455
        %v457 = vld [vmem:[%s411 + $0x11c] sm:$0x8]
        %v458 = vsel %vm414, 0, %v457
        %459 = vst [vmem:[%s411 + $0x11c] sm:$0x8] %v458
        %v460 = vld [vmem:[%s411 + $0x130] sm:$0x8]
        %v461 = vsel %vm414, 0, %v460
        %462 = vst [vmem:[%s411 + $0x130] sm:$0x8] %v461
        %v463 = vld [vmem:[%s411 + $0x10] sm:$0x1]
        %v464 = vsel %vm399, 0, %v463
        %465 = vst [vmem:[%s411 + $0x10] sm:$0x1] %v464
        %v466 = vld [vmem:[%s411 + $0x24] sm:$0x1]
        %v467 = vsel %vm399, 0, %v466
        %468 = vst [vmem:[%s411 + $0x24] sm:$0x1] %v467
        %v469 = vld [vmem:[%s411 + $0x38] sm:$0x1]
        %v470 = vsel %vm399, 0, %v469
        %471 = vst [vmem:[%s411 + $0x38] sm:$0x1] %v470
        %v472 = vld [vmem:[%s411 + $0x4c] sm:$0x1]
        %v473 = vsel %vm399, 0, %v472
        %474 = vst [vmem:[%s411 + $0x4c] sm:$0x1] %v473
        %v475 = vld [vmem:[%s411 + $0x60] sm:$0x1]
        %v476 = vsel %vm399, 0, %v475
        %477 = vst [vmem:[%s411 + $0x60] sm:$0x1] %v476
        %v478 = vld [vmem:[%s411 + $0x74] sm:$0x1]
        %v479 = vsel %vm399, 0, %v478
        %480 = vst [vmem:[%s411 + $0x74] sm:$0x1] %v479
        %v481 = vld [vmem:[%s411 + $0x88] sm:$0x1]
        %v482 = vsel %vm399, 0, %v481
        %483 = vst [vmem:[%s411 + $0x88] sm:$0x1] %v482
        %v484 = vld [vmem:[%s411 + $0x9c] sm:$0x1]
        %v485 = vsel %vm399, 0, %v484
        %486 = vst [vmem:[%s411 + $0x9c] sm:$0x1] %v485
        %v487 = vld [vmem:[%s411 + $0xb0] sm:$0x1]
        %v488 = vsel %vm399, 0, %v487
        %489 = vst [vmem:[%s411 + $0xb0] sm:$0x1] %v488
        %v490 = vld [vmem:[%s411 + $0xc4] sm:$0x1]
        %v491 = vsel %vm399, 0, %v490
        %492 = vst [vmem:[%s411 + $0xc4] sm:$0x1] %v491
        %v493 = vld [vmem:[%s411 + $0xd8] sm:$0x1]
        %v494 = vsel %vm399, 0, %v493
        %495 = vst [vmem:[%s411 + $0xd8] sm:$0x1] %v494
        %v496 = vld [vmem:[%s411 + $0xec] sm:$0x1]
        %v497 = vsel %vm399, 0, %v496
        %498 = vst [vmem:[%s411 + $0xec] sm:$0x1] %v497
        %v499 = vld [vmem:[%s411 + $0x100] sm:$0x1]
        %v500 = vsel %vm399, 0, %v499
        %501 = vst [vmem:[%s411 + $0x100] sm:$0x1] %v500
        %v502 = vld [vmem:[%s411 + $0x114] sm:$0x1]
        %v503 = vsel %vm399, 0, %v502
        %504 = vst [vmem:[%s411 + $0x114] sm:$0x1] %v503
        %v505 = vld [vmem:[%s411 + $0x128] sm:$0x1]
        %v506 = vsel %vm399, 0, %v505
        %507 = vst [vmem:[%s411 + $0x128] sm:$0x1] %v506
        %v508 = vld [vmem:[%s411 + $0x13c] sm:$0x1]
        %v509 = vsel %vm399, 0, %v508
        %510 = vst [vmem:[%s411 + $0x13c] sm:$0x1] %v509
        %vm511 = vcmask 27648
        %512 = vst.msk [vmem:[#allocation3] sm:$0xf] %vm511, 4286578559
        %513 = vst.msk [vmem:[#allocation3 + $0x4] sm:$0xf] %vm511, 4286578559
        %514 = vst.msk [vmem:[#allocation3 + $0x8] sm:$0xf] %vm511, 4286578559
        %515 = vst.msk [vmem:[#allocation3 + $0xc] sm:$0xf] %vm511, 4286578559
        %vm516 = vcmask 24576
        %vm517 = vmand %vm516, %vm398
        %v518 = vld [vmem:[#allocation3 + $0x10] sm:$0x1]
        %v519 = vsel %vm517, 4286578559, %v518
        %520 = vst [vmem:[#allocation3 + $0x10] sm:$0x1] %v519
        %s521 = scalar_lea.vmem [#allocation3], 340
        %522 = vst.msk [vmem:[%s521] sm:$0xf] %vm511, 4286578559
        %523 = vst.msk [vmem:[%s521 + $0x4] sm:$0xf] %vm511, 4286578559
        %524 = vst.msk [vmem:[%s521 + $0x8] sm:$0xf] %vm511, 4286578559
        %525 = vst.msk [vmem:[%s521 + $0xc] sm:$0xf] %vm511, 4286578559
        %v526 = vld [vmem:[%s521 + $0x10] sm:$0x1]
        %v527 = vsel %vm517, 4286578559, %v526
        %528 = vst [vmem:[%s521 + $0x10] sm:$0x1] %v527
        %s529 = scalar_lea.vmem [#allocation3], 20
        %vm530 = vcmask 27651
        %vm531 = vmand %vm530, %vm413
        %v532 = vld [vmem:[%s529 + $0x4] sm:$0x8]
        %v533 = vsel %vm531, 4286578559, %v532
        %534 = vst [vmem:[%s529 + $0x4] sm:$0x8] %v533
        %v535 = vld [vmem:[%s529 + $0x18] sm:$0x8]
        %v536 = vsel %vm531, 4286578559, %v535
        %537 = vst [vmem:[%s529 + $0x18] sm:$0x8] %v536
        %v538 = vld [vmem:[%s529 + $0x2c] sm:$0x8]
        %v539 = vsel %vm531, 4286578559, %v538
        %540 = vst [vmem:[%s529 + $0x2c] sm:$0x8] %v539
        %v541 = vld [vmem:[%s529 + $0x40] sm:$0x8]
        %v542 = vsel %vm531, 4286578559, %v541
        %543 = vst [vmem:[%s529 + $0x40] sm:$0x8] %v542
        %v544 = vld [vmem:[%s529 + $0x54] sm:$0x8]
        %v545 = vsel %vm531, 4286578559, %v544
        %546 = vst [vmem:[%s529 + $0x54] sm:$0x8] %v545
        %v547 = vld [vmem:[%s529 + $0x68] sm:$0x8]
        %v548 = vsel %vm531, 4286578559, %v547
        %549 = vst [vmem:[%s529 + $0x68] sm:$0x8] %v548
        %v550 = vld [vmem:[%s529 + $0x7c] sm:$0x8]
        %v551 = vsel %vm531, 4286578559, %v550
        %552 = vst [vmem:[%s529 + $0x7c] sm:$0x8] %v551
        %v553 = vld [vmem:[%s529 + $0x90] sm:$0x8]
        %v554 = vsel %vm531, 4286578559, %v553
        %555 = vst [vmem:[%s529 + $0x90] sm:$0x8] %v554
        %v556 = vld [vmem:[%s529 + $0xa4] sm:$0x8]
        %v557 = vsel %vm531, 4286578559, %v556
        %558 = vst [vmem:[%s529 + $0xa4] sm:$0x8] %v557
        %v559 = vld [vmem:[%s529 + $0xb8] sm:$0x8]
        %v560 = vsel %vm531, 4286578559, %v559
        %561 = vst [vmem:[%s529 + $0xb8] sm:$0x8] %v560
        %v562 = vld [vmem:[%s529 + $0xcc] sm:$0x8]
        %v563 = vsel %vm531, 4286578559, %v562
        %564 = vst [vmem:[%s529 + $0xcc] sm:$0x8] %v563
        %v565 = vld [vmem:[%s529 + $0xe0] sm:$0x8]
        %v566 = vsel %vm531, 4286578559, %v565
        %567 = vst [vmem:[%s529 + $0xe0] sm:$0x8] %v566
        %v568 = vld [vmem:[%s529 + $0xf4] sm:$0x8]
        %v569 = vsel %vm531, 4286578559, %v568
        %570 = vst [vmem:[%s529 + $0xf4] sm:$0x8] %v569
        %v571 = vld [vmem:[%s529 + $0x108] sm:$0x8]
        %v572 = vsel %vm531, 4286578559, %v571
        %573 = vst [vmem:[%s529 + $0x108] sm:$0x8] %v572
        %v574 = vld [vmem:[%s529 + $0x11c] sm:$0x8]
        %v575 = vsel %vm531, 4286578559, %v574
        %576 = vst [vmem:[%s529 + $0x11c] sm:$0x8] %v575
        %v577 = vld [vmem:[%s529 + $0x130] sm:$0x8]
        %v578 = vsel %vm531, 4286578559, %v577
        %579 = vst [vmem:[%s529 + $0x130] sm:$0x8] %v578
        %v580 = vld [vmem:[%s529 + $0x10] sm:$0x1]
        %v581 = vsel %vm517, 4286578559, %v580
        %582 = vst [vmem:[%s529 + $0x10] sm:$0x1] %v581
        %v583 = vld [vmem:[%s529 + $0x24] sm:$0x1]
        %v584 = vsel %vm517, 4286578559, %v583
        %585 = vst [vmem:[%s529 + $0x24] sm:$0x1] %v584
        %v586 = vld [vmem:[%s529 + $0x38] sm:$0x1]
        %v587 = vsel %vm517, 4286578559, %v586
        %588 = vst [vmem:[%s529 + $0x38] sm:$0x1] %v587
        %v589 = vld [vmem:[%s529 + $0x4c] sm:$0x1]
        %v590 = vsel %vm517, 4286578559, %v589
        %591 = vst [vmem:[%s529 + $0x4c] sm:$0x1] %v590
        %v592 = vld [vmem:[%s529 + $0x60] sm:$0x1]
        %v593 = vsel %vm517, 4286578559, %v592
        %594 = vst [vmem:[%s529 + $0x60] sm:$0x1] %v593
        %v595 = vld [vmem:[%s529 + $0x74] sm:$0x1]
        %v596 = vsel %vm517, 4286578559, %v595
        %597 = vst [vmem:[%s529 + $0x74] sm:$0x1] %v596
        %v598 = vld [vmem:[%s529 + $0x88] sm:$0x1]
        %v599 = vsel %vm517, 4286578559, %v598
        %600 = vst [vmem:[%s529 + $0x88] sm:$0x1] %v599
        %v601 = vld [vmem:[%s529 + $0x9c] sm:$0x1]
        %v602 = vsel %vm517, 4286578559, %v601
        %603 = vst [vmem:[%s529 + $0x9c] sm:$0x1] %v602
        %v604 = vld [vmem:[%s529 + $0xb0] sm:$0x1]
        %v605 = vsel %vm517, 4286578559, %v604
        %606 = vst [vmem:[%s529 + $0xb0] sm:$0x1] %v605
        %v607 = vld [vmem:[%s529 + $0xc4] sm:$0x1]
        %v608 = vsel %vm517, 4286578559, %v607
        %609 = vst [vmem:[%s529 + $0xc4] sm:$0x1] %v608
        %v610 = vld [vmem:[%s529 + $0xd8] sm:$0x1]
        %v611 = vsel %vm517, 4286578559, %v610
        %612 = vst [vmem:[%s529 + $0xd8] sm:$0x1] %v611
        %v613 = vld [vmem:[%s529 + $0xec] sm:$0x1]
        %v614 = vsel %vm517, 4286578559, %v613
        %615 = vst [vmem:[%s529 + $0xec] sm:$0x1] %v614
        %v616 = vld [vmem:[%s529 + $0x100] sm:$0x1]
        %v617 = vsel %vm517, 4286578559, %v616
        %618 = vst [vmem:[%s529 + $0x100] sm:$0x1] %v617
        %v619 = vld [vmem:[%s529 + $0x114] sm:$0x1]
        %v620 = vsel %vm517, 4286578559, %v619
        %621 = vst [vmem:[%s529 + $0x114] sm:$0x1] %v620
        %v622 = vld [vmem:[%s529 + $0x128] sm:$0x1]
        %v623 = vsel %vm517, 4286578559, %v622
        %624 = vst [vmem:[%s529 + $0x128] sm:$0x1] %v623
        %v625 = vld [vmem:[%s529 + $0x13c] sm:$0x1]
        %v626 = vsel %vm517, 4286578559, %v625
        %627 = vst [vmem:[%s529 + $0x13c] sm:$0x1] %v626
        %v628 = vld [vmem:[%s1] sm:$0x3]
        %v661 = vunpack.c.l.b16 %v360
        %v662 = vunpack.c.l.b16 %v361
        %v663 = vunpack.c.l.b16 %v362
        %v664 = vunpack.c.l.b16 %v363
        %v665 = vunpack.c.l.b16 %v364
        %v666 = vunpack.c.l.b16 %v365
        %v667 = vunpack.c.l.b16 %v366
        %v668 = vunpack.c.l.b16 %v367
        %v669 = vunpack.c.l.b16 %v368
        %v670 = vunpack.c.l.b16 %v369
        %v671 = vunpack.c.l.b16 %v370
        %v672 = vunpack.c.l.b16 %v371
        %v673 = vunpack.c.l.b16 %v372
        %v674 = vunpack.c.l.b16 %v373
        %v675 = vunpack.c.l.b16 %v374
        %v676 = vunpack.c.l.b16 %v375
        %v677 = vunpack.c.l.b16 %v376
        %v678 = vunpack.c.l.b16 %v377
        %v679 = vunpack.c.l.b16 %v378
        %v680 = vunpack.c.l.b16 %v379
        %v681 = vunpack.c.l.b16 %v380
        %v682 = vunpack.c.l.b16 %v381
        %v683 = vunpack.c.l.b16 %v382
        %v684 = vunpack.c.l.b16 %v383
        %v685 = vunpack.c.l.b16 %v384
        %v686 = vunpack.c.l.b16 %v385
        %v687 = vunpack.c.l.b16 %v386
        %v688 = vunpack.c.l.b16 %v387
        %v689 = vunpack.c.l.b16 %v388
        %v690 = vunpack.c.l.b16 %v389
        %v691 = vunpack.c.l.b16 %v390
        %v692 = vunpack.c.l.b16 %v391
        %v693 = vpack.c.b16 %v662, %v661
        %v694 = vpack.c.b16 %v664, %v663
        %v695 = vpack.c.b16 %v666, %v665
        %v696 = vpack.c.b16 %v668, %v667
        %v697 = vpack.c.b16 %v670, %v669
        %v698 = vpack.c.b16 %v672, %v671
        %v699 = vpack.c.b16 %v674, %v673
        %v700 = vpack.c.b16 %v676, %v675
        %v701 = vpack.c.b16 %v678, %v677
        %v702 = vpack.c.b16 %v680, %v679
        %v703 = vpack.c.b16 %v682, %v681
        %v704 = vpack.c.b16 %v684, %v683
        %v705 = vpack.c.b16 %v686, %v685
        %v706 = vpack.c.b16 %v688, %v687
        %v707 = vpack.c.b16 %v690, %v689
        %v708 = vpack.c.b16 %v692, %v691
        %vm709 = vcmask 31744
        %v711 = vsel %vm709, %v693, 0
        %v714 = vsel %vm709, %v694, 0
        %v717 = vsel %vm709, %v695, 0
        %v720 = vsel %vm709, %v696, 0
        %v723 = vsel %vm709, %v697, 0
        %v726 = vsel %vm709, %v698, 0
        %v729 = vsel %vm709, %v699, 0
        %v732 = vsel %vm709, %v700, 0
        %v735 = vsel %vm709, %v701, 0
        %v738 = vsel %vm709, %v702, 0
        %v741 = vsel %vm709, %v703, 0
        %v744 = vsel %vm709, %v704, 0
        %v747 = vsel %vm709, %v705, 0
        %v750 = vsel %vm709, %v706, 0
        %v753 = vsel %vm709, %v707, 0
        %v756 = vsel %vm709, %v708, 0
        %vm758 = vcmask 1041408
        %v760 = vsel %vm758, %v628, 0
        %762 = vmatprep.subr.bf16.mxu0 0
        %763 = vmatpush1.bf16.msra.mxu0 %v760
        %764 = vmatprep.subr.bf16.mxu0 0
        %765 = vmatpush1.bf16.msra.mxu0 0
        %766 = vmatprep.subr.bf16.mxu0 0
        %767 = vmatpush1.bf16.msra.mxu0 0
        %768 = vmatprep.subr.bf16.mxu0 0
        %769 = vmatpush1.bf16.msra.mxu0 0
        %770 = vmatprep.subr.bf16.mxu0 0
        %771 = vmatpush1.bf16.msra.mxu0 0
        %772 = vmatprep.subr.bf16.mxu0 0
        %773 = vmatpush1.bf16.msra.mxu0 0
        %774 = vmatprep.subr.bf16.mxu0 0
        %775 = vmatpush1.bf16.msra.mxu0 0
        %776 = vmatprep.subr.bf16.mxu0 0
        %777 = vmatpush1.bf16.msra.mxu0 0
        %778 = vmatprep.subr.bf16.mxu0 0
        %779 = vmatpush1.bf16.msra.mxu0 0
        %780 = vmatprep.subr.bf16.mxu0 0
        %781 = vmatpush1.bf16.msra.mxu0 0
        %782 = vmatprep.subr.bf16.mxu0 0
        %783 = vmatpush1.bf16.msra.mxu0 0
        %784 = vmatprep.subr.bf16.mxu0 0
        %785 = vmatpush1.bf16.msra.mxu0 0
        %786 = vmatprep.subr.bf16.mxu0 0
        %787 = vmatpush1.bf16.msra.mxu0 0
        %788 = vmatprep.subr.bf16.mxu0 0
        %789 = vmatpush1.bf16.msra.mxu0 0
        %790 = vmatprep.subr.bf16.mxu0 0
        %791 = vmatpush1.bf16.msra.mxu0 0
        %792 = vmatprep.subr.bf16.mxu0 0
        %793 = vmatpush1.bf16.msra.mxu0 0
        %794 = vmatprep.mubr.bf16.mxu0 0
        %795 = vmatmul.mubr.bf16.gmra.mrb[0].mxu0 %v711
        %v796 = vpop.f32.mrb[0].mxu0
        %v797 = vadd.f32 0.0, %v796
        %v798 = vpop.f32.mrb[0].mxu0
        %v799 = vpop.f32.mrb[0].mxu0
        %v800 = vadd.f32 0.0, %v799
        %v801 = vpop.f32.mrb[0].mxu0
        %802 = vmatprep.mubr.bf16.mxu0 0
        %803 = vmatmul.mubr.bf16.gmra.mrb[0].mxu0 %v714
        %v804 = vpop.f32.mrb[0].mxu0
        %v805 = vadd.f32 0.0, %v804
        %v806 = vpop.f32.mrb[0].mxu0
        %v807 = vpop.f32.mrb[0].mxu0
        %v808 = vadd.f32 0.0, %v807
        %v809 = vpop.f32.mrb[0].mxu0
        %810 = vmatprep.mubr.bf16.mxu0 0
        %811 = vmatmul.mubr.bf16.gmra.mrb[0].mxu0 %v717
        %v812 = vpop.f32.mrb[0].mxu0
        %v813 = vadd.f32 0.0, %v812
        %v814 = vpop.f32.mrb[0].mxu0
        %v815 = vpop.f32.mrb[0].mxu0
        %v816 = vadd.f32 0.0, %v815
        %v817 = vpop.f32.mrb[0].mxu0
        %818 = vmatprep.mubr.bf16.mxu0 0
        %819 = vmatmul.mubr.bf16.gmra.mrb[0].mxu0 %v720
        %v820 = vpop.f32.mrb[0].mxu0
        %v821 = vadd.f32 0.0, %v820
        %v822 = vpop.f32.mrb[0].mxu0
        %v823 = vpop.f32.mrb[0].mxu0
        %v824 = vadd.f32 0.0, %v823
        %v825 = vpop.f32.mrb[0].mxu0
        %826 = vmatprep.mubr.bf16.mxu0 0
        %827 = vmatmul.mubr.bf16.gmra.mrb[0].mxu0 %v723
        %v828 = vpop.f32.mrb[0].mxu0
        %v829 = vadd.f32 0.0, %v828
        %v830 = vpop.f32.mrb[0].mxu0
        %v831 = vpop.f32.mrb[0].mxu0
        %v832 = vadd.f32 0.0, %v831
        %v833 = vpop.f32.mrb[0].mxu0
        %834 = vmatprep.mubr.bf16.mxu0 0
        %835 = vmatmul.mubr.bf16.gmra.mrb[0].mxu0 %v726
        %v836 = vpop.f32.mrb[0].mxu0
        %v837 = vadd.f32 0.0, %v836
        %v838 = vpop.f32.mrb[0].mxu0
        %v839 = vpop.f32.mrb[0].mxu0
        %v840 = vadd.f32 0.0, %v839
        %v841 = vpop.f32.mrb[0].mxu0
        %842 = vmatprep.mubr.bf16.mxu0 0
        %843 = vmatmul.mubr.bf16.gmra.mrb[0].mxu0 %v729
        %v844 = vpop.f32.mrb[0].mxu0
        %v845 = vadd.f32 0.0, %v844
        %v846 = vpop.f32.mrb[0].mxu0
        %v847 = vpop.f32.mrb[0].mxu0
        %v848 = vadd.f32 0.0, %v847
        %v849 = vpop.f32.mrb[0].mxu0
        %850 = vmatprep.mubr.bf16.mxu0 0
        %851 = vmatmul.mubr.bf16.gmra.mrb[0].mxu0 %v732
        %v852 = vpop.f32.mrb[0].mxu0
        %v853 = vadd.f32 0.0, %v852
        %v854 = vpop.f32.mrb[0].mxu0
        %v855 = vpop.f32.mrb[0].mxu0
        %v856 = vadd.f32 0.0, %v855
        %v857 = vpop.f32.mrb[0].mxu0
        %858 = vmatprep.mubr.bf16.mxu0 0
        %859 = vmatmul.mubr.bf16.gmra.mrb[0].mxu0 %v735
        %v860 = vpop.f32.mrb[0].mxu0
        %v861 = vadd.f32 0.0, %v860
        %v862 = vpop.f32.mrb[0].mxu0
        %v863 = vpop.f32.mrb[0].mxu0
        %v864 = vadd.f32 0.0, %v863
        %v865 = vpop.f32.mrb[0].mxu0
        %866 = vmatprep.mubr.bf16.mxu0 0
        %867 = vmatmul.mubr.bf16.gmra.mrb[0].mxu0 %v738
        %v868 = vpop.f32.mrb[0].mxu0
        %v869 = vadd.f32 0.0, %v868
        %v870 = vpop.f32.mrb[0].mxu0
        %v871 = vpop.f32.mrb[0].mxu0
        %v872 = vadd.f32 0.0, %v871
        %v873 = vpop.f32.mrb[0].mxu0
        %874 = vmatprep.mubr.bf16.mxu0 0
        %875 = vmatmul.mubr.bf16.gmra.mrb[0].mxu0 %v741
        %v876 = vpop.f32.mrb[0].mxu0
        %v877 = vadd.f32 0.0, %v876
        %v878 = vpop.f32.mrb[0].mxu0
        %v879 = vpop.f32.mrb[0].mxu0
        %v880 = vadd.f32 0.0, %v879
        %v881 = vpop.f32.mrb[0].mxu0
        %882 = vmatprep.mubr.bf16.mxu0 0
        %883 = vmatmul.mubr.bf16.gmra.mrb[0].mxu0 %v744
        %v884 = vpop.f32.mrb[0].mxu0
        %v885 = vadd.f32 0.0, %v884
        %v886 = vpop.f32.mrb[0].mxu0
        %v887 = vpop.f32.mrb[0].mxu0
        %v888 = vadd.f32 0.0, %v887
        %v889 = vpop.f32.mrb[0].mxu0
        %890 = vmatprep.mubr.bf16.mxu0 0
        %891 = vmatmul.mubr.bf16.gmra.mrb[0].mxu0 %v747
        %v892 = vpop.f32.mrb[0].mxu0
        %v893 = vadd.f32 0.0, %v892
        %v894 = vpop.f32.mrb[0].mxu0
        %v895 = vpop.f32.mrb[0].mxu0
        %v896 = vadd.f32 0.0, %v895
        %v897 = vpop.f32.mrb[0].mxu0
        %898 = vmatprep.mubr.bf16.mxu0 0
        %899 = vmatmul.mubr.bf16.gmra.mrb[0].mxu0 %v750
        %v900 = vpop.f32.mrb[0].mxu0
        %v901 = vadd.f32 0.0, %v900
        %v902 = vpop.f32.mrb[0].mxu0
        %v903 = vpop.f32.mrb[0].mxu0
        %v904 = vadd.f32 0.0, %v903
        %v905 = vpop.f32.mrb[0].mxu0
        %906 = vmatprep.mubr.bf16.mxu0 0
        %907 = vmatmul.mubr.bf16.gmra.mrb[0].mxu0 %v753
        %v908 = vpop.f32.mrb[0].mxu0
        %v909 = vadd.f32 0.0, %v908
        %v910 = vpop.f32.mrb[0].mxu0
        %v911 = vpop.f32.mrb[0].mxu0
        %v912 = vadd.f32 0.0, %v911
        %v913 = vpop.f32.mrb[0].mxu0
        %914 = vmatprep.mubr.bf16.mxu0 0
        %915 = vmatmul.mubr.bf16.gmra.mrb[0].mxu0 %v756
        %v916 = vpop.f32.mrb[0].mxu0
        %v917 = vadd.f32 0.0, %v916
        %v918 = vpop.f32.mrb[0].mxu0
        %v919 = vpop.f32.mrb[0].mxu0
        %v920 = vadd.f32 0.0, %v919
        %v921 = vpop.f32.mrb[0].mxu0
        %922 = vdwg.mxu0
        %v923 = vld [vmem:[%s2] sm:$0x1]
        %v925 = vlaneseq
        %v926 = vshrl.u32 %v925, 7
        %v927 = vsub.s32 0, %v926
        %v928 = vrot.slane %v923, %v927
        %v930 = vmul.f32 %v797, %v928
        %v931 = vmul.f32 %v800, %v928
        %v932 = vmul.f32 %v805, %v928
        %v933 = vmul.f32 %v808, %v928
        %v934 = vmul.f32 %v813, %v928
        %v935 = vmul.f32 %v816, %v928
        %v936 = vmul.f32 %v821, %v928
        %v937 = vmul.f32 %v824, %v928
        %v938 = vmul.f32 %v829, %v928
        %v939 = vmul.f32 %v832, %v928
        %v940 = vmul.f32 %v837, %v928
        %v941 = vmul.f32 %v840, %v928
        %v942 = vmul.f32 %v845, %v928
        %v943 = vmul.f32 %v848, %v928
        %v944 = vmul.f32 %v853, %v928
        %v945 = vmul.f32 %v856, %v928
        %v946 = vmul.f32 %v861, %v928
        %v947 = vmul.f32 %v864, %v928
        %v948 = vmul.f32 %v869, %v928
        %v949 = vmul.f32 %v872, %v928
        %v950 = vmul.f32 %v877, %v928
        %v951 = vmul.f32 %v880, %v928
        %v952 = vmul.f32 %v885, %v928
        %v953 = vmul.f32 %v888, %v928
        %v954 = vmul.f32 %v893, %v928
        %v955 = vmul.f32 %v896, %v928
        %v956 = vmul.f32 %v901, %v928
        %v957 = vmul.f32 %v904, %v928
        %v958 = vmul.f32 %v909, %v928
        %v959 = vmul.f32 %v912, %v928
        %v960 = vmul.f32 %v917, %v928
        %v961 = vmul.f32 %v920, %v928
        %v962 = vld [vmem:[%s3] sm:$0x1]
        %v964 = vlaneseq
        %v965 = vshrl.u32 %v964, 7
        %v966 = vsub.s32 0, %v965
        %v967 = vrot.slane %v962, %v966
        %v969 = vadd.f32 %v930, %v967
        %v970 = vadd.f32 %v931, %v967
        %v971 = vadd.f32 %v932, %v967
        %v972 = vadd.f32 %v933, %v967
        %v973 = vadd.f32 %v934, %v967
        %v974 = vadd.f32 %v935, %v967
        %v975 = vadd.f32 %v936, %v967
        %v976 = vadd.f32 %v937, %v967
        %v977 = vadd.f32 %v938, %v967
        %v978 = vadd.f32 %v939, %v967
        %v979 = vadd.f32 %v940, %v967
        %v980 = vadd.f32 %v941, %v967
        %v981 = vadd.f32 %v942, %v967
        %v982 = vadd.f32 %v943, %v967
        %v983 = vadd.f32 %v944, %v967
        %v984 = vadd.f32 %v945, %v967
        %v985 = vadd.f32 %v946, %v967
        %v986 = vadd.f32 %v947, %v967
        %v987 = vadd.f32 %v948, %v967
        %v988 = vadd.f32 %v949, %v967
        %v989 = vadd.f32 %v950, %v967
        %v990 = vadd.f32 %v951, %v967
        %v991 = vadd.f32 %v952, %v967
        %v992 = vadd.f32 %v953, %v967
        %v993 = vadd.f32 %v954, %v967
        %v994 = vadd.f32 %v955, %v967
        %v995 = vadd.f32 %v956, %v967
        %v996 = vadd.f32 %v957, %v967
        %v997 = vadd.f32 %v958, %v967
        %v998 = vadd.f32 %v959, %v967
        %v999 = vadd.f32 %v960, %v967
        %v1000 = vadd.f32 %v961, %v967
        %v1001 = vmax.f32 %v969, 0.0
        %v1002 = vmax.f32 %v970, 0.0
        %v1003 = vmax.f32 %v971, 0.0
        %v1004 = vmax.f32 %v972, 0.0
        %v1005 = vmax.f32 %v973, 0.0
        %v1006 = vmax.f32 %v974, 0.0
        %v1007 = vmax.f32 %v975, 0.0
        %v1008 = vmax.f32 %v976, 0.0
        %v1009 = vmax.f32 %v977, 0.0
        %v1010 = vmax.f32 %v978, 0.0
        %v1011 = vmax.f32 %v979, 0.0
        %v1012 = vmax.f32 %v980, 0.0
        %v1013 = vmax.f32 %v981, 0.0
        %v1014 = vmax.f32 %v982, 0.0
        %v1015 = vmax.f32 %v983, 0.0
        %v1016 = vmax.f32 %v984, 0.0
        %v1017 = vmax.f32 %v985, 0.0
        %v1018 = vmax.f32 %v986, 0.0
        %v1019 = vmax.f32 %v987, 0.0
        %v1020 = vmax.f32 %v988, 0.0
        %v1021 = vmax.f32 %v989, 0.0
        %v1022 = vmax.f32 %v990, 0.0
        %v1023 = vmax.f32 %v991, 0.0
        %v1024 = vmax.f32 %v992, 0.0
        %v1025 = vmax.f32 %v993, 0.0
        %v1026 = vmax.f32 %v994, 0.0
        %v1027 = vmax.f32 %v995, 0.0
        %v1028 = vmax.f32 %v996, 0.0
        %v1029 = vmax.f32 %v997, 0.0
        %v1030 = vmax.f32 %v998, 0.0
        %v1031 = vmax.f32 %v999, 0.0
        %v1032 = vmax.f32 %v1000, 0.0
        %v1033 = vpack.c.bf16 %v1002, %v1001
        %v1034 = vpack.c.bf16 %v1004, %v1003
        %v1035 = vpack.c.bf16 %v1006, %v1005
        %v1036 = vpack.c.bf16 %v1008, %v1007
        %v1037 = vpack.c.bf16 %v1010, %v1009
        %v1038 = vpack.c.bf16 %v1012, %v1011
        %v1039 = vpack.c.bf16 %v1014, %v1013
        %v1040 = vpack.c.bf16 %v1016, %v1015
        %v1041 = vpack.c.bf16 %v1018, %v1017
        %v1042 = vpack.c.bf16 %v1020, %v1019
        %v1043 = vpack.c.bf16 %v1022, %v1021
        %v1044 = vpack.c.bf16 %v1024, %v1023
        %v1045 = vpack.c.bf16 %v1026, %v1025
        %v1046 = vpack.c.bf16 %v1028, %v1027
        %v1047 = vpack.c.bf16 %v1030, %v1029
        %v1048 = vpack.c.bf16 %v1032, %v1031
        %v1065 = vunpack.c.l.b16 %v1033
        %v1066 = vunpack.c.h.b16 %v1033
        %v1067 = vunpack.c.l.b16 %v1034
        %v1068 = vunpack.c.h.b16 %v1034
        %v1069 = vunpack.c.l.b16 %v1035
        %v1070 = vunpack.c.h.b16 %v1035
        %v1071 = vunpack.c.l.b16 %v1036
        %v1072 = vunpack.c.h.b16 %v1036
        %v1073 = vunpack.c.l.b16 %v1037
        %v1074 = vunpack.c.h.b16 %v1037
        %v1075 = vunpack.c.l.b16 %v1038
        %v1076 = vunpack.c.h.b16 %v1038
        %v1077 = vunpack.c.l.b16 %v1039
        %v1078 = vunpack.c.h.b16 %v1039
        %v1079 = vunpack.c.l.b16 %v1040
        %v1080 = vunpack.c.h.b16 %v1040
        %v1081 = vunpack.c.l.b16 %v1041
        %v1082 = vunpack.c.h.b16 %v1041
        %v1083 = vunpack.c.l.b16 %v1042
        %v1084 = vunpack.c.h.b16 %v1042
        %v1085 = vunpack.c.l.b16 %v1043
        %v1086 = vunpack.c.h.b16 %v1043
        %v1087 = vunpack.c.l.b16 %v1044
        %v1088 = vunpack.c.h.b16 %v1044
        %v1089 = vunpack.c.l.b16 %v1045
        %v1090 = vunpack.c.h.b16 %v1045
        %v1091 = vunpack.c.l.b16 %v1046
        %v1092 = vunpack.c.h.b16 %v1046
        %v1093 = vunpack.c.l.b16 %v1047
        %v1094 = vunpack.c.h.b16 %v1047
        %v1095 = vunpack.c.l.b16 %v1048
        %v1096 = vunpack.c.h.b16 %v1048
        %v1097 = vpack.c.b16 %v1065, %v1065
        %v1098 = vpack.c.b16 %v1066, %v1066
        %v1099 = vpack.c.b16 %v1067, %v1067
        %v1100 = vpack.c.b16 %v1068, %v1068
        %v1101 = vpack.c.b16 %v1069, %v1069
        %v1102 = vpack.c.b16 %v1070, %v1070
        %v1103 = vpack.c.b16 %v1071, %v1071
        %v1104 = vpack.c.b16 %v1072, %v1072
        %v1105 = vpack.c.b16 %v1073, %v1073
        %v1106 = vpack.c.b16 %v1074, %v1074
        %v1107 = vpack.c.b16 %v1075, %v1075
        %v1108 = vpack.c.b16 %v1076, %v1076
        %v1109 = vpack.c.b16 %v1077, %v1077
        %v1110 = vpack.c.b16 %v1078, %v1078
        %v1111 = vpack.c.b16 %v1079, %v1079
        %v1112 = vpack.c.b16 %v1080, %v1080
        %v1113 = vpack.c.b16 %v1081, %v1081
        %v1114 = vpack.c.b16 %v1082, %v1082
        %v1115 = vpack.c.b16 %v1083, %v1083
        %v1116 = vpack.c.b16 %v1084, %v1084
        %v1117 = vpack.c.b16 %v1085, %v1085
        %v1118 = vpack.c.b16 %v1086, %v1086
        %v1119 = vpack.c.b16 %v1087, %v1087
        %v1120 = vpack.c.b16 %v1088, %v1088
        %v1121 = vpack.c.b16 %v1089, %v1089
        %v1122 = vpack.c.b16 %v1090, %v1090
        %v1123 = vpack.c.b16 %v1091, %v1091
        %v1124 = vpack.c.b16 %v1092, %v1092
        %v1125 = vpack.c.b16 %v1093, %v1093
        %v1126 = vpack.c.b16 %v1094, %v1094
        %v1127 = vpack.c.b16 %v1095, %v1095
        %v1128 = vpack.c.b16 %v1096, %v1096
        %1129 = vrot.lane.b32.xlu0 %v1097, 120
        %v1130 = vpop.permute.xlu0 %1129
        %1131 = vrot.lane.b32.xlu0 %v1098, 120
        %v1132 = vpop.permute.xlu0 %1131
        %1133 = vrot.lane.b32.xlu0 %v1099, 120
        %v1134 = vpop.permute.xlu0 %1133
        %1135 = vrot.lane.b32.xlu0 %v1100, 120
        %v1136 = vpop.permute.xlu0 %1135
        %1137 = vrot.lane.b32.xlu0 %v1101, 120
        %v1138 = vpop.permute.xlu0 %1137
        %1139 = vrot.lane.b32.xlu0 %v1102, 120
        %v1140 = vpop.permute.xlu0 %1139
        %1141 = vrot.lane.b32.xlu0 %v1103, 120
        %v1142 = vpop.permute.xlu0 %1141
        %1143 = vrot.lane.b32.xlu0 %v1104, 120
        %v1144 = vpop.permute.xlu0 %1143
        %1145 = vrot.lane.b32.xlu0 %v1105, 120
        %v1146 = vpop.permute.xlu0 %1145
        %1147 = vrot.lane.b32.xlu0 %v1106, 120
        %v1148 = vpop.permute.xlu0 %1147
        %1149 = vrot.lane.b32.xlu0 %v1107, 120
        %v1150 = vpop.permute.xlu0 %1149
        %1151 = vrot.lane.b32.xlu0 %v1108, 120
        %v1152 = vpop.permute.xlu0 %1151
        %1153 = vrot.lane.b32.xlu0 %v1109, 120
        %v1154 = vpop.permute.xlu0 %1153
        %1155 = vrot.lane.b32.xlu0 %v1110, 120
        %v1156 = vpop.permute.xlu0 %1155
        %1157 = vrot.lane.b32.xlu0 %v1111, 120
        %v1158 = vpop.permute.xlu0 %1157
        %1159 = vrot.lane.b32.xlu0 %v1112, 120
        %v1160 = vpop.permute.xlu0 %1159
        %1161 = vrot.lane.b32.xlu0 %v1113, 120
        %v1162 = vpop.permute.xlu0 %1161
        %1163 = vrot.lane.b32.xlu0 %v1114, 120
        %v1164 = vpop.permute.xlu0 %1163
        %1165 = vrot.lane.b32.xlu0 %v1115, 120
        %v1166 = vpop.permute.xlu0 %1165
        %1167 = vrot.lane.b32.xlu0 %v1116, 120
        %v1168 = vpop.permute.xlu0 %1167
        %1169 = vrot.lane.b32.xlu0 %v1117, 120
        %v1170 = vpop.permute.xlu0 %1169
        %1171 = vrot.lane.b32.xlu0 %v1118, 120
        %v1172 = vpop.permute.xlu0 %1171
        %1173 = vrot.lane.b32.xlu0 %v1119, 120
        %v1174 = vpop.permute.xlu0 %1173
        %1175 = vrot.lane.b32.xlu0 %v1120, 120
        %v1176 = vpop.permute.xlu0 %1175
        %1177 = vrot.lane.b32.xlu0 %v1121, 120
        %v1178 = vpop.permute.xlu0 %1177
        %1179 = vrot.lane.b32.xlu0 %v1122, 120
        %v1180 = vpop.permute.xlu0 %1179
        %1181 = vrot.lane.b32.xlu0 %v1123, 120
        %v1182 = vpop.permute.xlu0 %1181
        %1183 = vrot.lane.b32.xlu0 %v1124, 120
        %v1184 = vpop.permute.xlu0 %1183
        %1185 = vrot.lane.b32.xlu0 %v1125, 120
        %v1186 = vpop.permute.xlu0 %1185
        %1187 = vrot.lane.b32.xlu0 %v1126, 120
        %v1188 = vpop.permute.xlu0 %1187
        %1189 = vrot.lane.b32.xlu0 %v1127, 120
        %v1190 = vpop.permute.xlu0 %1189
        %1191 = vrot.lane.b32.xlu0 %v1128, 120
        %v1192 = vpop.permute.xlu0 %1191
        %1225 = vst.msk [vmem:[%s411 + $0x8] sm:$0xf] %vm392, %v1130
        %1226 = vst.msk [vmem:[%s411 + $0xc] sm:$0xf] %vm392, %v1132
        %1227 = vst.msk [vmem:[%s411 + $0x1c] sm:$0xf] %vm392, %v1134
        %1228 = vst.msk [vmem:[%s411 + $0x20] sm:$0xf] %vm392, %v1136
        %1229 = vst.msk [vmem:[%s411 + $0x30] sm:$0xf] %vm392, %v1138
        %1230 = vst.msk [vmem:[%s411 + $0x34] sm:$0xf] %vm392, %v1140
        %1231 = vst.msk [vmem:[%s411 + $0x44] sm:$0xf] %vm392, %v1142
        %1232 = vst.msk [vmem:[%s411 + $0x48] sm:$0xf] %vm392, %v1144
        %1233 = vst.msk [vmem:[%s411 + $0x58] sm:$0xf] %vm392, %v1146
        %1234 = vst.msk [vmem:[%s411 + $0x5c] sm:$0xf] %vm392, %v1148
        %1235 = vst.msk [vmem:[%s411 + $0x6c] sm:$0xf] %vm392, %v1150
        %1236 = vst.msk [vmem:[%s411 + $0x70] sm:$0xf] %vm392, %v1152
        %1237 = vst.msk [vmem:[%s411 + $0x80] sm:$0xf] %vm392, %v1154
        %1238 = vst.msk [vmem:[%s411 + $0x84] sm:$0xf] %vm392, %v1156
        %1239 = vst.msk [vmem:[%s411 + $0x94] sm:$0xf] %vm392, %v1158
        %1240 = vst.msk [vmem:[%s411 + $0x98] sm:$0xf] %vm392, %v1160
        %1241 = vst.msk [vmem:[%s411 + $0xa8] sm:$0xf] %vm392, %v1162
        %1242 = vst.msk [vmem:[%s411 + $0xac] sm:$0xf] %vm392, %v1164
        %1243 = vst.msk [vmem:[%s411 + $0xbc] sm:$0xf] %vm392, %v1166
        %1244 = vst.msk [vmem:[%s411 + $0xc0] sm:$0xf] %vm392, %v1168
        %1245 = vst.msk [vmem:[%s411 + $0xd0] sm:$0xf] %vm392, %v1170
        %1246 = vst.msk [vmem:[%s411 + $0xd4] sm:$0xf] %vm392, %v1172
        %1247 = vst.msk [vmem:[%s411 + $0xe4] sm:$0xf] %vm392, %v1174
        %1248 = vst.msk [vmem:[%s411 + $0xe8] sm:$0xf] %vm392, %v1176
        %1249 = vst.msk [vmem:[%s411 + $0xf8] sm:$0xf] %vm392, %v1178
        %1250 = vst.msk [vmem:[%s411 + $0xfc] sm:$0xf] %vm392, %v1180
        %1251 = vst.msk [vmem:[%s411 + $0x10c] sm:$0xf] %vm392, %v1182
        %1252 = vst.msk [vmem:[%s411 + $0x110] sm:$0xf] %vm392, %v1184
        %1253 = vst.msk [vmem:[%s411 + $0x120] sm:$0xf] %vm392, %v1186
        %1254 = vst.msk [vmem:[%s411 + $0x124] sm:$0xf] %vm392, %v1188
        %1255 = vst.msk [vmem:[%s411 + $0x134] sm:$0xf] %vm392, %v1190
        %1256 = vst.msk [vmem:[%s411 + $0x138] sm:$0xf] %vm392, %v1192
        %1257 = vst.msk [vmem:[%s529 + $0x8] sm:$0xf] %vm511, %v360
        %1258 = vst.msk [vmem:[%s529 + $0xc] sm:$0xf] %vm511, %v361
        %1259 = vst.msk [vmem:[%s529 + $0x1c] sm:$0xf] %vm511, %v362
        %1260 = vst.msk [vmem:[%s529 + $0x20] sm:$0xf] %vm511, %v363
        %1261 = vst.msk [vmem:[%s529 + $0x30] sm:$0xf] %vm511, %v364
        %1262 = vst.msk [vmem:[%s529 + $0x34] sm:$0xf] %vm511, %v365
        %1263 = vst.msk [vmem:[%s529 + $0x44] sm:$0xf] %vm511, %v366
        %1264 = vst.msk [vmem:[%s529 + $0x48] sm:$0xf] %vm511, %v367
        %1265 = vst.msk [vmem:[%s529 + $0x58] sm:$0xf] %vm511, %v368
        %1266 = vst.msk [vmem:[%s529 + $0x5c] sm:$0xf] %vm511, %v369
        %1267 = vst.msk [vmem:[%s529 + $0x6c] sm:$0xf] %vm511, %v370
        %1268 = vst.msk [vmem:[%s529 + $0x70] sm:$0xf] %vm511, %v371
        %1269 = vst.msk [vmem:[%s529 + $0x80] sm:$0xf] %vm511, %v372
        %1270 = vst.msk [vmem:[%s529 + $0x84] sm:$0xf] %vm511, %v373
        %1271 = vst.msk [vmem:[%s529 + $0x94] sm:$0xf] %vm511, %v374
        %1272 = vst.msk [vmem:[%s529 + $0x98] sm:$0xf] %vm511, %v375
        %1273 = vst.msk [vmem:[%s529 + $0xa8] sm:$0xf] %vm511, %v376
        %1274 = vst.msk [vmem:[%s529 + $0xac] sm:$0xf] %vm511, %v377
        %1275 = vst.msk [vmem:[%s529 + $0xbc] sm:$0xf] %vm511, %v378
        %1276 = vst.msk [vmem:[%s529 + $0xc0] sm:$0xf] %vm511, %v379
        %1277 = vst.msk [vmem:[%s529 + $0xd0] sm:$0xf] %vm511, %v380
        %1278 = vst.msk [vmem:[%s529 + $0xd4] sm:$0xf] %vm511, %v381
        %1279 = vst.msk [vmem:[%s529 + $0xe4] sm:$0xf] %vm511, %v382
        %1280 = vst.msk [vmem:[%s529 + $0xe8] sm:$0xf] %vm511, %v383
        %1281 = vst.msk [vmem:[%s529 + $0xf8] sm:$0xf] %vm511, %v384
        %1282 = vst.msk [vmem:[%s529 + $0xfc] sm:$0xf] %vm511, %v385
        %1283 = vst.msk [vmem:[%s529 + $0x10c] sm:$0xf] %vm511, %v386
        %1284 = vst.msk [vmem:[%s529 + $0x110] sm:$0xf] %vm511, %v387
        %1285 = vst.msk [vmem:[%s529 + $0x120] sm:$0xf] %vm511, %v388
        %1286 = vst.msk [vmem:[%s529 + $0x124] sm:$0xf] %vm511, %v389
        %1287 = vst.msk [vmem:[%s529 + $0x134] sm:$0xf] %vm511, %v390
        %1288 = vst.msk [vmem:[%s529 + $0x138] sm:$0xf] %vm511, %v391
        %v1289 = vld [vmem:[#allocation2 + $0x4] sm:$0x8]
        %v1290 = vld [vmem:[#allocation2 + $0x8] sm:$0xf]
        %v1291 = vld [vmem:[#allocation2 + $0xc] sm:$0xf]
        %v1292 = vld [vmem:[#allocation2 + $0x18] sm:$0x8]
        %v1293 = vld [vmem:[#allocation2 + $0x1c] sm:$0xf]
        %v1294 = vld [vmem:[#allocation2 + $0x20] sm:$0xf]
        %v1295 = vld [vmem:[#allocation2 + $0x2c] sm:$0x8]
        %v1296 = vld [vmem:[#allocation2 + $0x30] sm:$0xf]
        %v1297 = vld [vmem:[#allocation2 + $0x34] sm:$0xf]
        %v1298 = vld [vmem:[#allocation2 + $0x40] sm:$0x8]
        %v1299 = vld [vmem:[#allocation2 + $0x44] sm:$0xf]
        %v1300 = vld [vmem:[#allocation2 + $0x48] sm:$0xf]
        %v1301 = vld [vmem:[#allocation2 + $0x54] sm:$0x8]
        %v1302 = vld [vmem:[#allocation2 + $0x58] sm:$0xf]
        %v1303 = vld [vmem:[#allocation2 + $0x5c] sm:$0xf]
        %v1304 = vld [vmem:[#allocation2 + $0x68] sm:$0x8]
        %v1305 = vld [vmem:[#allocation2 + $0x6c] sm:$0xf]
        %v1306 = vld [vmem:[#allocation2 + $0x70] sm:$0xf]
        %v1307 = vld [vmem:[#allocation2 + $0x7c] sm:$0x8]
        %v1308 = vld [vmem:[#allocation2 + $0x80] sm:$0xf]
        %v1309 = vld [vmem:[#allocation2 + $0x84] sm:$0xf]
        %v1310 = vld [vmem:[#allocation2 + $0x90] sm:$0x8]
        %v1311 = vld [vmem:[#allocation2 + $0x94] sm:$0xf]
        %v1312 = vld [vmem:[#allocation2 + $0x98] sm:$0xf]
        %v1313 = vld [vmem:[#allocation2 + $0xa4] sm:$0x8]
        %v1314 = vld [vmem:[#allocation2 + $0xa8] sm:$0xf]
        %v1315 = vld [vmem:[#allocation2 + $0xac] sm:$0xf]
        %v1316 = vld [vmem:[#allocation2 + $0xb8] sm:$0x8]
        %v1317 = vld [vmem:[#allocation2 + $0xbc] sm:$0xf]
        %v1318 = vld [vmem:[#allocation2 + $0xc0] sm:$0xf]
        %v1319 = vld [vmem:[#allocation2 + $0xcc] sm:$0x8]
        %v1320 = vld [vmem:[#allocation2 + $0xd0] sm:$0xf]
        %v1321 = vld [vmem:[#allocation2 + $0xd4] sm:$0xf]
        %v1322 = vld [vmem:[#allocation2 + $0xe0] sm:$0x8]
        %v1323 = vld [vmem:[#allocation2 + $0xe4] sm:$0xf]
        %v1324 = vld [vmem:[#allocation2 + $0xe8] sm:$0xf]
        %v1325 = vld [vmem:[#allocation2 + $0xf4] sm:$0x8]
        %v1326 = vld [vmem:[#allocation2 + $0xf8] sm:$0xf]
        %v1327 = vld [vmem:[#allocation2 + $0xfc] sm:$0xf]
        %v1328 = vld [vmem:[#allocation2 + $0x108] sm:$0x8]
        %v1329 = vld [vmem:[#allocation2 + $0x10c] sm:$0xf]
        %v1330 = vld [vmem:[#allocation2 + $0x110] sm:$0xf]
        %v1331 = vld [vmem:[#allocation2 + $0x11c] sm:$0x8]
        %v1332 = vld [vmem:[#allocation2 + $0x120] sm:$0xf]
        %v1333 = vld [vmem:[#allocation2 + $0x124] sm:$0xf]
        %v1334 = vld [vmem:[#allocation2 + $0x130] sm:$0x8]
        %v1335 = vld [vmem:[#allocation2 + $0x134] sm:$0xf]
        %v1336 = vld [vmem:[#allocation2 + $0x138] sm:$0xf]
        %vm1337 = vsmask.f32 4368
        %vm1338 = vmor %vm398, %vm1337
        %v1340 = vshrl.u32 %v1289, 16
        %v1342 = vrot.slane %v1340, 7
        %v1343 = vrot.slane %v1342, 4
        %v1345 = vshrl.u32 %v1290, 16
        %v1347 = vrot.slane %v1345, 7
        %v1348 = vshll.u32 %v1290, 16
        %v1350 = vor.u32 %v1347, %v1348
        %v1351 = vsel %vm1338, %v1343, %v1350
        %v1352 = vrot.slane %v1347, 4
        %v1354 = vshrl.u32 %v1291, 16
        %v1356 = vrot.slane %v1354, 7
        %v1357 = vshll.u32 %v1291, 16
        %v1359 = vor.u32 %v1356, %v1357
        %v1360 = vsel %vm1338, %v1352, %v1359
        %v1362 = vshrl.u32 %v1292, 16
        %v1364 = vrot.slane %v1362, 7
        %v1365 = vrot.slane %v1364, 4
        %v1367 = vshrl.u32 %v1293, 16
        %v1369 = vrot.slane %v1367, 7
        %v1370 = vshll.u32 %v1293, 16
        %v1372 = vor.u32 %v1369, %v1370
        %v1373 = vsel %vm1338, %v1365, %v1372
        %v1374 = vrot.slane %v1369, 4
        %v1376 = vshrl.u32 %v1294, 16
        %v1378 = vrot.slane %v1376, 7
        %v1379 = vshll.u32 %v1294, 16
        %v1381 = vor.u32 %v1378, %v1379
        %v1382 = vsel %vm1338, %v1374, %v1381
        %v1384 = vshrl.u32 %v1295, 16
        %v1386 = vrot.slane %v1384, 7
        %v1387 = vrot.slane %v1386, 4
        %v1389 = vshrl.u32 %v1296, 16
        %v1391 = vrot.slane %v1389, 7
        %v1392 = vshll.u32 %v1296, 16
        %v1394 = vor.u32 %v1391, %v1392
        %v1395 = vsel %vm1338, %v1387, %v1394
        %v1396 = vrot.slane %v1391, 4
        %v1398 = vshrl.u32 %v1297, 16
        %v1400 = vrot.slane %v1398, 7
        %v1401 = vshll.u32 %v1297, 16
        %v1403 = vor.u32 %v1400, %v1401
        %v1404 = vsel %vm1338, %v1396, %v1403
        %v1406 = vshrl.u32 %v1298, 16
        %v1408 = vrot.slane %v1406, 7
        %v1409 = vrot.slane %v1408, 4
        %v1411 = vshrl.u32 %v1299, 16
        %v1413 = vrot.slane %v1411, 7
        %v1414 = vshll.u32 %v1299, 16
        %v1416 = vor.u32 %v1413, %v1414
        %v1417 = vsel %vm1338, %v1409, %v1416
        %v1418 = vrot.slane %v1413, 4
        %v1420 = vshrl.u32 %v1300, 16
        %v1422 = vrot.slane %v1420, 7
        %v1423 = vshll.u32 %v1300, 16
        %v1425 = vor.u32 %v1422, %v1423
        %v1426 = vsel %vm1338, %v1418, %v1425
        %v1428 = vshrl.u32 %v1301, 16
        %v1430 = vrot.slane %v1428, 7
        %v1431 = vrot.slane %v1430, 4
        %v1433 = vshrl.u32 %v1302, 16
        %v1435 = vrot.slane %v1433, 7
        %v1436 = vshll.u32 %v1302, 16
        %v1438 = vor.u32 %v1435, %v1436
        %v1439 = vsel %vm1338, %v1431, %v1438
        %v1440 = vrot.slane %v1435, 4
        %v1442 = vshrl.u32 %v1303, 16
        %v1444 = vrot.slane %v1442, 7
        %v1445 = vshll.u32 %v1303, 16
        %v1447 = vor.u32 %v1444, %v1445
        %v1448 = vsel %vm1338, %v1440, %v1447
        %v1450 = vshrl.u32 %v1304, 16
        %v1452 = vrot.slane %v1450, 7
        %v1453 = vrot.slane %v1452, 4
        %v1455 = vshrl.u32 %v1305, 16
        %v1457 = vrot.slane %v1455, 7
        %v1458 = vshll.u32 %v1305, 16
        %v1460 = vor.u32 %v1457, %v1458
        %v1461 = vsel %vm1338, %v1453, %v1460
        %v1462 = vrot.slane %v1457, 4
        %v1464 = vshrl.u32 %v1306, 16
        %v1466 = vrot.slane %v1464, 7
        %v1467 = vshll.u32 %v1306, 16
        %v1469 = vor.u32 %v1466, %v1467
        %v1470 = vsel %vm1338, %v1462, %v1469
        %v1472 = vshrl.u32 %v1307, 16
        %v1474 = vrot.slane %v1472, 7
        %v1475 = vrot.slane %v1474, 4
        %v1477 = vshrl.u32 %v1308, 16
        %v1479 = vrot.slane %v1477, 7
        %v1480 = vshll.u32 %v1308, 16
        %v1482 = vor.u32 %v1479, %v1480
        %v1483 = vsel %vm1338, %v1475, %v1482
        %v1484 = vrot.slane %v1479, 4
        %v1486 = vshrl.u32 %v1309, 16
        %v1488 = vrot.slane %v1486, 7
        %v1489 = vshll.u32 %v1309, 16
        %v1491 = vor.u32 %v1488, %v1489
        %v1492 = vsel %vm1338, %v1484, %v1491
        %v1494 = vshrl.u32 %v1310, 16
        %v1496 = vrot.slane %v1494, 7
        %v1497 = vrot.slane %v1496, 4
        %v1499 = vshrl.u32 %v1311, 16
        %v1501 = vrot.slane %v1499, 7
        %v1502 = vshll.u32 %v1311, 16
        %v1504 = vor.u32 %v1501, %v1502
        %v1505 = vsel %vm1338, %v1497, %v1504
        %v1506 = vrot.slane %v1501, 4
        %v1508 = vshrl.u32 %v1312, 16
        %v1510 = vrot.slane %v1508, 7
        %v1511 = vshll.u32 %v1312, 16
        %v1513 = vor.u32 %v1510, %v1511
        %v1514 = vsel %vm1338, %v1506, %v1513
        %v1516 = vshrl.u32 %v1313, 16
        %v1518 = vrot.slane %v1516, 7
        %v1519 = vrot.slane %v1518, 4
        %v1521 = vshrl.u32 %v1314, 16
        %v1523 = vrot.slane %v1521, 7
        %v1524 = vshll.u32 %v1314, 16
        %v1526 = vor.u32 %v1523, %v1524
        %v1527 = vsel %vm1338, %v1519, %v1526
        %v1528 = vrot.slane %v1523, 4
        %v1530 = vshrl.u32 %v1315, 16
        %v1532 = vrot.slane %v1530, 7
        %v1533 = vshll.u32 %v1315, 16
        %v1535 = vor.u32 %v1532, %v1533
        %v1536 = vsel %vm1338, %v1528, %v1535
        %v1538 = vshrl.u32 %v1316, 16
        %v1540 = vrot.slane %v1538, 7
        %v1541 = vrot.slane %v1540, 4
        %v1543 = vshrl.u32 %v1317, 16
        %v1545 = vrot.slane %v1543, 7
        %v1546 = vshll.u32 %v1317, 16
        %v1548 = vor.u32 %v1545, %v1546
        %v1549 = vsel %vm1338, %v1541, %v1548
        %v1550 = vrot.slane %v1545, 4
        %v1552 = vshrl.u32 %v1318, 16
        %v1554 = vrot.slane %v1552, 7
        %v1555 = vshll.u32 %v1318, 16
        %v1557 = vor.u32 %v1554, %v1555
        %v1558 = vsel %vm1338, %v1550, %v1557
        %v1560 = vshrl.u32 %v1319, 16
        %v1562 = vrot.slane %v1560, 7
        %v1563 = vrot.slane %v1562, 4
        %v1565 = vshrl.u32 %v1320, 16
        %v1567 = vrot.slane %v1565, 7
        %v1568 = vshll.u32 %v1320, 16
        %v1570 = vor.u32 %v1567, %v1568
        %v1571 = vsel %vm1338, %v1563, %v1570
        %v1572 = vrot.slane %v1567, 4
        %v1574 = vshrl.u32 %v1321, 16
        %v1576 = vrot.slane %v1574, 7
        %v1577 = vshll.u32 %v1321, 16
        %v1579 = vor.u32 %v1576, %v1577
        %v1580 = vsel %vm1338, %v1572, %v1579
        %v1582 = vshrl.u32 %v1322, 16
        %v1584 = vrot.slane %v1582, 7
        %v1585 = vrot.slane %v1584, 4
        %v1587 = vshrl.u32 %v1323, 16
        %v1589 = vrot.slane %v1587, 7
        %v1590 = vshll.u32 %v1323, 16
        %v1592 = vor.u32 %v1589, %v1590
        %v1593 = vsel %vm1338, %v1585, %v1592
        %v1594 = vrot.slane %v1589, 4
        %v1596 = vshrl.u32 %v1324, 16
        %v1598 = vrot.slane %v1596, 7
        %v1599 = vshll.u32 %v1324, 16
        %v1601 = vor.u32 %v1598, %v1599
        %v1602 = vsel %vm1338, %v1594, %v1601
        %v1604 = vshrl.u32 %v1325, 16
        %v1606 = vrot.slane %v1604, 7
        %v1607 = vrot.slane %v1606, 4
        %v1609 = vshrl.u32 %v1326, 16
        %v1611 = vrot.slane %v1609, 7
        %v1612 = vshll.u32 %v1326, 16
        %v1614 = vor.u32 %v1611, %v1612
        %v1615 = vsel %vm1338, %v1607, %v1614
        %v1616 = vrot.slane %v1611, 4
        %v1618 = vshrl.u32 %v1327, 16
        %v1620 = vrot.slane %v1618, 7
        %v1621 = vshll.u32 %v1327, 16
        %v1623 = vor.u32 %v1620, %v1621
        %v1624 = vsel %vm1338, %v1616, %v1623
        %v1626 = vshrl.u32 %v1328, 16
        %v1628 = vrot.slane %v1626, 7
        %v1629 = vrot.slane %v1628, 4
        %v1631 = vshrl.u32 %v1329, 16
        %v1633 = vrot.slane %v1631, 7
        %v1634 = vshll.u32 %v1329, 16
        %v1636 = vor.u32 %v1633, %v1634
        %v1637 = vsel %vm1338, %v1629, %v1636
        %v1638 = vrot.slane %v1633, 4
        %v1640 = vshrl.u32 %v1330, 16
        %v1642 = vrot.slane %v1640, 7
        %v1643 = vshll.u32 %v1330, 16
        %v1645 = vor.u32 %v1642, %v1643
        %v1646 = vsel %vm1338, %v1638, %v1645
        %v1648 = vshrl.u32 %v1331, 16
        %v1650 = vrot.slane %v1648, 7
        %v1651 = vrot.slane %v1650, 4
        %v1653 = vshrl.u32 %v1332, 16
        %v1655 = vrot.slane %v1653, 7
        %v1656 = vshll.u32 %v1332, 16
        %v1658 = vor.u32 %v1655, %v1656
        %v1659 = vsel %vm1338, %v1651, %v1658
        %v1660 = vrot.slane %v1655, 4
        %v1662 = vshrl.u32 %v1333, 16
        %v1664 = vrot.slane %v1662, 7
        %v1665 = vshll.u32 %v1333, 16
        %v1667 = vor.u32 %v1664, %v1665
        %v1668 = vsel %vm1338, %v1660, %v1667
        %v1670 = vshrl.u32 %v1334, 16
        %v1672 = vrot.slane %v1670, 7
        %v1673 = vrot.slane %v1672, 4
        %v1675 = vshrl.u32 %v1335, 16
        %v1677 = vrot.slane %v1675, 7
        %v1678 = vshll.u32 %v1335, 16
        %v1680 = vor.u32 %v1677, %v1678
        %v1681 = vsel %vm1338, %v1673, %v1680
        %v1682 = vrot.slane %v1677, 4
        %v1684 = vshrl.u32 %v1336, 16
        %v1686 = vrot.slane %v1684, 7
        %v1687 = vshll.u32 %v1336, 16
        %v1689 = vor.u32 %v1686, %v1687
        %v1690 = vsel %vm1338, %v1682, %v1689
        %v1691 = vld [vmem:[%s4] sm:$0xf]
        %v1692 = vld [vmem:[%s4 + $0x4] sm:$0x3]
        %s1693 = scalar_lea.vmem %s4, 8
        %v1694 = vld [vmem:[%s1693] sm:$0xf]
        %v1695 = vld [vmem:[%s1693 + $0x4] sm:$0x3]
        %v1728 = vunpack.c.l.b16 %v1290
        %v1729 = vunpack.c.l.b16 %v1291
        %v1730 = vunpack.c.l.b16 %v1293
        %v1731 = vunpack.c.l.b16 %v1294
        %v1732 = vunpack.c.l.b16 %v1296
        %v1733 = vunpack.c.l.b16 %v1297
        %v1734 = vunpack.c.l.b16 %v1299
        %v1735 = vunpack.c.l.b16 %v1300
        %v1736 = vunpack.c.l.b16 %v1302
        %v1737 = vunpack.c.l.b16 %v1303
        %v1738 = vunpack.c.l.b16 %v1305
        %v1739 = vunpack.c.l.b16 %v1306
        %v1740 = vunpack.c.l.b16 %v1308
        %v1741 = vunpack.c.l.b16 %v1309
        %v1742 = vunpack.c.l.b16 %v1311
        %v1743 = vunpack.c.l.b16 %v1312
        %v1744 = vunpack.c.l.b16 %v1314
        %v1745 = vunpack.c.l.b16 %v1315
        %v1746 = vunpack.c.l.b16 %v1317
        %v1747 = vunpack.c.l.b16 %v1318
        %v1748 = vunpack.c.l.b16 %v1320
        %v1749 = vunpack.c.l.b16 %v1321
        %v1750 = vunpack.c.l.b16 %v1323
        %v1751 = vunpack.c.l.b16 %v1324
        %v1752 = vunpack.c.l.b16 %v1326
        %v1753 = vunpack.c.l.b16 %v1327
        %v1754 = vunpack.c.l.b16 %v1329
        %v1755 = vunpack.c.l.b16 %v1330
        %v1756 = vunpack.c.l.b16 %v1332
        %v1757 = vunpack.c.l.b16 %v1333
        %v1758 = vunpack.c.l.b16 %v1335
        %v1759 = vunpack.c.l.b16 %v1336
        %v1760 = vpack.c.b16 %v1729, %v1728
        %v1761 = vpack.c.b16 %v1731, %v1730
        %v1762 = vpack.c.b16 %v1733, %v1732
        %v1763 = vpack.c.b16 %v1735, %v1734
        %v1764 = vpack.c.b16 %v1737, %v1736
        %v1765 = vpack.c.b16 %v1739, %v1738
        %v1766 = vpack.c.b16 %v1741, %v1740
        %v1767 = vpack.c.b16 %v1743, %v1742
        %v1768 = vpack.c.b16 %v1745, %v1744
        %v1769 = vpack.c.b16 %v1747, %v1746
        %v1770 = vpack.c.b16 %v1749, %v1748
        %v1771 = vpack.c.b16 %v1751, %v1750
        %v1772 = vpack.c.b16 %v1753, %v1752
        %v1773 = vpack.c.b16 %v1755, %v1754
        %v1774 = vpack.c.b16 %v1757, %v1756
        %v1775 = vpack.c.b16 %v1759, %v1758
        %v1778 = vunpack.c.l.b16 %v1694
        %v1779 = vunpack.c.l.b16 %v1695
        %v1780 = vpack.c.b16 %v1779, %v1778
        %vm1781 = vcmask 97280
        %v1783 = vsel %vm1781, %v1760, 0
        %v1786 = vsel %vm1781, %v1761, 0
        %v1789 = vsel %vm1781, %v1762, 0
        %v1792 = vsel %vm1781, %v1763, 0
        %v1795 = vsel %vm1781, %v1764, 0
        %v1798 = vsel %vm1781, %v1765, 0
        %v1801 = vsel %vm1781, %v1766, 0
        %v1804 = vsel %vm1781, %v1767, 0
        %v1807 = vsel %vm1781, %v1768, 0
        %v1810 = vsel %vm1781, %v1769, 0
        %v1813 = vsel %vm1781, %v1770, 0
        %v1816 = vsel %vm1781, %v1771, 0
        %v1819 = vsel %vm1781, %v1772, 0
        %v1822 = vsel %vm1781, %v1773, 0
        %v1825 = vsel %vm1781, %v1774, 0
        %v1828 = vsel %vm1781, %v1775, 0
        %vm1830 = vcmask 1045504
        %v1832 = vsel %vm1830, %v1780, 0
        %1834 = vmatprep.subr.bf16.mxu0 0
        %1835 = vmatpush1.bf16.msra.mxu0 %v1832
        %1836 = vmatprep.subr.bf16.mxu0 0
        %1837 = vmatpush1.bf16.msra.mxu0 0
        %1838 = vmatprep.subr.bf16.mxu0 0
        %1839 = vmatpush1.bf16.msra.mxu0 0
        %1840 = vmatprep.subr.bf16.mxu0 0
        %1841 = vmatpush1.bf16.msra.mxu0 0
        %1842 = vmatprep.subr.bf16.mxu0 0
        %1843 = vmatpush1.bf16.msra.mxu0 0
        %1844 = vmatprep.subr.bf16.mxu0 0
        %1845 = vmatpush1.bf16.msra.mxu0 0
        %1846 = vmatprep.subr.bf16.mxu0 0
        %1847 = vmatpush1.bf16.msra.mxu0 0
        %1848 = vmatprep.subr.bf16.mxu0 0
        %1849 = vmatpush1.bf16.msra.mxu0 0
        %1850 = vmatprep.subr.bf16.mxu0 0
        %1851 = vmatpush1.bf16.msra.mxu0 0
        %1852 = vmatprep.subr.bf16.mxu0 0
        %1853 = vmatpush1.bf16.msra.mxu0 0
        %1854 = vmatprep.subr.bf16.mxu0 0
        %1855 = vmatpush1.bf16.msra.mxu0 0
        %1856 = vmatprep.subr.bf16.mxu0 0
        %1857 = vmatpush1.bf16.msra.mxu0 0
        %1858 = vmatprep.subr.bf16.mxu0 0
        %1859 = vmatpush1.bf16.msra.mxu0 0
        %1860 = vmatprep.subr.bf16.mxu0 0
        %1861 = vmatpush1.bf16.msra.mxu0 0
        %1862 = vmatprep.subr.bf16.mxu0 0
        %1863 = vmatpush1.bf16.msra.mxu0 0
        %1864 = vmatprep.subr.bf16.mxu0 0
        %1865 = vmatpush1.bf16.msra.mxu0 0
        %1866 = vmatprep.mubr.bf16.mxu0 0
        %1867 = vmatmul.mubr.bf16.gmra.mrb[0].mxu0 %v1783
        %v1868 = vpop.f32.mrb[0].mxu0
        %v1869 = vadd.f32 0.0, %v1868
        %v1870 = vpop.f32.mrb[0].mxu0
        %v1871 = vpop.f32.mrb[0].mxu0
        %v1872 = vadd.f32 0.0, %v1871
        %v1873 = vpop.f32.mrb[0].mxu0
        %1874 = vmatprep.mubr.bf16.mxu0 0
        %1875 = vmatmul.mubr.bf16.gmra.mrb[0].mxu0 %v1786
        %v1876 = vpop.f32.mrb[0].mxu0
        %v1877 = vadd.f32 0.0, %v1876
        %v1878 = vpop.f32.mrb[0].mxu0
        %v1879 = vpop.f32.mrb[0].mxu0
        %v1880 = vadd.f32 0.0, %v1879
        %v1881 = vpop.f32.mrb[0].mxu0
        %1882 = vmatprep.mubr.bf16.mxu0 0
        %1883 = vmatmul.mubr.bf16.gmra.mrb[0].mxu0 %v1789
        %v1884 = vpop.f32.mrb[0].mxu0
        %v1885 = vadd.f32 0.0, %v1884
        %v1886 = vpop.f32.mrb[0].mxu0
        %v1887 = vpop.f32.mrb[0].mxu0
        %v1888 = vadd.f32 0.0, %v1887
        %v1889 = vpop.f32.mrb[0].mxu0
        %1890 = vmatprep.mubr.bf16.mxu0 0
        %1891 = vmatmul.mubr.bf16.gmra.mrb[0].mxu0 %v1792
        %v1892 = vpop.f32.mrb[0].mxu0
        %v1893 = vadd.f32 0.0, %v1892
        %v1894 = vpop.f32.mrb[0].mxu0
        %v1895 = vpop.f32.mrb[0].mxu0
        %v1896 = vadd.f32 0.0, %v1895
        %v1897 = vpop.f32.mrb[0].mxu0
        %1898 = vmatprep.mubr.bf16.mxu0 0
        %1899 = vmatmul.mubr.bf16.gmra.mrb[0].mxu0 %v1795
        %v1900 = vpop.f32.mrb[0].mxu0
        %v1901 = vadd.f32 0.0, %v1900
        %v1902 = vpop.f32.mrb[0].mxu0
        %v1903 = vpop.f32.mrb[0].mxu0
        %v1904 = vadd.f32 0.0, %v1903
        %v1905 = vpop.f32.mrb[0].mxu0
        %1906 = vmatprep.mubr.bf16.mxu0 0
        %1907 = vmatmul.mubr.bf16.gmra.mrb[0].mxu0 %v1798
        %v1908 = vpop.f32.mrb[0].mxu0
        %v1909 = vadd.f32 0.0, %v1908
        %v1910 = vpop.f32.mrb[0].mxu0
        %v1911 = vpop.f32.mrb[0].mxu0
        %v1912 = vadd.f32 0.0, %v1911
        %v1913 = vpop.f32.mrb[0].mxu0
        %1914 = vmatprep.mubr.bf16.mxu0 0
        %1915 = vmatmul.mubr.bf16.gmra.mrb[0].mxu0 %v1801
        %v1916 = vpop.f32.mrb[0].mxu0
        %v1917 = vadd.f32 0.0, %v1916
        %v1918 = vpop.f32.mrb[0].mxu0
        %v1919 = vpop.f32.mrb[0].mxu0
        %v1920 = vadd.f32 0.0, %v1919
        %v1921 = vpop.f32.mrb[0].mxu0
        %1922 = vmatprep.mubr.bf16.mxu0 0
        %1923 = vmatmul.mubr.bf16.gmra.mrb[0].mxu0 %v1804
        %v1924 = vpop.f32.mrb[0].mxu0
        %v1925 = vadd.f32 0.0, %v1924
        %v1926 = vpop.f32.mrb[0].mxu0
        %v1927 = vpop.f32.mrb[0].mxu0
        %v1928 = vadd.f32 0.0, %v1927
        %v1929 = vpop.f32.mrb[0].mxu0
        %1930 = vmatprep.mubr.bf16.mxu0 0
        %1931 = vmatmul.mubr.bf16.gmra.mrb[0].mxu0 %v1807
        %v1932 = vpop.f32.mrb[0].mxu0
        %v1933 = vadd.f32 0.0, %v1932
        %v1934 = vpop.f32.mrb[0].mxu0
        %v1935 = vpop.f32.mrb[0].mxu0
        %v1936 = vadd.f32 0.0, %v1935
        %v1937 = vpop.f32.mrb[0].mxu0
        %1938 = vmatprep.mubr.bf16.mxu0 0
        %1939 = vmatmul.mubr.bf16.gmra.mrb[0].mxu0 %v1810
        %v1940 = vpop.f32.mrb[0].mxu0
        %v1941 = vadd.f32 0.0, %v1940
        %v1942 = vpop.f32.mrb[0].mxu0
        %v1943 = vpop.f32.mrb[0].mxu0
        %v1944 = vadd.f32 0.0, %v1943
        %v1945 = vpop.f32.mrb[0].mxu0
        %1946 = vmatprep.mubr.bf16.mxu0 0
        %1947 = vmatmul.mubr.bf16.gmra.mrb[0].mxu0 %v1813
        %v1948 = vpop.f32.mrb[0].mxu0
        %v1949 = vadd.f32 0.0, %v1948
        %v1950 = vpop.f32.mrb[0].mxu0
        %v1951 = vpop.f32.mrb[0].mxu0
        %v1952 = vadd.f32 0.0, %v1951
        %v1953 = vpop.f32.mrb[0].mxu0
        %1954 = vmatprep.mubr.bf16.mxu0 0
        %1955 = vmatmul.mubr.bf16.gmra.mrb[0].mxu0 %v1816
        %v1956 = vpop.f32.mrb[0].mxu0
        %v1957 = vadd.f32 0.0, %v1956
        %v1958 = vpop.f32.mrb[0].mxu0
        %v1959 = vpop.f32.mrb[0].mxu0
        %v1960 = vadd.f32 0.0, %v1959
        %v1961 = vpop.f32.mrb[0].mxu0
        %1962 = vmatprep.mubr.bf16.mxu0 0
        %1963 = vmatmul.mubr.bf16.gmra.mrb[0].mxu0 %v1819
        %v1964 = vpop.f32.mrb[0].mxu0
        %v1965 = vadd.f32 0.0, %v1964
        %v1966 = vpop.f32.mrb[0].mxu0
        %v1967 = vpop.f32.mrb[0].mxu0
        %v1968 = vadd.f32 0.0, %v1967
        %v1969 = vpop.f32.mrb[0].mxu0
        %1970 = vmatprep.mubr.bf16.mxu0 0
        %1971 = vmatmul.mubr.bf16.gmra.mrb[0].mxu0 %v1822
        %v1972 = vpop.f32.mrb[0].mxu0
        %v1973 = vadd.f32 0.0, %v1972
        %v1974 = vpop.f32.mrb[0].mxu0
        %v1975 = vpop.f32.mrb[0].mxu0
        %v1976 = vadd.f32 0.0, %v1975
        %v1977 = vpop.f32.mrb[0].mxu0
        %1978 = vmatprep.mubr.bf16.mxu0 0
        %1979 = vmatmul.mubr.bf16.gmra.mrb[0].mxu0 %v1825
        %v1980 = vpop.f32.mrb[0].mxu0
        %v1981 = vadd.f32 0.0, %v1980
        %v1982 = vpop.f32.mrb[0].mxu0
        %v1983 = vpop.f32.mrb[0].mxu0
        %v1984 = vadd.f32 0.0, %v1983
        %v1985 = vpop.f32.mrb[0].mxu0
        %1986 = vmatprep.mubr.bf16.mxu0 0
        %1987 = vmatmul.mubr.bf16.gmra.mrb[0].mxu0 %v1828
        %v1988 = vpop.f32.mrb[0].mxu0
        %v1989 = vadd.f32 0.0, %v1988
        %v1990 = vpop.f32.mrb[0].mxu0
        %v1991 = vpop.f32.mrb[0].mxu0
        %v1992 = vadd.f32 0.0, %v1991
        %v1993 = vpop.f32.mrb[0].mxu0
        %1994 = vdwg.mxu0
        %v1995 = vunpack.c.l.b16 %v1351
        %v1996 = vunpack.c.l.b16 %v1360
        %v1997 = vunpack.c.l.b16 %v1373
        %v1998 = vunpack.c.l.b16 %v1382
        %v1999 = vunpack.c.l.b16 %v1395
        %v2000 = vunpack.c.l.b16 %v1404
        %v2001 = vunpack.c.l.b16 %v1417
        %v2002 = vunpack.c.l.b16 %v1426
        %v2003 = vunpack.c.l.b16 %v1439
        %v2004 = vunpack.c.l.b16 %v1448
        %v2005 = vunpack.c.l.b16 %v1461
        %v2006 = vunpack.c.l.b16 %v1470
        %v2007 = vunpack.c.l.b16 %v1483
        %v2008 = vunpack.c.l.b16 %v1492
        %v2009 = vunpack.c.l.b16 %v1505
        %v2010 = vunpack.c.l.b16 %v1514
        %v2011 = vunpack.c.l.b16 %v1527
        %v2012 = vunpack.c.l.b16 %v1536
        %v2013 = vunpack.c.l.b16 %v1549
        %v2014 = vunpack.c.l.b16 %v1558
        %v2015 = vunpack.c.l.b16 %v1571
        %v2016 = vunpack.c.l.b16 %v1580
        %v2017 = vunpack.c.l.b16 %v1593
        %v2018 = vunpack.c.l.b16 %v1602
        %v2019 = vunpack.c.l.b16 %v1615
        %v2020 = vunpack.c.l.b16 %v1624
        %v2021 = vunpack.c.l.b16 %v1637
        %v2022 = vunpack.c.l.b16 %v1646
        %v2023 = vunpack.c.l.b16 %v1659
        %v2024 = vunpack.c.l.b16 %v1668
        %v2025 = vunpack.c.l.b16 %v1681
        %v2026 = vunpack.c.l.b16 %v1690
        %v2027 = vpack.c.b16 %v1996, %v1995
        %v2028 = vpack.c.b16 %v1998, %v1997
        %v2029 = vpack.c.b16 %v2000, %v1999
        %v2030 = vpack.c.b16 %v2002, %v2001
        %v2031 = vpack.c.b16 %v2004, %v2003
        %v2032 = vpack.c.b16 %v2006, %v2005
        %v2033 = vpack.c.b16 %v2008, %v2007
        %v2034 = vpack.c.b16 %v2010, %v2009
        %v2035 = vpack.c.b16 %v2012, %v2011
        %v2036 = vpack.c.b16 %v2014, %v2013
        %v2037 = vpack.c.b16 %v2016, %v2015
        %v2038 = vpack.c.b16 %v2018, %v2017
        %v2039 = vpack.c.b16 %v2020, %v2019
        %v2040 = vpack.c.b16 %v2022, %v2021
        %v2041 = vpack.c.b16 %v2024, %v2023
        %v2042 = vpack.c.b16 %v2026, %v2025
        %v2045 = vunpack.c.l.b16 %v1691
        %v2046 = vunpack.c.l.b16 %v1692
        %v2047 = vpack.c.b16 %v2046, %v2045
        %v2049 = vsel %vm1781, %v2027, 0
        %v2052 = vsel %vm1781, %v2028, 0
        %v2055 = vsel %vm1781, %v2029, 0
        %v2058 = vsel %vm1781, %v2030, 0
        %v2061 = vsel %vm1781, %v2031, 0
        %v2064 = vsel %vm1781, %v2032, 0
        %v2067 = vsel %vm1781, %v2033, 0
        %v2070 = vsel %vm1781, %v2034, 0
        %v2073 = vsel %vm1781, %v2035, 0
        %v2076 = vsel %vm1781, %v2036, 0
        %v2079 = vsel %vm1781, %v2037, 0
        %v2082 = vsel %vm1781, %v2038, 0
        %v2085 = vsel %vm1781, %v2039, 0
        %v2088 = vsel %vm1781, %v2040, 0
        %v2091 = vsel %vm1781, %v2041, 0
        %v2094 = vsel %vm1781, %v2042, 0
        %v2097 = vsel %vm1830, %v2047, 0
        %2099 = vmatprep.subr.bf16.mxu0 0
        %2100 = vmatpush1.bf16.msra.mxu0 %v2097
        %2101 = vmatprep.subr.bf16.mxu0 0
        %2102 = vmatpush1.bf16.msra.mxu0 0
        %2103 = vmatprep.subr.bf16.mxu0 0
        %2104 = vmatpush1.bf16.msra.mxu0 0
        %2105 = vmatprep.subr.bf16.mxu0 0
        %2106 = vmatpush1.bf16.msra.mxu0 0
        %2107 = vmatprep.subr.bf16.mxu0 0
        %2108 = vmatpush1.bf16.msra.mxu0 0
        %2109 = vmatprep.subr.bf16.mxu0 0
        %2110 = vmatpush1.bf16.msra.mxu0 0
        %2111 = vmatprep.subr.bf16.mxu0 0
        %2112 = vmatpush1.bf16.msra.mxu0 0
        %2113 = vmatprep.subr.bf16.mxu0 0
        %2114 = vmatpush1.bf16.msra.mxu0 0
        %2115 = vmatprep.subr.bf16.mxu0 0
        %2116 = vmatpush1.bf16.msra.mxu0 0
        %2117 = vmatprep.subr.bf16.mxu0 0
        %2118 = vmatpush1.bf16.msra.mxu0 0
        %2119 = vmatprep.subr.bf16.mxu0 0
        %2120 = vmatpush1.bf16.msra.mxu0 0
        %2121 = vmatprep.subr.bf16.mxu0 0
        %2122 = vmatpush1.bf16.msra.mxu0 0
        %2123 = vmatprep.subr.bf16.mxu0 0
        %2124 = vmatpush1.bf16.msra.mxu0 0
        %2125 = vmatprep.subr.bf16.mxu0 0
        %2126 = vmatpush1.bf16.msra.mxu0 0
        %2127 = vmatprep.subr.bf16.mxu0 0
        %2128 = vmatpush1.bf16.msra.mxu0 0
        %2129 = vmatprep.subr.bf16.mxu0 0
        %2130 = vmatpush1.bf16.msra.mxu0 0
        %2131 = vmatprep.mubr.bf16.mxu0 0
        %2132 = vmatmul.mubr.bf16.gmra.mrb[0].mxu0 %v2049
        %v2133 = vpop.f32.mrb[0].mxu0
        %v2134 = vadd.f32 %v1869, %v2133
        %v2135 = vpop.f32.mrb[0].mxu0
        %v2136 = vpop.f32.mrb[0].mxu0
        %v2137 = vadd.f32 %v1872, %v2136
        %v2138 = vpop.f32.mrb[0].mxu0
        %2139 = vmatprep.mubr.bf16.mxu0 0
        %2140 = vmatmul.mubr.bf16.gmra.mrb[0].mxu0 %v2052
        %v2141 = vpop.f32.mrb[0].mxu0
        %v2142 = vadd.f32 %v1877, %v2141
        %v2143 = vpop.f32.mrb[0].mxu0
        %v2144 = vpop.f32.mrb[0].mxu0
        %v2145 = vadd.f32 %v1880, %v2144
        %v2146 = vpop.f32.mrb[0].mxu0
        %2147 = vmatprep.mubr.bf16.mxu0 0
        %2148 = vmatmul.mubr.bf16.gmra.mrb[0].mxu0 %v2055
        %v2149 = vpop.f32.mrb[0].mxu0
        %v2150 = vadd.f32 %v1885, %v2149
        %v2151 = vpop.f32.mrb[0].mxu0
        %v2152 = vpop.f32.mrb[0].mxu0
        %v2153 = vadd.f32 %v1888, %v2152
        %v2154 = vpop.f32.mrb[0].mxu0
        %2155 = vmatprep.mubr.bf16.mxu0 0
        %2156 = vmatmul.mubr.bf16.gmra.mrb[0].mxu0 %v2058
        %v2157 = vpop.f32.mrb[0].mxu0
        %v2158 = vadd.f32 %v1893, %v2157
        %v2159 = vpop.f32.mrb[0].mxu0
        %v2160 = vpop.f32.mrb[0].mxu0
        %v2161 = vadd.f32 %v1896, %v2160
        %v2162 = vpop.f32.mrb[0].mxu0
        %2163 = vmatprep.mubr.bf16.mxu0 0
        %2164 = vmatmul.mubr.bf16.gmra.mrb[0].mxu0 %v2061
        %v2165 = vpop.f32.mrb[0].mxu0
        %v2166 = vadd.f32 %v1901, %v2165
        %v2167 = vpop.f32.mrb[0].mxu0
        %v2168 = vpop.f32.mrb[0].mxu0
        %v2169 = vadd.f32 %v1904, %v2168
        %v2170 = vpop.f32.mrb[0].mxu0
        %2171 = vmatprep.mubr.bf16.mxu0 0
        %2172 = vmatmul.mubr.bf16.gmra.mrb[0].mxu0 %v2064
        %v2173 = vpop.f32.mrb[0].mxu0
        %v2174 = vadd.f32 %v1909, %v2173
        %v2175 = vpop.f32.mrb[0].mxu0
        %v2176 = vpop.f32.mrb[0].mxu0
        %v2177 = vadd.f32 %v1912, %v2176
        %v2178 = vpop.f32.mrb[0].mxu0
        %2179 = vmatprep.mubr.bf16.mxu0 0
        %2180 = vmatmul.mubr.bf16.gmra.mrb[0].mxu0 %v2067
        %v2181 = vpop.f32.mrb[0].mxu0
        %v2182 = vadd.f32 %v1917, %v2181
        %v2183 = vpop.f32.mrb[0].mxu0
        %v2184 = vpop.f32.mrb[0].mxu0
        %v2185 = vadd.f32 %v1920, %v2184
        %v2186 = vpop.f32.mrb[0].mxu0
        %2187 = vmatprep.mubr.bf16.mxu0 0
        %2188 = vmatmul.mubr.bf16.gmra.mrb[0].mxu0 %v2070
        %v2189 = vpop.f32.mrb[0].mxu0
        %v2190 = vadd.f32 %v1925, %v2189
        %v2191 = vpop.f32.mrb[0].mxu0
        %v2192 = vpop.f32.mrb[0].mxu0
        %v2193 = vadd.f32 %v1928, %v2192
        %v2194 = vpop.f32.mrb[0].mxu0
        %2195 = vmatprep.mubr.bf16.mxu0 0
        %2196 = vmatmul.mubr.bf16.gmra.mrb[0].mxu0 %v2073
        %v2197 = vpop.f32.mrb[0].mxu0
        %v2198 = vadd.f32 %v1933, %v2197
        %v2199 = vpop.f32.mrb[0].mxu0
        %v2200 = vpop.f32.mrb[0].mxu0
        %v2201 = vadd.f32 %v1936, %v2200
        %v2202 = vpop.f32.mrb[0].mxu0
        %2203 = vmatprep.mubr.bf16.mxu0 0
        %2204 = vmatmul.mubr.bf16.gmra.mrb[0].mxu0 %v2076
        %v2205 = vpop.f32.mrb[0].mxu0
        %v2206 = vadd.f32 %v1941, %v2205
        %v2207 = vpop.f32.mrb[0].mxu0
        %v2208 = vpop.f32.mrb[0].mxu0
        %v2209 = vadd.f32 %v1944, %v2208
        %v2210 = vpop.f32.mrb[0].mxu0
        %2211 = vmatprep.mubr.bf16.mxu0 0
        %2212 = vmatmul.mubr.bf16.gmra.mrb[0].mxu0 %v2079
        %v2213 = vpop.f32.mrb[0].mxu0
        %v2214 = vadd.f32 %v1949, %v2213
        %v2215 = vpop.f32.mrb[0].mxu0
        %v2216 = vpop.f32.mrb[0].mxu0
        %v2217 = vadd.f32 %v1952, %v2216
        %v2218 = vpop.f32.mrb[0].mxu0
        %2219 = vmatprep.mubr.bf16.mxu0 0
        %2220 = vmatmul.mubr.bf16.gmra.mrb[0].mxu0 %v2082
        %v2221 = vpop.f32.mrb[0].mxu0
        %v2222 = vadd.f32 %v1957, %v2221
        %v2223 = vpop.f32.mrb[0].mxu0
        %v2224 = vpop.f32.mrb[0].mxu0
        %v2225 = vadd.f32 %v1960, %v2224
        %v2226 = vpop.f32.mrb[0].mxu0
        %2227 = vmatprep.mubr.bf16.mxu0 0
        %2228 = vmatmul.mubr.bf16.gmra.mrb[0].mxu0 %v2085
        %v2229 = vpop.f32.mrb[0].mxu0
        %v2230 = vadd.f32 %v1965, %v2229
        %v2231 = vpop.f32.mrb[0].mxu0
        %v2232 = vpop.f32.mrb[0].mxu0
        %v2233 = vadd.f32 %v1968, %v2232
        %v2234 = vpop.f32.mrb[0].mxu0
        %2235 = vmatprep.mubr.bf16.mxu0 0
        %2236 = vmatmul.mubr.bf16.gmra.mrb[0].mxu0 %v2088
        %v2237 = vpop.f32.mrb[0].mxu0
        %v2238 = vadd.f32 %v1973, %v2237
        %v2239 = vpop.f32.mrb[0].mxu0
        %v2240 = vpop.f32.mrb[0].mxu0
        %v2241 = vadd.f32 %v1976, %v2240
        %v2242 = vpop.f32.mrb[0].mxu0
        %2243 = vmatprep.mubr.bf16.mxu0 0
        %2244 = vmatmul.mubr.bf16.gmra.mrb[0].mxu0 %v2091
        %v2245 = vpop.f32.mrb[0].mxu0
        %v2246 = vadd.f32 %v1981, %v2245
        %v2247 = vpop.f32.mrb[0].mxu0
        %v2248 = vpop.f32.mrb[0].mxu0
        %v2249 = vadd.f32 %v1984, %v2248
        %v2250 = vpop.f32.mrb[0].mxu0
        %2251 = vmatprep.mubr.bf16.mxu0 0
        %2252 = vmatmul.mubr.bf16.gmra.mrb[0].mxu0 %v2094
        %v2253 = vpop.f32.mrb[0].mxu0
        %v2254 = vadd.f32 %v1989, %v2253
        %v2255 = vpop.f32.mrb[0].mxu0
        %v2256 = vpop.f32.mrb[0].mxu0
        %v2257 = vadd.f32 %v1992, %v2256
        %v2258 = vpop.f32.mrb[0].mxu0
        %2259 = vdwg.mxu0
        %v2260 = vld [vmem:[#allocation2 + $0x8] sm:$0xf]
        %v2261 = vld [vmem:[#allocation2 + $0xc] sm:$0xf]
        %v2262 = vld [vmem:[#allocation2 + $0x10] sm:$0x1]
        %v2263 = vld [vmem:[#allocation2 + $0x1c] sm:$0xf]
        %v2264 = vld [vmem:[#allocation2 + $0x20] sm:$0xf]
        %v2265 = vld [vmem:[#allocation2 + $0x24] sm:$0x1]
        %v2266 = vld [vmem:[#allocation2 + $0x30] sm:$0xf]
        %v2267 = vld [vmem:[#allocation2 + $0x34] sm:$0xf]
        %v2268 = vld [vmem:[#allocation2 + $0x38] sm:$0x1]
        %v2269 = vld [vmem:[#allocation2 + $0x44] sm:$0xf]
        %v2270 = vld [vmem:[#allocation2 + $0x48] sm:$0xf]
        %v2271 = vld [vmem:[#allocation2 + $0x4c] sm:$0x1]
        %v2272 = vld [vmem:[#allocation2 + $0x58] sm:$0xf]
        %v2273 = vld [vmem:[#allocation2 + $0x5c] sm:$0xf]
        %v2274 = vld [vmem:[#allocation2 + $0x60] sm:$0x1]
        %v2275 = vld [vmem:[#allocation2 + $0x6c] sm:$0xf]
        %v2276 = vld [vmem:[#allocation2 + $0x70] sm:$0xf]
        %v2277 = vld [vmem:[#allocation2 + $0x74] sm:$0x1]
        %v2278 = vld [vmem:[#allocation2 + $0x80] sm:$0xf]
        %v2279 = vld [vmem:[#allocation2 + $0x84] sm:$0xf]
        %v2280 = vld [vmem:[#allocation2 + $0x88] sm:$0x1]
        %v2281 = vld [vmem:[#allocation2 + $0x94] sm:$0xf]
        %v2282 = vld [vmem:[#allocation2 + $0x98] sm:$0xf]
        %v2283 = vld [vmem:[#allocation2 + $0x9c] sm:$0x1]
        %v2284 = vld [vmem:[#allocation2 + $0xa8] sm:$0xf]
        %v2285 = vld [vmem:[#allocation2 + $0xac] sm:$0xf]
        %v2286 = vld [vmem:[#allocation2 + $0xb0] sm:$0x1]
        %v2287 = vld [vmem:[#allocation2 + $0xbc] sm:$0xf]
        %v2288 = vld [vmem:[#allocation2 + $0xc0] sm:$0xf]
        %v2289 = vld [vmem:[#allocation2 + $0xc4] sm:$0x1]
        %v2290 = vld [vmem:[#allocation2 + $0xd0] sm:$0xf]
        %v2291 = vld [vmem:[#allocation2 + $0xd4] sm:$0xf]
        %v2292 = vld [vmem:[#allocation2 + $0xd8] sm:$0x1]
        %v2293 = vld [vmem:[#allocation2 + $0xe4] sm:$0xf]
        %v2294 = vld [vmem:[#allocation2 + $0xe8] sm:$0xf]
        %v2295 = vld [vmem:[#allocation2 + $0xec] sm:$0x1]
        %v2296 = vld [vmem:[#allocation2 + $0xf8] sm:$0xf]
        %v2297 = vld [vmem:[#allocation2 + $0xfc] sm:$0xf]
        %v2298 = vld [vmem:[#allocation2 + $0x100] sm:$0x1]
        %v2299 = vld [vmem:[#allocation2 + $0x10c] sm:$0xf]
        %v2300 = vld [vmem:[#allocation2 + $0x110] sm:$0xf]
        %v2301 = vld [vmem:[#allocation2 + $0x114] sm:$0x1]
        %v2302 = vld [vmem:[#allocation2 + $0x120] sm:$0xf]
        %v2303 = vld [vmem:[#allocation2 + $0x124] sm:$0xf]
        %v2304 = vld [vmem:[#allocation2 + $0x128] sm:$0x1]
        %v2305 = vld [vmem:[#allocation2 + $0x134] sm:$0xf]
        %v2306 = vld [vmem:[#allocation2 + $0x138] sm:$0xf]
        %v2307 = vld [vmem:[#allocation2 + $0x13c] sm:$0x1]
        %vm2308 = vsmask.f32 3328
        %vm2309 = vsmask.f32 7440
        %vm2310 = vmor %vm2308, %vm2309
        %v2312 = vshrl.u32 %v2260, 16
        %v2314 = vrot.slane %v2312, 4
        %v2315 = vshll.u32 %v2260, 16
        %v2317 = vrot.slane %v2315, 5
        %v2318 = vor.u32 %v2314, %v2317
        %v2319 = vrot.slane %v2318, 4
        %v2321 = vshll.u32 %v2261, 16
        %v2323 = vrot.slane %v2321, 5
        %v2324 = vsel %vm2310, %v2319, %v2323
        %v2325 = vshrl.u32 %v2261, 16
        %v2327 = vrot.slane %v2325, 4
        %v2328 = vor.u32 %v2327, %v2323
        %v2329 = vrot.slane %v2328, 4
        %v2331 = vshll.u32 %v2262, 16
        %v2333 = vrot.slane %v2331, 5
        %v2334 = vsel %vm2310, %v2329, %v2333
        %v2336 = vshrl.u32 %v2263, 16
        %v2338 = vrot.slane %v2336, 4
        %v2339 = vshll.u32 %v2263, 16
        %v2341 = vrot.slane %v2339, 5
        %v2342 = vor.u32 %v2338, %v2341
        %v2343 = vrot.slane %v2342, 4
        %v2345 = vshll.u32 %v2264, 16
        %v2347 = vrot.slane %v2345, 5
        %v2348 = vsel %vm2310, %v2343, %v2347
        %v2349 = vshrl.u32 %v2264, 16
        %v2351 = vrot.slane %v2349, 4
        %v2352 = vor.u32 %v2351, %v2347
        %v2353 = vrot.slane %v2352, 4
        %v2355 = vshll.u32 %v2265, 16
        %v2357 = vrot.slane %v2355, 5
        %v2358 = vsel %vm2310, %v2353, %v2357
        %v2360 = vshrl.u32 %v2266, 16
        %v2362 = vrot.slane %v2360, 4
        %v2363 = vshll.u32 %v2266, 16
        %v2365 = vrot.slane %v2363, 5
        %v2366 = vor.u32 %v2362, %v2365
        %v2367 = vrot.slane %v2366, 4
        %v2369 = vshll.u32 %v2267, 16
        %v2371 = vrot.slane %v2369, 5
        %v2372 = vsel %vm2310, %v2367, %v2371
        %v2373 = vshrl.u32 %v2267, 16
        %v2375 = vrot.slane %v2373, 4
        %v2376 = vor.u32 %v2375, %v2371
        %v2377 = vrot.slane %v2376, 4
        %v2379 = vshll.u32 %v2268, 16
        %v2381 = vrot.slane %v2379, 5
        %v2382 = vsel %vm2310, %v2377, %v2381
        %v2384 = vshrl.u32 %v2269, 16
        %v2386 = vrot.slane %v2384, 4
        %v2387 = vshll.u32 %v2269, 16
        %v2389 = vrot.slane %v2387, 5
        %v2390 = vor.u32 %v2386, %v2389
        %v2391 = vrot.slane %v2390, 4
        %v2393 = vshll.u32 %v2270, 16
        %v2395 = vrot.slane %v2393, 5
        %v2396 = vsel %vm2310, %v2391, %v2395
        %v2397 = vshrl.u32 %v2270, 16
        %v2399 = vrot.slane %v2397, 4
        %v2400 = vor.u32 %v2399, %v2395
        %v2401 = vrot.slane %v2400, 4
        %v2403 = vshll.u32 %v2271, 16
        %v2405 = vrot.slane %v2403, 5
        %v2406 = vsel %vm2310, %v2401, %v2405
        %v2408 = vshrl.u32 %v2272, 16
        %v2410 = vrot.slane %v2408, 4
        %v2411 = vshll.u32 %v2272, 16
        %v2413 = vrot.slane %v2411, 5
        %v2414 = vor.u32 %v2410, %v2413
        %v2415 = vrot.slane %v2414, 4
        %v2417 = vshll.u32 %v2273, 16
        %v2419 = vrot.slane %v2417, 5
        %v2420 = vsel %vm2310, %v2415, %v2419
        %v2421 = vshrl.u32 %v2273, 16
        %v2423 = vrot.slane %v2421, 4
        %v2424 = vor.u32 %v2423, %v2419
        %v2425 = vrot.slane %v2424, 4
        %v2427 = vshll.u32 %v2274, 16
        %v2429 = vrot.slane %v2427, 5
        %v2430 = vsel %vm2310, %v2425, %v2429
        %v2432 = vshrl.u32 %v2275, 16
        %v2434 = vrot.slane %v2432, 4
        %v2435 = vshll.u32 %v2275, 16
        %v2437 = vrot.slane %v2435, 5
        %v2438 = vor.u32 %v2434, %v2437
        %v2439 = vrot.slane %v2438, 4
        %v2441 = vshll.u32 %v2276, 16
        %v2443 = vrot.slane %v2441, 5
        %v2444 = vsel %vm2310, %v2439, %v2443
        %v2445 = vshrl.u32 %v2276, 16
        %v2447 = vrot.slane %v2445, 4
        %v2448 = vor.u32 %v2447, %v2443
        %v2449 = vrot.slane %v2448, 4
        %v2451 = vshll.u32 %v2277, 16
        %v2453 = vrot.slane %v2451, 5
        %v2454 = vsel %vm2310, %v2449, %v2453
        %v2456 = vshrl.u32 %v2278, 16
        %v2458 = vrot.slane %v2456, 4
        %v2459 = vshll.u32 %v2278, 16
        %v2461 = vrot.slane %v2459, 5
        %v2462 = vor.u32 %v2458, %v2461
        %v2463 = vrot.slane %v2462, 4
        %v2465 = vshll.u32 %v2279, 16
        %v2467 = vrot.slane %v2465, 5
        %v2468 = vsel %vm2310, %v2463, %v2467
        %v2469 = vshrl.u32 %v2279, 16
        %v2471 = vrot.slane %v2469, 4
        %v2472 = vor.u32 %v2471, %v2467
        %v2473 = vrot.slane %v2472, 4
        %v2475 = vshll.u32 %v2280, 16
        %v2477 = vrot.slane %v2475, 5
        %v2478 = vsel %vm2310, %v2473, %v2477
        %v2480 = vshrl.u32 %v2281, 16
        %v2482 = vrot.slane %v2480, 4
        %v2483 = vshll.u32 %v2281, 16
        %v2485 = vrot.slane %v2483, 5
        %v2486 = vor.u32 %v2482, %v2485
        %v2487 = vrot.slane %v2486, 4
        %v2489 = vshll.u32 %v2282, 16
        %v2491 = vrot.slane %v2489, 5
        %v2492 = vsel %vm2310, %v2487, %v2491
        %v2493 = vshrl.u32 %v2282, 16
        %v2495 = vrot.slane %v2493, 4
        %v2496 = vor.u32 %v2495, %v2491
        %v2497 = vrot.slane %v2496, 4
        %v2499 = vshll.u32 %v2283, 16
        %v2501 = vrot.slane %v2499, 5
        %v2502 = vsel %vm2310, %v2497, %v2501
        %v2504 = vshrl.u32 %v2284, 16
        %v2506 = vrot.slane %v2504, 4
        %v2507 = vshll.u32 %v2284, 16
        %v2509 = vrot.slane %v2507, 5
        %v2510 = vor.u32 %v2506, %v2509
        %v2511 = vrot.slane %v2510, 4
        %v2513 = vshll.u32 %v2285, 16
        %v2515 = vrot.slane %v2513, 5
        %v2516 = vsel %vm2310, %v2511, %v2515
        %v2517 = vshrl.u32 %v2285, 16
        %v2519 = vrot.slane %v2517, 4
        %v2520 = vor.u32 %v2519, %v2515
        %v2521 = vrot.slane %v2520, 4
        %v2523 = vshll.u32 %v2286, 16
        %v2525 = vrot.slane %v2523, 5
        %v2526 = vsel %vm2310, %v2521, %v2525
        %v2528 = vshrl.u32 %v2287, 16
        %v2530 = vrot.slane %v2528, 4
        %v2531 = vshll.u32 %v2287, 16
        %v2533 = vrot.slane %v2531, 5
        %v2534 = vor.u32 %v2530, %v2533
        %v2535 = vrot.slane %v2534, 4
        %v2537 = vshll.u32 %v2288, 16
        %v2539 = vrot.slane %v2537, 5
        %v2540 = vsel %vm2310, %v2535, %v2539
        %v2541 = vshrl.u32 %v2288, 16
        %v2543 = vrot.slane %v2541, 4
        %v2544 = vor.u32 %v2543, %v2539
        %v2545 = vrot.slane %v2544, 4
        %v2547 = vshll.u32 %v2289, 16
        %v2549 = vrot.slane %v2547, 5
        %v2550 = vsel %vm2310, %v2545, %v2549
        %v2552 = vshrl.u32 %v2290, 16
        %v2554 = vrot.slane %v2552, 4
        %v2555 = vshll.u32 %v2290, 16
        %v2557 = vrot.slane %v2555, 5
        %v2558 = vor.u32 %v2554, %v2557
        %v2559 = vrot.slane %v2558, 4
        %v2561 = vshll.u32 %v2291, 16
        %v2563 = vrot.slane %v2561, 5
        %v2564 = vsel %vm2310, %v2559, %v2563
        %v2565 = vshrl.u32 %v2291, 16
        %v2567 = vrot.slane %v2565, 4
        %v2568 = vor.u32 %v2567, %v2563
        %v2569 = vrot.slane %v2568, 4
        %v2571 = vshll.u32 %v2292, 16
        %v2573 = vrot.slane %v2571, 5
        %v2574 = vsel %vm2310, %v2569, %v2573
        %v2576 = vshrl.u32 %v2293, 16
        %v2578 = vrot.slane %v2576, 4
        %v2579 = vshll.u32 %v2293, 16
        %v2581 = vrot.slane %v2579, 5
        %v2582 = vor.u32 %v2578, %v2581
        %v2583 = vrot.slane %v2582, 4
        %v2585 = vshll.u32 %v2294, 16
        %v2587 = vrot.slane %v2585, 5
        %v2588 = vsel %vm2310, %v2583, %v2587
        %v2589 = vshrl.u32 %v2294, 16
        %v2591 = vrot.slane %v2589, 4
        %v2592 = vor.u32 %v2591, %v2587
        %v2593 = vrot.slane %v2592, 4
        %v2595 = vshll.u32 %v2295, 16
        %v2597 = vrot.slane %v2595, 5
        %v2598 = vsel %vm2310, %v2593, %v2597
        %v2600 = vshrl.u32 %v2296, 16
        %v2602 = vrot.slane %v2600, 4
        %v2603 = vshll.u32 %v2296, 16
        %v2605 = vrot.slane %v2603, 5
        %v2606 = vor.u32 %v2602, %v2605
        %v2607 = vrot.slane %v2606, 4
        %v2609 = vshll.u32 %v2297, 16
        %v2611 = vrot.slane %v2609, 5
        %v2612 = vsel %vm2310, %v2607, %v2611
        %v2613 = vshrl.u32 %v2297, 16
        %v2615 = vrot.slane %v2613, 4
        %v2616 = vor.u32 %v2615, %v2611
        %v2617 = vrot.slane %v2616, 4
        %v2619 = vshll.u32 %v2298, 16
        %v2621 = vrot.slane %v2619, 5
        %v2622 = vsel %vm2310, %v2617, %v2621
        %v2624 = vshrl.u32 %v2299, 16
        %v2626 = vrot.slane %v2624, 4
        %v2627 = vshll.u32 %v2299, 16
        %v2629 = vrot.slane %v2627, 5
        %v2630 = vor.u32 %v2626, %v2629
        %v2631 = vrot.slane %v2630, 4
        %v2633 = vshll.u32 %v2300, 16
        %v2635 = vrot.slane %v2633, 5
        %v2636 = vsel %vm2310, %v2631, %v2635
        %v2637 = vshrl.u32 %v2300, 16
        %v2639 = vrot.slane %v2637, 4
        %v2640 = vor.u32 %v2639, %v2635
        %v2641 = vrot.slane %v2640, 4
        %v2643 = vshll.u32 %v2301, 16
        %v2645 = vrot.slane %v2643, 5
        %v2646 = vsel %vm2310, %v2641, %v2645
        %v2648 = vshrl.u32 %v2302, 16
        %v2650 = vrot.slane %v2648, 4
        %v2651 = vshll.u32 %v2302, 16
        %v2653 = vrot.slane %v2651, 5
        %v2654 = vor.u32 %v2650, %v2653
        %v2655 = vrot.slane %v2654, 4
        %v2657 = vshll.u32 %v2303, 16
        %v2659 = vrot.slane %v2657, 5
        %v2660 = vsel %vm2310, %v2655, %v2659
        %v2661 = vshrl.u32 %v2303, 16
        %v2663 = vrot.slane %v2661, 4
        %v2664 = vor.u32 %v2663, %v2659
        %v2665 = vrot.slane %v2664, 4
        %v2667 = vshll.u32 %v2304, 16
        %v2669 = vrot.slane %v2667, 5
        %v2670 = vsel %vm2310, %v2665, %v2669
        %v2672 = vshrl.u32 %v2305, 16
        %v2674 = vrot.slane %v2672, 4
        %v2675 = vshll.u32 %v2305, 16
        %v2677 = vrot.slane %v2675, 5
        %v2678 = vor.u32 %v2674, %v2677
        %v2679 = vrot.slane %v2678, 4
        %v2681 = vshll.u32 %v2306, 16
        %v2683 = vrot.slane %v2681, 5
        %v2684 = vsel %vm2310, %v2679, %v2683
        %v2685 = vshrl.u32 %v2306, 16
        %v2687 = vrot.slane %v2685, 4
        %v2688 = vor.u32 %v2687, %v2683
        %v2689 = vrot.slane %v2688, 4
        %v2691 = vshll.u32 %v2307, 16
        %v2693 = vrot.slane %v2691, 5
        %v2694 = vsel %vm2310, %v2689, %v2693
        %s2695 = scalar_lea.vmem %s4, 16
        %v2696 = vld [vmem:[%s2695] sm:$0xf]
        %v2697 = vld [vmem:[%s2695 + $0x4] sm:$0x3]
        %v2698 = vunpack.c.l.b16 %v2324
        %v2699 = vunpack.c.l.b16 %v2334
        %v2700 = vunpack.c.l.b16 %v2348
        %v2701 = vunpack.c.l.b16 %v2358
        %v2702 = vunpack.c.l.b16 %v2372
        %v2703 = vunpack.c.l.b16 %v2382
        %v2704 = vunpack.c.l.b16 %v2396
        %v2705 = vunpack.c.l.b16 %v2406
        %v2706 = vunpack.c.l.b16 %v2420
        %v2707 = vunpack.c.l.b16 %v2430
        %v2708 = vunpack.c.l.b16 %v2444
        %v2709 = vunpack.c.l.b16 %v2454
        %v2710 = vunpack.c.l.b16 %v2468
        %v2711 = vunpack.c.l.b16 %v2478
        %v2712 = vunpack.c.l.b16 %v2492
        %v2713 = vunpack.c.l.b16 %v2502
        %v2714 = vunpack.c.l.b16 %v2516
        %v2715 = vunpack.c.l.b16 %v2526
        %v2716 = vunpack.c.l.b16 %v2540
        %v2717 = vunpack.c.l.b16 %v2550
        %v2718 = vunpack.c.l.b16 %v2564
        %v2719 = vunpack.c.l.b16 %v2574
        %v2720 = vunpack.c.l.b16 %v2588
        %v2721 = vunpack.c.l.b16 %v2598
        %v2722 = vunpack.c.l.b16 %v2612
        %v2723 = vunpack.c.l.b16 %v2622
        %v2724 = vunpack.c.l.b16 %v2636
        %v2725 = vunpack.c.l.b16 %v2646
        %v2726 = vunpack.c.l.b16 %v2660
        %v2727 = vunpack.c.l.b16 %v2670
        %v2728 = vunpack.c.l.b16 %v2684
        %v2729 = vunpack.c.l.b16 %v2694
        %v2730 = vpack.c.b16 %v2699, %v2698
        %v2731 = vpack.c.b16 %v2701, %v2700
        %v2732 = vpack.c.b16 %v2703, %v2702
        %v2733 = vpack.c.b16 %v2705, %v2704
        %v2734 = vpack.c.b16 %v2707, %v2706
        %v2735 = vpack.c.b16 %v2709, %v2708
        %v2736 = vpack.c.b16 %v2711, %v2710
        %v2737 = vpack.c.b16 %v2713, %v2712
        %v2738 = vpack.c.b16 %v2715, %v2714
        %v2739 = vpack.c.b16 %v2717, %v2716
        %v2740 = vpack.c.b16 %v2719, %v2718
        %v2741 = vpack.c.b16 %v2721, %v2720
        %v2742 = vpack.c.b16 %v2723, %v2722
        %v2743 = vpack.c.b16 %v2725, %v2724
        %v2744 = vpack.c.b16 %v2727, %v2726
        %v2745 = vpack.c.b16 %v2729, %v2728
        %v2748 = vunpack.c.l.b16 %v2696
        %v2749 = vunpack.c.l.b16 %v2697
        %v2750 = vpack.c.b16 %v2749, %v2748
        %v2752 = vsel %vm1781, %v2730, 0
        %v2755 = vsel %vm1781, %v2731, 0
        %v2758 = vsel %vm1781, %v2732, 0
        %v2761 = vsel %vm1781, %v2733, 0
        %v2764 = vsel %vm1781, %v2734, 0
        %v2767 = vsel %vm1781, %v2735, 0
        %v2770 = vsel %vm1781, %v2736, 0
        %v2773 = vsel %vm1781, %v2737, 0
        %v2776 = vsel %vm1781, %v2738, 0
        %v2779 = vsel %vm1781, %v2739, 0
        %v2782 = vsel %vm1781, %v2740, 0
        %v2785 = vsel %vm1781, %v2741, 0
        %v2788 = vsel %vm1781, %v2742, 0
        %v2791 = vsel %vm1781, %v2743, 0
        %v2794 = vsel %vm1781, %v2744, 0
        %v2797 = vsel %vm1781, %v2745, 0
        %v2800 = vsel %vm1830, %v2750, 0
        %2802 = vmatprep.subr.bf16.mxu0 0
        %2803 = vmatpush1.bf16.msra.mxu0 %v2800
        %2804 = vmatprep.subr.bf16.mxu0 0
        %2805 = vmatpush1.bf16.msra.mxu0 0
        %2806 = vmatprep.subr.bf16.mxu0 0
        %2807 = vmatpush1.bf16.msra.mxu0 0
        %2808 = vmatprep.subr.bf16.mxu0 0
        %2809 = vmatpush1.bf16.msra.mxu0 0
        %2810 = vmatprep.subr.bf16.mxu0 0
        %2811 = vmatpush1.bf16.msra.mxu0 0
        %2812 = vmatprep.subr.bf16.mxu0 0
        %2813 = vmatpush1.bf16.msra.mxu0 0
        %2814 = vmatprep.subr.bf16.mxu0 0
        %2815 = vmatpush1.bf16.msra.mxu0 0
        %2816 = vmatprep.subr.bf16.mxu0 0
        %2817 = vmatpush1.bf16.msra.mxu0 0
        %2818 = vmatprep.subr.bf16.mxu0 0
        %2819 = vmatpush1.bf16.msra.mxu0 0
        %2820 = vmatprep.subr.bf16.mxu0 0
        %2821 = vmatpush1.bf16.msra.mxu0 0
        %2822 = vmatprep.subr.bf16.mxu0 0
        %2823 = vmatpush1.bf16.msra.mxu0 0
        %2824 = vmatprep.subr.bf16.mxu0 0
        %2825 = vmatpush1.bf16.msra.mxu0 0
        %2826 = vmatprep.subr.bf16.mxu0 0
        %2827 = vmatpush1.bf16.msra.mxu0 0
        %2828 = vmatprep.subr.bf16.mxu0 0
        %2829 = vmatpush1.bf16.msra.mxu0 0
        %2830 = vmatprep.subr.bf16.mxu0 0
        %2831 = vmatpush1.bf16.msra.mxu0 0
        %2832 = vmatprep.subr.bf16.mxu0 0
        %2833 = vmatpush1.bf16.msra.mxu0 0
        %2834 = vmatprep.mubr.bf16.mxu0 0
        %2835 = vmatmul.mubr.bf16.gmra.mrb[0].mxu0 %v2752
        %v2836 = vpop.f32.mrb[0].mxu0
        %v2837 = vadd.f32 0.0, %v2836
        %v2838 = vpop.f32.mrb[0].mxu0
        %v2839 = vpop.f32.mrb[0].mxu0
        %v2840 = vadd.f32 0.0, %v2839
        %v2841 = vpop.f32.mrb[0].mxu0
        %2842 = vmatprep.mubr.bf16.mxu0 0
        %2843 = vmatmul.mubr.bf16.gmra.mrb[0].mxu0 %v2755
        %v2844 = vpop.f32.mrb[0].mxu0
        %v2845 = vadd.f32 0.0, %v2844
        %v2846 = vpop.f32.mrb[0].mxu0
        %v2847 = vpop.f32.mrb[0].mxu0
        %v2848 = vadd.f32 0.0, %v2847
        %v2849 = vpop.f32.mrb[0].mxu0
        %2850 = vmatprep.mubr.bf16.mxu0 0
        %2851 = vmatmul.mubr.bf16.gmra.mrb[0].mxu0 %v2758
        %v2852 = vpop.f32.mrb[0].mxu0
        %v2853 = vadd.f32 0.0, %v2852
        %v2854 = vpop.f32.mrb[0].mxu0
        %v2855 = vpop.f32.mrb[0].mxu0
        %v2856 = vadd.f32 0.0, %v2855
        %v2857 = vpop.f32.mrb[0].mxu0
        %2858 = vmatprep.mubr.bf16.mxu0 0
        %2859 = vmatmul.mubr.bf16.gmra.mrb[0].mxu0 %v2761
        %v2860 = vpop.f32.mrb[0].mxu0
        %v2861 = vadd.f32 0.0, %v2860
        %v2862 = vpop.f32.mrb[0].mxu0
        %v2863 = vpop.f32.mrb[0].mxu0
        %v2864 = vadd.f32 0.0, %v2863
        %v2865 = vpop.f32.mrb[0].mxu0
        %2866 = vmatprep.mubr.bf16.mxu0 0
        %2867 = vmatmul.mubr.bf16.gmra.mrb[0].mxu0 %v2764
        %v2868 = vpop.f32.mrb[0].mxu0
        %v2869 = vadd.f32 0.0, %v2868
        %v2870 = vpop.f32.mrb[0].mxu0
        %v2871 = vpop.f32.mrb[0].mxu0
        %v2872 = vadd.f32 0.0, %v2871
        %v2873 = vpop.f32.mrb[0].mxu0
        %2874 = vmatprep.mubr.bf16.mxu0 0
        %2875 = vmatmul.mubr.bf16.gmra.mrb[0].mxu0 %v2767
        %v2876 = vpop.f32.mrb[0].mxu0
        %v2877 = vadd.f32 0.0, %v2876
        %v2878 = vpop.f32.mrb[0].mxu0
        %v2879 = vpop.f32.mrb[0].mxu0
        %v2880 = vadd.f32 0.0, %v2879
        %v2881 = vpop.f32.mrb[0].mxu0
        %2882 = vmatprep.mubr.bf16.mxu0 0
        %2883 = vmatmul.mubr.bf16.gmra.mrb[0].mxu0 %v2770
        %v2884 = vpop.f32.mrb[0].mxu0
        %v2885 = vadd.f32 0.0, %v2884
        %v2886 = vpop.f32.mrb[0].mxu0
        %v2887 = vpop.f32.mrb[0].mxu0
        %v2888 = vadd.f32 0.0, %v2887
        %v2889 = vpop.f32.mrb[0].mxu0
        %2890 = vmatprep.mubr.bf16.mxu0 0
        %2891 = vmatmul.mubr.bf16.gmra.mrb[0].mxu0 %v2773
        %v2892 = vpop.f32.mrb[0].mxu0
        %v2893 = vadd.f32 0.0, %v2892
        %v2894 = vpop.f32.mrb[0].mxu0
        %v2895 = vpop.f32.mrb[0].mxu0
        %v2896 = vadd.f32 0.0, %v2895
        %v2897 = vpop.f32.mrb[0].mxu0
        %2898 = vmatprep.mubr.bf16.mxu0 0
        %2899 = vmatmul.mubr.bf16.gmra.mrb[0].mxu0 %v2776
        %v2900 = vpop.f32.mrb[0].mxu0
        %v2901 = vadd.f32 0.0, %v2900
        %v2902 = vpop.f32.mrb[0].mxu0
        %v2903 = vpop.f32.mrb[0].mxu0
        %v2904 = vadd.f32 0.0, %v2903
        %v2905 = vpop.f32.mrb[0].mxu0
        %2906 = vmatprep.mubr.bf16.mxu0 0
        %2907 = vmatmul.mubr.bf16.gmra.mrb[0].mxu0 %v2779
        %v2908 = vpop.f32.mrb[0].mxu0
        %v2909 = vadd.f32 0.0, %v2908
        %v2910 = vpop.f32.mrb[0].mxu0
        %v2911 = vpop.f32.mrb[0].mxu0
        %v2912 = vadd.f32 0.0, %v2911
        %v2913 = vpop.f32.mrb[0].mxu0
        %2914 = vmatprep.mubr.bf16.mxu0 0
        %2915 = vmatmul.mubr.bf16.gmra.mrb[0].mxu0 %v2782
        %v2916 = vpop.f32.mrb[0].mxu0
        %v2917 = vadd.f32 0.0, %v2916
        %v2918 = vpop.f32.mrb[0].mxu0
        %v2919 = vpop.f32.mrb[0].mxu0
        %v2920 = vadd.f32 0.0, %v2919
        %v2921 = vpop.f32.mrb[0].mxu0
        %2922 = vmatprep.mubr.bf16.mxu0 0
        %2923 = vmatmul.mubr.bf16.gmra.mrb[0].mxu0 %v2785
        %v2924 = vpop.f32.mrb[0].mxu0
        %v2925 = vadd.f32 0.0, %v2924
        %v2926 = vpop.f32.mrb[0].mxu0
        %v2927 = vpop.f32.mrb[0].mxu0
        %v2928 = vadd.f32 0.0, %v2927
        %v2929 = vpop.f32.mrb[0].mxu0
        %2930 = vmatprep.mubr.bf16.mxu0 0
        %2931 = vmatmul.mubr.bf16.gmra.mrb[0].mxu0 %v2788
        %v2932 = vpop.f32.mrb[0].mxu0
        %v2933 = vadd.f32 0.0, %v2932
        %v2934 = vpop.f32.mrb[0].mxu0
        %v2935 = vpop.f32.mrb[0].mxu0
        %v2936 = vadd.f32 0.0, %v2935
        %v2937 = vpop.f32.mrb[0].mxu0
        %2938 = vmatprep.mubr.bf16.mxu0 0
        %2939 = vmatmul.mubr.bf16.gmra.mrb[0].mxu0 %v2791
        %v2940 = vpop.f32.mrb[0].mxu0
        %v2941 = vadd.f32 0.0, %v2940
        %v2942 = vpop.f32.mrb[0].mxu0
        %v2943 = vpop.f32.mrb[0].mxu0
        %v2944 = vadd.f32 0.0, %v2943
        %v2945 = vpop.f32.mrb[0].mxu0
        %2946 = vmatprep.mubr.bf16.mxu0 0
        %2947 = vmatmul.mubr.bf16.gmra.mrb[0].mxu0 %v2794
        %v2948 = vpop.f32.mrb[0].mxu0
        %v2949 = vadd.f32 0.0, %v2948
        %v2950 = vpop.f32.mrb[0].mxu0
        %v2951 = vpop.f32.mrb[0].mxu0
        %v2952 = vadd.f32 0.0, %v2951
        %v2953 = vpop.f32.mrb[0].mxu0
        %2954 = vmatprep.mubr.bf16.mxu0 0
        %2955 = vmatmul.mubr.bf16.gmra.mrb[0].mxu0 %v2797
        %v2956 = vpop.f32.mrb[0].mxu0
        %v2957 = vadd.f32 0.0, %v2956
        %v2958 = vpop.f32.mrb[0].mxu0
        %v2959 = vpop.f32.mrb[0].mxu0
        %v2960 = vadd.f32 0.0, %v2959
        %v2961 = vpop.f32.mrb[0].mxu0
        %2962 = vdwg.mxu0
        %v2963 = vadd.f32 %v2134, %v2837
        %v2964 = vadd.f32 %v2137, %v2840
        %v2965 = vadd.f32 %v2142, %v2845
        %v2966 = vadd.f32 %v2145, %v2848
        %v2967 = vadd.f32 %v2150, %v2853
        %v2968 = vadd.f32 %v2153, %v2856
        %v2969 = vadd.f32 %v2158, %v2861
        %v2970 = vadd.f32 %v2161, %v2864
        %v2971 = vadd.f32 %v2166, %v2869
        %v2972 = vadd.f32 %v2169, %v2872
        %v2973 = vadd.f32 %v2174, %v2877
        %v2974 = vadd.f32 %v2177, %v2880
        %v2975 = vadd.f32 %v2182, %v2885
        %v2976 = vadd.f32 %v2185, %v2888
        %v2977 = vadd.f32 %v2190, %v2893
        %v2978 = vadd.f32 %v2193, %v2896
        %v2979 = vadd.f32 %v2198, %v2901
        %v2980 = vadd.f32 %v2201, %v2904
        %v2981 = vadd.f32 %v2206, %v2909
        %v2982 = vadd.f32 %v2209, %v2912
        %v2983 = vadd.f32 %v2214, %v2917
        %v2984 = vadd.f32 %v2217, %v2920
        %v2985 = vadd.f32 %v2222, %v2925
        %v2986 = vadd.f32 %v2225, %v2928
        %v2987 = vadd.f32 %v2230, %v2933
        %v2988 = vadd.f32 %v2233, %v2936
        %v2989 = vadd.f32 %v2238, %v2941
        %v2990 = vadd.f32 %v2241, %v2944
        %v2991 = vadd.f32 %v2246, %v2949
        %v2992 = vadd.f32 %v2249, %v2952
        %v2993 = vadd.f32 %v2254, %v2957
        %v2994 = vadd.f32 %v2257, %v2960
        %v2995 = vld [vmem:[%s411 + $0x4] sm:$0x8]
        %v2996 = vld [vmem:[%s411 + $0x8] sm:$0xf]
        %v2997 = vld [vmem:[%s411 + $0xc] sm:$0xf]
        %v2998 = vld [vmem:[%s411 + $0x18] sm:$0x8]
        %v2999 = vld [vmem:[%s411 + $0x1c] sm:$0xf]
        %v3000 = vld [vmem:[%s411 + $0x20] sm:$0xf]
        %v3001 = vld [vmem:[%s411 + $0x2c] sm:$0x8]
        %v3002 = vld [vmem:[%s411 + $0x30] sm:$0xf]
        %v3003 = vld [vmem:[%s411 + $0x34] sm:$0xf]
        %v3004 = vld [vmem:[%s411 + $0x40] sm:$0x8]
        %v3005 = vld [vmem:[%s411 + $0x44] sm:$0xf]
        %v3006 = vld [vmem:[%s411 + $0x48] sm:$0xf]
        %v3007 = vld [vmem:[%s411 + $0x54] sm:$0x8]
        %v3008 = vld [vmem:[%s411 + $0x58] sm:$0xf]
        %v3009 = vld [vmem:[%s411 + $0x5c] sm:$0xf]
        %v3010 = vld [vmem:[%s411 + $0x68] sm:$0x8]
        %v3011 = vld [vmem:[%s411 + $0x6c] sm:$0xf]
        %v3012 = vld [vmem:[%s411 + $0x70] sm:$0xf]
        %v3013 = vld [vmem:[%s411 + $0x7c] sm:$0x8]
        %v3014 = vld [vmem:[%s411 + $0x80] sm:$0xf]
        %v3015 = vld [vmem:[%s411 + $0x84] sm:$0xf]
        %v3016 = vld [vmem:[%s411 + $0x90] sm:$0x8]
        %v3017 = vld [vmem:[%s411 + $0x94] sm:$0xf]
        %v3018 = vld [vmem:[%s411 + $0x98] sm:$0xf]
        %v3019 = vld [vmem:[%s411 + $0xa4] sm:$0x8]
        %v3020 = vld [vmem:[%s411 + $0xa8] sm:$0xf]
        %v3021 = vld [vmem:[%s411 + $0xac] sm:$0xf]
        %v3022 = vld [vmem:[%s411 + $0xb8] sm:$0x8]
        %v3023 = vld [vmem:[%s411 + $0xbc] sm:$0xf]
        %v3024 = vld [vmem:[%s411 + $0xc0] sm:$0xf]
        %v3025 = vld [vmem:[%s411 + $0xcc] sm:$0x8]
        %v3026 = vld [vmem:[%s411 + $0xd0] sm:$0xf]
        %v3027 = vld [vmem:[%s411 + $0xd4] sm:$0xf]
        %v3028 = vld [vmem:[%s411 + $0xe0] sm:$0x8]
        %v3029 = vld [vmem:[%s411 + $0xe4] sm:$0xf]
        %v3030 = vld [vmem:[%s411 + $0xe8] sm:$0xf]
        %v3031 = vld [vmem:[%s411 + $0xf4] sm:$0x8]
        %v3032 = vld [vmem:[%s411 + $0xf8] sm:$0xf]
        %v3033 = vld [vmem:[%s411 + $0xfc] sm:$0xf]
        %v3034 = vld [vmem:[%s411 + $0x108] sm:$0x8]
        %v3035 = vld [vmem:[%s411 + $0x10c] sm:$0xf]
        %v3036 = vld [vmem:[%s411 + $0x110] sm:$0xf]
        %v3037 = vld [vmem:[%s411 + $0x11c] sm:$0x8]
        %v3038 = vld [vmem:[%s411 + $0x120] sm:$0xf]
        %v3039 = vld [vmem:[%s411 + $0x124] sm:$0xf]
        %v3040 = vld [vmem:[%s411 + $0x130] sm:$0x8]
        %v3041 = vld [vmem:[%s411 + $0x134] sm:$0xf]
        %v3042 = vld [vmem:[%s411 + $0x138] sm:$0xf]
        %v3044 = vshrl.u32 %v2995, 16
        %v3046 = vrot.slane %v3044, 7
        %v3047 = vrot.slane %v3046, 4
        %v3049 = vshrl.u32 %v2996, 16
        %v3051 = vrot.slane %v3049, 7
        %v3052 = vshll.u32 %v2996, 16
        %v3054 = vor.u32 %v3051, %v3052
        %v3055 = vsel %vm1338, %v3047, %v3054
        %v3056 = vrot.slane %v3051, 4
        %v3058 = vshrl.u32 %v2997, 16
        %v3060 = vrot.slane %v3058, 7
        %v3061 = vshll.u32 %v2997, 16
        %v3063 = vor.u32 %v3060, %v3061
        %v3064 = vsel %vm1338, %v3056, %v3063
        %v3066 = vshrl.u32 %v2998, 16
        %v3068 = vrot.slane %v3066, 7
        %v3069 = vrot.slane %v3068, 4
        %v3071 = vshrl.u32 %v2999, 16
        %v3073 = vrot.slane %v3071, 7
        %v3074 = vshll.u32 %v2999, 16
        %v3076 = vor.u32 %v3073, %v3074
        %v3077 = vsel %vm1338, %v3069, %v3076
        %v3078 = vrot.slane %v3073, 4
        %v3080 = vshrl.u32 %v3000, 16
        %v3082 = vrot.slane %v3080, 7
        %v3083 = vshll.u32 %v3000, 16
        %v3085 = vor.u32 %v3082, %v3083
        %v3086 = vsel %vm1338, %v3078, %v3085
        %v3088 = vshrl.u32 %v3001, 16
        %v3090 = vrot.slane %v3088, 7
        %v3091 = vrot.slane %v3090, 4
        %v3093 = vshrl.u32 %v3002, 16
        %v3095 = vrot.slane %v3093, 7
        %v3096 = vshll.u32 %v3002, 16
        %v3098 = vor.u32 %v3095, %v3096
        %v3099 = vsel %vm1338, %v3091, %v3098
        %v3100 = vrot.slane %v3095, 4
        %v3102 = vshrl.u32 %v3003, 16
        %v3104 = vrot.slane %v3102, 7
        %v3105 = vshll.u32 %v3003, 16
        %v3107 = vor.u32 %v3104, %v3105
        %v3108 = vsel %vm1338, %v3100, %v3107
        %v3110 = vshrl.u32 %v3004, 16
        %v3112 = vrot.slane %v3110, 7
        %v3113 = vrot.slane %v3112, 4
        %v3115 = vshrl.u32 %v3005, 16
        %v3117 = vrot.slane %v3115, 7
        %v3118 = vshll.u32 %v3005, 16
        %v3120 = vor.u32 %v3117, %v3118
        %v3121 = vsel %vm1338, %v3113, %v3120
        %v3122 = vrot.slane %v3117, 4
        %v3124 = vshrl.u32 %v3006, 16
        %v3126 = vrot.slane %v3124, 7
        %v3127 = vshll.u32 %v3006, 16
        %v3129 = vor.u32 %v3126, %v3127
        %v3130 = vsel %vm1338, %v3122, %v3129
        %v3132 = vshrl.u32 %v3007, 16
        %v3134 = vrot.slane %v3132, 7
        %v3135 = vrot.slane %v3134, 4
        %v3137 = vshrl.u32 %v3008, 16
        %v3139 = vrot.slane %v3137, 7
        %v3140 = vshll.u32 %v3008, 16
        %v3142 = vor.u32 %v3139, %v3140
        %v3143 = vsel %vm1338, %v3135, %v3142
        %v3144 = vrot.slane %v3139, 4
        %v3146 = vshrl.u32 %v3009, 16
        %v3148 = vrot.slane %v3146, 7
        %v3149 = vshll.u32 %v3009, 16
        %v3151 = vor.u32 %v3148, %v3149
        %v3152 = vsel %vm1338, %v3144, %v3151
        %v3154 = vshrl.u32 %v3010, 16
        %v3156 = vrot.slane %v3154, 7
        %v3157 = vrot.slane %v3156, 4
        %v3159 = vshrl.u32 %v3011, 16
        %v3161 = vrot.slane %v3159, 7
        %v3162 = vshll.u32 %v3011, 16
        %v3164 = vor.u32 %v3161, %v3162
        %v3165 = vsel %vm1338, %v3157, %v3164
        %v3166 = vrot.slane %v3161, 4
        %v3168 = vshrl.u32 %v3012, 16
        %v3170 = vrot.slane %v3168, 7
        %v3171 = vshll.u32 %v3012, 16
        %v3173 = vor.u32 %v3170, %v3171
        %v3174 = vsel %vm1338, %v3166, %v3173
        %v3176 = vshrl.u32 %v3013, 16
        %v3178 = vrot.slane %v3176, 7
        %v3179 = vrot.slane %v3178, 4
        %v3181 = vshrl.u32 %v3014, 16
        %v3183 = vrot.slane %v3181, 7
        %v3184 = vshll.u32 %v3014, 16
        %v3186 = vor.u32 %v3183, %v3184
        %v3187 = vsel %vm1338, %v3179, %v3186
        %v3188 = vrot.slane %v3183, 4
        %v3190 = vshrl.u32 %v3015, 16
        %v3192 = vrot.slane %v3190, 7
        %v3193 = vshll.u32 %v3015, 16
        %v3195 = vor.u32 %v3192, %v3193
        %v3196 = vsel %vm1338, %v3188, %v3195
        %v3198 = vshrl.u32 %v3016, 16
        %v3200 = vrot.slane %v3198, 7
        %v3201 = vrot.slane %v3200, 4
        %v3203 = vshrl.u32 %v3017, 16
        %v3205 = vrot.slane %v3203, 7
        %v3206 = vshll.u32 %v3017, 16
        %v3208 = vor.u32 %v3205, %v3206
        %v3209 = vsel %vm1338, %v3201, %v3208
        %v3210 = vrot.slane %v3205, 4
        %v3212 = vshrl.u32 %v3018, 16
        %v3214 = vrot.slane %v3212, 7
        %v3215 = vshll.u32 %v3018, 16
        %v3217 = vor.u32 %v3214, %v3215
        %v3218 = vsel %vm1338, %v3210, %v3217
        %v3220 = vshrl.u32 %v3019, 16
        %v3222 = vrot.slane %v3220, 7
        %v3223 = vrot.slane %v3222, 4
        %v3225 = vshrl.u32 %v3020, 16
        %v3227 = vrot.slane %v3225, 7
        %v3228 = vshll.u32 %v3020, 16
        %v3230 = vor.u32 %v3227, %v3228
        %v3231 = vsel %vm1338, %v3223, %v3230
        %v3232 = vrot.slane %v3227, 4
        %v3234 = vshrl.u32 %v3021, 16
        %v3236 = vrot.slane %v3234, 7
        %v3237 = vshll.u32 %v3021, 16
        %v3239 = vor.u32 %v3236, %v3237
        %v3240 = vsel %vm1338, %v3232, %v3239
        %v3242 = vshrl.u32 %v3022, 16
        %v3244 = vrot.slane %v3242, 7
        %v3245 = vrot.slane %v3244, 4
        %v3247 = vshrl.u32 %v3023, 16
        %v3249 = vrot.slane %v3247, 7
        %v3250 = vshll.u32 %v3023, 16
        %v3252 = vor.u32 %v3249, %v3250
        %v3253 = vsel %vm1338, %v3245, %v3252
        %v3254 = vrot.slane %v3249, 4
        %v3256 = vshrl.u32 %v3024, 16
        %v3258 = vrot.slane %v3256, 7
        %v3259 = vshll.u32 %v3024, 16
        %v3261 = vor.u32 %v3258, %v3259
        %v3262 = vsel %vm1338, %v3254, %v3261
        %v3264 = vshrl.u32 %v3025, 16
        %v3266 = vrot.slane %v3264, 7
        %v3267 = vrot.slane %v3266, 4
        %v3269 = vshrl.u32 %v3026, 16
        %v3271 = vrot.slane %v3269, 7
        %v3272 = vshll.u32 %v3026, 16
        %v3274 = vor.u32 %v3271, %v3272
        %v3275 = vsel %vm1338, %v3267, %v3274
        %v3276 = vrot.slane %v3271, 4
        %v3278 = vshrl.u32 %v3027, 16
        %v3280 = vrot.slane %v3278, 7
        %v3281 = vshll.u32 %v3027, 16
        %v3283 = vor.u32 %v3280, %v3281
        %v3284 = vsel %vm1338, %v3276, %v3283
        %v3286 = vshrl.u32 %v3028, 16
        %v3288 = vrot.slane %v3286, 7
        %v3289 = vrot.slane %v3288, 4
        %v3291 = vshrl.u32 %v3029, 16
        %v3293 = vrot.slane %v3291, 7
        %v3294 = vshll.u32 %v3029, 16
        %v3296 = vor.u32 %v3293, %v3294
        %v3297 = vsel %vm1338, %v3289, %v3296
        %v3298 = vrot.slane %v3293, 4
        %v3300 = vshrl.u32 %v3030, 16
        %v3302 = vrot.slane %v3300, 7
        %v3303 = vshll.u32 %v3030, 16
        %v3305 = vor.u32 %v3302, %v3303
        %v3306 = vsel %vm1338, %v3298, %v3305
        %v3308 = vshrl.u32 %v3031, 16
        %v3310 = vrot.slane %v3308, 7
        %v3311 = vrot.slane %v3310, 4
        %v3313 = vshrl.u32 %v3032, 16
        %v3315 = vrot.slane %v3313, 7
        %v3316 = vshll.u32 %v3032, 16
        %v3318 = vor.u32 %v3315, %v3316
        %v3319 = vsel %vm1338, %v3311, %v3318
        %v3320 = vrot.slane %v3315, 4
        %v3322 = vshrl.u32 %v3033, 16
        %v3324 = vrot.slane %v3322, 7
        %v3325 = vshll.u32 %v3033, 16
        %v3327 = vor.u32 %v3324, %v3325
        %v3328 = vsel %vm1338, %v3320, %v3327
        %v3330 = vshrl.u32 %v3034, 16
        %v3332 = vrot.slane %v3330, 7
        %v3333 = vrot.slane %v3332, 4
        %v3335 = vshrl.u32 %v3035, 16
        %v3337 = vrot.slane %v3335, 7
        %v3338 = vshll.u32 %v3035, 16
        %v3340 = vor.u32 %v3337, %v3338
        %v3341 = vsel %vm1338, %v3333, %v3340
        %v3342 = vrot.slane %v3337, 4
        %v3344 = vshrl.u32 %v3036, 16
        %v3346 = vrot.slane %v3344, 7
        %v3347 = vshll.u32 %v3036, 16
        %v3349 = vor.u32 %v3346, %v3347
        %v3350 = vsel %vm1338, %v3342, %v3349
        %v3352 = vshrl.u32 %v3037, 16
        %v3354 = vrot.slane %v3352, 7
        %v3355 = vrot.slane %v3354, 4
        %v3357 = vshrl.u32 %v3038, 16
        %v3359 = vrot.slane %v3357, 7
        %v3360 = vshll.u32 %v3038, 16
        %v3362 = vor.u32 %v3359, %v3360
        %v3363 = vsel %vm1338, %v3355, %v3362
        %v3364 = vrot.slane %v3359, 4
        %v3366 = vshrl.u32 %v3039, 16
        %v3368 = vrot.slane %v3366, 7
        %v3369 = vshll.u32 %v3039, 16
        %v3371 = vor.u32 %v3368, %v3369
        %v3372 = vsel %vm1338, %v3364, %v3371
        %v3374 = vshrl.u32 %v3040, 16
        %v3376 = vrot.slane %v3374, 7
        %v3377 = vrot.slane %v3376, 4
        %v3379 = vshrl.u32 %v3041, 16
        %v3381 = vrot.slane %v3379, 7
        %v3382 = vshll.u32 %v3041, 16
        %v3384 = vor.u32 %v3381, %v3382
        %v3385 = vsel %vm1338, %v3377, %v3384
        %v3386 = vrot.slane %v3381, 4
        %v3388 = vshrl.u32 %v3042, 16
        %v3390 = vrot.slane %v3388, 7
        %v3391 = vshll.u32 %v3042, 16
        %v3393 = vor.u32 %v3390, %v3391
        %v3394 = vsel %vm1338, %v3386, %v3393
        %s3395 = scalar_lea.vmem %s4, 24
        %v3396 = vld [vmem:[%s3395] sm:$0xf]
        %v3397 = vld [vmem:[%s3395 + $0x4] sm:$0x3]
        %v3398 = vunpack.c.l.b16 %v3055
        %v3399 = vunpack.c.l.b16 %v3064
        %v3400 = vunpack.c.l.b16 %v3077
        %v3401 = vunpack.c.l.b16 %v3086
        %v3402 = vunpack.c.l.b16 %v3099
        %v3403 = vunpack.c.l.b16 %v3108
        %v3404 = vunpack.c.l.b16 %v3121
        %v3405 = vunpack.c.l.b16 %v3130
        %v3406 = vunpack.c.l.b16 %v3143
        %v3407 = vunpack.c.l.b16 %v3152
        %v3408 = vunpack.c.l.b16 %v3165
        %v3409 = vunpack.c.l.b16 %v3174
        %v3410 = vunpack.c.l.b16 %v3187
        %v3411 = vunpack.c.l.b16 %v3196
        %v3412 = vunpack.c.l.b16 %v3209
        %v3413 = vunpack.c.l.b16 %v3218
        %v3414 = vunpack.c.l.b16 %v3231
        %v3415 = vunpack.c.l.b16 %v3240
        %v3416 = vunpack.c.l.b16 %v3253
        %v3417 = vunpack.c.l.b16 %v3262
        %v3418 = vunpack.c.l.b16 %v3275
        %v3419 = vunpack.c.l.b16 %v3284
        %v3420 = vunpack.c.l.b16 %v3297
        %v3421 = vunpack.c.l.b16 %v3306
        %v3422 = vunpack.c.l.b16 %v3319
        %v3423 = vunpack.c.l.b16 %v3328
        %v3424 = vunpack.c.l.b16 %v3341
        %v3425 = vunpack.c.l.b16 %v3350
        %v3426 = vunpack.c.l.b16 %v3363
        %v3427 = vunpack.c.l.b16 %v3372
        %v3428 = vunpack.c.l.b16 %v3385
        %v3429 = vunpack.c.l.b16 %v3394
        %v3430 = vpack.c.b16 %v3399, %v3398
        %v3431 = vpack.c.b16 %v3401, %v3400
        %v3432 = vpack.c.b16 %v3403, %v3402
        %v3433 = vpack.c.b16 %v3405, %v3404
        %v3434 = vpack.c.b16 %v3407, %v3406
        %v3435 = vpack.c.b16 %v3409, %v3408
        %v3436 = vpack.c.b16 %v3411, %v3410
        %v3437 = vpack.c.b16 %v3413, %v3412
        %v3438 = vpack.c.b16 %v3415, %v3414
        %v3439 = vpack.c.b16 %v3417, %v3416
        %v3440 = vpack.c.b16 %v3419, %v3418
        %v3441 = vpack.c.b16 %v3421, %v3420
        %v3442 = vpack.c.b16 %v3423, %v3422
        %v3443 = vpack.c.b16 %v3425, %v3424
        %v3444 = vpack.c.b16 %v3427, %v3426
        %v3445 = vpack.c.b16 %v3429, %v3428
        %v3448 = vunpack.c.l.b16 %v3396
        %v3449 = vunpack.c.l.b16 %v3397
        %v3450 = vpack.c.b16 %v3449, %v3448
        %v3452 = vsel %vm1781, %v3430, 0
        %v3455 = vsel %vm1781, %v3431, 0
        %v3458 = vsel %vm1781, %v3432, 0
        %v3461 = vsel %vm1781, %v3433, 0
        %v3464 = vsel %vm1781, %v3434, 0
        %v3467 = vsel %vm1781, %v3435, 0
        %v3470 = vsel %vm1781, %v3436, 0
        %v3473 = vsel %vm1781, %v3437, 0
        %v3476 = vsel %vm1781, %v3438, 0
        %v3479 = vsel %vm1781, %v3439, 0
        %v3482 = vsel %vm1781, %v3440, 0
        %v3485 = vsel %vm1781, %v3441, 0
        %v3488 = vsel %vm1781, %v3442, 0
        %v3491 = vsel %vm1781, %v3443, 0
        %v3494 = vsel %vm1781, %v3444, 0
        %v3497 = vsel %vm1781, %v3445, 0
        %v3500 = vsel %vm1830, %v3450, 0
        %3502 = vmatprep.subr.bf16.mxu0 0
        %3503 = vmatpush1.bf16.msra.mxu0 %v3500
        %3504 = vmatprep.subr.bf16.mxu0 0
        %3505 = vmatpush1.bf16.msra.mxu0 0
        %3506 = vmatprep.subr.bf16.mxu0 0
        %3507 = vmatpush1.bf16.msra.mxu0 0
        %3508 = vmatprep.subr.bf16.mxu0 0
        %3509 = vmatpush1.bf16.msra.mxu0 0
        %3510 = vmatprep.subr.bf16.mxu0 0
        %3511 = vmatpush1.bf16.msra.mxu0 0
        %3512 = vmatprep.subr.bf16.mxu0 0
        %3513 = vmatpush1.bf16.msra.mxu0 0
        %3514 = vmatprep.subr.bf16.mxu0 0
        %3515 = vmatpush1.bf16.msra.mxu0 0
        %3516 = vmatprep.subr.bf16.mxu0 0
        %3517 = vmatpush1.bf16.msra.mxu0 0
        %3518 = vmatprep.subr.bf16.mxu0 0
        %3519 = vmatpush1.bf16.msra.mxu0 0
        %3520 = vmatprep.subr.bf16.mxu0 0
        %3521 = vmatpush1.bf16.msra.mxu0 0
        %3522 = vmatprep.subr.bf16.mxu0 0
        %3523 = vmatpush1.bf16.msra.mxu0 0
        %3524 = vmatprep.subr.bf16.mxu0 0
        %3525 = vmatpush1.bf16.msra.mxu0 0
        %3526 = vmatprep.subr.bf16.mxu0 0
        %3527 = vmatpush1.bf16.msra.mxu0 0
        %3528 = vmatprep.subr.bf16.mxu0 0
        %3529 = vmatpush1.bf16.msra.mxu0 0
        %3530 = vmatprep.subr.bf16.mxu0 0
        %3531 = vmatpush1.bf16.msra.mxu0 0
        %3532 = vmatprep.subr.bf16.mxu0 0
        %3533 = vmatpush1.bf16.msra.mxu0 0
        %3534 = vmatprep.mubr.bf16.mxu0 0
        %3535 = vmatmul.mubr.bf16.gmra.mrb[0].mxu0 %v3452
        %v3536 = vpop.f32.mrb[0].mxu0
        %v3537 = vadd.f32 0.0, %v3536
        %v3538 = vpop.f32.mrb[0].mxu0
        %v3539 = vpop.f32.mrb[0].mxu0
        %v3540 = vadd.f32 0.0, %v3539
        %v3541 = vpop.f32.mrb[0].mxu0
        %3542 = vmatprep.mubr.bf16.mxu0 0
        %3543 = vmatmul.mubr.bf16.gmra.mrb[0].mxu0 %v3455
        %v3544 = vpop.f32.mrb[0].mxu0
        %v3545 = vadd.f32 0.0, %v3544
        %v3546 = vpop.f32.mrb[0].mxu0
        %v3547 = vpop.f32.mrb[0].mxu0
        %v3548 = vadd.f32 0.0, %v3547
        %v3549 = vpop.f32.mrb[0].mxu0
        %3550 = vmatprep.mubr.bf16.mxu0 0
        %3551 = vmatmul.mubr.bf16.gmra.mrb[0].mxu0 %v3458
        %v3552 = vpop.f32.mrb[0].mxu0
        %v3553 = vadd.f32 0.0, %v3552
        %v3554 = vpop.f32.mrb[0].mxu0
        %v3555 = vpop.f32.mrb[0].mxu0
        %v3556 = vadd.f32 0.0, %v3555
        %v3557 = vpop.f32.mrb[0].mxu0
        %3558 = vmatprep.mubr.bf16.mxu0 0
        %3559 = vmatmul.mubr.bf16.gmra.mrb[0].mxu0 %v3461
        %v3560 = vpop.f32.mrb[0].mxu0
        %v3561 = vadd.f32 0.0, %v3560
        %v3562 = vpop.f32.mrb[0].mxu0
        %v3563 = vpop.f32.mrb[0].mxu0
        %v3564 = vadd.f32 0.0, %v3563
        %v3565 = vpop.f32.mrb[0].mxu0
        %3566 = vmatprep.mubr.bf16.mxu0 0
        %3567 = vmatmul.mubr.bf16.gmra.mrb[0].mxu0 %v3464
        %v3568 = vpop.f32.mrb[0].mxu0
        %v3569 = vadd.f32 0.0, %v3568
        %v3570 = vpop.f32.mrb[0].mxu0
        %v3571 = vpop.f32.mrb[0].mxu0
        %v3572 = vadd.f32 0.0, %v3571
        %v3573 = vpop.f32.mrb[0].mxu0
        %3574 = vmatprep.mubr.bf16.mxu0 0
        %3575 = vmatmul.mubr.bf16.gmra.mrb[0].mxu0 %v3467
        %v3576 = vpop.f32.mrb[0].mxu0
        %v3577 = vadd.f32 0.0, %v3576
        %v3578 = vpop.f32.mrb[0].mxu0
        %v3579 = vpop.f32.mrb[0].mxu0
        %v3580 = vadd.f32 0.0, %v3579
        %v3581 = vpop.f32.mrb[0].mxu0
        %3582 = vmatprep.mubr.bf16.mxu0 0
        %3583 = vmatmul.mubr.bf16.gmra.mrb[0].mxu0 %v3470
        %v3584 = vpop.f32.mrb[0].mxu0
        %v3585 = vadd.f32 0.0, %v3584
        %v3586 = vpop.f32.mrb[0].mxu0
        %v3587 = vpop.f32.mrb[0].mxu0
        %v3588 = vadd.f32 0.0, %v3587
        %v3589 = vpop.f32.mrb[0].mxu0
        %3590 = vmatprep.mubr.bf16.mxu0 0
        %3591 = vmatmul.mubr.bf16.gmra.mrb[0].mxu0 %v3473
        %v3592 = vpop.f32.mrb[0].mxu0
        %v3593 = vadd.f32 0.0, %v3592
        %v3594 = vpop.f32.mrb[0].mxu0
        %v3595 = vpop.f32.mrb[0].mxu0
        %v3596 = vadd.f32 0.0, %v3595
        %v3597 = vpop.f32.mrb[0].mxu0
        %3598 = vmatprep.mubr.bf16.mxu0 0
        %3599 = vmatmul.mubr.bf16.gmra.mrb[0].mxu0 %v3476
        %v3600 = vpop.f32.mrb[0].mxu0
        %v3601 = vadd.f32 0.0, %v3600
        %v3602 = vpop.f32.mrb[0].mxu0
        %v3603 = vpop.f32.mrb[0].mxu0
        %v3604 = vadd.f32 0.0, %v3603
        %v3605 = vpop.f32.mrb[0].mxu0
        %3606 = vmatprep.mubr.bf16.mxu0 0
        %3607 = vmatmul.mubr.bf16.gmra.mrb[0].mxu0 %v3479
        %v3608 = vpop.f32.mrb[0].mxu0
        %v3609 = vadd.f32 0.0, %v3608
        %v3610 = vpop.f32.mrb[0].mxu0
        %v3611 = vpop.f32.mrb[0].mxu0
        %v3612 = vadd.f32 0.0, %v3611
        %v3613 = vpop.f32.mrb[0].mxu0
        %3614 = vmatprep.mubr.bf16.mxu0 0
        %3615 = vmatmul.mubr.bf16.gmra.mrb[0].mxu0 %v3482
        %v3616 = vpop.f32.mrb[0].mxu0
        %v3617 = vadd.f32 0.0, %v3616
        %v3618 = vpop.f32.mrb[0].mxu0
        %v3619 = vpop.f32.mrb[0].mxu0
        %v3620 = vadd.f32 0.0, %v3619
        %v3621 = vpop.f32.mrb[0].mxu0
        %3622 = vmatprep.mubr.bf16.mxu0 0
        %3623 = vmatmul.mubr.bf16.gmra.mrb[0].mxu0 %v3485
        %v3624 = vpop.f32.mrb[0].mxu0
        %v3625 = vadd.f32 0.0, %v3624
        %v3626 = vpop.f32.mrb[0].mxu0
        %v3627 = vpop.f32.mrb[0].mxu0
        %v3628 = vadd.f32 0.0, %v3627
        %v3629 = vpop.f32.mrb[0].mxu0
        %3630 = vmatprep.mubr.bf16.mxu0 0
        %3631 = vmatmul.mubr.bf16.gmra.mrb[0].mxu0 %v3488
        %v3632 = vpop.f32.mrb[0].mxu0
        %v3633 = vadd.f32 0.0, %v3632
        %v3634 = vpop.f32.mrb[0].mxu0
        %v3635 = vpop.f32.mrb[0].mxu0
        %v3636 = vadd.f32 0.0, %v3635
        %v3637 = vpop.f32.mrb[0].mxu0
        %3638 = vmatprep.mubr.bf16.mxu0 0
        %3639 = vmatmul.mubr.bf16.gmra.mrb[0].mxu0 %v3491
        %v3640 = vpop.f32.mrb[0].mxu0
        %v3641 = vadd.f32 0.0, %v3640
        %v3642 = vpop.f32.mrb[0].mxu0
        %v3643 = vpop.f32.mrb[0].mxu0
        %v3644 = vadd.f32 0.0, %v3643
        %v3645 = vpop.f32.mrb[0].mxu0
        %3646 = vmatprep.mubr.bf16.mxu0 0
        %3647 = vmatmul.mubr.bf16.gmra.mrb[0].mxu0 %v3494
        %v3648 = vpop.f32.mrb[0].mxu0
        %v3649 = vadd.f32 0.0, %v3648
        %v3650 = vpop.f32.mrb[0].mxu0
        %v3651 = vpop.f32.mrb[0].mxu0
        %v3652 = vadd.f32 0.0, %v3651
        %v3653 = vpop.f32.mrb[0].mxu0
        %3654 = vmatprep.mubr.bf16.mxu0 0
        %3655 = vmatmul.mubr.bf16.gmra.mrb[0].mxu0 %v3497
        %v3656 = vpop.f32.mrb[0].mxu0
        %v3657 = vadd.f32 0.0, %v3656
        %v3658 = vpop.f32.mrb[0].mxu0
        %v3659 = vpop.f32.mrb[0].mxu0
        %v3660 = vadd.f32 0.0, %v3659
        %v3661 = vpop.f32.mrb[0].mxu0
        %3662 = vdwg.mxu0
        %v3663 = vadd.f32 %v2963, %v3537
        %v3664 = vadd.f32 %v2964, %v3540
        %v3665 = vadd.f32 %v2965, %v3545
        %v3666 = vadd.f32 %v2966, %v3548
        %v3667 = vadd.f32 %v2967, %v3553
        %v3668 = vadd.f32 %v2968, %v3556
        %v3669 = vadd.f32 %v2969, %v3561
        %v3670 = vadd.f32 %v2970, %v3564
        %v3671 = vadd.f32 %v2971, %v3569
        %v3672 = vadd.f32 %v2972, %v3572
        %v3673 = vadd.f32 %v2973, %v3577
        %v3674 = vadd.f32 %v2974, %v3580
        %v3675 = vadd.f32 %v2975, %v3585
        %v3676 = vadd.f32 %v2976, %v3588
        %v3677 = vadd.f32 %v2977, %v3593
        %v3678 = vadd.f32 %v2978, %v3596
        %v3679 = vadd.f32 %v2979, %v3601
        %v3680 = vadd.f32 %v2980, %v3604
        %v3681 = vadd.f32 %v2981, %v3609
        %v3682 = vadd.f32 %v2982, %v3612
        %v3683 = vadd.f32 %v2983, %v3617
        %v3684 = vadd.f32 %v2984, %v3620
        %v3685 = vadd.f32 %v2985, %v3625
        %v3686 = vadd.f32 %v2986, %v3628
        %v3687 = vadd.f32 %v2987, %v3633
        %v3688 = vadd.f32 %v2988, %v3636
        %v3689 = vadd.f32 %v2989, %v3641
        %v3690 = vadd.f32 %v2990, %v3644
        %v3691 = vadd.f32 %v2991, %v3649
        %v3692 = vadd.f32 %v2992, %v3652
        %v3693 = vadd.f32 %v2993, %v3657
        %v3694 = vadd.f32 %v2994, %v3660
        %s3695 = scalar_lea.vmem %s4, 32
        %v3696 = vld [vmem:[%s3695] sm:$0xf]
        %v3697 = vld [vmem:[%s3695 + $0x4] sm:$0x3]
        %v3730 = vunpack.c.l.b16 %v2996
        %v3731 = vunpack.c.l.b16 %v2997
        %v3732 = vunpack.c.l.b16 %v2999
        %v3733 = vunpack.c.l.b16 %v3000
        %v3734 = vunpack.c.l.b16 %v3002
        %v3735 = vunpack.c.l.b16 %v3003
        %v3736 = vunpack.c.l.b16 %v3005
        %v3737 = vunpack.c.l.b16 %v3006
        %v3738 = vunpack.c.l.b16 %v3008
        %v3739 = vunpack.c.l.b16 %v3009
        %v3740 = vunpack.c.l.b16 %v3011
        %v3741 = vunpack.c.l.b16 %v3012
        %v3742 = vunpack.c.l.b16 %v3014
        %v3743 = vunpack.c.l.b16 %v3015
        %v3744 = vunpack.c.l.b16 %v3017
        %v3745 = vunpack.c.l.b16 %v3018
        %v3746 = vunpack.c.l.b16 %v3020
        %v3747 = vunpack.c.l.b16 %v3021
        %v3748 = vunpack.c.l.b16 %v3023
        %v3749 = vunpack.c.l.b16 %v3024
        %v3750 = vunpack.c.l.b16 %v3026
        %v3751 = vunpack.c.l.b16 %v3027
        %v3752 = vunpack.c.l.b16 %v3029
        %v3753 = vunpack.c.l.b16 %v3030
        %v3754 = vunpack.c.l.b16 %v3032
        %v3755 = vunpack.c.l.b16 %v3033
        %v3756 = vunpack.c.l.b16 %v3035
        %v3757 = vunpack.c.l.b16 %v3036
        %v3758 = vunpack.c.l.b16 %v3038
        %v3759 = vunpack.c.l.b16 %v3039
        %v3760 = vunpack.c.l.b16 %v3041
        %v3761 = vunpack.c.l.b16 %v3042
        %v3762 = vpack.c.b16 %v3731, %v3730
        %v3763 = vpack.c.b16 %v3733, %v3732
        %v3764 = vpack.c.b16 %v3735, %v3734
        %v3765 = vpack.c.b16 %v3737, %v3736
        %v3766 = vpack.c.b16 %v3739, %v3738
        %v3767 = vpack.c.b16 %v3741, %v3740
        %v3768 = vpack.c.b16 %v3743, %v3742
        %v3769 = vpack.c.b16 %v3745, %v3744
        %v3770 = vpack.c.b16 %v3747, %v3746
        %v3771 = vpack.c.b16 %v3749, %v3748
        %v3772 = vpack.c.b16 %v3751, %v3750
        %v3773 = vpack.c.b16 %v3753, %v3752
        %v3774 = vpack.c.b16 %v3755, %v3754
        %v3775 = vpack.c.b16 %v3757, %v3756
        %v3776 = vpack.c.b16 %v3759, %v3758
        %v3777 = vpack.c.b16 %v3761, %v3760
        %v3780 = vunpack.c.l.b16 %v3696
        %v3781 = vunpack.c.l.b16 %v3697
        %v3782 = vpack.c.b16 %v3781, %v3780
        %v3784 = vsel %vm1781, %v3762, 0
        %v3787 = vsel %vm1781, %v3763, 0
        %v3790 = vsel %vm1781, %v3764, 0
        %v3793 = vsel %vm1781, %v3765, 0
        %v3796 = vsel %vm1781, %v3766, 0
        %v3799 = vsel %vm1781, %v3767, 0
        %v3802 = vsel %vm1781, %v3768, 0
        %v3805 = vsel %vm1781, %v3769, 0
        %v3808 = vsel %vm1781, %v3770, 0
        %v3811 = vsel %vm1781, %v3771, 0
        %v3814 = vsel %vm1781, %v3772, 0
        %v3817 = vsel %vm1781, %v3773, 0
        %v3820 = vsel %vm1781, %v3774, 0
        %v3823 = vsel %vm1781, %v3775, 0
        %v3826 = vsel %vm1781, %v3776, 0
        %v3829 = vsel %vm1781, %v3777, 0
        %v3832 = vsel %vm1830, %v3782, 0
        %3834 = vmatprep.subr.bf16.mxu0 0
        %3835 = vmatpush1.bf16.msra.mxu0 %v3832
        %3836 = vmatprep.subr.bf16.mxu0 0
        %3837 = vmatpush1.bf16.msra.mxu0 0
        %3838 = vmatprep.subr.bf16.mxu0 0
        %3839 = vmatpush1.bf16.msra.mxu0 0
        %3840 = vmatprep.subr.bf16.mxu0 0
        %3841 = vmatpush1.bf16.msra.mxu0 0
        %3842 = vmatprep.subr.bf16.mxu0 0
        %3843 = vmatpush1.bf16.msra.mxu0 0
        %3844 = vmatprep.subr.bf16.mxu0 0
        %3845 = vmatpush1.bf16.msra.mxu0 0
        %3846 = vmatprep.subr.bf16.mxu0 0
        %3847 = vmatpush1.bf16.msra.mxu0 0
        %3848 = vmatprep.subr.bf16.mxu0 0
        %3849 = vmatpush1.bf16.msra.mxu0 0
        %3850 = vmatprep.subr.bf16.mxu0 0
        %3851 = vmatpush1.bf16.msra.mxu0 0
        %3852 = vmatprep.subr.bf16.mxu0 0
        %3853 = vmatpush1.bf16.msra.mxu0 0
        %3854 = vmatprep.subr.bf16.mxu0 0
        %3855 = vmatpush1.bf16.msra.mxu0 0
        %3856 = vmatprep.subr.bf16.mxu0 0
        %3857 = vmatpush1.bf16.msra.mxu0 0
        %3858 = vmatprep.subr.bf16.mxu0 0
        %3859 = vmatpush1.bf16.msra.mxu0 0
        %3860 = vmatprep.subr.bf16.mxu0 0
        %3861 = vmatpush1.bf16.msra.mxu0 0
        %3862 = vmatprep.subr.bf16.mxu0 0
        %3863 = vmatpush1.bf16.msra.mxu0 0
        %3864 = vmatprep.subr.bf16.mxu0 0
        %3865 = vmatpush1.bf16.msra.mxu0 0
        %3866 = vmatprep.mubr.bf16.mxu0 0
        %3867 = vmatmul.mubr.bf16.gmra.mrb[0].mxu0 %v3784
        %v3868 = vpop.f32.mrb[0].mxu0
        %v3869 = vadd.f32 0.0, %v3868
        %v3870 = vpop.f32.mrb[0].mxu0
        %v3871 = vpop.f32.mrb[0].mxu0
        %v3872 = vadd.f32 0.0, %v3871
        %v3873 = vpop.f32.mrb[0].mxu0
        %3874 = vmatprep.mubr.bf16.mxu0 0
        %3875 = vmatmul.mubr.bf16.gmra.mrb[0].mxu0 %v3787
        %v3876 = vpop.f32.mrb[0].mxu0
        %v3877 = vadd.f32 0.0, %v3876
        %v3878 = vpop.f32.mrb[0].mxu0
        %v3879 = vpop.f32.mrb[0].mxu0
        %v3880 = vadd.f32 0.0, %v3879
        %v3881 = vpop.f32.mrb[0].mxu0
        %3882 = vmatprep.mubr.bf16.mxu0 0
        %3883 = vmatmul.mubr.bf16.gmra.mrb[0].mxu0 %v3790
        %v3884 = vpop.f32.mrb[0].mxu0
        %v3885 = vadd.f32 0.0, %v3884
        %v3886 = vpop.f32.mrb[0].mxu0
        %v3887 = vpop.f32.mrb[0].mxu0
        %v3888 = vadd.f32 0.0, %v3887
        %v3889 = vpop.f32.mrb[0].mxu0
        %3890 = vmatprep.mubr.bf16.mxu0 0
        %3891 = vmatmul.mubr.bf16.gmra.mrb[0].mxu0 %v3793
        %v3892 = vpop.f32.mrb[0].mxu0
        %v3893 = vadd.f32 0.0, %v3892
        %v3894 = vpop.f32.mrb[0].mxu0
        %v3895 = vpop.f32.mrb[0].mxu0
        %v3896 = vadd.f32 0.0, %v3895
        %v3897 = vpop.f32.mrb[0].mxu0
        %3898 = vmatprep.mubr.bf16.mxu0 0
        %3899 = vmatmul.mubr.bf16.gmra.mrb[0].mxu0 %v3796
        %v3900 = vpop.f32.mrb[0].mxu0
        %v3901 = vadd.f32 0.0, %v3900
        %v3902 = vpop.f32.mrb[0].mxu0
        %v3903 = vpop.f32.mrb[0].mxu0
        %v3904 = vadd.f32 0.0, %v3903
        %v3905 = vpop.f32.mrb[0].mxu0
        %3906 = vmatprep.mubr.bf16.mxu0 0
        %3907 = vmatmul.mubr.bf16.gmra.mrb[0].mxu0 %v3799
        %v3908 = vpop.f32.mrb[0].mxu0
        %v3909 = vadd.f32 0.0, %v3908
        %v3910 = vpop.f32.mrb[0].mxu0
        %v3911 = vpop.f32.mrb[0].mxu0
        %v3912 = vadd.f32 0.0, %v3911
        %v3913 = vpop.f32.mrb[0].mxu0
        %3914 = vmatprep.mubr.bf16.mxu0 0
        %3915 = vmatmul.mubr.bf16.gmra.mrb[0].mxu0 %v3802
        %v3916 = vpop.f32.mrb[0].mxu0
        %v3917 = vadd.f32 0.0, %v3916
        %v3918 = vpop.f32.mrb[0].mxu0
        %v3919 = vpop.f32.mrb[0].mxu0
        %v3920 = vadd.f32 0.0, %v3919
        %v3921 = vpop.f32.mrb[0].mxu0
        %3922 = vmatprep.mubr.bf16.mxu0 0
        %3923 = vmatmul.mubr.bf16.gmra.mrb[0].mxu0 %v3805
        %v3924 = vpop.f32.mrb[0].mxu0
        %v3925 = vadd.f32 0.0, %v3924
        %v3926 = vpop.f32.mrb[0].mxu0
        %v3927 = vpop.f32.mrb[0].mxu0
        %v3928 = vadd.f32 0.0, %v3927
        %v3929 = vpop.f32.mrb[0].mxu0
        %3930 = vmatprep.mubr.bf16.mxu0 0
        %3931 = vmatmul.mubr.bf16.gmra.mrb[0].mxu0 %v3808
        %v3932 = vpop.f32.mrb[0].mxu0
        %v3933 = vadd.f32 0.0, %v3932
        %v3934 = vpop.f32.mrb[0].mxu0
        %v3935 = vpop.f32.mrb[0].mxu0
        %v3936 = vadd.f32 0.0, %v3935
        %v3937 = vpop.f32.mrb[0].mxu0
        %3938 = vmatprep.mubr.bf16.mxu0 0
        %3939 = vmatmul.mubr.bf16.gmra.mrb[0].mxu0 %v3811
        %v3940 = vpop.f32.mrb[0].mxu0
        %v3941 = vadd.f32 0.0, %v3940
        %v3942 = vpop.f32.mrb[0].mxu0
        %v3943 = vpop.f32.mrb[0].mxu0
        %v3944 = vadd.f32 0.0, %v3943
        %v3945 = vpop.f32.mrb[0].mxu0
        %3946 = vmatprep.mubr.bf16.mxu0 0
        %3947 = vmatmul.mubr.bf16.gmra.mrb[0].mxu0 %v3814
        %v3948 = vpop.f32.mrb[0].mxu0
        %v3949 = vadd.f32 0.0, %v3948
        %v3950 = vpop.f32.mrb[0].mxu0
        %v3951 = vpop.f32.mrb[0].mxu0
        %v3952 = vadd.f32 0.0, %v3951
        %v3953 = vpop.f32.mrb[0].mxu0
        %3954 = vmatprep.mubr.bf16.mxu0 0
        %3955 = vmatmul.mubr.bf16.gmra.mrb[0].mxu0 %v3817
        %v3956 = vpop.f32.mrb[0].mxu0
        %v3957 = vadd.f32 0.0, %v3956
        %v3958 = vpop.f32.mrb[0].mxu0
        %v3959 = vpop.f32.mrb[0].mxu0
        %v3960 = vadd.f32 0.0, %v3959
        %v3961 = vpop.f32.mrb[0].mxu0
        %3962 = vmatprep.mubr.bf16.mxu0 0
        %3963 = vmatmul.mubr.bf16.gmra.mrb[0].mxu0 %v3820
        %v3964 = vpop.f32.mrb[0].mxu0
        %v3965 = vadd.f32 0.0, %v3964
        %v3966 = vpop.f32.mrb[0].mxu0
        %v3967 = vpop.f32.mrb[0].mxu0
        %v3968 = vadd.f32 0.0, %v3967
        %v3969 = vpop.f32.mrb[0].mxu0
        %3970 = vmatprep.mubr.bf16.mxu0 0
        %3971 = vmatmul.mubr.bf16.gmra.mrb[0].mxu0 %v3823
        %v3972 = vpop.f32.mrb[0].mxu0
        %v3973 = vadd.f32 0.0, %v3972
        %v3974 = vpop.f32.mrb[0].mxu0
        %v3975 = vpop.f32.mrb[0].mxu0
        %v3976 = vadd.f32 0.0, %v3975
        %v3977 = vpop.f32.mrb[0].mxu0
        %3978 = vmatprep.mubr.bf16.mxu0 0
        %3979 = vmatmul.mubr.bf16.gmra.mrb[0].mxu0 %v3826
        %v3980 = vpop.f32.mrb[0].mxu0
        %v3981 = vadd.f32 0.0, %v3980
        %v3982 = vpop.f32.mrb[0].mxu0
        %v3983 = vpop.f32.mrb[0].mxu0
        %v3984 = vadd.f32 0.0, %v3983
        %v3985 = vpop.f32.mrb[0].mxu0
        %3986 = vmatprep.mubr.bf16.mxu0 0
        %3987 = vmatmul.mubr.bf16.gmra.mrb[0].mxu0 %v3829
        %v3988 = vpop.f32.mrb[0].mxu0
        %v3989 = vadd.f32 0.0, %v3988
        %v3990 = vpop.f32.mrb[0].mxu0
        %v3991 = vpop.f32.mrb[0].mxu0
        %v3992 = vadd.f32 0.0, %v3991
        %v3993 = vpop.f32.mrb[0].mxu0
        %3994 = vdwg.mxu0
        %v3995 = vadd.f32 %v3663, %v3869
        %v3996 = vadd.f32 %v3664, %v3872
        %v3997 = vadd.f32 %v3665, %v3877
        %v3998 = vadd.f32 %v3666, %v3880
        %v3999 = vadd.f32 %v3667, %v3885
        %v4000 = vadd.f32 %v3668, %v3888
        %v4001 = vadd.f32 %v3669, %v3893
        %v4002 = vadd.f32 %v3670, %v3896
        %v4003 = vadd.f32 %v3671, %v3901
        %v4004 = vadd.f32 %v3672, %v3904
        %v4005 = vadd.f32 %v3673, %v3909
        %v4006 = vadd.f32 %v3674, %v3912
        %v4007 = vadd.f32 %v3675, %v3917
        %v4008 = vadd.f32 %v3676, %v3920
        %v4009 = vadd.f32 %v3677, %v3925
        %v4010 = vadd.f32 %v3678, %v3928
        %v4011 = vadd.f32 %v3679, %v3933
        %v4012 = vadd.f32 %v3680, %v3936
        %v4013 = vadd.f32 %v3681, %v3941
        %v4014 = vadd.f32 %v3682, %v3944
        %v4015 = vadd.f32 %v3683, %v3949
        %v4016 = vadd.f32 %v3684, %v3952
        %v4017 = vadd.f32 %v3685, %v3957
        %v4018 = vadd.f32 %v3686, %v3960
        %v4019 = vadd.f32 %v3687, %v3965
        %v4020 = vadd.f32 %v3688, %v3968
        %v4021 = vadd.f32 %v3689, %v3973
        %v4022 = vadd.f32 %v3690, %v3976
        %v4023 = vadd.f32 %v3691, %v3981
        %v4024 = vadd.f32 %v3692, %v3984
        %v4025 = vadd.f32 %v3693, %v3989
        %v4026 = vadd.f32 %v3694, %v3992
        %v4027 = vld [vmem:[%s411 + $0x8] sm:$0xf]
        %v4028 = vld [vmem:[%s411 + $0xc] sm:$0xf]
        %v4029 = vld [vmem:[%s411 + $0x10] sm:$0x1]
        %v4030 = vld [vmem:[%s411 + $0x1c] sm:$0xf]
        %v4031 = vld [vmem:[%s411 + $0x20] sm:$0xf]
        %v4032 = vld [vmem:[%s411 + $0x24] sm:$0x1]
        %v4033 = vld [vmem:[%s411 + $0x30] sm:$0xf]
        %v4034 = vld [vmem:[%s411 + $0x34] sm:$0xf]
        %v4035 = vld [vmem:[%s411 + $0x38] sm:$0x1]
        %v4036 = vld [vmem:[%s411 + $0x44] sm:$0xf]
        %v4037 = vld [vmem:[%s411 + $0x48] sm:$0xf]
        %v4038 = vld [vmem:[%s411 + $0x4c] sm:$0x1]
        %v4039 = vld [vmem:[%s411 + $0x58] sm:$0xf]
        %v4040 = vld [vmem:[%s411 + $0x5c] sm:$0xf]
        %v4041 = vld [vmem:[%s411 + $0x60] sm:$0x1]
        %v4042 = vld [vmem:[%s411 + $0x6c] sm:$0xf]
        %v4043 = vld [vmem:[%s411 + $0x70] sm:$0xf]
        %v4044 = vld [vmem:[%s411 + $0x74] sm:$0x1]
        %v4045 = vld [vmem:[%s411 + $0x80] sm:$0xf]
        %v4046 = vld [vmem:[%s411 + $0x84] sm:$0xf]
        %v4047 = vld [vmem:[%s411 + $0x88] sm:$0x1]
        %v4048 = vld [vmem:[%s411 + $0x94] sm:$0xf]
        %v4049 = vld [vmem:[%s411 + $0x98] sm:$0xf]
        %v4050 = vld [vmem:[%s411 + $0x9c] sm:$0x1]
        %v4051 = vld [vmem:[%s411 + $0xa8] sm:$0xf]
        %v4052 = vld [vmem:[%s411 + $0xac] sm:$0xf]
        %v4053 = vld [vmem:[%s411 + $0xb0] sm:$0x1]
        %v4054 = vld [vmem:[%s411 + $0xbc] sm:$0xf]
        %v4055 = vld [vmem:[%s411 + $0xc0] sm:$0xf]
        %v4056 = vld [vmem:[%s411 + $0xc4] sm:$0x1]
        %v4057 = vld [vmem:[%s411 + $0xd0] sm:$0xf]
        %v4058 = vld [vmem:[%s411 + $0xd4] sm:$0xf]
        %v4059 = vld [vmem:[%s411 + $0xd8] sm:$0x1]
        %v4060 = vld [vmem:[%s411 + $0xe4] sm:$0xf]
        %v4061 = vld [vmem:[%s411 + $0xe8] sm:$0xf]
        %v4062 = vld [vmem:[%s411 + $0xec] sm:$0x1]
        %v4063 = vld [vmem:[%s411 + $0xf8] sm:$0xf]
        %v4064 = vld [vmem:[%s411 + $0xfc] sm:$0xf]
        %v4065 = vld [vmem:[%s411 + $0x100] sm:$0x1]
        %v4066 = vld [vmem:[%s411 + $0x10c] sm:$0xf]
        %v4067 = vld [vmem:[%s411 + $0x110] sm:$0xf]
        %v4068 = vld [vmem:[%s411 + $0x114] sm:$0x1]
        %v4069 = vld [vmem:[%s411 + $0x120] sm:$0xf]
        %v4070 = vld [vmem:[%s411 + $0x124] sm:$0xf]
        %v4071 = vld [vmem:[%s411 + $0x128] sm:$0x1]
        %v4072 = vld [vmem:[%s411 + $0x134] sm:$0xf]
        %v4073 = vld [vmem:[%s411 + $0x138] sm:$0xf]
        %v4074 = vld [vmem:[%s411 + $0x13c] sm:$0x1]
        %v4076 = vshrl.u32 %v4027, 16
        %v4078 = vrot.slane %v4076, 4
        %v4079 = vshll.u32 %v4027, 16
        %v4081 = vrot.slane %v4079, 5
        %v4082 = vor.u32 %v4078, %v4081
        %v4083 = vrot.slane %v4082, 4
        %v4085 = vshll.u32 %v4028, 16
        %v4087 = vrot.slane %v4085, 5
        %v4088 = vsel %vm2310, %v4083, %v4087
        %v4089 = vshrl.u32 %v4028, 16
        %v4091 = vrot.slane %v4089, 4
        %v4092 = vor.u32 %v4091, %v4087
        %v4093 = vrot.slane %v4092, 4
        %v4095 = vshll.u32 %v4029, 16
        %v4097 = vrot.slane %v4095, 5
        %v4098 = vsel %vm2310, %v4093, %v4097
        %v4100 = vshrl.u32 %v4030, 16
        %v4102 = vrot.slane %v4100, 4
        %v4103 = vshll.u32 %v4030, 16
        %v4105 = vrot.slane %v4103, 5
        %v4106 = vor.u32 %v4102, %v4105
        %v4107 = vrot.slane %v4106, 4
        %v4109 = vshll.u32 %v4031, 16
        %v4111 = vrot.slane %v4109, 5
        %v4112 = vsel %vm2310, %v4107, %v4111
        %v4113 = vshrl.u32 %v4031, 16
        %v4115 = vrot.slane %v4113, 4
        %v4116 = vor.u32 %v4115, %v4111
        %v4117 = vrot.slane %v4116, 4
        %v4119 = vshll.u32 %v4032, 16
        %v4121 = vrot.slane %v4119, 5
        %v4122 = vsel %vm2310, %v4117, %v4121
        %v4124 = vshrl.u32 %v4033, 16
        %v4126 = vrot.slane %v4124, 4
        %v4127 = vshll.u32 %v4033, 16
        %v4129 = vrot.slane %v4127, 5
        %v4130 = vor.u32 %v4126, %v4129
        %v4131 = vrot.slane %v4130, 4
        %v4133 = vshll.u32 %v4034, 16
        %v4135 = vrot.slane %v4133, 5
        %v4136 = vsel %vm2310, %v4131, %v4135
        %v4137 = vshrl.u32 %v4034, 16
        %v4139 = vrot.slane %v4137, 4
        %v4140 = vor.u32 %v4139, %v4135
        %v4141 = vrot.slane %v4140, 4
        %v4143 = vshll.u32 %v4035, 16
        %v4145 = vrot.slane %v4143, 5
        %v4146 = vsel %vm2310, %v4141, %v4145
        %v4148 = vshrl.u32 %v4036, 16
        %v4150 = vrot.slane %v4148, 4
        %v4151 = vshll.u32 %v4036, 16
        %v4153 = vrot.slane %v4151, 5
        %v4154 = vor.u32 %v4150, %v4153
        %v4155 = vrot.slane %v4154, 4
        %v4157 = vshll.u32 %v4037, 16
        %v4159 = vrot.slane %v4157, 5
        %v4160 = vsel %vm2310, %v4155, %v4159
        %v4161 = vshrl.u32 %v4037, 16
        %v4163 = vrot.slane %v4161, 4
        %v4164 = vor.u32 %v4163, %v4159
        %v4165 = vrot.slane %v4164, 4
        %v4167 = vshll.u32 %v4038, 16
        %v4169 = vrot.slane %v4167, 5
        %v4170 = vsel %vm2310, %v4165, %v4169
        %v4172 = vshrl.u32 %v4039, 16
        %v4174 = vrot.slane %v4172, 4
        %v4175 = vshll.u32 %v4039, 16
        %v4177 = vrot.slane %v4175, 5
        %v4178 = vor.u32 %v4174, %v4177
        %v4179 = vrot.slane %v4178, 4
        %v4181 = vshll.u32 %v4040, 16
        %v4183 = vrot.slane %v4181, 5
        %v4184 = vsel %vm2310, %v4179, %v4183
        %v4185 = vshrl.u32 %v4040, 16
        %v4187 = vrot.slane %v4185, 4
        %v4188 = vor.u32 %v4187, %v4183
        %v4189 = vrot.slane %v4188, 4
        %v4191 = vshll.u32 %v4041, 16
        %v4193 = vrot.slane %v4191, 5
        %v4194 = vsel %vm2310, %v4189, %v4193
        %v4196 = vshrl.u32 %v4042, 16
        %v4198 = vrot.slane %v4196, 4
        %v4199 = vshll.u32 %v4042, 16
        %v4201 = vrot.slane %v4199, 5
        %v4202 = vor.u32 %v4198, %v4201
        %v4203 = vrot.slane %v4202, 4
        %v4205 = vshll.u32 %v4043, 16
        %v4207 = vrot.slane %v4205, 5
        %v4208 = vsel %vm2310, %v4203, %v4207
        %v4209 = vshrl.u32 %v4043, 16
        %v4211 = vrot.slane %v4209, 4
        %v4212 = vor.u32 %v4211, %v4207
        %v4213 = vrot.slane %v4212, 4
        %v4215 = vshll.u32 %v4044, 16
        %v4217 = vrot.slane %v4215, 5
        %v4218 = vsel %vm2310, %v4213, %v4217
        %v4220 = vshrl.u32 %v4045, 16
        %v4222 = vrot.slane %v4220, 4
        %v4223 = vshll.u32 %v4045, 16
        %v4225 = vrot.slane %v4223, 5
        %v4226 = vor.u32 %v4222, %v4225
        %v4227 = vrot.slane %v4226, 4
        %v4229 = vshll.u32 %v4046, 16
        %v4231 = vrot.slane %v4229, 5
        %v4232 = vsel %vm2310, %v4227, %v4231
        %v4233 = vshrl.u32 %v4046, 16
        %v4235 = vrot.slane %v4233, 4
        %v4236 = vor.u32 %v4235, %v4231
        %v4237 = vrot.slane %v4236, 4
        %v4239 = vshll.u32 %v4047, 16
        %v4241 = vrot.slane %v4239, 5
        %v4242 = vsel %vm2310, %v4237, %v4241
        %v4244 = vshrl.u32 %v4048, 16
        %v4246 = vrot.slane %v4244, 4
        %v4247 = vshll.u32 %v4048, 16
        %v4249 = vrot.slane %v4247, 5
        %v4250 = vor.u32 %v4246, %v4249
        %v4251 = vrot.slane %v4250, 4
        %v4253 = vshll.u32 %v4049, 16
        %v4255 = vrot.slane %v4253, 5
        %v4256 = vsel %vm2310, %v4251, %v4255
        %v4257 = vshrl.u32 %v4049, 16
        %v4259 = vrot.slane %v4257, 4
        %v4260 = vor.u32 %v4259, %v4255
        %v4261 = vrot.slane %v4260, 4
        %v4263 = vshll.u32 %v4050, 16
        %v4265 = vrot.slane %v4263, 5
        %v4266 = vsel %vm2310, %v4261, %v4265
        %v4268 = vshrl.u32 %v4051, 16
        %v4270 = vrot.slane %v4268, 4
        %v4271 = vshll.u32 %v4051, 16
        %v4273 = vrot.slane %v4271, 5
        %v4274 = vor.u32 %v4270, %v4273
        %v4275 = vrot.slane %v4274, 4
        %v4277 = vshll.u32 %v4052, 16
        %v4279 = vrot.slane %v4277, 5
        %v4280 = vsel %vm2310, %v4275, %v4279
        %v4281 = vshrl.u32 %v4052, 16
        %v4283 = vrot.slane %v4281, 4
        %v4284 = vor.u32 %v4283, %v4279
        %v4285 = vrot.slane %v4284, 4
        %v4287 = vshll.u32 %v4053, 16
        %v4289 = vrot.slane %v4287, 5
        %v4290 = vsel %vm2310, %v4285, %v4289
        %v4292 = vshrl.u32 %v4054, 16
        %v4294 = vrot.slane %v4292, 4
        %v4295 = vshll.u32 %v4054, 16
        %v4297 = vrot.slane %v4295, 5
        %v4298 = vor.u32 %v4294, %v4297
        %v4299 = vrot.slane %v4298, 4
        %v4301 = vshll.u32 %v4055, 16
        %v4303 = vrot.slane %v4301, 5
        %v4304 = vsel %vm2310, %v4299, %v4303
        %v4305 = vshrl.u32 %v4055, 16
        %v4307 = vrot.slane %v4305, 4
        %v4308 = vor.u32 %v4307, %v4303
        %v4309 = vrot.slane %v4308, 4
        %v4311 = vshll.u32 %v4056, 16
        %v4313 = vrot.slane %v4311, 5
        %v4314 = vsel %vm2310, %v4309, %v4313
        %v4316 = vshrl.u32 %v4057, 16
        %v4318 = vrot.slane %v4316, 4
        %v4319 = vshll.u32 %v4057, 16
        %v4321 = vrot.slane %v4319, 5
        %v4322 = vor.u32 %v4318, %v4321
        %v4323 = vrot.slane %v4322, 4
        %v4325 = vshll.u32 %v4058, 16
        %v4327 = vrot.slane %v4325, 5
        %v4328 = vsel %vm2310, %v4323, %v4327
        %v4329 = vshrl.u32 %v4058, 16
        %v4331 = vrot.slane %v4329, 4
        %v4332 = vor.u32 %v4331, %v4327
        %v4333 = vrot.slane %v4332, 4
        %v4335 = vshll.u32 %v4059, 16
        %v4337 = vrot.slane %v4335, 5
        %v4338 = vsel %vm2310, %v4333, %v4337
        %v4340 = vshrl.u32 %v4060, 16
        %v4342 = vrot.slane %v4340, 4
        %v4343 = vshll.u32 %v4060, 16
        %v4345 = vrot.slane %v4343, 5
        %v4346 = vor.u32 %v4342, %v4345
        %v4347 = vrot.slane %v4346, 4
        %v4349 = vshll.u32 %v4061, 16
        %v4351 = vrot.slane %v4349, 5
        %v4352 = vsel %vm2310, %v4347, %v4351
        %v4353 = vshrl.u32 %v4061, 16
        %v4355 = vrot.slane %v4353, 4
        %v4356 = vor.u32 %v4355, %v4351
        %v4357 = vrot.slane %v4356, 4
        %v4359 = vshll.u32 %v4062, 16
        %v4361 = vrot.slane %v4359, 5
        %v4362 = vsel %vm2310, %v4357, %v4361
        %v4364 = vshrl.u32 %v4063, 16
        %v4366 = vrot.slane %v4364, 4
        %v4367 = vshll.u32 %v4063, 16
        %v4369 = vrot.slane %v4367, 5
        %v4370 = vor.u32 %v4366, %v4369
        %v4371 = vrot.slane %v4370, 4
        %v4373 = vshll.u32 %v4064, 16
        %v4375 = vrot.slane %v4373, 5
        %v4376 = vsel %vm2310, %v4371, %v4375
        %v4377 = vshrl.u32 %v4064, 16
        %v4379 = vrot.slane %v4377, 4
        %v4380 = vor.u32 %v4379, %v4375
        %v4381 = vrot.slane %v4380, 4
        %v4383 = vshll.u32 %v4065, 16
        %v4385 = vrot.slane %v4383, 5
        %v4386 = vsel %vm2310, %v4381, %v4385
        %v4388 = vshrl.u32 %v4066, 16
        %v4390 = vrot.slane %v4388, 4
        %v4391 = vshll.u32 %v4066, 16
        %v4393 = vrot.slane %v4391, 5
        %v4394 = vor.u32 %v4390, %v4393
        %v4395 = vrot.slane %v4394, 4
        %v4397 = vshll.u32 %v4067, 16
        %v4399 = vrot.slane %v4397, 5
        %v4400 = vsel %vm2310, %v4395, %v4399
        %v4401 = vshrl.u32 %v4067, 16
        %v4403 = vrot.slane %v4401, 4
        %v4404 = vor.u32 %v4403, %v4399
        %v4405 = vrot.slane %v4404, 4
        %v4407 = vshll.u32 %v4068, 16
        %v4409 = vrot.slane %v4407, 5
        %v4410 = vsel %vm2310, %v4405, %v4409
        %v4412 = vshrl.u32 %v4069, 16
        %v4414 = vrot.slane %v4412, 4
        %v4415 = vshll.u32 %v4069, 16
        %v4417 = vrot.slane %v4415, 5
        %v4418 = vor.u32 %v4414, %v4417
        %v4419 = vrot.slane %v4418, 4
        %v4421 = vshll.u32 %v4070, 16
        %v4423 = vrot.slane %v4421, 5
        %v4424 = vsel %vm2310, %v4419, %v4423
        %v4425 = vshrl.u32 %v4070, 16
        %v4427 = vrot.slane %v4425, 4
        %v4428 = vor.u32 %v4427, %v4423
        %v4429 = vrot.slane %v4428, 4
        %v4431 = vshll.u32 %v4071, 16
        %v4433 = vrot.slane %v4431, 5
        %v4434 = vsel %vm2310, %v4429, %v4433
        %v4436 = vshrl.u32 %v4072, 16
        %v4438 = vrot.slane %v4436, 4
        %v4439 = vshll.u32 %v4072, 16
        %v4441 = vrot.slane %v4439, 5
        %v4442 = vor.u32 %v4438, %v4441
        %v4443 = vrot.slane %v4442, 4
        %v4445 = vshll.u32 %v4073, 16
        %v4447 = vrot.slane %v4445, 5
        %v4448 = vsel %vm2310, %v4443, %v4447
        %v4449 = vshrl.u32 %v4073, 16
        %v4451 = vrot.slane %v4449, 4
        %v4452 = vor.u32 %v4451, %v4447
        %v4453 = vrot.slane %v4452, 4
        %v4455 = vshll.u32 %v4074, 16
        %v4457 = vrot.slane %v4455, 5
        %v4458 = vsel %vm2310, %v4453, %v4457
        %s4459 = scalar_lea.vmem %s4, 40
        %v4460 = vld [vmem:[%s4459] sm:$0xf]
        %v4461 = vld [vmem:[%s4459 + $0x4] sm:$0x3]
        %v4462 = vunpack.c.l.b16 %v4088
        %v4463 = vunpack.c.l.b16 %v4098
        %v4464 = vunpack.c.l.b16 %v4112
        %v4465 = vunpack.c.l.b16 %v4122
        %v4466 = vunpack.c.l.b16 %v4136
        %v4467 = vunpack.c.l.b16 %v4146
        %v4468 = vunpack.c.l.b16 %v4160
        %v4469 = vunpack.c.l.b16 %v4170
        %v4470 = vunpack.c.l.b16 %v4184
        %v4471 = vunpack.c.l.b16 %v4194
        %v4472 = vunpack.c.l.b16 %v4208
        %v4473 = vunpack.c.l.b16 %v4218
        %v4474 = vunpack.c.l.b16 %v4232
        %v4475 = vunpack.c.l.b16 %v4242
        %v4476 = vunpack.c.l.b16 %v4256
        %v4477 = vunpack.c.l.b16 %v4266
        %v4478 = vunpack.c.l.b16 %v4280
        %v4479 = vunpack.c.l.b16 %v4290
        %v4480 = vunpack.c.l.b16 %v4304
        %v4481 = vunpack.c.l.b16 %v4314
        %v4482 = vunpack.c.l.b16 %v4328
        %v4483 = vunpack.c.l.b16 %v4338
        %v4484 = vunpack.c.l.b16 %v4352
        %v4485 = vunpack.c.l.b16 %v4362
        %v4486 = vunpack.c.l.b16 %v4376
        %v4487 = vunpack.c.l.b16 %v4386
        %v4488 = vunpack.c.l.b16 %v4400
        %v4489 = vunpack.c.l.b16 %v4410
        %v4490 = vunpack.c.l.b16 %v4424
        %v4491 = vunpack.c.l.b16 %v4434
        %v4492 = vunpack.c.l.b16 %v4448
        %v4493 = vunpack.c.l.b16 %v4458
        %v4494 = vpack.c.b16 %v4463, %v4462
        %v4495 = vpack.c.b16 %v4465, %v4464
        %v4496 = vpack.c.b16 %v4467, %v4466
        %v4497 = vpack.c.b16 %v4469, %v4468
        %v4498 = vpack.c.b16 %v4471, %v4470
        %v4499 = vpack.c.b16 %v4473, %v4472
        %v4500 = vpack.c.b16 %v4475, %v4474
        %v4501 = vpack.c.b16 %v4477, %v4476
        %v4502 = vpack.c.b16 %v4479, %v4478
        %v4503 = vpack.c.b16 %v4481, %v4480
        %v4504 = vpack.c.b16 %v4483, %v4482
        %v4505 = vpack.c.b16 %v4485, %v4484
        %v4506 = vpack.c.b16 %v4487, %v4486
        %v4507 = vpack.c.b16 %v4489, %v4488
        %v4508 = vpack.c.b16 %v4491, %v4490
        %v4509 = vpack.c.b16 %v4493, %v4492
        %v4512 = vunpack.c.l.b16 %v4460
        %v4513 = vunpack.c.l.b16 %v4461
        %v4514 = vpack.c.b16 %v4513, %v4512
        %v4516 = vsel %vm1781, %v4494, 0
        %v4519 = vsel %vm1781, %v4495, 0
        %v4522 = vsel %vm1781, %v4496, 0
        %v4525 = vsel %vm1781, %v4497, 0
        %v4528 = vsel %vm1781, %v4498, 0
        %v4531 = vsel %vm1781, %v4499, 0
        %v4534 = vsel %vm1781, %v4500, 0
        %v4537 = vsel %vm1781, %v4501, 0
        %v4540 = vsel %vm1781, %v4502, 0
        %v4543 = vsel %vm1781, %v4503, 0
        %v4546 = vsel %vm1781, %v4504, 0
        %v4549 = vsel %vm1781, %v4505, 0
        %v4552 = vsel %vm1781, %v4506, 0
        %v4555 = vsel %vm1781, %v4507, 0
        %v4558 = vsel %vm1781, %v4508, 0
        %v4561 = vsel %vm1781, %v4509, 0
        %v4564 = vsel %vm1830, %v4514, 0
        %4566 = vmatprep.subr.bf16.mxu0 0
        %4567 = vmatpush1.bf16.msra.mxu0 %v4564
        %4568 = vmatprep.subr.bf16.mxu0 0
        %4569 = vmatpush1.bf16.msra.mxu0 0
        %4570 = vmatprep.subr.bf16.mxu0 0
        %4571 = vmatpush1.bf16.msra.mxu0 0
        %4572 = vmatprep.subr.bf16.mxu0 0
        %4573 = vmatpush1.bf16.msra.mxu0 0
        %4574 = vmatprep.subr.bf16.mxu0 0
        %4575 = vmatpush1.bf16.msra.mxu0 0
        %4576 = vmatprep.subr.bf16.mxu0 0
        %4577 = vmatpush1.bf16.msra.mxu0 0
        %4578 = vmatprep.subr.bf16.mxu0 0
        %4579 = vmatpush1.bf16.msra.mxu0 0
        %4580 = vmatprep.subr.bf16.mxu0 0
        %4581 = vmatpush1.bf16.msra.mxu0 0
        %4582 = vmatprep.subr.bf16.mxu0 0
        %4583 = vmatpush1.bf16.msra.mxu0 0
        %4584 = vmatprep.subr.bf16.mxu0 0
        %4585 = vmatpush1.bf16.msra.mxu0 0
        %4586 = vmatprep.subr.bf16.mxu0 0
        %4587 = vmatpush1.bf16.msra.mxu0 0
        %4588 = vmatprep.subr.bf16.mxu0 0
        %4589 = vmatpush1.bf16.msra.mxu0 0
        %4590 = vmatprep.subr.bf16.mxu0 0
        %4591 = vmatpush1.bf16.msra.mxu0 0
        %4592 = vmatprep.subr.bf16.mxu0 0
        %4593 = vmatpush1.bf16.msra.mxu0 0
        %4594 = vmatprep.subr.bf16.mxu0 0
        %4595 = vmatpush1.bf16.msra.mxu0 0
        %4596 = vmatprep.subr.bf16.mxu0 0
        %4597 = vmatpush1.bf16.msra.mxu0 0
        %4598 = vmatprep.mubr.bf16.mxu0 0
        %4599 = vmatmul.mubr.bf16.gmra.mrb[0].mxu0 %v4516
        %v4600 = vpop.f32.mrb[0].mxu0
        %v4601 = vadd.f32 0.0, %v4600
        %v4602 = vpop.f32.mrb[0].mxu0
        %v4603 = vpop.f32.mrb[0].mxu0
        %v4604 = vadd.f32 0.0, %v4603
        %v4605 = vpop.f32.mrb[0].mxu0
        %4606 = vmatprep.mubr.bf16.mxu0 0
        %4607 = vmatmul.mubr.bf16.gmra.mrb[0].mxu0 %v4519
        %v4608 = vpop.f32.mrb[0].mxu0
        %v4609 = vadd.f32 0.0, %v4608
        %v4610 = vpop.f32.mrb[0].mxu0
        %v4611 = vpop.f32.mrb[0].mxu0
        %v4612 = vadd.f32 0.0, %v4611
        %v4613 = vpop.f32.mrb[0].mxu0
        %4614 = vmatprep.mubr.bf16.mxu0 0
        %4615 = vmatmul.mubr.bf16.gmra.mrb[0].mxu0 %v4522
        %v4616 = vpop.f32.mrb[0].mxu0
        %v4617 = vadd.f32 0.0, %v4616
        %v4618 = vpop.f32.mrb[0].mxu0
        %v4619 = vpop.f32.mrb[0].mxu0
        %v4620 = vadd.f32 0.0, %v4619
        %v4621 = vpop.f32.mrb[0].mxu0
        %4622 = vmatprep.mubr.bf16.mxu0 0
        %4623 = vmatmul.mubr.bf16.gmra.mrb[0].mxu0 %v4525
        %v4624 = vpop.f32.mrb[0].mxu0
        %v4625 = vadd.f32 0.0, %v4624
        %v4626 = vpop.f32.mrb[0].mxu0
        %v4627 = vpop.f32.mrb[0].mxu0
        %v4628 = vadd.f32 0.0, %v4627
        %v4629 = vpop.f32.mrb[0].mxu0
        %4630 = vmatprep.mubr.bf16.mxu0 0
        %4631 = vmatmul.mubr.bf16.gmra.mrb[0].mxu0 %v4528
        %v4632 = vpop.f32.mrb[0].mxu0
        %v4633 = vadd.f32 0.0, %v4632
        %v4634 = vpop.f32.mrb[0].mxu0
        %v4635 = vpop.f32.mrb[0].mxu0
        %v4636 = vadd.f32 0.0, %v4635
        %v4637 = vpop.f32.mrb[0].mxu0
        %4638 = vmatprep.mubr.bf16.mxu0 0
        %4639 = vmatmul.mubr.bf16.gmra.mrb[0].mxu0 %v4531
        %v4640 = vpop.f32.mrb[0].mxu0
        %v4641 = vadd.f32 0.0, %v4640
        %v4642 = vpop.f32.mrb[0].mxu0
        %v4643 = vpop.f32.mrb[0].mxu0
        %v4644 = vadd.f32 0.0, %v4643
        %v4645 = vpop.f32.mrb[0].mxu0
        %4646 = vmatprep.mubr.bf16.mxu0 0
        %4647 = vmatmul.mubr.bf16.gmra.mrb[0].mxu0 %v4534
        %v4648 = vpop.f32.mrb[0].mxu0
        %v4649 = vadd.f32 0.0, %v4648
        %v4650 = vpop.f32.mrb[0].mxu0
        %v4651 = vpop.f32.mrb[0].mxu0
        %v4652 = vadd.f32 0.0, %v4651
        %v4653 = vpop.f32.mrb[0].mxu0
        %4654 = vmatprep.mubr.bf16.mxu0 0
        %4655 = vmatmul.mubr.bf16.gmra.mrb[0].mxu0 %v4537
        %v4656 = vpop.f32.mrb[0].mxu0
        %v4657 = vadd.f32 0.0, %v4656
        %v4658 = vpop.f32.mrb[0].mxu0
        %v4659 = vpop.f32.mrb[0].mxu0
        %v4660 = vadd.f32 0.0, %v4659
        %v4661 = vpop.f32.mrb[0].mxu0
        %4662 = vmatprep.mubr.bf16.mxu0 0
        %4663 = vmatmul.mubr.bf16.gmra.mrb[0].mxu0 %v4540
        %v4664 = vpop.f32.mrb[0].mxu0
        %v4665 = vadd.f32 0.0, %v4664
        %v4666 = vpop.f32.mrb[0].mxu0
        %v4667 = vpop.f32.mrb[0].mxu0
        %v4668 = vadd.f32 0.0, %v4667
        %v4669 = vpop.f32.mrb[0].mxu0
        %4670 = vmatprep.mubr.bf16.mxu0 0
        %4671 = vmatmul.mubr.bf16.gmra.mrb[0].mxu0 %v4543
        %v4672 = vpop.f32.mrb[0].mxu0
        %v4673 = vadd.f32 0.0, %v4672
        %v4674 = vpop.f32.mrb[0].mxu0
        %v4675 = vpop.f32.mrb[0].mxu0
        %v4676 = vadd.f32 0.0, %v4675
        %v4677 = vpop.f32.mrb[0].mxu0
        %4678 = vmatprep.mubr.bf16.mxu0 0
        %4679 = vmatmul.mubr.bf16.gmra.mrb[0].mxu0 %v4546
        %v4680 = vpop.f32.mrb[0].mxu0
        %v4681 = vadd.f32 0.0, %v4680
        %v4682 = vpop.f32.mrb[0].mxu0
        %v4683 = vpop.f32.mrb[0].mxu0
        %v4684 = vadd.f32 0.0, %v4683
        %v4685 = vpop.f32.mrb[0].mxu0
        %4686 = vmatprep.mubr.bf16.mxu0 0
        %4687 = vmatmul.mubr.bf16.gmra.mrb[0].mxu0 %v4549
        %v4688 = vpop.f32.mrb[0].mxu0
        %v4689 = vadd.f32 0.0, %v4688
        %v4690 = vpop.f32.mrb[0].mxu0
        %v4691 = vpop.f32.mrb[0].mxu0
        %v4692 = vadd.f32 0.0, %v4691
        %v4693 = vpop.f32.mrb[0].mxu0
        %4694 = vmatprep.mubr.bf16.mxu0 0
        %4695 = vmatmul.mubr.bf16.gmra.mrb[0].mxu0 %v4552
        %v4696 = vpop.f32.mrb[0].mxu0
        %v4697 = vadd.f32 0.0, %v4696
        %v4698 = vpop.f32.mrb[0].mxu0
        %v4699 = vpop.f32.mrb[0].mxu0
        %v4700 = vadd.f32 0.0, %v4699
        %v4701 = vpop.f32.mrb[0].mxu0
        %4702 = vmatprep.mubr.bf16.mxu0 0
        %4703 = vmatmul.mubr.bf16.gmra.mrb[0].mxu0 %v4555
        %v4704 = vpop.f32.mrb[0].mxu0
        %v4705 = vadd.f32 0.0, %v4704
        %v4706 = vpop.f32.mrb[0].mxu0
        %v4707 = vpop.f32.mrb[0].mxu0
        %v4708 = vadd.f32 0.0, %v4707
        %v4709 = vpop.f32.mrb[0].mxu0
        %4710 = vmatprep.mubr.bf16.mxu0 0
        %4711 = vmatmul.mubr.bf16.gmra.mrb[0].mxu0 %v4558
        %v4712 = vpop.f32.mrb[0].mxu0
        %v4713 = vadd.f32 0.0, %v4712
        %v4714 = vpop.f32.mrb[0].mxu0
        %v4715 = vpop.f32.mrb[0].mxu0
        %v4716 = vadd.f32 0.0, %v4715
        %v4717 = vpop.f32.mrb[0].mxu0
        %4718 = vmatprep.mubr.bf16.mxu0 0
        %4719 = vmatmul.mubr.bf16.gmra.mrb[0].mxu0 %v4561
        %v4720 = vpop.f32.mrb[0].mxu0
        %v4721 = vadd.f32 0.0, %v4720
        %v4722 = vpop.f32.mrb[0].mxu0
        %v4723 = vpop.f32.mrb[0].mxu0
        %v4724 = vadd.f32 0.0, %v4723
        %v4725 = vpop.f32.mrb[0].mxu0
        %4726 = vdwg.mxu0
        %v4727 = vadd.f32 %v3995, %v4601
        %v4728 = vadd.f32 %v3996, %v4604
        %v4729 = vadd.f32 %v3997, %v4609
        %v4730 = vadd.f32 %v3998, %v4612
        %v4731 = vadd.f32 %v3999, %v4617
        %v4732 = vadd.f32 %v4000, %v4620
        %v4733 = vadd.f32 %v4001, %v4625
        %v4734 = vadd.f32 %v4002, %v4628
        %v4735 = vadd.f32 %v4003, %v4633
        %v4736 = vadd.f32 %v4004, %v4636
        %v4737 = vadd.f32 %v4005, %v4641
        %v4738 = vadd.f32 %v4006, %v4644
        %v4739 = vadd.f32 %v4007, %v4649
        %v4740 = vadd.f32 %v4008, %v4652
        %v4741 = vadd.f32 %v4009, %v4657
        %v4742 = vadd.f32 %v4010, %v4660
        %v4743 = vadd.f32 %v4011, %v4665
        %v4744 = vadd.f32 %v4012, %v4668
        %v4745 = vadd.f32 %v4013, %v4673
        %v4746 = vadd.f32 %v4014, %v4676
        %v4747 = vadd.f32 %v4015, %v4681
        %v4748 = vadd.f32 %v4016, %v4684
        %v4749 = vadd.f32 %v4017, %v4689
        %v4750 = vadd.f32 %v4018, %v4692
        %v4751 = vadd.f32 %v4019, %v4697
        %v4752 = vadd.f32 %v4020, %v4700
        %v4753 = vadd.f32 %v4021, %v4705
        %v4754 = vadd.f32 %v4022, %v4708
        %v4755 = vadd.f32 %v4023, %v4713
        %v4756 = vadd.f32 %v4024, %v4716
        %v4757 = vadd.f32 %v4025, %v4721
        %v4758 = vadd.f32 %v4026, %v4724
        %s4759 = scalar_lea.vmem [#allocation2], 40
        %v4760 = vld [vmem:[%s4759 + $0x4] sm:$0x8]
        %v4761 = vld [vmem:[%s4759 + $0x8] sm:$0xf]
        %v4762 = vld [vmem:[%s4759 + $0xc] sm:$0xf]
        %v4763 = vld [vmem:[%s4759 + $0x18] sm:$0x8]
        %v4764 = vld [vmem:[%s4759 + $0x1c] sm:$0xf]
        %v4765 = vld [vmem:[%s4759 + $0x20] sm:$0xf]
        %v4766 = vld [vmem:[%s4759 + $0x2c] sm:$0x8]
        %v4767 = vld [vmem:[%s4759 + $0x30] sm:$0xf]
        %v4768 = vld [vmem:[%s4759 + $0x34] sm:$0xf]
        %v4769 = vld [vmem:[%s4759 + $0x40] sm:$0x8]
        %v4770 = vld [vmem:[%s4759 + $0x44] sm:$0xf]
        %v4771 = vld [vmem:[%s4759 + $0x48] sm:$0xf]
        %v4772 = vld [vmem:[%s4759 + $0x54] sm:$0x8]
        %v4773 = vld [vmem:[%s4759 + $0x58] sm:$0xf]
        %v4774 = vld [vmem:[%s4759 + $0x5c] sm:$0xf]
        %v4775 = vld [vmem:[%s4759 + $0x68] sm:$0x8]
        %v4776 = vld [vmem:[%s4759 + $0x6c] sm:$0xf]
        %v4777 = vld [vmem:[%s4759 + $0x70] sm:$0xf]
        %v4778 = vld [vmem:[%s4759 + $0x7c] sm:$0x8]
        %v4779 = vld [vmem:[%s4759 + $0x80] sm:$0xf]
        %v4780 = vld [vmem:[%s4759 + $0x84] sm:$0xf]
        %v4781 = vld [vmem:[%s4759 + $0x90] sm:$0x8]
        %v4782 = vld [vmem:[%s4759 + $0x94] sm:$0xf]
        %v4783 = vld [vmem:[%s4759 + $0x98] sm:$0xf]
        %v4784 = vld [vmem:[%s4759 + $0xa4] sm:$0x8]
        %v4785 = vld [vmem:[%s4759 + $0xa8] sm:$0xf]
        %v4786 = vld [vmem:[%s4759 + $0xac] sm:$0xf]
        %v4787 = vld [vmem:[%s4759 + $0xb8] sm:$0x8]
        %v4788 = vld [vmem:[%s4759 + $0xbc] sm:$0xf]
        %v4789 = vld [vmem:[%s4759 + $0xc0] sm:$0xf]
        %v4790 = vld [vmem:[%s4759 + $0xcc] sm:$0x8]
        %v4791 = vld [vmem:[%s4759 + $0xd0] sm:$0xf]
        %v4792 = vld [vmem:[%s4759 + $0xd4] sm:$0xf]
        %v4793 = vld [vmem:[%s4759 + $0xe0] sm:$0x8]
        %v4794 = vld [vmem:[%s4759 + $0xe4] sm:$0xf]
        %v4795 = vld [vmem:[%s4759 + $0xe8] sm:$0xf]
        %v4796 = vld [vmem:[%s4759 + $0xf4] sm:$0x8]
        %v4797 = vld [vmem:[%s4759 + $0xf8] sm:$0xf]
        %v4798 = vld [vmem:[%s4759 + $0xfc] sm:$0xf]
        %v4799 = vld [vmem:[%s4759 + $0x108] sm:$0x8]
        %v4800 = vld [vmem:[%s4759 + $0x10c] sm:$0xf]
        %v4801 = vld [vmem:[%s4759 + $0x110] sm:$0xf]
        %v4802 = vld [vmem:[%s4759 + $0x11c] sm:$0x8]
        %v4803 = vld [vmem:[%s4759 + $0x120] sm:$0xf]
        %v4804 = vld [vmem:[%s4759 + $0x124] sm:$0xf]
        %v4805 = vld [vmem:[%s4759 + $0x130] sm:$0x8]
        %v4806 = vld [vmem:[%s4759 + $0x134] sm:$0xf]
        %v4807 = vld [vmem:[%s4759 + $0x138] sm:$0xf]
        %v4809 = vshrl.u32 %v4760, 16
        %v4811 = vrot.slane %v4809, 7
        %v4812 = vrot.slane %v4811, 4
        %v4814 = vshrl.u32 %v4761, 16
        %v4816 = vrot.slane %v4814, 7
        %v4817 = vshll.u32 %v4761, 16
        %v4819 = vor.u32 %v4816, %v4817
        %v4820 = vsel %vm1338, %v4812, %v4819
        %v4821 = vrot.slane %v4816, 4
        %v4823 = vshrl.u32 %v4762, 16
        %v4825 = vrot.slane %v4823, 7
        %v4826 = vshll.u32 %v4762, 16
        %v4828 = vor.u32 %v4825, %v4826
        %v4829 = vsel %vm1338, %v4821, %v4828
        %v4831 = vshrl.u32 %v4763, 16
        %v4833 = vrot.slane %v4831, 7
        %v4834 = vrot.slane %v4833, 4
        %v4836 = vshrl.u32 %v4764, 16
        %v4838 = vrot.slane %v4836, 7
        %v4839 = vshll.u32 %v4764, 16
        %v4841 = vor.u32 %v4838, %v4839
        %v4842 = vsel %vm1338, %v4834, %v4841
        %v4843 = vrot.slane %v4838, 4
        %v4845 = vshrl.u32 %v4765, 16
        %v4847 = vrot.slane %v4845, 7
        %v4848 = vshll.u32 %v4765, 16
        %v4850 = vor.u32 %v4847, %v4848
        %v4851 = vsel %vm1338, %v4843, %v4850
        %v4853 = vshrl.u32 %v4766, 16
        %v4855 = vrot.slane %v4853, 7
        %v4856 = vrot.slane %v4855, 4
        %v4858 = vshrl.u32 %v4767, 16
        %v4860 = vrot.slane %v4858, 7
        %v4861 = vshll.u32 %v4767, 16
        %v4863 = vor.u32 %v4860, %v4861
        %v4864 = vsel %vm1338, %v4856, %v4863
        %v4865 = vrot.slane %v4860, 4
        %v4867 = vshrl.u32 %v4768, 16
        %v4869 = vrot.slane %v4867, 7
        %v4870 = vshll.u32 %v4768, 16
        %v4872 = vor.u32 %v4869, %v4870
        %v4873 = vsel %vm1338, %v4865, %v4872
        %v4875 = vshrl.u32 %v4769, 16
        %v4877 = vrot.slane %v4875, 7
        %v4878 = vrot.slane %v4877, 4
        %v4880 = vshrl.u32 %v4770, 16
        %v4882 = vrot.slane %v4880, 7
        %v4883 = vshll.u32 %v4770, 16
        %v4885 = vor.u32 %v4882, %v4883
        %v4886 = vsel %vm1338, %v4878, %v4885
        %v4887 = vrot.slane %v4882, 4
        %v4889 = vshrl.u32 %v4771, 16
        %v4891 = vrot.slane %v4889, 7
        %v4892 = vshll.u32 %v4771, 16
        %v4894 = vor.u32 %v4891, %v4892
        %v4895 = vsel %vm1338, %v4887, %v4894
        %v4897 = vshrl.u32 %v4772, 16
        %v4899 = vrot.slane %v4897, 7
        %v4900 = vrot.slane %v4899, 4
        %v4902 = vshrl.u32 %v4773, 16
        %v4904 = vrot.slane %v4902, 7
        %v4905 = vshll.u32 %v4773, 16
        %v4907 = vor.u32 %v4904, %v4905
        %v4908 = vsel %vm1338, %v4900, %v4907
        %v4909 = vrot.slane %v4904, 4
        %v4911 = vshrl.u32 %v4774, 16
        %v4913 = vrot.slane %v4911, 7
        %v4914 = vshll.u32 %v4774, 16
        %v4916 = vor.u32 %v4913, %v4914
        %v4917 = vsel %vm1338, %v4909, %v4916
        %v4919 = vshrl.u32 %v4775, 16
        %v4921 = vrot.slane %v4919, 7
        %v4922 = vrot.slane %v4921, 4
        %v4924 = vshrl.u32 %v4776, 16
        %v4926 = vrot.slane %v4924, 7
        %v4927 = vshll.u32 %v4776, 16
        %v4929 = vor.u32 %v4926, %v4927
        %v4930 = vsel %vm1338, %v4922, %v4929
        %v4931 = vrot.slane %v4926, 4
        %v4933 = vshrl.u32 %v4777, 16
        %v4935 = vrot.slane %v4933, 7
        %v4936 = vshll.u32 %v4777, 16
        %v4938 = vor.u32 %v4935, %v4936
        %v4939 = vsel %vm1338, %v4931, %v4938
        %v4941 = vshrl.u32 %v4778, 16
        %v4943 = vrot.slane %v4941, 7
        %v4944 = vrot.slane %v4943, 4
        %v4946 = vshrl.u32 %v4779, 16
        %v4948 = vrot.slane %v4946, 7
        %v4949 = vshll.u32 %v4779, 16
        %v4951 = vor.u32 %v4948, %v4949
        %v4952 = vsel %vm1338, %v4944, %v4951
        %v4953 = vrot.slane %v4948, 4
        %v4955 = vshrl.u32 %v4780, 16
        %v4957 = vrot.slane %v4955, 7
        %v4958 = vshll.u32 %v4780, 16
        %v4960 = vor.u32 %v4957, %v4958
        %v4961 = vsel %vm1338, %v4953, %v4960
        %v4963 = vshrl.u32 %v4781, 16
        %v4965 = vrot.slane %v4963, 7
        %v4966 = vrot.slane %v4965, 4
        %v4968 = vshrl.u32 %v4782, 16
        %v4970 = vrot.slane %v4968, 7
        %v4971 = vshll.u32 %v4782, 16
        %v4973 = vor.u32 %v4970, %v4971
        %v4974 = vsel %vm1338, %v4966, %v4973
        %v4975 = vrot.slane %v4970, 4
        %v4977 = vshrl.u32 %v4783, 16
        %v4979 = vrot.slane %v4977, 7
        %v4980 = vshll.u32 %v4783, 16
        %v4982 = vor.u32 %v4979, %v4980
        %v4983 = vsel %vm1338, %v4975, %v4982
        %v4985 = vshrl.u32 %v4784, 16
        %v4987 = vrot.slane %v4985, 7
        %v4988 = vrot.slane %v4987, 4
        %v4990 = vshrl.u32 %v4785, 16
        %v4992 = vrot.slane %v4990, 7
        %v4993 = vshll.u32 %v4785, 16
        %v4995 = vor.u32 %v4992, %v4993
        %v4996 = vsel %vm1338, %v4988, %v4995
        %v4997 = vrot.slane %v4992, 4
        %v4999 = vshrl.u32 %v4786, 16
        %v5001 = vrot.slane %v4999, 7
        %v5002 = vshll.u32 %v4786, 16
        %v5004 = vor.u32 %v5001, %v5002
        %v5005 = vsel %vm1338, %v4997, %v5004
        %v5007 = vshrl.u32 %v4787, 16
        %v5009 = vrot.slane %v5007, 7
        %v5010 = vrot.slane %v5009, 4
        %v5012 = vshrl.u32 %v4788, 16
        %v5014 = vrot.slane %v5012, 7
        %v5015 = vshll.u32 %v4788, 16
        %v5017 = vor.u32 %v5014, %v5015
        %v5018 = vsel %vm1338, %v5010, %v5017
        %v5019 = vrot.slane %v5014, 4
        %v5021 = vshrl.u32 %v4789, 16
        %v5023 = vrot.slane %v5021, 7
        %v5024 = vshll.u32 %v4789, 16
        %v5026 = vor.u32 %v5023, %v5024
        %v5027 = vsel %vm1338, %v5019, %v5026
        %v5029 = vshrl.u32 %v4790, 16
        %v5031 = vrot.slane %v5029, 7
        %v5032 = vrot.slane %v5031, 4
        %v5034 = vshrl.u32 %v4791, 16
        %v5036 = vrot.slane %v5034, 7
        %v5037 = vshll.u32 %v4791, 16
        %v5039 = vor.u32 %v5036, %v5037
        %v5040 = vsel %vm1338, %v5032, %v5039
        %v5041 = vrot.slane %v5036, 4
        %v5043 = vshrl.u32 %v4792, 16
        %v5045 = vrot.slane %v5043, 7
        %v5046 = vshll.u32 %v4792, 16
        %v5048 = vor.u32 %v5045, %v5046
        %v5049 = vsel %vm1338, %v5041, %v5048
        %v5051 = vshrl.u32 %v4793, 16
        %v5053 = vrot.slane %v5051, 7
        %v5054 = vrot.slane %v5053, 4
        %v5056 = vshrl.u32 %v4794, 16
        %v5058 = vrot.slane %v5056, 7
        %v5059 = vshll.u32 %v4794, 16
        %v5061 = vor.u32 %v5058, %v5059
        %v5062 = vsel %vm1338, %v5054, %v5061
        %v5063 = vrot.slane %v5058, 4
        %v5065 = vshrl.u32 %v4795, 16
        %v5067 = vrot.slane %v5065, 7
        %v5068 = vshll.u32 %v4795, 16
        %v5070 = vor.u32 %v5067, %v5068
        %v5071 = vsel %vm1338, %v5063, %v5070
        %v5073 = vshrl.u32 %v4796, 16
        %v5075 = vrot.slane %v5073, 7
        %v5076 = vrot.slane %v5075, 4
        %v5078 = vshrl.u32 %v4797, 16
        %v5080 = vrot.slane %v5078, 7
        %v5081 = vshll.u32 %v4797, 16
        %v5083 = vor.u32 %v5080, %v5081
        %v5084 = vsel %vm1338, %v5076, %v5083
        %v5085 = vrot.slane %v5080, 4
        %v5087 = vshrl.u32 %v4798, 16
        %v5089 = vrot.slane %v5087, 7
        %v5090 = vshll.u32 %v4798, 16
        %v5092 = vor.u32 %v5089, %v5090
        %v5093 = vsel %vm1338, %v5085, %v5092
        %v5095 = vshrl.u32 %v4799, 16
        %v5097 = vrot.slane %v5095, 7
        %v5098 = vrot.slane %v5097, 4
        %v5100 = vshrl.u32 %v4800, 16
        %v5102 = vrot.slane %v5100, 7
        %v5103 = vshll.u32 %v4800, 16
        %v5105 = vor.u32 %v5102, %v5103
        %v5106 = vsel %vm1338, %v5098, %v5105
        %v5107 = vrot.slane %v5102, 4
        %v5109 = vshrl.u32 %v4801, 16
        %v5111 = vrot.slane %v5109, 7
        %v5112 = vshll.u32 %v4801, 16
        %v5114 = vor.u32 %v5111, %v5112
        %v5115 = vsel %vm1338, %v5107, %v5114
        %v5117 = vshrl.u32 %v4802, 16
        %v5119 = vrot.slane %v5117, 7
        %v5120 = vrot.slane %v5119, 4
        %v5122 = vshrl.u32 %v4803, 16
        %v5124 = vrot.slane %v5122, 7
        %v5125 = vshll.u32 %v4803, 16
        %v5127 = vor.u32 %v5124, %v5125
        %v5128 = vsel %vm1338, %v5120, %v5127
        %v5129 = vrot.slane %v5124, 4
        %v5131 = vshrl.u32 %v4804, 16
        %v5133 = vrot.slane %v5131, 7
        %v5134 = vshll.u32 %v4804, 16
        %v5136 = vor.u32 %v5133, %v5134
        %v5137 = vsel %vm1338, %v5129, %v5136
        %v5139 = vshrl.u32 %v4805, 16
        %v5141 = vrot.slane %v5139, 7
        %v5142 = vrot.slane %v5141, 4
        %v5144 = vshrl.u32 %v4806, 16
        %v5146 = vrot.slane %v5144, 7
        %v5147 = vshll.u32 %v4806, 16
        %v5149 = vor.u32 %v5146, %v5147
        %v5150 = vsel %vm1338, %v5142, %v5149
        %v5151 = vrot.slane %v5146, 4
        %v5153 = vshrl.u32 %v4807, 16
        %v5155 = vrot.slane %v5153, 7
        %v5156 = vshll.u32 %v4807, 16
        %v5158 = vor.u32 %v5155, %v5156
        %v5159 = vsel %vm1338, %v5151, %v5158
        %s5160 = scalar_lea.vmem %s4, 48
        %v5161 = vld [vmem:[%s5160] sm:$0xf]
        %v5162 = vld [vmem:[%s5160 + $0x4] sm:$0x3]
        %v5163 = vunpack.c.l.b16 %v4820
        %v5164 = vunpack.c.l.b16 %v4829
        %v5165 = vunpack.c.l.b16 %v4842
        %v5166 = vunpack.c.l.b16 %v4851
        %v5167 = vunpack.c.l.b16 %v4864
        %v5168 = vunpack.c.l.b16 %v4873
        %v5169 = vunpack.c.l.b16 %v4886
        %v5170 = vunpack.c.l.b16 %v4895
        %v5171 = vunpack.c.l.b16 %v4908
        %v5172 = vunpack.c.l.b16 %v4917
        %v5173 = vunpack.c.l.b16 %v4930
        %v5174 = vunpack.c.l.b16 %v4939
        %v5175 = vunpack.c.l.b16 %v4952
        %v5176 = vunpack.c.l.b16 %v4961
        %v5177 = vunpack.c.l.b16 %v4974
        %v5178 = vunpack.c.l.b16 %v4983
        %v5179 = vunpack.c.l.b16 %v4996
        %v5180 = vunpack.c.l.b16 %v5005
        %v5181 = vunpack.c.l.b16 %v5018
        %v5182 = vunpack.c.l.b16 %v5027
        %v5183 = vunpack.c.l.b16 %v5040
        %v5184 = vunpack.c.l.b16 %v5049
        %v5185 = vunpack.c.l.b16 %v5062
        %v5186 = vunpack.c.l.b16 %v5071
        %v5187 = vunpack.c.l.b16 %v5084
        %v5188 = vunpack.c.l.b16 %v5093
        %v5189 = vunpack.c.l.b16 %v5106
        %v5190 = vunpack.c.l.b16 %v5115
        %v5191 = vunpack.c.l.b16 %v5128
        %v5192 = vunpack.c.l.b16 %v5137
        %v5193 = vunpack.c.l.b16 %v5150
        %v5194 = vunpack.c.l.b16 %v5159
        %v5195 = vpack.c.b16 %v5164, %v5163
        %v5196 = vpack.c.b16 %v5166, %v5165
        %v5197 = vpack.c.b16 %v5168, %v5167
        %v5198 = vpack.c.b16 %v5170, %v5169
        %v5199 = vpack.c.b16 %v5172, %v5171
        %v5200 = vpack.c.b16 %v5174, %v5173
        %v5201 = vpack.c.b16 %v5176, %v5175
        %v5202 = vpack.c.b16 %v5178, %v5177
        %v5203 = vpack.c.b16 %v5180, %v5179
        %v5204 = vpack.c.b16 %v5182, %v5181
        %v5205 = vpack.c.b16 %v5184, %v5183
        %v5206 = vpack.c.b16 %v5186, %v5185
        %v5207 = vpack.c.b16 %v5188, %v5187
        %v5208 = vpack.c.b16 %v5190, %v5189
        %v5209 = vpack.c.b16 %v5192, %v5191
        %v5210 = vpack.c.b16 %v5194, %v5193
        %v5213 = vunpack.c.l.b16 %v5161
        %v5214 = vunpack.c.l.b16 %v5162
        %v5215 = vpack.c.b16 %v5214, %v5213
        %v5217 = vsel %vm1781, %v5195, 0
        %v5220 = vsel %vm1781, %v5196, 0
        %v5223 = vsel %vm1781, %v5197, 0
        %v5226 = vsel %vm1781, %v5198, 0
        %v5229 = vsel %vm1781, %v5199, 0
        %v5232 = vsel %vm1781, %v5200, 0
        %v5235 = vsel %vm1781, %v5201, 0
        %v5238 = vsel %vm1781, %v5202, 0
        %v5241 = vsel %vm1781, %v5203, 0
        %v5244 = vsel %vm1781, %v5204, 0
        %v5247 = vsel %vm1781, %v5205, 0
        %v5250 = vsel %vm1781, %v5206, 0
        %v5253 = vsel %vm1781, %v5207, 0
        %v5256 = vsel %vm1781, %v5208, 0
        %v5259 = vsel %vm1781, %v5209, 0
        %v5262 = vsel %vm1781, %v5210, 0
        %v5265 = vsel %vm1830, %v5215, 0
        %5267 = vmatprep.subr.bf16.mxu0 0
        %5268 = vmatpush1.bf16.msra.mxu0 %v5265
        %5269 = vmatprep.subr.bf16.mxu0 0
        %5270 = vmatpush1.bf16.msra.mxu0 0
        %5271 = vmatprep.subr.bf16.mxu0 0
        %5272 = vmatpush1.bf16.msra.mxu0 0
        %5273 = vmatprep.subr.bf16.mxu0 0
        %5274 = vmatpush1.bf16.msra.mxu0 0
        %5275 = vmatprep.subr.bf16.mxu0 0
        %5276 = vmatpush1.bf16.msra.mxu0 0
        %5277 = vmatprep.subr.bf16.mxu0 0
        %5278 = vmatpush1.bf16.msra.mxu0 0
        %5279 = vmatprep.subr.bf16.mxu0 0
        %5280 = vmatpush1.bf16.msra.mxu0 0
        %5281 = vmatprep.subr.bf16.mxu0 0
        %5282 = vmatpush1.bf16.msra.mxu0 0
        %5283 = vmatprep.subr.bf16.mxu0 0
        %5284 = vmatpush1.bf16.msra.mxu0 0
        %5285 = vmatprep.subr.bf16.mxu0 0
        %5286 = vmatpush1.bf16.msra.mxu0 0
        %5287 = vmatprep.subr.bf16.mxu0 0
        %5288 = vmatpush1.bf16.msra.mxu0 0
        %5289 = vmatprep.subr.bf16.mxu0 0
        %5290 = vmatpush1.bf16.msra.mxu0 0
        %5291 = vmatprep.subr.bf16.mxu0 0
        %5292 = vmatpush1.bf16.msra.mxu0 0
        %5293 = vmatprep.subr.bf16.mxu0 0
        %5294 = vmatpush1.bf16.msra.mxu0 0
        %5295 = vmatprep.subr.bf16.mxu0 0
        %5296 = vmatpush1.bf16.msra.mxu0 0
        %5297 = vmatprep.subr.bf16.mxu0 0
        %5298 = vmatpush1.bf16.msra.mxu0 0
        %5299 = vmatprep.mubr.bf16.mxu0 0
        %5300 = vmatmul.mubr.bf16.gmra.mrb[0].mxu0 %v5217
        %v5301 = vpop.f32.mrb[0].mxu0
        %v5302 = vadd.f32 0.0, %v5301
        %v5303 = vpop.f32.mrb[0].mxu0
        %v5304 = vpop.f32.mrb[0].mxu0
        %v5305 = vadd.f32 0.0, %v5304
        %v5306 = vpop.f32.mrb[0].mxu0
        %5307 = vmatprep.mubr.bf16.mxu0 0
        %5308 = vmatmul.mubr.bf16.gmra.mrb[0].mxu0 %v5220
        %v5309 = vpop.f32.mrb[0].mxu0
        %v5310 = vadd.f32 0.0, %v5309
        %v5311 = vpop.f32.mrb[0].mxu0
        %v5312 = vpop.f32.mrb[0].mxu0
        %v5313 = vadd.f32 0.0, %v5312
        %v5314 = vpop.f32.mrb[0].mxu0
        %5315 = vmatprep.mubr.bf16.mxu0 0
        %5316 = vmatmul.mubr.bf16.gmra.mrb[0].mxu0 %v5223
        %v5317 = vpop.f32.mrb[0].mxu0
        %v5318 = vadd.f32 0.0, %v5317
        %v5319 = vpop.f32.mrb[0].mxu0
        %v5320 = vpop.f32.mrb[0].mxu0
        %v5321 = vadd.f32 0.0, %v5320
        %v5322 = vpop.f32.mrb[0].mxu0
        %5323 = vmatprep.mubr.bf16.mxu0 0
        %5324 = vmatmul.mubr.bf16.gmra.mrb[0].mxu0 %v5226
        %v5325 = vpop.f32.mrb[0].mxu0
        %v5326 = vadd.f32 0.0, %v5325
        %v5327 = vpop.f32.mrb[0].mxu0
        %v5328 = vpop.f32.mrb[0].mxu0
        %v5329 = vadd.f32 0.0, %v5328
        %v5330 = vpop.f32.mrb[0].mxu0
        %5331 = vmatprep.mubr.bf16.mxu0 0
        %5332 = vmatmul.mubr.bf16.gmra.mrb[0].mxu0 %v5229
        %v5333 = vpop.f32.mrb[0].mxu0
        %v5334 = vadd.f32 0.0, %v5333
        %v5335 = vpop.f32.mrb[0].mxu0
        %v5336 = vpop.f32.mrb[0].mxu0
        %v5337 = vadd.f32 0.0, %v5336
        %v5338 = vpop.f32.mrb[0].mxu0
        %5339 = vmatprep.mubr.bf16.mxu0 0
        %5340 = vmatmul.mubr.bf16.gmra.mrb[0].mxu0 %v5232
        %v5341 = vpop.f32.mrb[0].mxu0
        %v5342 = vadd.f32 0.0, %v5341
        %v5343 = vpop.f32.mrb[0].mxu0
        %v5344 = vpop.f32.mrb[0].mxu0
        %v5345 = vadd.f32 0.0, %v5344
        %v5346 = vpop.f32.mrb[0].mxu0
        %5347 = vmatprep.mubr.bf16.mxu0 0
        %5348 = vmatmul.mubr.bf16.gmra.mrb[0].mxu0 %v5235
        %v5349 = vpop.f32.mrb[0].mxu0
        %v5350 = vadd.f32 0.0, %v5349
        %v5351 = vpop.f32.mrb[0].mxu0
        %v5352 = vpop.f32.mrb[0].mxu0
        %v5353 = vadd.f32 0.0, %v5352
        %v5354 = vpop.f32.mrb[0].mxu0
        %5355 = vmatprep.mubr.bf16.mxu0 0
        %5356 = vmatmul.mubr.bf16.gmra.mrb[0].mxu0 %v5238
        %v5357 = vpop.f32.mrb[0].mxu0
        %v5358 = vadd.f32 0.0, %v5357
        %v5359 = vpop.f32.mrb[0].mxu0
        %v5360 = vpop.f32.mrb[0].mxu0
        %v5361 = vadd.f32 0.0, %v5360
        %v5362 = vpop.f32.mrb[0].mxu0
        %5363 = vmatprep.mubr.bf16.mxu0 0
        %5364 = vmatmul.mubr.bf16.gmra.mrb[0].mxu0 %v5241
        %v5365 = vpop.f32.mrb[0].mxu0
        %v5366 = vadd.f32 0.0, %v5365
        %v5367 = vpop.f32.mrb[0].mxu0
        %v5368 = vpop.f32.mrb[0].mxu0
        %v5369 = vadd.f32 0.0, %v5368
        %v5370 = vpop.f32.mrb[0].mxu0
        %5371 = vmatprep.mubr.bf16.mxu0 0
        %5372 = vmatmul.mubr.bf16.gmra.mrb[0].mxu0 %v5244
        %v5373 = vpop.f32.mrb[0].mxu0
        %v5374 = vadd.f32 0.0, %v5373
        %v5375 = vpop.f32.mrb[0].mxu0
        %v5376 = vpop.f32.mrb[0].mxu0
        %v5377 = vadd.f32 0.0, %v5376
        %v5378 = vpop.f32.mrb[0].mxu0
        %5379 = vmatprep.mubr.bf16.mxu0 0
        %5380 = vmatmul.mubr.bf16.gmra.mrb[0].mxu0 %v5247
        %v5381 = vpop.f32.mrb[0].mxu0
        %v5382 = vadd.f32 0.0, %v5381
        %v5383 = vpop.f32.mrb[0].mxu0
        %v5384 = vpop.f32.mrb[0].mxu0
        %v5385 = vadd.f32 0.0, %v5384
        %v5386 = vpop.f32.mrb[0].mxu0
        %5387 = vmatprep.mubr.bf16.mxu0 0
        %5388 = vmatmul.mubr.bf16.gmra.mrb[0].mxu0 %v5250
        %v5389 = vpop.f32.mrb[0].mxu0
        %v5390 = vadd.f32 0.0, %v5389
        %v5391 = vpop.f32.mrb[0].mxu0
        %v5392 = vpop.f32.mrb[0].mxu0
        %v5393 = vadd.f32 0.0, %v5392
        %v5394 = vpop.f32.mrb[0].mxu0
        %5395 = vmatprep.mubr.bf16.mxu0 0
        %5396 = vmatmul.mubr.bf16.gmra.mrb[0].mxu0 %v5253
        %v5397 = vpop.f32.mrb[0].mxu0
        %v5398 = vadd.f32 0.0, %v5397
        %v5399 = vpop.f32.mrb[0].mxu0
        %v5400 = vpop.f32.mrb[0].mxu0
        %v5401 = vadd.f32 0.0, %v5400
        %v5402 = vpop.f32.mrb[0].mxu0
        %5403 = vmatprep.mubr.bf16.mxu0 0
        %5404 = vmatmul.mubr.bf16.gmra.mrb[0].mxu0 %v5256
        %v5405 = vpop.f32.mrb[0].mxu0
        %v5406 = vadd.f32 0.0, %v5405
        %v5407 = vpop.f32.mrb[0].mxu0
        %v5408 = vpop.f32.mrb[0].mxu0
        %v5409 = vadd.f32 0.0, %v5408
        %v5410 = vpop.f32.mrb[0].mxu0
        %5411 = vmatprep.mubr.bf16.mxu0 0
        %5412 = vmatmul.mubr.bf16.gmra.mrb[0].mxu0 %v5259
        %v5413 = vpop.f32.mrb[0].mxu0
        %v5414 = vadd.f32 0.0, %v5413
        %v5415 = vpop.f32.mrb[0].mxu0
        %v5416 = vpop.f32.mrb[0].mxu0
        %v5417 = vadd.f32 0.0, %v5416
        %v5418 = vpop.f32.mrb[0].mxu0
        %5419 = vmatprep.mubr.bf16.mxu0 0
        %5420 = vmatmul.mubr.bf16.gmra.mrb[0].mxu0 %v5262
        %v5421 = vpop.f32.mrb[0].mxu0
        %v5422 = vadd.f32 0.0, %v5421
        %v5423 = vpop.f32.mrb[0].mxu0
        %v5424 = vpop.f32.mrb[0].mxu0
        %v5425 = vadd.f32 0.0, %v5424
        %v5426 = vpop.f32.mrb[0].mxu0
        %5427 = vdwg.mxu0
        %v5428 = vadd.f32 %v4727, %v5302
        %v5429 = vadd.f32 %v4728, %v5305
        %v5430 = vadd.f32 %v4729, %v5310
        %v5431 = vadd.f32 %v4730, %v5313
        %v5432 = vadd.f32 %v4731, %v5318
        %v5433 = vadd.f32 %v4732, %v5321
        %v5434 = vadd.f32 %v4733, %v5326
        %v5435 = vadd.f32 %v4734, %v5329
        %v5436 = vadd.f32 %v4735, %v5334
        %v5437 = vadd.f32 %v4736, %v5337
        %v5438 = vadd.f32 %v4737, %v5342
        %v5439 = vadd.f32 %v4738, %v5345
        %v5440 = vadd.f32 %v4739, %v5350
        %v5441 = vadd.f32 %v4740, %v5353
        %v5442 = vadd.f32 %v4741, %v5358
        %v5443 = vadd.f32 %v4742, %v5361
        %v5444 = vadd.f32 %v4743, %v5366
        %v5445 = vadd.f32 %v4744, %v5369
        %v5446 = vadd.f32 %v4745, %v5374
        %v5447 = vadd.f32 %v4746, %v5377
        %v5448 = vadd.f32 %v4747, %v5382
        %v5449 = vadd.f32 %v4748, %v5385
        %v5450 = vadd.f32 %v4749, %v5390
        %v5451 = vadd.f32 %v4750, %v5393
        %v5452 = vadd.f32 %v4751, %v5398
        %v5453 = vadd.f32 %v4752, %v5401
        %v5454 = vadd.f32 %v4753, %v5406
        %v5455 = vadd.f32 %v4754, %v5409
        %v5456 = vadd.f32 %v4755, %v5414
        %v5457 = vadd.f32 %v4756, %v5417
        %v5458 = vadd.f32 %v4757, %v5422
        %v5459 = vadd.f32 %v4758, %v5425
        %s5460 = scalar_lea.vmem %s4, 56
        %v5461 = vld [vmem:[%s5460] sm:$0xf]
        %v5462 = vld [vmem:[%s5460 + $0x4] sm:$0x3]
        %v5495 = vunpack.c.l.b16 %v4761
        %v5496 = vunpack.c.l.b16 %v4762
        %v5497 = vunpack.c.l.b16 %v4764
        %v5498 = vunpack.c.l.b16 %v4765
        %v5499 = vunpack.c.l.b16 %v4767
        %v5500 = vunpack.c.l.b16 %v4768
        %v5501 = vunpack.c.l.b16 %v4770
        %v5502 = vunpack.c.l.b16 %v4771
        %v5503 = vunpack.c.l.b16 %v4773
        %v5504 = vunpack.c.l.b16 %v4774
        %v5505 = vunpack.c.l.b16 %v4776
        %v5506 = vunpack.c.l.b16 %v4777
        %v5507 = vunpack.c.l.b16 %v4779
        %v5508 = vunpack.c.l.b16 %v4780
        %v5509 = vunpack.c.l.b16 %v4782
        %v5510 = vunpack.c.l.b16 %v4783
        %v5511 = vunpack.c.l.b16 %v4785
        %v5512 = vunpack.c.l.b16 %v4786
        %v5513 = vunpack.c.l.b16 %v4788
        %v5514 = vunpack.c.l.b16 %v4789
        %v5515 = vunpack.c.l.b16 %v4791
        %v5516 = vunpack.c.l.b16 %v4792
        %v5517 = vunpack.c.l.b16 %v4794
        %v5518 = vunpack.c.l.b16 %v4795
        %v5519 = vunpack.c.l.b16 %v4797
        %v5520 = vunpack.c.l.b16 %v4798
        %v5521 = vunpack.c.l.b16 %v4800
        %v5522 = vunpack.c.l.b16 %v4801
        %v5523 = vunpack.c.l.b16 %v4803
        %v5524 = vunpack.c.l.b16 %v4804
        %v5525 = vunpack.c.l.b16 %v4806
        %v5526 = vunpack.c.l.b16 %v4807
        %v5527 = vpack.c.b16 %v5496, %v5495
        %v5528 = vpack.c.b16 %v5498, %v5497
        %v5529 = vpack.c.b16 %v5500, %v5499
        %v5530 = vpack.c.b16 %v5502, %v5501
        %v5531 = vpack.c.b16 %v5504, %v5503
        %v5532 = vpack.c.b16 %v5506, %v5505
        %v5533 = vpack.c.b16 %v5508, %v5507
        %v5534 = vpack.c.b16 %v5510, %v5509
        %v5535 = vpack.c.b16 %v5512, %v5511
        %v5536 = vpack.c.b16 %v5514, %v5513
        %v5537 = vpack.c.b16 %v5516, %v5515
        %v5538 = vpack.c.b16 %v5518, %v5517
        %v5539 = vpack.c.b16 %v5520, %v5519
        %v5540 = vpack.c.b16 %v5522, %v5521
        %v5541 = vpack.c.b16 %v5524, %v5523
        %v5542 = vpack.c.b16 %v5526, %v5525
        %v5545 = vunpack.c.l.b16 %v5461
        %v5546 = vunpack.c.l.b16 %v5462
        %v5547 = vpack.c.b16 %v5546, %v5545
        %v5549 = vsel %vm1781, %v5527, 0
        %v5552 = vsel %vm1781, %v5528, 0
        %v5555 = vsel %vm1781, %v5529, 0
        %v5558 = vsel %vm1781, %v5530, 0
        %v5561 = vsel %vm1781, %v5531, 0
        %v5564 = vsel %vm1781, %v5532, 0
        %v5567 = vsel %vm1781, %v5533, 0
        %v5570 = vsel %vm1781, %v5534, 0
        %v5573 = vsel %vm1781, %v5535, 0
        %v5576 = vsel %vm1781, %v5536, 0
        %v5579 = vsel %vm1781, %v5537, 0
        %v5582 = vsel %vm1781, %v5538, 0
        %v5585 = vsel %vm1781, %v5539, 0
        %v5588 = vsel %vm1781, %v5540, 0
        %v5591 = vsel %vm1781, %v5541, 0
        %v5594 = vsel %vm1781, %v5542, 0
        %v5597 = vsel %vm1830, %v5547, 0
        %5599 = vmatprep.subr.bf16.mxu0 0
        %5600 = vmatpush1.bf16.msra.mxu0 %v5597
        %5601 = vmatprep.subr.bf16.mxu0 0
        %5602 = vmatpush1.bf16.msra.mxu0 0
        %5603 = vmatprep.subr.bf16.mxu0 0
        %5604 = vmatpush1.bf16.msra.mxu0 0
        %5605 = vmatprep.subr.bf16.mxu0 0
        %5606 = vmatpush1.bf16.msra.mxu0 0
        %5607 = vmatprep.subr.bf16.mxu0 0
        %5608 = vmatpush1.bf16.msra.mxu0 0
        %5609 = vmatprep.subr.bf16.mxu0 0
        %5610 = vmatpush1.bf16.msra.mxu0 0
        %5611 = vmatprep.subr.bf16.mxu0 0
        %5612 = vmatpush1.bf16.msra.mxu0 0
        %5613 = vmatprep.subr.bf16.mxu0 0
        %5614 = vmatpush1.bf16.msra.mxu0 0
        %5615 = vmatprep.subr.bf16.mxu0 0
        %5616 = vmatpush1.bf16.msra.mxu0 0
        %5617 = vmatprep.subr.bf16.mxu0 0
        %5618 = vmatpush1.bf16.msra.mxu0 0
        %5619 = vmatprep.subr.bf16.mxu0 0
        %5620 = vmatpush1.bf16.msra.mxu0 0
        %5621 = vmatprep.subr.bf16.mxu0 0
        %5622 = vmatpush1.bf16.msra.mxu0 0
        %5623 = vmatprep.subr.bf16.mxu0 0
        %5624 = vmatpush1.bf16.msra.mxu0 0
        %5625 = vmatprep.subr.bf16.mxu0 0
        %5626 = vmatpush1.bf16.msra.mxu0 0
        %5627 = vmatprep.subr.bf16.mxu0 0
        %5628 = vmatpush1.bf16.msra.mxu0 0
        %5629 = vmatprep.subr.bf16.mxu0 0
        %5630 = vmatpush1.bf16.msra.mxu0 0
        %5631 = vmatprep.mubr.bf16.mxu0 0
        %5632 = vmatmul.mubr.bf16.gmra.mrb[0].mxu0 %v5549
        %v5633 = vpop.f32.mrb[0].mxu0
        %v5634 = vadd.f32 0.0, %v5633
        %v5635 = vpop.f32.mrb[0].mxu0
        %v5636 = vpop.f32.mrb[0].mxu0
        %v5637 = vadd.f32 0.0, %v5636
        %v5638 = vpop.f32.mrb[0].mxu0
        %5639 = vmatprep.mubr.bf16.mxu0 0
        %5640 = vmatmul.mubr.bf16.gmra.mrb[0].mxu0 %v5552
        %v5641 = vpop.f32.mrb[0].mxu0
        %v5642 = vadd.f32 0.0, %v5641
        %v5643 = vpop.f32.mrb[0].mxu0
        %v5644 = vpop.f32.mrb[0].mxu0
        %v5645 = vadd.f32 0.0, %v5644
        %v5646 = vpop.f32.mrb[0].mxu0
        %5647 = vmatprep.mubr.bf16.mxu0 0
        %5648 = vmatmul.mubr.bf16.gmra.mrb[0].mxu0 %v5555
        %v5649 = vpop.f32.mrb[0].mxu0
        %v5650 = vadd.f32 0.0, %v5649
        %v5651 = vpop.f32.mrb[0].mxu0
        %v5652 = vpop.f32.mrb[0].mxu0
        %v5653 = vadd.f32 0.0, %v5652
        %v5654 = vpop.f32.mrb[0].mxu0
        %5655 = vmatprep.mubr.bf16.mxu0 0
        %5656 = vmatmul.mubr.bf16.gmra.mrb[0].mxu0 %v5558
        %v5657 = vpop.f32.mrb[0].mxu0
        %v5658 = vadd.f32 0.0, %v5657
        %v5659 = vpop.f32.mrb[0].mxu0
        %v5660 = vpop.f32.mrb[0].mxu0
        %v5661 = vadd.f32 0.0, %v5660
        %v5662 = vpop.f32.mrb[0].mxu0
        %5663 = vmatprep.mubr.bf16.mxu0 0
        %5664 = vmatmul.mubr.bf16.gmra.mrb[0].mxu0 %v5561
        %v5665 = vpop.f32.mrb[0].mxu0
        %v5666 = vadd.f32 0.0, %v5665
        %v5667 = vpop.f32.mrb[0].mxu0
        %v5668 = vpop.f32.mrb[0].mxu0
        %v5669 = vadd.f32 0.0, %v5668
        %v5670 = vpop.f32.mrb[0].mxu0
        %5671 = vmatprep.mubr.bf16.mxu0 0
        %5672 = vmatmul.mubr.bf16.gmra.mrb[0].mxu0 %v5564
        %v5673 = vpop.f32.mrb[0].mxu0
        %v5674 = vadd.f32 0.0, %v5673
        %v5675 = vpop.f32.mrb[0].mxu0
        %v5676 = vpop.f32.mrb[0].mxu0
        %v5677 = vadd.f32 0.0, %v5676
        %v5678 = vpop.f32.mrb[0].mxu0
        %5679 = vmatprep.mubr.bf16.mxu0 0
        %5680 = vmatmul.mubr.bf16.gmra.mrb[0].mxu0 %v5567
        %v5681 = vpop.f32.mrb[0].mxu0
        %v5682 = vadd.f32 0.0, %v5681
        %v5683 = vpop.f32.mrb[0].mxu0
        %v5684 = vpop.f32.mrb[0].mxu0
        %v5685 = vadd.f32 0.0, %v5684
        %v5686 = vpop.f32.mrb[0].mxu0
        %5687 = vmatprep.mubr.bf16.mxu0 0
        %5688 = vmatmul.mubr.bf16.gmra.mrb[0].mxu0 %v5570
        %v5689 = vpop.f32.mrb[0].mxu0
        %v5690 = vadd.f32 0.0, %v5689
        %v5691 = vpop.f32.mrb[0].mxu0
        %v5692 = vpop.f32.mrb[0].mxu0
        %v5693 = vadd.f32 0.0, %v5692
        %v5694 = vpop.f32.mrb[0].mxu0
        %5695 = vmatprep.mubr.bf16.mxu0 0
        %5696 = vmatmul.mubr.bf16.gmra.mrb[0].mxu0 %v5573
        %v5697 = vpop.f32.mrb[0].mxu0
        %v5698 = vadd.f32 0.0, %v5697
        %v5699 = vpop.f32.mrb[0].mxu0
        %v5700 = vpop.f32.mrb[0].mxu0
        %v5701 = vadd.f32 0.0, %v5700
        %v5702 = vpop.f32.mrb[0].mxu0
        %5703 = vmatprep.mubr.bf16.mxu0 0
        %5704 = vmatmul.mubr.bf16.gmra.mrb[0].mxu0 %v5576
        %v5705 = vpop.f32.mrb[0].mxu0
        %v5706 = vadd.f32 0.0, %v5705
        %v5707 = vpop.f32.mrb[0].mxu0
        %v5708 = vpop.f32.mrb[0].mxu0
        %v5709 = vadd.f32 0.0, %v5708
        %v5710 = vpop.f32.mrb[0].mxu0
        %5711 = vmatprep.mubr.bf16.mxu0 0
        %5712 = vmatmul.mubr.bf16.gmra.mrb[0].mxu0 %v5579
        %v5713 = vpop.f32.mrb[0].mxu0
        %v5714 = vadd.f32 0.0, %v5713
        %v5715 = vpop.f32.mrb[0].mxu0
        %v5716 = vpop.f32.mrb[0].mxu0
        %v5717 = vadd.f32 0.0, %v5716
        %v5718 = vpop.f32.mrb[0].mxu0
        %5719 = vmatprep.mubr.bf16.mxu0 0
        %5720 = vmatmul.mubr.bf16.gmra.mrb[0].mxu0 %v5582
        %v5721 = vpop.f32.mrb[0].mxu0
        %v5722 = vadd.f32 0.0, %v5721
        %v5723 = vpop.f32.mrb[0].mxu0
        %v5724 = vpop.f32.mrb[0].mxu0
        %v5725 = vadd.f32 0.0, %v5724
        %v5726 = vpop.f32.mrb[0].mxu0
        %5727 = vmatprep.mubr.bf16.mxu0 0
        %5728 = vmatmul.mubr.bf16.gmra.mrb[0].mxu0 %v5585
        %v5729 = vpop.f32.mrb[0].mxu0
        %v5730 = vadd.f32 0.0, %v5729
        %v5731 = vpop.f32.mrb[0].mxu0
        %v5732 = vpop.f32.mrb[0].mxu0
        %v5733 = vadd.f32 0.0, %v5732
        %v5734 = vpop.f32.mrb[0].mxu0
        %5735 = vmatprep.mubr.bf16.mxu0 0
        %5736 = vmatmul.mubr.bf16.gmra.mrb[0].mxu0 %v5588
        %v5737 = vpop.f32.mrb[0].mxu0
        %v5738 = vadd.f32 0.0, %v5737
        %v5739 = vpop.f32.mrb[0].mxu0
        %v5740 = vpop.f32.mrb[0].mxu0
        %v5741 = vadd.f32 0.0, %v5740
        %v5742 = vpop.f32.mrb[0].mxu0
        %5743 = vmatprep.mubr.bf16.mxu0 0
        %5744 = vmatmul.mubr.bf16.gmra.mrb[0].mxu0 %v5591
        %v5745 = vpop.f32.mrb[0].mxu0
        %v5746 = vadd.f32 0.0, %v5745
        %v5747 = vpop.f32.mrb[0].mxu0
        %v5748 = vpop.f32.mrb[0].mxu0
        %v5749 = vadd.f32 0.0, %v5748
        %v5750 = vpop.f32.mrb[0].mxu0
        %5751 = vmatprep.mubr.bf16.mxu0 0
        %5752 = vmatmul.mubr.bf16.gmra.mrb[0].mxu0 %v5594
        %v5753 = vpop.f32.mrb[0].mxu0
        %v5754 = vadd.f32 0.0, %v5753
        %v5755 = vpop.f32.mrb[0].mxu0
        %v5756 = vpop.f32.mrb[0].mxu0
        %v5757 = vadd.f32 0.0, %v5756
        %v5758 = vpop.f32.mrb[0].mxu0
        %5759 = vdwg.mxu0
        %v5760 = vadd.f32 %v5428, %v5634
        %v5761 = vadd.f32 %v5429, %v5637
        %v5762 = vadd.f32 %v5430, %v5642
        %v5763 = vadd.f32 %v5431, %v5645
        %v5764 = vadd.f32 %v5432, %v5650
        %v5765 = vadd.f32 %v5433, %v5653
        %v5766 = vadd.f32 %v5434, %v5658
        %v5767 = vadd.f32 %v5435, %v5661
        %v5768 = vadd.f32 %v5436, %v5666
        %v5769 = vadd.f32 %v5437, %v5669
        %v5770 = vadd.f32 %v5438, %v5674
        %v5771 = vadd.f32 %v5439, %v5677
        %v5772 = vadd.f32 %v5440, %v5682
        %v5773 = vadd.f32 %v5441, %v5685
        %v5774 = vadd.f32 %v5442, %v5690
        %v5775 = vadd.f32 %v5443, %v5693
        %v5776 = vadd.f32 %v5444, %v5698
        %v5777 = vadd.f32 %v5445, %v5701
        %v5778 = vadd.f32 %v5446, %v5706
        %v5779 = vadd.f32 %v5447, %v5709
        %v5780 = vadd.f32 %v5448, %v5714
        %v5781 = vadd.f32 %v5449, %v5717
        %v5782 = vadd.f32 %v5450, %v5722
        %v5783 = vadd.f32 %v5451, %v5725
        %v5784 = vadd.f32 %v5452, %v5730
        %v5785 = vadd.f32 %v5453, %v5733
        %v5786 = vadd.f32 %v5454, %v5738
        %v5787 = vadd.f32 %v5455, %v5741
        %v5788 = vadd.f32 %v5456, %v5746
        %v5789 = vadd.f32 %v5457, %v5749
        %v5790 = vadd.f32 %v5458, %v5754
        %v5791 = vadd.f32 %v5459, %v5757
        %v5792 = vld [vmem:[%s4759 + $0x8] sm:$0xf]
        %v5793 = vld [vmem:[%s4759 + $0xc] sm:$0xf]
        %v5794 = vld [vmem:[%s4759 + $0x10] sm:$0x1]
        %v5795 = vld [vmem:[%s4759 + $0x1c] sm:$0xf]
        %v5796 = vld [vmem:[%s4759 + $0x20] sm:$0xf]
        %v5797 = vld [vmem:[%s4759 + $0x24] sm:$0x1]
        %v5798 = vld [vmem:[%s4759 + $0x30] sm:$0xf]
        %v5799 = vld [vmem:[%s4759 + $0x34] sm:$0xf]
        %v5800 = vld [vmem:[%s4759 + $0x38] sm:$0x1]
        %v5801 = vld [vmem:[%s4759 + $0x44] sm:$0xf]
        %v5802 = vld [vmem:[%s4759 + $0x48] sm:$0xf]
        %v5803 = vld [vmem:[%s4759 + $0x4c] sm:$0x1]
        %v5804 = vld [vmem:[%s4759 + $0x58] sm:$0xf]
        %v5805 = vld [vmem:[%s4759 + $0x5c] sm:$0xf]
        %v5806 = vld [vmem:[%s4759 + $0x60] sm:$0x1]
        %v5807 = vld [vmem:[%s4759 + $0x6c] sm:$0xf]
        %v5808 = vld [vmem:[%s4759 + $0x70] sm:$0xf]
        %v5809 = vld [vmem:[%s4759 + $0x74] sm:$0x1]
        %v5810 = vld [vmem:[%s4759 + $0x80] sm:$0xf]
        %v5811 = vld [vmem:[%s4759 + $0x84] sm:$0xf]
        %v5812 = vld [vmem:[%s4759 + $0x88] sm:$0x1]
        %v5813 = vld [vmem:[%s4759 + $0x94] sm:$0xf]
        %v5814 = vld [vmem:[%s4759 + $0x98] sm:$0xf]
        %v5815 = vld [vmem:[%s4759 + $0x9c] sm:$0x1]
        %v5816 = vld [vmem:[%s4759 + $0xa8] sm:$0xf]
        %v5817 = vld [vmem:[%s4759 + $0xac] sm:$0xf]
        %v5818 = vld [vmem:[%s4759 + $0xb0] sm:$0x1]
        %v5819 = vld [vmem:[%s4759 + $0xbc] sm:$0xf]
        %v5820 = vld [vmem:[%s4759 + $0xc0] sm:$0xf]
        %v5821 = vld [vmem:[%s4759 + $0xc4] sm:$0x1]
        %v5822 = vld [vmem:[%s4759 + $0xd0] sm:$0xf]
        %v5823 = vld [vmem:[%s4759 + $0xd4] sm:$0xf]
        %v5824 = vld [vmem:[%s4759 + $0xd8] sm:$0x1]
        %v5825 = vld [vmem:[%s4759 + $0xe4] sm:$0xf]
        %v5826 = vld [vmem:[%s4759 + $0xe8] sm:$0xf]
        %v5827 = vld [vmem:[%s4759 + $0xec] sm:$0x1]
        %v5828 = vld [vmem:[%s4759 + $0xf8] sm:$0xf]
        %v5829 = vld [vmem:[%s4759 + $0xfc] sm:$0xf]
        %v5830 = vld [vmem:[%s4759 + $0x100] sm:$0x1]
        %v5831 = vld [vmem:[%s4759 + $0x10c] sm:$0xf]
        %v5832 = vld [vmem:[%s4759 + $0x110] sm:$0xf]
        %v5833 = vld [vmem:[%s4759 + $0x114] sm:$0x1]
        %v5834 = vld [vmem:[%s4759 + $0x120] sm:$0xf]
        %v5835 = vld [vmem:[%s4759 + $0x124] sm:$0xf]
        %v5836 = vld [vmem:[%s4759 + $0x128] sm:$0x1]
        %v5837 = vld [vmem:[%s4759 + $0x134] sm:$0xf]
        %v5838 = vld [vmem:[%s4759 + $0x138] sm:$0xf]
        %v5839 = vld [vmem:[%s4759 + $0x13c] sm:$0x1]
        %v5841 = vshrl.u32 %v5792, 16
        %v5843 = vrot.slane %v5841, 4
        %v5844 = vshll.u32 %v5792, 16
        %v5846 = vrot.slane %v5844, 5
        %v5847 = vor.u32 %v5843, %v5846
        %v5848 = vrot.slane %v5847, 4
        %v5850 = vshll.u32 %v5793, 16
        %v5852 = vrot.slane %v5850, 5
        %v5853 = vsel %vm2310, %v5848, %v5852
        %v5854 = vshrl.u32 %v5793, 16
        %v5856 = vrot.slane %v5854, 4
        %v5857 = vor.u32 %v5856, %v5852
        %v5858 = vrot.slane %v5857, 4
        %v5860 = vshll.u32 %v5794, 16
        %v5862 = vrot.slane %v5860, 5
        %v5863 = vsel %vm2310, %v5858, %v5862
        %v5865 = vshrl.u32 %v5795, 16
        %v5867 = vrot.slane %v5865, 4
        %v5868 = vshll.u32 %v5795, 16
        %v5870 = vrot.slane %v5868, 5
        %v5871 = vor.u32 %v5867, %v5870
        %v5872 = vrot.slane %v5871, 4
        %v5874 = vshll.u32 %v5796, 16
        %v5876 = vrot.slane %v5874, 5
        %v5877 = vsel %vm2310, %v5872, %v5876
        %v5878 = vshrl.u32 %v5796, 16
        %v5880 = vrot.slane %v5878, 4
        %v5881 = vor.u32 %v5880, %v5876
        %v5882 = vrot.slane %v5881, 4
        %v5884 = vshll.u32 %v5797, 16
        %v5886 = vrot.slane %v5884, 5
        %v5887 = vsel %vm2310, %v5882, %v5886
        %v5889 = vshrl.u32 %v5798, 16
        %v5891 = vrot.slane %v5889, 4
        %v5892 = vshll.u32 %v5798, 16
        %v5894 = vrot.slane %v5892, 5
        %v5895 = vor.u32 %v5891, %v5894
        %v5896 = vrot.slane %v5895, 4
        %v5898 = vshll.u32 %v5799, 16
        %v5900 = vrot.slane %v5898, 5
        %v5901 = vsel %vm2310, %v5896, %v5900
        %v5902 = vshrl.u32 %v5799, 16
        %v5904 = vrot.slane %v5902, 4
        %v5905 = vor.u32 %v5904, %v5900
        %v5906 = vrot.slane %v5905, 4
        %v5908 = vshll.u32 %v5800, 16
        %v5910 = vrot.slane %v5908, 5
        %v5911 = vsel %vm2310, %v5906, %v5910
        %v5913 = vshrl.u32 %v5801, 16
        %v5915 = vrot.slane %v5913, 4
        %v5916 = vshll.u32 %v5801, 16
        %v5918 = vrot.slane %v5916, 5
        %v5919 = vor.u32 %v5915, %v5918
        %v5920 = vrot.slane %v5919, 4
        %v5922 = vshll.u32 %v5802, 16
        %v5924 = vrot.slane %v5922, 5
        %v5925 = vsel %vm2310, %v5920, %v5924
        %v5926 = vshrl.u32 %v5802, 16
        %v5928 = vrot.slane %v5926, 4
        %v5929 = vor.u32 %v5928, %v5924
        %v5930 = vrot.slane %v5929, 4
        %v5932 = vshll.u32 %v5803, 16
        %v5934 = vrot.slane %v5932, 5
        %v5935 = vsel %vm2310, %v5930, %v5934
        %v5937 = vshrl.u32 %v5804, 16
        %v5939 = vrot.slane %v5937, 4
        %v5940 = vshll.u32 %v5804, 16
        %v5942 = vrot.slane %v5940, 5
        %v5943 = vor.u32 %v5939, %v5942
        %v5944 = vrot.slane %v5943, 4
        %v5946 = vshll.u32 %v5805, 16
        %v5948 = vrot.slane %v5946, 5
        %v5949 = vsel %vm2310, %v5944, %v5948
        %v5950 = vshrl.u32 %v5805, 16
        %v5952 = vrot.slane %v5950, 4
        %v5953 = vor.u32 %v5952, %v5948
        %v5954 = vrot.slane %v5953, 4
        %v5956 = vshll.u32 %v5806, 16
        %v5958 = vrot.slane %v5956, 5
        %v5959 = vsel %vm2310, %v5954, %v5958
        %v5961 = vshrl.u32 %v5807, 16
        %v5963 = vrot.slane %v5961, 4
        %v5964 = vshll.u32 %v5807, 16
        %v5966 = vrot.slane %v5964, 5
        %v5967 = vor.u32 %v5963, %v5966
        %v5968 = vrot.slane %v5967, 4
        %v5970 = vshll.u32 %v5808, 16
        %v5972 = vrot.slane %v5970, 5
        %v5973 = vsel %vm2310, %v5968, %v5972
        %v5974 = vshrl.u32 %v5808, 16
        %v5976 = vrot.slane %v5974, 4
        %v5977 = vor.u32 %v5976, %v5972
        %v5978 = vrot.slane %v5977, 4
        %v5980 = vshll.u32 %v5809, 16
        %v5982 = vrot.slane %v5980, 5
        %v5983 = vsel %vm2310, %v5978, %v5982
        %v5985 = vshrl.u32 %v5810, 16
        %v5987 = vrot.slane %v5985, 4
        %v5988 = vshll.u32 %v5810, 16
        %v5990 = vrot.slane %v5988, 5
        %v5991 = vor.u32 %v5987, %v5990
        %v5992 = vrot.slane %v5991, 4
        %v5994 = vshll.u32 %v5811, 16
        %v5996 = vrot.slane %v5994, 5
        %v5997 = vsel %vm2310, %v5992, %v5996
        %v5998 = vshrl.u32 %v5811, 16
        %v6000 = vrot.slane %v5998, 4
        %v6001 = vor.u32 %v6000, %v5996
        %v6002 = vrot.slane %v6001, 4
        %v6004 = vshll.u32 %v5812, 16
        %v6006 = vrot.slane %v6004, 5
        %v6007 = vsel %vm2310, %v6002, %v6006
        %v6009 = vshrl.u32 %v5813, 16
        %v6011 = vrot.slane %v6009, 4
        %v6012 = vshll.u32 %v5813, 16
        %v6014 = vrot.slane %v6012, 5
        %v6015 = vor.u32 %v6011, %v6014
        %v6016 = vrot.slane %v6015, 4
        %v6018 = vshll.u32 %v5814, 16
        %v6020 = vrot.slane %v6018, 5
        %v6021 = vsel %vm2310, %v6016, %v6020
        %v6022 = vshrl.u32 %v5814, 16
        %v6024 = vrot.slane %v6022, 4
        %v6025 = vor.u32 %v6024, %v6020
        %v6026 = vrot.slane %v6025, 4
        %v6028 = vshll.u32 %v5815, 16
        %v6030 = vrot.slane %v6028, 5
        %v6031 = vsel %vm2310, %v6026, %v6030
        %v6033 = vshrl.u32 %v5816, 16
        %v6035 = vrot.slane %v6033, 4
        %v6036 = vshll.u32 %v5816, 16
        %v6038 = vrot.slane %v6036, 5
        %v6039 = vor.u32 %v6035, %v6038
        %v6040 = vrot.slane %v6039, 4
        %v6042 = vshll.u32 %v5817, 16
        %v6044 = vrot.slane %v6042, 5
        %v6045 = vsel %vm2310, %v6040, %v6044
        %v6046 = vshrl.u32 %v5817, 16
        %v6048 = vrot.slane %v6046, 4
        %v6049 = vor.u32 %v6048, %v6044
        %v6050 = vrot.slane %v6049, 4
        %v6052 = vshll.u32 %v5818, 16
        %v6054 = vrot.slane %v6052, 5
        %v6055 = vsel %vm2310, %v6050, %v6054
        %v6057 = vshrl.u32 %v5819, 16
        %v6059 = vrot.slane %v6057, 4
        %v6060 = vshll.u32 %v5819, 16
        %v6062 = vrot.slane %v6060, 5
        %v6063 = vor.u32 %v6059, %v6062
        %v6064 = vrot.slane %v6063, 4
        %v6066 = vshll.u32 %v5820, 16
        %v6068 = vrot.slane %v6066, 5
        %v6069 = vsel %vm2310, %v6064, %v6068
        %v6070 = vshrl.u32 %v5820, 16
        %v6072 = vrot.slane %v6070, 4
        %v6073 = vor.u32 %v6072, %v6068
        %v6074 = vrot.slane %v6073, 4
        %v6076 = vshll.u32 %v5821, 16
        %v6078 = vrot.slane %v6076, 5
        %v6079 = vsel %vm2310, %v6074, %v6078
        %v6081 = vshrl.u32 %v5822, 16
        %v6083 = vrot.slane %v6081, 4
        %v6084 = vshll.u32 %v5822, 16
        %v6086 = vrot.slane %v6084, 5
        %v6087 = vor.u32 %v6083, %v6086
        %v6088 = vrot.slane %v6087, 4
        %v6090 = vshll.u32 %v5823, 16
        %v6092 = vrot.slane %v6090, 5
        %v6093 = vsel %vm2310, %v6088, %v6092
        %v6094 = vshrl.u32 %v5823, 16
        %v6096 = vrot.slane %v6094, 4
        %v6097 = vor.u32 %v6096, %v6092
        %v6098 = vrot.slane %v6097, 4
        %v6100 = vshll.u32 %v5824, 16
        %v6102 = vrot.slane %v6100, 5
        %v6103 = vsel %vm2310, %v6098, %v6102
        %v6105 = vshrl.u32 %v5825, 16
        %v6107 = vrot.slane %v6105, 4
        %v6108 = vshll.u32 %v5825, 16
        %v6110 = vrot.slane %v6108, 5
        %v6111 = vor.u32 %v6107, %v6110
        %v6112 = vrot.slane %v6111, 4
        %v6114 = vshll.u32 %v5826, 16
        %v6116 = vrot.slane %v6114, 5
        %v6117 = vsel %vm2310, %v6112, %v6116
        %v6118 = vshrl.u32 %v5826, 16
        %v6120 = vrot.slane %v6118, 4
        %v6121 = vor.u32 %v6120, %v6116
        %v6122 = vrot.slane %v6121, 4
        %v6124 = vshll.u32 %v5827, 16
        %v6126 = vrot.slane %v6124, 5
        %v6127 = vsel %vm2310, %v6122, %v6126
        %v6129 = vshrl.u32 %v5828, 16
        %v6131 = vrot.slane %v6129, 4
        %v6132 = vshll.u32 %v5828, 16
        %v6134 = vrot.slane %v6132, 5
        %v6135 = vor.u32 %v6131, %v6134
        %v6136 = vrot.slane %v6135, 4
        %v6138 = vshll.u32 %v5829, 16
        %v6140 = vrot.slane %v6138, 5
        %v6141 = vsel %vm2310, %v6136, %v6140
        %v6142 = vshrl.u32 %v5829, 16
        %v6144 = vrot.slane %v6142, 4
        %v6145 = vor.u32 %v6144, %v6140
        %v6146 = vrot.slane %v6145, 4
        %v6148 = vshll.u32 %v5830, 16
        %v6150 = vrot.slane %v6148, 5
        %v6151 = vsel %vm2310, %v6146, %v6150
        %v6153 = vshrl.u32 %v5831, 16
        %v6155 = vrot.slane %v6153, 4
        %v6156 = vshll.u32 %v5831, 16
        %v6158 = vrot.slane %v6156, 5
        %v6159 = vor.u32 %v6155, %v6158
        %v6160 = vrot.slane %v6159, 4
        %v6162 = vshll.u32 %v5832, 16
        %v6164 = vrot.slane %v6162, 5
        %v6165 = vsel %vm2310, %v6160, %v6164
        %v6166 = vshrl.u32 %v5832, 16
        %v6168 = vrot.slane %v6166, 4
        %v6169 = vor.u32 %v6168, %v6164
        %v6170 = vrot.slane %v6169, 4
        %v6172 = vshll.u32 %v5833, 16
        %v6174 = vrot.slane %v6172, 5
        %v6175 = vsel %vm2310, %v6170, %v6174
        %v6177 = vshrl.u32 %v5834, 16
        %v6179 = vrot.slane %v6177, 4
        %v6180 = vshll.u32 %v5834, 16
        %v6182 = vrot.slane %v6180, 5
        %v6183 = vor.u32 %v6179, %v6182
        %v6184 = vrot.slane %v6183, 4
        %v6186 = vshll.u32 %v5835, 16
        %v6188 = vrot.slane %v6186, 5
        %v6189 = vsel %vm2310, %v6184, %v6188
        %v6190 = vshrl.u32 %v5835, 16
        %v6192 = vrot.slane %v6190, 4
        %v6193 = vor.u32 %v6192, %v6188
        %v6194 = vrot.slane %v6193, 4
        %v6196 = vshll.u32 %v5836, 16
        %v6198 = vrot.slane %v6196, 5
        %v6199 = vsel %vm2310, %v6194, %v6198
        %v6201 = vshrl.u32 %v5837, 16
        %v6203 = vrot.slane %v6201, 4
        %v6204 = vshll.u32 %v5837, 16
        %v6206 = vrot.slane %v6204, 5
        %v6207 = vor.u32 %v6203, %v6206
        %v6208 = vrot.slane %v6207, 4
        %v6210 = vshll.u32 %v5838, 16
        %v6212 = vrot.slane %v6210, 5
        %v6213 = vsel %vm2310, %v6208, %v6212
        %v6214 = vshrl.u32 %v5838, 16
        %v6216 = vrot.slane %v6214, 4
        %v6217 = vor.u32 %v6216, %v6212
        %v6218 = vrot.slane %v6217, 4
        %v6220 = vshll.u32 %v5839, 16
        %v6222 = vrot.slane %v6220, 5
        %v6223 = vsel %vm2310, %v6218, %v6222
        %s6224 = scalar_lea.vmem %s4, 64
        %v6225 = vld [vmem:[%s6224] sm:$0xf]
        %v6226 = vld [vmem:[%s6224 + $0x4] sm:$0x3]
        %v6227 = vunpack.c.l.b16 %v5853
        %v6228 = vunpack.c.l.b16 %v5863
        %v6229 = vunpack.c.l.b16 %v5877
        %v6230 = vunpack.c.l.b16 %v5887
        %v6231 = vunpack.c.l.b16 %v5901
        %v6232 = vunpack.c.l.b16 %v5911
        %v6233 = vunpack.c.l.b16 %v5925
        %v6234 = vunpack.c.l.b16 %v5935
        %v6235 = vunpack.c.l.b16 %v5949
        %v6236 = vunpack.c.l.b16 %v5959
        %v6237 = vunpack.c.l.b16 %v5973
        %v6238 = vunpack.c.l.b16 %v5983
        %v6239 = vunpack.c.l.b16 %v5997
        %v6240 = vunpack.c.l.b16 %v6007
        %v6241 = vunpack.c.l.b16 %v6021
        %v6242 = vunpack.c.l.b16 %v6031
        %v6243 = vunpack.c.l.b16 %v6045
        %v6244 = vunpack.c.l.b16 %v6055
        %v6245 = vunpack.c.l.b16 %v6069
        %v6246 = vunpack.c.l.b16 %v6079
        %v6247 = vunpack.c.l.b16 %v6093
        %v6248 = vunpack.c.l.b16 %v6103
        %v6249 = vunpack.c.l.b16 %v6117
        %v6250 = vunpack.c.l.b16 %v6127
        %v6251 = vunpack.c.l.b16 %v6141
        %v6252 = vunpack.c.l.b16 %v6151
        %v6253 = vunpack.c.l.b16 %v6165
        %v6254 = vunpack.c.l.b16 %v6175
        %v6255 = vunpack.c.l.b16 %v6189
        %v6256 = vunpack.c.l.b16 %v6199
        %v6257 = vunpack.c.l.b16 %v6213
        %v6258 = vunpack.c.l.b16 %v6223
        %v6259 = vpack.c.b16 %v6228, %v6227
        %v6260 = vpack.c.b16 %v6230, %v6229
        %v6261 = vpack.c.b16 %v6232, %v6231
        %v6262 = vpack.c.b16 %v6234, %v6233
        %v6263 = vpack.c.b16 %v6236, %v6235
        %v6264 = vpack.c.b16 %v6238, %v6237
        %v6265 = vpack.c.b16 %v6240, %v6239
        %v6266 = vpack.c.b16 %v6242, %v6241
        %v6267 = vpack.c.b16 %v6244, %v6243
        %v6268 = vpack.c.b16 %v6246, %v6245
        %v6269 = vpack.c.b16 %v6248, %v6247
        %v6270 = vpack.c.b16 %v6250, %v6249
        %v6271 = vpack.c.b16 %v6252, %v6251
        %v6272 = vpack.c.b16 %v6254, %v6253
        %v6273 = vpack.c.b16 %v6256, %v6255
        %v6274 = vpack.c.b16 %v6258, %v6257
        %v6277 = vunpack.c.l.b16 %v6225
        %v6278 = vunpack.c.l.b16 %v6226
        %v6279 = vpack.c.b16 %v6278, %v6277
        %v6281 = vsel %vm1781, %v6259, 0
        %v6284 = vsel %vm1781, %v6260, 0
        %v6287 = vsel %vm1781, %v6261, 0
        %v6290 = vsel %vm1781, %v6262, 0
        %v6293 = vsel %vm1781, %v6263, 0
        %v6296 = vsel %vm1781, %v6264, 0
        %v6299 = vsel %vm1781, %v6265, 0
        %v6302 = vsel %vm1781, %v6266, 0
        %v6305 = vsel %vm1781, %v6267, 0
        %v6308 = vsel %vm1781, %v6268, 0
        %v6311 = vsel %vm1781, %v6269, 0
        %v6314 = vsel %vm1781, %v6270, 0
        %v6317 = vsel %vm1781, %v6271, 0
        %v6320 = vsel %vm1781, %v6272, 0
        %v6323 = vsel %vm1781, %v6273, 0
        %v6326 = vsel %vm1781, %v6274, 0
        %v6329 = vsel %vm1830, %v6279, 0
        %6331 = vmatprep.subr.bf16.mxu0 0
        %6332 = vmatpush1.bf16.msra.mxu0 %v6329
        %6333 = vmatprep.subr.bf16.mxu0 0
        %6334 = vmatpush1.bf16.msra.mxu0 0
        %6335 = vmatprep.subr.bf16.mxu0 0
        %6336 = vmatpush1.bf16.msra.mxu0 0
        %6337 = vmatprep.subr.bf16.mxu0 0
        %6338 = vmatpush1.bf16.msra.mxu0 0
        %6339 = vmatprep.subr.bf16.mxu0 0
        %6340 = vmatpush1.bf16.msra.mxu0 0
        %6341 = vmatprep.subr.bf16.mxu0 0
        %6342 = vmatpush1.bf16.msra.mxu0 0
        %6343 = vmatprep.subr.bf16.mxu0 0
        %6344 = vmatpush1.bf16.msra.mxu0 0
        %6345 = vmatprep.subr.bf16.mxu0 0
        %6346 = vmatpush1.bf16.msra.mxu0 0
        %6347 = vmatprep.subr.bf16.mxu0 0
        %6348 = vmatpush1.bf16.msra.mxu0 0
        %6349 = vmatprep.subr.bf16.mxu0 0
        %6350 = vmatpush1.bf16.msra.mxu0 0
        %6351 = vmatprep.subr.bf16.mxu0 0
        %6352 = vmatpush1.bf16.msra.mxu0 0
        %6353 = vmatprep.subr.bf16.mxu0 0
        %6354 = vmatpush1.bf16.msra.mxu0 0
        %6355 = vmatprep.subr.bf16.mxu0 0
        %6356 = vmatpush1.bf16.msra.mxu0 0
        %6357 = vmatprep.subr.bf16.mxu0 0
        %6358 = vmatpush1.bf16.msra.mxu0 0
        %6359 = vmatprep.subr.bf16.mxu0 0
        %6360 = vmatpush1.bf16.msra.mxu0 0
        %6361 = vmatprep.subr.bf16.mxu0 0
        %6362 = vmatpush1.bf16.msra.mxu0 0
        %6363 = vmatprep.mubr.bf16.mxu0 0
        %6364 = vmatmul.mubr.bf16.gmra.mrb[0].mxu0 %v6281
        %v6365 = vpop.f32.mrb[0].mxu0
        %v6366 = vadd.f32 0.0, %v6365
        %v6367 = vpop.f32.mrb[0].mxu0
        %v6368 = vpop.f32.mrb[0].mxu0
        %v6369 = vadd.f32 0.0, %v6368
        %v6370 = vpop.f32.mrb[0].mxu0
        %6371 = vmatprep.mubr.bf16.mxu0 0
        %6372 = vmatmul.mubr.bf16.gmra.mrb[0].mxu0 %v6284
        %v6373 = vpop.f32.mrb[0].mxu0
        %v6374 = vadd.f32 0.0, %v6373
        %v6375 = vpop.f32.mrb[0].mxu0
        %v6376 = vpop.f32.mrb[0].mxu0
        %v6377 = vadd.f32 0.0, %v6376
        %v6378 = vpop.f32.mrb[0].mxu0
        %6379 = vmatprep.mubr.bf16.mxu0 0
        %6380 = vmatmul.mubr.bf16.gmra.mrb[0].mxu0 %v6287
        %v6381 = vpop.f32.mrb[0].mxu0
        %v6382 = vadd.f32 0.0, %v6381
        %v6383 = vpop.f32.mrb[0].mxu0
        %v6384 = vpop.f32.mrb[0].mxu0
        %v6385 = vadd.f32 0.0, %v6384
        %v6386 = vpop.f32.mrb[0].mxu0
        %6387 = vmatprep.mubr.bf16.mxu0 0
        %6388 = vmatmul.mubr.bf16.gmra.mrb[0].mxu0 %v6290
        %v6389 = vpop.f32.mrb[0].mxu0
        %v6390 = vadd.f32 0.0, %v6389
        %v6391 = vpop.f32.mrb[0].mxu0
        %v6392 = vpop.f32.mrb[0].mxu0
        %v6393 = vadd.f32 0.0, %v6392
        %v6394 = vpop.f32.mrb[0].mxu0
        %6395 = vmatprep.mubr.bf16.mxu0 0
        %6396 = vmatmul.mubr.bf16.gmra.mrb[0].mxu0 %v6293
        %v6397 = vpop.f32.mrb[0].mxu0
        %v6398 = vadd.f32 0.0, %v6397
        %v6399 = vpop.f32.mrb[0].mxu0
        %v6400 = vpop.f32.mrb[0].mxu0
        %v6401 = vadd.f32 0.0, %v6400
        %v6402 = vpop.f32.mrb[0].mxu0
        %6403 = vmatprep.mubr.bf16.mxu0 0
        %6404 = vmatmul.mubr.bf16.gmra.mrb[0].mxu0 %v6296
        %v6405 = vpop.f32.mrb[0].mxu0
        %v6406 = vadd.f32 0.0, %v6405
        %v6407 = vpop.f32.mrb[0].mxu0
        %v6408 = vpop.f32.mrb[0].mxu0
        %v6409 = vadd.f32 0.0, %v6408
        %v6410 = vpop.f32.mrb[0].mxu0
        %6411 = vmatprep.mubr.bf16.mxu0 0
        %6412 = vmatmul.mubr.bf16.gmra.mrb[0].mxu0 %v6299
        %v6413 = vpop.f32.mrb[0].mxu0
        %v6414 = vadd.f32 0.0, %v6413
        %v6415 = vpop.f32.mrb[0].mxu0
        %v6416 = vpop.f32.mrb[0].mxu0
        %v6417 = vadd.f32 0.0, %v6416
        %v6418 = vpop.f32.mrb[0].mxu0
        %6419 = vmatprep.mubr.bf16.mxu0 0
        %6420 = vmatmul.mubr.bf16.gmra.mrb[0].mxu0 %v6302
        %v6421 = vpop.f32.mrb[0].mxu0
        %v6422 = vadd.f32 0.0, %v6421
        %v6423 = vpop.f32.mrb[0].mxu0
        %v6424 = vpop.f32.mrb[0].mxu0
        %v6425 = vadd.f32 0.0, %v6424
        %v6426 = vpop.f32.mrb[0].mxu0
        %6427 = vmatprep.mubr.bf16.mxu0 0
        %6428 = vmatmul.mubr.bf16.gmra.mrb[0].mxu0 %v6305
        %v6429 = vpop.f32.mrb[0].mxu0
        %v6430 = vadd.f32 0.0, %v6429
        %v6431 = vpop.f32.mrb[0].mxu0
        %v6432 = vpop.f32.mrb[0].mxu0
        %v6433 = vadd.f32 0.0, %v6432
        %v6434 = vpop.f32.mrb[0].mxu0
        %6435 = vmatprep.mubr.bf16.mxu0 0
        %6436 = vmatmul.mubr.bf16.gmra.mrb[0].mxu0 %v6308
        %v6437 = vpop.f32.mrb[0].mxu0
        %v6438 = vadd.f32 0.0, %v6437
        %v6439 = vpop.f32.mrb[0].mxu0
        %v6440 = vpop.f32.mrb[0].mxu0
        %v6441 = vadd.f32 0.0, %v6440
        %v6442 = vpop.f32.mrb[0].mxu0
        %6443 = vmatprep.mubr.bf16.mxu0 0
        %6444 = vmatmul.mubr.bf16.gmra.mrb[0].mxu0 %v6311
        %v6445 = vpop.f32.mrb[0].mxu0
        %v6446 = vadd.f32 0.0, %v6445
        %v6447 = vpop.f32.mrb[0].mxu0
        %v6448 = vpop.f32.mrb[0].mxu0
        %v6449 = vadd.f32 0.0, %v6448
        %v6450 = vpop.f32.mrb[0].mxu0
        %6451 = vmatprep.mubr.bf16.mxu0 0
        %6452 = vmatmul.mubr.bf16.gmra.mrb[0].mxu0 %v6314
        %v6453 = vpop.f32.mrb[0].mxu0
        %v6454 = vadd.f32 0.0, %v6453
        %v6455 = vpop.f32.mrb[0].mxu0
        %v6456 = vpop.f32.mrb[0].mxu0
        %v6457 = vadd.f32 0.0, %v6456
        %v6458 = vpop.f32.mrb[0].mxu0
        %6459 = vmatprep.mubr.bf16.mxu0 0
        %6460 = vmatmul.mubr.bf16.gmra.mrb[0].mxu0 %v6317
        %v6461 = vpop.f32.mrb[0].mxu0
        %v6462 = vadd.f32 0.0, %v6461
        %v6463 = vpop.f32.mrb[0].mxu0
        %v6464 = vpop.f32.mrb[0].mxu0
        %v6465 = vadd.f32 0.0, %v6464
        %v6466 = vpop.f32.mrb[0].mxu0
        %6467 = vmatprep.mubr.bf16.mxu0 0
        %6468 = vmatmul.mubr.bf16.gmra.mrb[0].mxu0 %v6320
        %v6469 = vpop.f32.mrb[0].mxu0
        %v6470 = vadd.f32 0.0, %v6469
        %v6471 = vpop.f32.mrb[0].mxu0
        %v6472 = vpop.f32.mrb[0].mxu0
        %v6473 = vadd.f32 0.0, %v6472
        %v6474 = vpop.f32.mrb[0].mxu0
        %6475 = vmatprep.mubr.bf16.mxu0 0
        %6476 = vmatmul.mubr.bf16.gmra.mrb[0].mxu0 %v6323
        %v6477 = vpop.f32.mrb[0].mxu0
        %v6478 = vadd.f32 0.0, %v6477
        %v6479 = vpop.f32.mrb[0].mxu0
        %v6480 = vpop.f32.mrb[0].mxu0
        %v6481 = vadd.f32 0.0, %v6480
        %v6482 = vpop.f32.mrb[0].mxu0
        %6483 = vmatprep.mubr.bf16.mxu0 0
        %6484 = vmatmul.mubr.bf16.gmra.mrb[0].mxu0 %v6326
        %v6485 = vpop.f32.mrb[0].mxu0
        %v6486 = vadd.f32 0.0, %v6485
        %v6487 = vpop.f32.mrb[0].mxu0
        %v6488 = vpop.f32.mrb[0].mxu0
        %v6489 = vadd.f32 0.0, %v6488
        %v6490 = vpop.f32.mrb[0].mxu0
        %6491 = vdwg.mxu0
        %v6492 = vadd.f32 %v5760, %v6366
        %v6493 = vadd.f32 %v5761, %v6369
        %v6494 = vadd.f32 %v5762, %v6374
        %v6495 = vadd.f32 %v5763, %v6377
        %v6496 = vadd.f32 %v5764, %v6382
        %v6497 = vadd.f32 %v5765, %v6385
        %v6498 = vadd.f32 %v5766, %v6390
        %v6499 = vadd.f32 %v5767, %v6393
        %v6500 = vadd.f32 %v5768, %v6398
        %v6501 = vadd.f32 %v5769, %v6401
        %v6502 = vadd.f32 %v5770, %v6406
        %v6503 = vadd.f32 %v5771, %v6409
        %v6504 = vadd.f32 %v5772, %v6414
        %v6505 = vadd.f32 %v5773, %v6417
        %v6506 = vadd.f32 %v5774, %v6422
        %v6507 = vadd.f32 %v5775, %v6425
        %v6508 = vadd.f32 %v5776, %v6430
        %v6509 = vadd.f32 %v5777, %v6433
        %v6510 = vadd.f32 %v5778, %v6438
        %v6511 = vadd.f32 %v5779, %v6441
        %v6512 = vadd.f32 %v5780, %v6446
        %v6513 = vadd.f32 %v5781, %v6449
        %v6514 = vadd.f32 %v5782, %v6454
        %v6515 = vadd.f32 %v5783, %v6457
        %v6516 = vadd.f32 %v5784, %v6462
        %v6517 = vadd.f32 %v5785, %v6465
        %v6518 = vadd.f32 %v5786, %v6470
        %v6519 = vadd.f32 %v5787, %v6473
        %v6520 = vadd.f32 %v5788, %v6478
        %v6521 = vadd.f32 %v5789, %v6481
        %v6522 = vadd.f32 %v5790, %v6486
        %v6523 = vadd.f32 %v5791, %v6489
        %v6524 = vld [vmem:[%s5] sm:$0x1]
        %v6526 = vlaneseq
        %v6527 = vshrl.u32 %v6526, 7
        %v6528 = vsub.s32 0, %v6527
        %v6529 = vrot.slane %v6524, %v6528
        %v6531 = vmul.f32 %v6492, %v6529
        %v6532 = vmul.f32 %v6493, %v6529
        %v6533 = vmul.f32 %v6494, %v6529
        %v6534 = vmul.f32 %v6495, %v6529
        %v6535 = vmul.f32 %v6496, %v6529
        %v6536 = vmul.f32 %v6497, %v6529
        %v6537 = vmul.f32 %v6498, %v6529
        %v6538 = vmul.f32 %v6499, %v6529
        %v6539 = vmul.f32 %v6500, %v6529
        %v6540 = vmul.f32 %v6501, %v6529
        %v6541 = vmul.f32 %v6502, %v6529
        %v6542 = vmul.f32 %v6503, %v6529
        %v6543 = vmul.f32 %v6504, %v6529
        %v6544 = vmul.f32 %v6505, %v6529
        %v6545 = vmul.f32 %v6506, %v6529
        %v6546 = vmul.f32 %v6507, %v6529
        %v6547 = vmul.f32 %v6508, %v6529
        %v6548 = vmul.f32 %v6509, %v6529
        %v6549 = vmul.f32 %v6510, %v6529
        %v6550 = vmul.f32 %v6511, %v6529
        %v6551 = vmul.f32 %v6512, %v6529
        %v6552 = vmul.f32 %v6513, %v6529
        %v6553 = vmul.f32 %v6514, %v6529
        %v6554 = vmul.f32 %v6515, %v6529
        %v6555 = vmul.f32 %v6516, %v6529
        %v6556 = vmul.f32 %v6517, %v6529
        %v6557 = vmul.f32 %v6518, %v6529
        %v6558 = vmul.f32 %v6519, %v6529
        %v6559 = vmul.f32 %v6520, %v6529
        %v6560 = vmul.f32 %v6521, %v6529
        %v6561 = vmul.f32 %v6522, %v6529
        %v6562 = vmul.f32 %v6523, %v6529
        %v6563 = vld [vmem:[%s6] sm:$0x1]
        %v6565 = vlaneseq
        %v6566 = vshrl.u32 %v6565, 7
        %v6567 = vsub.s32 0, %v6566
        %v6568 = vrot.slane %v6563, %v6567
        %v6570 = vadd.f32 %v6531, %v6568
        %v6571 = vadd.f32 %v6532, %v6568
        %v6572 = vadd.f32 %v6533, %v6568
        %v6573 = vadd.f32 %v6534, %v6568
        %v6574 = vadd.f32 %v6535, %v6568
        %v6575 = vadd.f32 %v6536, %v6568
        %v6576 = vadd.f32 %v6537, %v6568
        %v6577 = vadd.f32 %v6538, %v6568
        %v6578 = vadd.f32 %v6539, %v6568
        %v6579 = vadd.f32 %v6540, %v6568
        %v6580 = vadd.f32 %v6541, %v6568
        %v6581 = vadd.f32 %v6542, %v6568
        %v6582 = vadd.f32 %v6543, %v6568
        %v6583 = vadd.f32 %v6544, %v6568
        %v6584 = vadd.f32 %v6545, %v6568
        %v6585 = vadd.f32 %v6546, %v6568
        %v6586 = vadd.f32 %v6547, %v6568
        %v6587 = vadd.f32 %v6548, %v6568
        %v6588 = vadd.f32 %v6549, %v6568
        %v6589 = vadd.f32 %v6550, %v6568
        %v6590 = vadd.f32 %v6551, %v6568
        %v6591 = vadd.f32 %v6552, %v6568
        %v6592 = vadd.f32 %v6553, %v6568
        %v6593 = vadd.f32 %v6554, %v6568
        %v6594 = vadd.f32 %v6555, %v6568
        %v6595 = vadd.f32 %v6556, %v6568
        %v6596 = vadd.f32 %v6557, %v6568
        %v6597 = vadd.f32 %v6558, %v6568
        %v6598 = vadd.f32 %v6559, %v6568
        %v6599 = vadd.f32 %v6560, %v6568
        %v6600 = vadd.f32 %v6561, %v6568
        %v6601 = vadd.f32 %v6562, %v6568
        %v6602 = vmax.f32 %v6570, 0.0
        %v6603 = vmax.f32 %v6571, 0.0
        %v6604 = vmax.f32 %v6572, 0.0
        %v6605 = vmax.f32 %v6573, 0.0
        %v6606 = vmax.f32 %v6574, 0.0
        %v6607 = vmax.f32 %v6575, 0.0
        %v6608 = vmax.f32 %v6576, 0.0
        %v6609 = vmax.f32 %v6577, 0.0
        %v6610 = vmax.f32 %v6578, 0.0
        %v6611 = vmax.f32 %v6579, 0.0
        %v6612 = vmax.f32 %v6580, 0.0
        %v6613 = vmax.f32 %v6581, 0.0
        %v6614 = vmax.f32 %v6582, 0.0
        %v6615 = vmax.f32 %v6583, 0.0
        %v6616 = vmax.f32 %v6584, 0.0
        %v6617 = vmax.f32 %v6585, 0.0
        %v6618 = vmax.f32 %v6586, 0.0
        %v6619 = vmax.f32 %v6587, 0.0
        %v6620 = vmax.f32 %v6588, 0.0
        %v6621 = vmax.f32 %v6589, 0.0
        %v6622 = vmax.f32 %v6590, 0.0
        %v6623 = vmax.f32 %v6591, 0.0
        %v6624 = vmax.f32 %v6592, 0.0
        %v6625 = vmax.f32 %v6593, 0.0
        %v6626 = vmax.f32 %v6594, 0.0
        %v6627 = vmax.f32 %v6595, 0.0
        %v6628 = vmax.f32 %v6596, 0.0
        %v6629 = vmax.f32 %v6597, 0.0
        %v6630 = vmax.f32 %v6598, 0.0
        %v6631 = vmax.f32 %v6599, 0.0
        %v6632 = vmax.f32 %v6600, 0.0
        %v6633 = vmax.f32 %v6601, 0.0
        %v6634 = vld [vmem:[#allocation3 + $0x4] sm:$0x8]
        %v6635 = vld [vmem:[#allocation3 + $0x8] sm:$0xf]
        %v6636 = vld [vmem:[#allocation3 + $0xc] sm:$0xf]
        %v6637 = vld [vmem:[#allocation3 + $0x18] sm:$0x8]
        %v6638 = vld [vmem:[#allocation3 + $0x1c] sm:$0xf]
        %v6639 = vld [vmem:[#allocation3 + $0x20] sm:$0xf]
        %v6640 = vld [vmem:[#allocation3 + $0x2c] sm:$0x8]
        %v6641 = vld [vmem:[#allocation3 + $0x30] sm:$0xf]
        %v6642 = vld [vmem:[#allocation3 + $0x34] sm:$0xf]
        %v6643 = vld [vmem:[#allocation3 + $0x40] sm:$0x8]
        %v6644 = vld [vmem:[#allocation3 + $0x44] sm:$0xf]
        %v6645 = vld [vmem:[#allocation3 + $0x48] sm:$0xf]
        %v6646 = vld [vmem:[#allocation3 + $0x54] sm:$0x8]
        %v6647 = vld [vmem:[#allocation3 + $0x58] sm:$0xf]
        %v6648 = vld [vmem:[#allocation3 + $0x5c] sm:$0xf]
        %v6649 = vld [vmem:[#allocation3 + $0x68] sm:$0x8]
        %v6650 = vld [vmem:[#allocation3 + $0x6c] sm:$0xf]
        %v6651 = vld [vmem:[#allocation3 + $0x70] sm:$0xf]
        %v6652 = vld [vmem:[#allocation3 + $0x7c] sm:$0x8]
        %v6653 = vld [vmem:[#allocation3 + $0x80] sm:$0xf]
        %v6654 = vld [vmem:[#allocation3 + $0x84] sm:$0xf]
        %v6655 = vld [vmem:[#allocation3 + $0x90] sm:$0x8]
        %v6656 = vld [vmem:[#allocation3 + $0x94] sm:$0xf]
        %v6657 = vld [vmem:[#allocation3 + $0x98] sm:$0xf]
        %v6658 = vld [vmem:[#allocation3 + $0xa4] sm:$0x8]
        %v6659 = vld [vmem:[#allocation3 + $0xa8] sm:$0xf]
        %v6660 = vld [vmem:[#allocation3 + $0xac] sm:$0xf]
        %v6661 = vld [vmem:[#allocation3 + $0xb8] sm:$0x8]
        %v6662 = vld [vmem:[#allocation3 + $0xbc] sm:$0xf]
        %v6663 = vld [vmem:[#allocation3 + $0xc0] sm:$0xf]
        %v6664 = vld [vmem:[#allocation3 + $0xcc] sm:$0x8]
        %v6665 = vld [vmem:[#allocation3 + $0xd0] sm:$0xf]
        %v6666 = vld [vmem:[#allocation3 + $0xd4] sm:$0xf]
        %v6667 = vld [vmem:[#allocation3 + $0xe0] sm:$0x8]
        %v6668 = vld [vmem:[#allocation3 + $0xe4] sm:$0xf]
        %v6669 = vld [vmem:[#allocation3 + $0xe8] sm:$0xf]
        %v6670 = vld [vmem:[#allocation3 + $0xf4] sm:$0x8]
        %v6671 = vld [vmem:[#allocation3 + $0xf8] sm:$0xf]
        %v6672 = vld [vmem:[#allocation3 + $0xfc] sm:$0xf]
        %v6673 = vld [vmem:[#allocation3 + $0x108] sm:$0x8]
        %v6674 = vld [vmem:[#allocation3 + $0x10c] sm:$0xf]
        %v6675 = vld [vmem:[#allocation3 + $0x110] sm:$0xf]
        %v6676 = vld [vmem:[#allocation3 + $0x11c] sm:$0x8]
        %v6677 = vld [vmem:[#allocation3 + $0x120] sm:$0xf]
        %v6678 = vld [vmem:[#allocation3 + $0x124] sm:$0xf]
        %v6679 = vld [vmem:[#allocation3 + $0x130] sm:$0x8]
        %v6680 = vld [vmem:[#allocation3 + $0x134] sm:$0xf]
        %v6681 = vld [vmem:[#allocation3 + $0x138] sm:$0xf]
        %v6682 = vld [vmem:[#allocation3 + $0x144] sm:$0x8]
        %v6683 = vld [vmem:[#allocation3 + $0x148] sm:$0xf]
        %v6684 = vld [vmem:[#allocation3 + $0x14c] sm:$0xf]
        %v6685 = vld [vmem:[#allocation3 + $0x158] sm:$0x8]
        %v6686 = vld [vmem:[#allocation3 + $0x15c] sm:$0xf]
        %v6687 = vld [vmem:[#allocation3 + $0x160] sm:$0xf]
        %v6689 = vshll.u32 %v6635, 16
        %v6691 = vrot.slane %v6689, 5
        %v6692 = vshrl.u32 %v6635, 16
        %v6694 = vrot.slane %v6692, 4
        %v6695 = vor.u32 %v6694, %v6691
        %v6696 = vrot.slane %v6695, 4
        %v6698 = vshll.u32 %v6636, 16
        %v6700 = vrot.slane %v6698, 5
        %v6701 = vsel %vm2310, %v6696, %v6700
        %v6702 = vshrl.u32 %v6636, 16
        %v6704 = vrot.slane %v6702, 4
        %v6705 = vor.u32 %v6704, %v6700
        %v6706 = vrot.slane %v6705, 4
        %v6708 = vshll.u32 %v6638, 16
        %v6710 = vrot.slane %v6708, 5
        %v6711 = vshrl.u32 %v6638, 16
        %v6713 = vrot.slane %v6711, 4
        %v6714 = vor.u32 %v6713, %v6710
        %v6715 = vrot.slane %v6714, 4
        %v6717 = vshll.u32 %v6639, 16
        %v6719 = vrot.slane %v6717, 5
        %v6720 = vsel %vm2310, %v6715, %v6719
        %v6721 = vshrl.u32 %v6639, 16
        %v6723 = vrot.slane %v6721, 4
        %v6724 = vor.u32 %v6723, %v6719
        %v6725 = vrot.slane %v6724, 4
        %v6727 = vshll.u32 %v6641, 16
        %v6729 = vrot.slane %v6727, 5
        %v6730 = vshrl.u32 %v6641, 16
        %v6732 = vrot.slane %v6730, 4
        %v6733 = vor.u32 %v6732, %v6729
        %v6734 = vrot.slane %v6733, 4
        %v6736 = vshll.u32 %v6642, 16
        %v6738 = vrot.slane %v6736, 5
        %v6739 = vsel %vm2310, %v6734, %v6738
        %v6740 = vshrl.u32 %v6642, 16
        %v6742 = vrot.slane %v6740, 4
        %v6743 = vor.u32 %v6742, %v6738
        %v6744 = vrot.slane %v6743, 4
        %v6746 = vshll.u32 %v6644, 16
        %v6748 = vrot.slane %v6746, 5
        %v6749 = vshrl.u32 %v6644, 16
        %v6751 = vrot.slane %v6749, 4
        %v6752 = vor.u32 %v6751, %v6748
        %v6753 = vrot.slane %v6752, 4
        %v6755 = vshll.u32 %v6645, 16
        %v6757 = vrot.slane %v6755, 5
        %v6758 = vsel %vm2310, %v6753, %v6757
        %v6759 = vshrl.u32 %v6645, 16
        %v6761 = vrot.slane %v6759, 4
        %v6762 = vor.u32 %v6761, %v6757
        %v6763 = vrot.slane %v6762, 4
        %v6765 = vshll.u32 %v6647, 16
        %v6767 = vrot.slane %v6765, 5
        %v6768 = vshrl.u32 %v6647, 16
        %v6770 = vrot.slane %v6768, 4
        %v6771 = vor.u32 %v6770, %v6767
        %v6772 = vrot.slane %v6771, 4
        %v6774 = vshll.u32 %v6648, 16
        %v6776 = vrot.slane %v6774, 5
        %v6777 = vsel %vm2310, %v6772, %v6776
        %v6778 = vshrl.u32 %v6648, 16
        %v6780 = vrot.slane %v6778, 4
        %v6781 = vor.u32 %v6780, %v6776
        %v6782 = vrot.slane %v6781, 4
        %v6784 = vshll.u32 %v6650, 16
        %v6786 = vrot.slane %v6784, 5
        %v6787 = vshrl.u32 %v6650, 16
        %v6789 = vrot.slane %v6787, 4
        %v6790 = vor.u32 %v6789, %v6786
        %v6791 = vrot.slane %v6790, 4
        %v6793 = vshll.u32 %v6651, 16
        %v6795 = vrot.slane %v6793, 5
        %v6796 = vsel %vm2310, %v6791, %v6795
        %v6797 = vshrl.u32 %v6651, 16
        %v6799 = vrot.slane %v6797, 4
        %v6800 = vor.u32 %v6799, %v6795
        %v6801 = vrot.slane %v6800, 4
        %v6803 = vshll.u32 %v6653, 16
        %v6805 = vrot.slane %v6803, 5
        %v6806 = vshrl.u32 %v6653, 16
        %v6808 = vrot.slane %v6806, 4
        %v6809 = vor.u32 %v6808, %v6805
        %v6810 = vrot.slane %v6809, 4
        %v6812 = vshll.u32 %v6654, 16
        %v6814 = vrot.slane %v6812, 5
        %v6815 = vsel %vm2310, %v6810, %v6814
        %v6816 = vshrl.u32 %v6654, 16
        %v6818 = vrot.slane %v6816, 4
        %v6819 = vor.u32 %v6818, %v6814
        %v6820 = vrot.slane %v6819, 4
        %v6822 = vshll.u32 %v6656, 16
        %v6824 = vrot.slane %v6822, 5
        %v6825 = vshrl.u32 %v6656, 16
        %v6827 = vrot.slane %v6825, 4
        %v6828 = vor.u32 %v6827, %v6824
        %v6829 = vrot.slane %v6828, 4
        %v6831 = vshll.u32 %v6657, 16
        %v6833 = vrot.slane %v6831, 5
        %v6834 = vsel %vm2310, %v6829, %v6833
        %v6835 = vshrl.u32 %v6657, 16
        %v6837 = vrot.slane %v6835, 4
        %v6838 = vor.u32 %v6837, %v6833
        %v6839 = vrot.slane %v6838, 4
        %v6841 = vshll.u32 %v6659, 16
        %v6843 = vrot.slane %v6841, 5
        %v6844 = vshrl.u32 %v6659, 16
        %v6846 = vrot.slane %v6844, 4
        %v6847 = vor.u32 %v6846, %v6843
        %v6848 = vrot.slane %v6847, 4
        %v6850 = vshll.u32 %v6660, 16
        %v6852 = vrot.slane %v6850, 5
        %v6853 = vsel %vm2310, %v6848, %v6852
        %v6854 = vshrl.u32 %v6660, 16
        %v6856 = vrot.slane %v6854, 4
        %v6857 = vor.u32 %v6856, %v6852
        %v6858 = vrot.slane %v6857, 4
        %v6860 = vshll.u32 %v6662, 16
        %v6862 = vrot.slane %v6860, 5
        %v6863 = vshrl.u32 %v6662, 16
        %v6865 = vrot.slane %v6863, 4
        %v6866 = vor.u32 %v6865, %v6862
        %v6867 = vrot.slane %v6866, 4
        %v6869 = vshll.u32 %v6663, 16
        %v6871 = vrot.slane %v6869, 5
        %v6872 = vsel %vm2310, %v6867, %v6871
        %v6873 = vshrl.u32 %v6663, 16
        %v6875 = vrot.slane %v6873, 4
        %v6876 = vor.u32 %v6875, %v6871
        %v6877 = vrot.slane %v6876, 4
        %v6879 = vshll.u32 %v6665, 16
        %v6881 = vrot.slane %v6879, 5
        %v6882 = vshrl.u32 %v6665, 16
        %v6884 = vrot.slane %v6882, 4
        %v6885 = vor.u32 %v6884, %v6881
        %v6886 = vrot.slane %v6885, 4
        %v6888 = vshll.u32 %v6666, 16
        %v6890 = vrot.slane %v6888, 5
        %v6891 = vsel %vm2310, %v6886, %v6890
        %v6892 = vshrl.u32 %v6666, 16
        %v6894 = vrot.slane %v6892, 4
        %v6895 = vor.u32 %v6894, %v6890
        %v6896 = vrot.slane %v6895, 4
        %v6898 = vshll.u32 %v6668, 16
        %v6900 = vrot.slane %v6898, 5
        %v6901 = vshrl.u32 %v6668, 16
        %v6903 = vrot.slane %v6901, 4
        %v6904 = vor.u32 %v6903, %v6900
        %v6905 = vrot.slane %v6904, 4
        %v6907 = vshll.u32 %v6669, 16
        %v6909 = vrot.slane %v6907, 5
        %v6910 = vsel %vm2310, %v6905, %v6909
        %v6911 = vshrl.u32 %v6669, 16
        %v6913 = vrot.slane %v6911, 4
        %v6914 = vor.u32 %v6913, %v6909
        %v6915 = vrot.slane %v6914, 4
        %v6917 = vshll.u32 %v6671, 16
        %v6919 = vrot.slane %v6917, 5
        %v6920 = vshrl.u32 %v6671, 16
        %v6922 = vrot.slane %v6920, 4
        %v6923 = vor.u32 %v6922, %v6919
        %v6924 = vrot.slane %v6923, 4
        %v6926 = vshll.u32 %v6672, 16
        %v6928 = vrot.slane %v6926, 5
        %v6929 = vsel %vm2310, %v6924, %v6928
        %v6930 = vshrl.u32 %v6672, 16
        %v6932 = vrot.slane %v6930, 4
        %v6933 = vor.u32 %v6932, %v6928
        %v6934 = vrot.slane %v6933, 4
        %v6936 = vshll.u32 %v6674, 16
        %v6938 = vrot.slane %v6936, 5
        %v6939 = vshrl.u32 %v6674, 16
        %v6941 = vrot.slane %v6939, 4
        %v6942 = vor.u32 %v6941, %v6938
        %v6943 = vrot.slane %v6942, 4
        %v6945 = vshll.u32 %v6675, 16
        %v6947 = vrot.slane %v6945, 5
        %v6948 = vsel %vm2310, %v6943, %v6947
        %v6949 = vshrl.u32 %v6675, 16
        %v6951 = vrot.slane %v6949, 4
        %v6952 = vor.u32 %v6951, %v6947
        %v6953 = vrot.slane %v6952, 4
        %v6955 = vshll.u32 %v6677, 16
        %v6957 = vrot.slane %v6955, 5
        %v6958 = vshrl.u32 %v6677, 16
        %v6960 = vrot.slane %v6958, 4
        %v6961 = vor.u32 %v6960, %v6957
        %v6962 = vrot.slane %v6961, 4
        %v6964 = vshll.u32 %v6678, 16
        %v6966 = vrot.slane %v6964, 5
        %v6967 = vsel %vm2310, %v6962, %v6966
        %v6968 = vshrl.u32 %v6678, 16
        %v6970 = vrot.slane %v6968, 4
        %v6971 = vor.u32 %v6970, %v6966
        %v6972 = vrot.slane %v6971, 4
        %v6974 = vshll.u32 %v6680, 16
        %v6976 = vrot.slane %v6974, 5
        %v6977 = vshrl.u32 %v6680, 16
        %v6979 = vrot.slane %v6977, 4
        %v6980 = vor.u32 %v6979, %v6976
        %v6981 = vrot.slane %v6980, 4
        %v6983 = vshll.u32 %v6681, 16
        %v6985 = vrot.slane %v6983, 5
        %v6986 = vsel %vm2310, %v6981, %v6985
        %v6987 = vshrl.u32 %v6681, 16
        %v6989 = vrot.slane %v6987, 4
        %v6990 = vor.u32 %v6989, %v6985
        %v6991 = vrot.slane %v6990, 4
        %v6993 = vshll.u32 %v6683, 16
        %v6995 = vrot.slane %v6993, 5
        %v6996 = vshrl.u32 %v6683, 16
        %v6998 = vrot.slane %v6996, 4
        %v6999 = vor.u32 %v6998, %v6995
        %v7000 = vrot.slane %v6999, 4
        %v7002 = vshll.u32 %v6684, 16
        %v7004 = vrot.slane %v7002, 5
        %v7005 = vsel %vm2310, %v7000, %v7004
        %v7006 = vshrl.u32 %v6684, 16
        %v7008 = vrot.slane %v7006, 4
        %v7009 = vor.u32 %v7008, %v7004
        %v7010 = vrot.slane %v7009, 4
        %v7012 = vshll.u32 %v6686, 16
        %v7014 = vrot.slane %v7012, 5
        %v7015 = vshrl.u32 %v6686, 16
        %v7017 = vrot.slane %v7015, 4
        %v7018 = vor.u32 %v7017, %v7014
        %v7019 = vrot.slane %v7018, 4
        %v7021 = vshll.u32 %v6687, 16
        %v7023 = vrot.slane %v7021, 5
        %v7024 = vsel %vm2310, %v7019, %v7023
        %v7025 = vshrl.u32 %v6687, 16
        %v7027 = vrot.slane %v7025, 4
        %v7028 = vor.u32 %v7027, %v7023
        %v7029 = vrot.slane %v7028, 4
        %v7084 = vmax.bf16 %v6634, %v6691
        %v7085 = vmax.bf16 %v6635, %v6701
        %v7086 = vmax.bf16 %v6636, %v6706
        %v7087 = vmax.bf16 %v6637, %v6710
        %v7088 = vmax.bf16 %v6638, %v6720
        %v7089 = vmax.bf16 %v6639, %v6725
        %v7090 = vmax.bf16 %v6640, %v6729
        %v7091 = vmax.bf16 %v6641, %v6739
        %v7092 = vmax.bf16 %v6642, %v6744
        %v7093 = vmax.bf16 %v6643, %v6748
        %v7094 = vmax.bf16 %v6644, %v6758
        %v7095 = vmax.bf16 %v6645, %v6763
        %v7096 = vmax.bf16 %v6646, %v6767
        %v7097 = vmax.bf16 %v6647, %v6777
        %v7098 = vmax.bf16 %v6648, %v6782
        %v7099 = vmax.bf16 %v6649, %v6786
        %v7100 = vmax.bf16 %v6650, %v6796
        %v7101 = vmax.bf16 %v6651, %v6801
        %v7102 = vmax.bf16 %v6652, %v6805
        %v7103 = vmax.bf16 %v6653, %v6815
        %v7104 = vmax.bf16 %v6654, %v6820
        %v7105 = vmax.bf16 %v6655, %v6824
        %v7106 = vmax.bf16 %v6656, %v6834
        %v7107 = vmax.bf16 %v6657, %v6839
        %v7108 = vmax.bf16 %v6658, %v6843
        %v7109 = vmax.bf16 %v6659, %v6853
        %v7110 = vmax.bf16 %v6660, %v6858
        %v7111 = vmax.bf16 %v6661, %v6862
        %v7112 = vmax.bf16 %v6662, %v6872
        %v7113 = vmax.bf16 %v6663, %v6877
        %v7114 = vmax.bf16 %v6664, %v6881
        %v7115 = vmax.bf16 %v6665, %v6891
        %v7116 = vmax.bf16 %v6666, %v6896
        %v7117 = vmax.bf16 %v6667, %v6900
        %v7118 = vmax.bf16 %v6668, %v6910
        %v7119 = vmax.bf16 %v6669, %v6915
        %v7120 = vmax.bf16 %v6670, %v6919
        %v7121 = vmax.bf16 %v6671, %v6929
        %v7122 = vmax.bf16 %v6672, %v6934
        %v7123 = vmax.bf16 %v6673, %v6938
        %v7124 = vmax.bf16 %v6674, %v6948
        %v7125 = vmax.bf16 %v6675, %v6953
        %v7126 = vmax.bf16 %v6676, %v6957
        %v7127 = vmax.bf16 %v6677, %v6967
        %v7128 = vmax.bf16 %v6678, %v6972
        %v7129 = vmax.bf16 %v6679, %v6976
        %v7130 = vmax.bf16 %v6680, %v6986
        %v7131 = vmax.bf16 %v6681, %v6991
        %v7132 = vmax.bf16 %v6682, %v6995
        %v7133 = vmax.bf16 %v6683, %v7005
        %v7134 = vmax.bf16 %v6684, %v7010
        %v7135 = vmax.bf16 %v6685, %v7014
        %v7136 = vmax.bf16 %v6686, %v7024
        %v7137 = vmax.bf16 %v6687, %v7029
        %v7138 = vld [vmem:[#allocation3 + $0x10] sm:$0x1]
        %v7139 = vld [vmem:[#allocation3 + $0x24] sm:$0x1]
        %v7140 = vld [vmem:[#allocation3 + $0x38] sm:$0x1]
        %v7141 = vld [vmem:[#allocation3 + $0x4c] sm:$0x1]
        %v7142 = vld [vmem:[#allocation3 + $0x60] sm:$0x1]
        %v7143 = vld [vmem:[#allocation3 + $0x74] sm:$0x1]
        %v7144 = vld [vmem:[#allocation3 + $0x88] sm:$0x1]
        %v7145 = vld [vmem:[#allocation3 + $0x9c] sm:$0x1]
        %v7146 = vld [vmem:[#allocation3 + $0xb0] sm:$0x1]
        %v7147 = vld [vmem:[#allocation3 + $0xc4] sm:$0x1]
        %v7148 = vld [vmem:[#allocation3 + $0xd8] sm:$0x1]
        %v7149 = vld [vmem:[#allocation3 + $0xec] sm:$0x1]
        %v7150 = vld [vmem:[#allocation3 + $0x100] sm:$0x1]
        %v7151 = vld [vmem:[#allocation3 + $0x114] sm:$0x1]
        %v7152 = vld [vmem:[#allocation3 + $0x128] sm:$0x1]
        %v7153 = vld [vmem:[#allocation3 + $0x13c] sm:$0x1]
        %v7154 = vld [vmem:[#allocation3 + $0x150] sm:$0x1]
        %v7155 = vld [vmem:[#allocation3 + $0x164] sm:$0x1]
        %vm7210 = vcmask 1042432
        %vm7211 = vcmask 1046532
        %vm7212 = vmor %vm7210, %vm7211
        %v7213 = vrot.slane %v6635, 5
        %v7214 = vrot.slane %v7213, 4
        %v7215 = vrot.slane %v6636, 5
        %v7216 = vsel %vm7212, %v7214, %v7215
        %v7217 = vrot.slane %v7215, 4
        %v7218 = vrot.slane %v7138, 5
        %v7219 = vsel %vm7212, %v7217, %v7218
        %v7220 = vrot.slane %v6638, 5
        %v7221 = vrot.slane %v7220, 4
        %v7222 = vrot.slane %v6639, 5
        %v7223 = vsel %vm7212, %v7221, %v7222
        %v7224 = vrot.slane %v7222, 4
        %v7225 = vrot.slane %v7139, 5
        %v7226 = vsel %vm7212, %v7224, %v7225
        %v7227 = vrot.slane %v6641, 5
        %v7228 = vrot.slane %v7227, 4
        %v7229 = vrot.slane %v6642, 5
        %v7230 = vsel %vm7212, %v7228, %v7229
        %v7231 = vrot.slane %v7229, 4
        %v7232 = vrot.slane %v7140, 5
        %v7233 = vsel %vm7212, %v7231, %v7232
        %v7234 = vrot.slane %v6644, 5
        %v7235 = vrot.slane %v7234, 4
        %v7236 = vrot.slane %v6645, 5
        %v7237 = vsel %vm7212, %v7235, %v7236
        %v7238 = vrot.slane %v7236, 4
        %v7239 = vrot.slane %v7141, 5
        %v7240 = vsel %vm7212, %v7238, %v7239
        %v7241 = vrot.slane %v6647, 5
        %v7242 = vrot.slane %v7241, 4
        %v7243 = vrot.slane %v6648, 5
        %v7244 = vsel %vm7212, %v7242, %v7243
        %v7245 = vrot.slane %v7243, 4
        %v7246 = vrot.slane %v7142, 5
        %v7247 = vsel %vm7212, %v7245, %v7246
        %v7248 = vrot.slane %v6650, 5
        %v7249 = vrot.slane %v7248, 4
        %v7250 = vrot.slane %v6651, 5
        %v7251 = vsel %vm7212, %v7249, %v7250
        %v7252 = vrot.slane %v7250, 4
        %v7253 = vrot.slane %v7143, 5
        %v7254 = vsel %vm7212, %v7252, %v7253
        %v7255 = vrot.slane %v6653, 5
        %v7256 = vrot.slane %v7255, 4
        %v7257 = vrot.slane %v6654, 5
        %v7258 = vsel %vm7212, %v7256, %v7257
        %v7259 = vrot.slane %v7257, 4
        %v7260 = vrot.slane %v7144, 5
        %v7261 = vsel %vm7212, %v7259, %v7260
        %v7262 = vrot.slane %v6656, 5
        %v7263 = vrot.slane %v7262, 4
        %v7264 = vrot.slane %v6657, 5
        %v7265 = vsel %vm7212, %v7263, %v7264
        %v7266 = vrot.slane %v7264, 4
        %v7267 = vrot.slane %v7145, 5
        %v7268 = vsel %vm7212, %v7266, %v7267
        %v7269 = vrot.slane %v6659, 5
        %v7270 = vrot.slane %v7269, 4
        %v7271 = vrot.slane %v6660, 5
        %v7272 = vsel %vm7212, %v7270, %v7271
        %v7273 = vrot.slane %v7271, 4
        %v7274 = vrot.slane %v7146, 5
        %v7275 = vsel %vm7212, %v7273, %v7274
        %v7276 = vrot.slane %v6662, 5
        %v7277 = vrot.slane %v7276, 4
        %v7278 = vrot.slane %v6663, 5
        %v7279 = vsel %vm7212, %v7277, %v7278
        %v7280 = vrot.slane %v7278, 4
        %v7281 = vrot.slane %v7147, 5
        %v7282 = vsel %vm7212, %v7280, %v7281
        %v7283 = vrot.slane %v6665, 5
        %v7284 = vrot.slane %v7283, 4
        %v7285 = vrot.slane %v6666, 5
        %v7286 = vsel %vm7212, %v7284, %v7285
        %v7287 = vrot.slane %v7285, 4
        %v7288 = vrot.slane %v7148, 5
        %v7289 = vsel %vm7212, %v7287, %v7288
        %v7290 = vrot.slane %v6668, 5
        %v7291 = vrot.slane %v7290, 4
        %v7292 = vrot.slane %v6669, 5
        %v7293 = vsel %vm7212, %v7291, %v7292
        %v7294 = vrot.slane %v7292, 4
        %v7295 = vrot.slane %v7149, 5
        %v7296 = vsel %vm7212, %v7294, %v7295
        %v7297 = vrot.slane %v6671, 5
        %v7298 = vrot.slane %v7297, 4
        %v7299 = vrot.slane %v6672, 5
        %v7300 = vsel %vm7212, %v7298, %v7299
        %v7301 = vrot.slane %v7299, 4
        %v7302 = vrot.slane %v7150, 5
        %v7303 = vsel %vm7212, %v7301, %v7302
        %v7304 = vrot.slane %v6674, 5
        %v7305 = vrot.slane %v7304, 4
        %v7306 = vrot.slane %v6675, 5
        %v7307 = vsel %vm7212, %v7305, %v7306
        %v7308 = vrot.slane %v7306, 4
        %v7309 = vrot.slane %v7151, 5
        %v7310 = vsel %vm7212, %v7308, %v7309
        %v7311 = vrot.slane %v6677, 5
        %v7312 = vrot.slane %v7311, 4
        %v7313 = vrot.slane %v6678, 5
        %v7314 = vsel %vm7212, %v7312, %v7313
        %v7315 = vrot.slane %v7313, 4
        %v7316 = vrot.slane %v7152, 5
        %v7317 = vsel %vm7212, %v7315, %v7316
        %v7318 = vrot.slane %v6680, 5
        %v7319 = vrot.slane %v7318, 4
        %v7320 = vrot.slane %v6681, 5
        %v7321 = vsel %vm7212, %v7319, %v7320
        %v7322 = vrot.slane %v7320, 4
        %v7323 = vrot.slane %v7153, 5
        %v7324 = vsel %vm7212, %v7322, %v7323
        %v7325 = vrot.slane %v6683, 5
        %v7326 = vrot.slane %v7325, 4
        %v7327 = vrot.slane %v6684, 5
        %v7328 = vsel %vm7212, %v7326, %v7327
        %v7329 = vrot.slane %v7327, 4
        %v7330 = vrot.slane %v7154, 5
        %v7331 = vsel %vm7212, %v7329, %v7330
        %v7332 = vrot.slane %v6686, 5
        %v7333 = vrot.slane %v7332, 4
        %v7334 = vrot.slane %v6687, 5
        %v7335 = vsel %vm7212, %v7333, %v7334
        %v7336 = vrot.slane %v7334, 4
        %v7337 = vrot.slane %v7155, 5
        %v7338 = vsel %vm7212, %v7336, %v7337
        %v7393 = vmax.bf16 %v7084, %v7213
        %v7394 = vmax.bf16 %v7085, %v7216
        %v7395 = vmax.bf16 %v7086, %v7219
        %v7396 = vmax.bf16 %v7087, %v7220
        %v7397 = vmax.bf16 %v7088, %v7223
        %v7398 = vmax.bf16 %v7089, %v7226
        %v7399 = vmax.bf16 %v7090, %v7227
        %v7400 = vmax.bf16 %v7091, %v7230
        %v7401 = vmax.bf16 %v7092, %v7233
        %v7402 = vmax.bf16 %v7093, %v7234
        %v7403 = vmax.bf16 %v7094, %v7237
        %v7404 = vmax.bf16 %v7095, %v7240
        %v7405 = vmax.bf16 %v7096, %v7241
        %v7406 = vmax.bf16 %v7097, %v7244
        %v7407 = vmax.bf16 %v7098, %v7247
        %v7408 = vmax.bf16 %v7099, %v7248
        %v7409 = vmax.bf16 %v7100, %v7251
        %v7410 = vmax.bf16 %v7101, %v7254
        %v7411 = vmax.bf16 %v7102, %v7255
        %v7412 = vmax.bf16 %v7103, %v7258
        %v7413 = vmax.bf16 %v7104, %v7261
        %v7414 = vmax.bf16 %v7105, %v7262
        %v7415 = vmax.bf16 %v7106, %v7265
        %v7416 = vmax.bf16 %v7107, %v7268
        %v7417 = vmax.bf16 %v7108, %v7269
        %v7418 = vmax.bf16 %v7109, %v7272
        %v7419 = vmax.bf16 %v7110, %v7275
        %v7420 = vmax.bf16 %v7111, %v7276
        %v7421 = vmax.bf16 %v7112, %v7279
        %v7422 = vmax.bf16 %v7113, %v7282
        %v7423 = vmax.bf16 %v7114, %v7283
        %v7424 = vmax.bf16 %v7115, %v7286
        %v7425 = vmax.bf16 %v7116, %v7289
        %v7426 = vmax.bf16 %v7117, %v7290
        %v7427 = vmax.bf16 %v7118, %v7293
        %v7428 = vmax.bf16 %v7119, %v7296
        %v7429 = vmax.bf16 %v7120, %v7297
        %v7430 = vmax.bf16 %v7121, %v7300
        %v7431 = vmax.bf16 %v7122, %v7303
        %v7432 = vmax.bf16 %v7123, %v7304
        %v7433 = vmax.bf16 %v7124, %v7307
        %v7434 = vmax.bf16 %v7125, %v7310
        %v7435 = vmax.bf16 %v7126, %v7311
        %v7436 = vmax.bf16 %v7127, %v7314
        %v7437 = vmax.bf16 %v7128, %v7317
        %v7438 = vmax.bf16 %v7129, %v7318
        %v7439 = vmax.bf16 %v7130, %v7321
        %v7440 = vmax.bf16 %v7131, %v7324
        %v7441 = vmax.bf16 %v7132, %v7325
        %v7442 = vmax.bf16 %v7133, %v7328
        %v7443 = vmax.bf16 %v7134, %v7331
        %v7444 = vmax.bf16 %v7135, %v7332
        %v7445 = vmax.bf16 %v7136, %v7335
        %v7446 = vmax.bf16 %v7137, %v7338
        %v7447 = vmax.bf16 %v7393, %v7396
        %v7448 = vmax.bf16 %v7394, %v7397
        %v7449 = vmax.bf16 %v7395, %v7398
        %v7450 = vmax.bf16 %v7396, %v7399
        %v7451 = vmax.bf16 %v7397, %v7400
        %v7452 = vmax.bf16 %v7398, %v7401
        %v7453 = vmax.bf16 %v7399, %v7402
        %v7454 = vmax.bf16 %v7400, %v7403
        %v7455 = vmax.bf16 %v7401, %v7404
        %v7456 = vmax.bf16 %v7402, %v7405
        %v7457 = vmax.bf16 %v7403, %v7406
        %v7458 = vmax.bf16 %v7404, %v7407
        %v7459 = vmax.bf16 %v7405, %v7408
        %v7460 = vmax.bf16 %v7406, %v7409
        %v7461 = vmax.bf16 %v7407, %v7410
        %v7462 = vmax.bf16 %v7408, %v7411
        %v7463 = vmax.bf16 %v7409, %v7412
        %v7464 = vmax.bf16 %v7410, %v7413
        %v7465 = vmax.bf16 %v7411, %v7414
        %v7466 = vmax.bf16 %v7412, %v7415
        %v7467 = vmax.bf16 %v7413, %v7416
        %v7468 = vmax.bf16 %v7414, %v7417
        %v7469 = vmax.bf16 %v7415, %v7418
        %v7470 = vmax.bf16 %v7416, %v7419
        %v7471 = vmax.bf16 %v7417, %v7420
        %v7472 = vmax.bf16 %v7418, %v7421
        %v7473 = vmax.bf16 %v7419, %v7422
        %v7474 = vmax.bf16 %v7420, %v7423
        %v7475 = vmax.bf16 %v7421, %v7424
        %v7476 = vmax.bf16 %v7422, %v7425
        %v7477 = vmax.bf16 %v7423, %v7426
        %v7478 = vmax.bf16 %v7424, %v7427
        %v7479 = vmax.bf16 %v7425, %v7428
        %v7480 = vmax.bf16 %v7426, %v7429
        %v7481 = vmax.bf16 %v7427, %v7430
        %v7482 = vmax.bf16 %v7428, %v7431
        %v7483 = vmax.bf16 %v7429, %v7432
        %v7484 = vmax.bf16 %v7430, %v7433
        %v7485 = vmax.bf16 %v7431, %v7434
        %v7486 = vmax.bf16 %v7432, %v7435
        %v7487 = vmax.bf16 %v7433, %v7436
        %v7488 = vmax.bf16 %v7434, %v7437
        %v7489 = vmax.bf16 %v7435, %v7438
        %v7490 = vmax.bf16 %v7436, %v7439
        %v7491 = vmax.bf16 %v7437, %v7440
        %v7492 = vmax.bf16 %v7438, %v7441
        %v7493 = vmax.bf16 %v7439, %v7442
        %v7494 = vmax.bf16 %v7440, %v7443
        %v7495 = vmax.bf16 %v7447, %v7399
        %v7496 = vmax.bf16 %v7448, %v7400
        %v7497 = vmax.bf16 %v7449, %v7401
        %v7498 = vmax.bf16 %v7450, %v7402
        %v7499 = vmax.bf16 %v7451, %v7403
        %v7500 = vmax.bf16 %v7452, %v7404
        %v7501 = vmax.bf16 %v7453, %v7405
        %v7502 = vmax.bf16 %v7454, %v7406
        %v7503 = vmax.bf16 %v7455, %v7407
        %v7504 = vmax.bf16 %v7456, %v7408
        %v7505 = vmax.bf16 %v7457, %v7409
        %v7506 = vmax.bf16 %v7458, %v7410
        %v7507 = vmax.bf16 %v7459, %v7411
        %v7508 = vmax.bf16 %v7460, %v7412
        %v7509 = vmax.bf16 %v7461, %v7413
        %v7510 = vmax.bf16 %v7462, %v7414
        %v7511 = vmax.bf16 %v7463, %v7415
        %v7512 = vmax.bf16 %v7464, %v7416
        %v7513 = vmax.bf16 %v7465, %v7417
        %v7514 = vmax.bf16 %v7466, %v7418
        %v7515 = vmax.bf16 %v7467, %v7419
        %v7516 = vmax.bf16 %v7468, %v7420
        %v7517 = vmax.bf16 %v7469, %v7421
        %v7518 = vmax.bf16 %v7470, %v7422
        %v7519 = vmax.bf16 %v7471, %v7423
        %v7520 = vmax.bf16 %v7472, %v7424
        %v7521 = vmax.bf16 %v7473, %v7425
        %v7522 = vmax.bf16 %v7474, %v7426
        %v7523 = vmax.bf16 %v7475, %v7427
        %v7524 = vmax.bf16 %v7476, %v7428
        %v7525 = vmax.bf16 %v7477, %v7429
        %v7526 = vmax.bf16 %v7478, %v7430
        %v7527 = vmax.bf16 %v7479, %v7431
        %v7528 = vmax.bf16 %v7480, %v7432
        %v7529 = vmax.bf16 %v7481, %v7433
        %v7530 = vmax.bf16 %v7482, %v7434
        %v7531 = vmax.bf16 %v7483, %v7435
        %v7532 = vmax.bf16 %v7484, %v7436
        %v7533 = vmax.bf16 %v7485, %v7437
        %v7534 = vmax.bf16 %v7486, %v7438
        %v7535 = vmax.bf16 %v7487, %v7439
        %v7536 = vmax.bf16 %v7488, %v7440
        %v7537 = vmax.bf16 %v7489, %v7441
        %v7538 = vmax.bf16 %v7490, %v7442
        %v7539 = vmax.bf16 %v7491, %v7443
        %v7540 = vmax.bf16 %v7492, %v7444
        %v7541 = vmax.bf16 %v7493, %v7445
        %v7542 = vmax.bf16 %v7494, %v7446
        %v7544 = vshrl.u32 %v7495, 16
        %v7546 = vrot.slane %v7544, 7
        %v7547 = vrot.slane %v7546, 4
        %v7549 = vshrl.u32 %v7496, 16
        %v7551 = vrot.slane %v7549, 7
        %v7552 = vshll.u32 %v7496, 16
        %v7554 = vor.u32 %v7551, %v7552
        %v7555 = vsel %vm1338, %v7547, %v7554
        %v7556 = vrot.slane %v7551, 4
        %v7558 = vshrl.u32 %v7497, 16
        %v7560 = vrot.slane %v7558, 7
        %v7561 = vshll.u32 %v7497, 16
        %v7563 = vor.u32 %v7560, %v7561
        %v7564 = vsel %vm1338, %v7556, %v7563
        %v7566 = vshrl.u32 %v7498, 16
        %v7568 = vrot.slane %v7566, 7
        %v7569 = vrot.slane %v7568, 4
        %v7571 = vshrl.u32 %v7499, 16
        %v7573 = vrot.slane %v7571, 7
        %v7574 = vshll.u32 %v7499, 16
        %v7576 = vor.u32 %v7573, %v7574
        %v7577 = vsel %vm1338, %v7569, %v7576
        %v7578 = vrot.slane %v7573, 4
        %v7580 = vshrl.u32 %v7500, 16
        %v7582 = vrot.slane %v7580, 7
        %v7583 = vshll.u32 %v7500, 16
        %v7585 = vor.u32 %v7582, %v7583
        %v7586 = vsel %vm1338, %v7578, %v7585
        %v7588 = vshrl.u32 %v7501, 16
        %v7590 = vrot.slane %v7588, 7
        %v7591 = vrot.slane %v7590, 4
        %v7593 = vshrl.u32 %v7502, 16
        %v7595 = vrot.slane %v7593, 7
        %v7596 = vshll.u32 %v7502, 16
        %v7598 = vor.u32 %v7595, %v7596
        %v7599 = vsel %vm1338, %v7591, %v7598
        %v7600 = vrot.slane %v7595, 4
        %v7602 = vshrl.u32 %v7503, 16
        %v7604 = vrot.slane %v7602, 7
        %v7605 = vshll.u32 %v7503, 16
        %v7607 = vor.u32 %v7604, %v7605
        %v7608 = vsel %vm1338, %v7600, %v7607
        %v7610 = vshrl.u32 %v7504, 16
        %v7612 = vrot.slane %v7610, 7
        %v7613 = vrot.slane %v7612, 4
        %v7615 = vshrl.u32 %v7505, 16
        %v7617 = vrot.slane %v7615, 7
        %v7618 = vshll.u32 %v7505, 16
        %v7620 = vor.u32 %v7617, %v7618
        %v7621 = vsel %vm1338, %v7613, %v7620
        %v7622 = vrot.slane %v7617, 4
        %v7624 = vshrl.u32 %v7506, 16
        %v7626 = vrot.slane %v7624, 7
        %v7627 = vshll.u32 %v7506, 16
        %v7629 = vor.u32 %v7626, %v7627
        %v7630 = vsel %vm1338, %v7622, %v7629
        %v7632 = vshrl.u32 %v7507, 16
        %v7634 = vrot.slane %v7632, 7
        %v7635 = vrot.slane %v7634, 4
        %v7637 = vshrl.u32 %v7508, 16
        %v7639 = vrot.slane %v7637, 7
        %v7640 = vshll.u32 %v7508, 16
        %v7642 = vor.u32 %v7639, %v7640
        %v7643 = vsel %vm1338, %v7635, %v7642
        %v7644 = vrot.slane %v7639, 4
        %v7646 = vshrl.u32 %v7509, 16
        %v7648 = vrot.slane %v7646, 7
        %v7649 = vshll.u32 %v7509, 16
        %v7651 = vor.u32 %v7648, %v7649
        %v7652 = vsel %vm1338, %v7644, %v7651
        %v7654 = vshrl.u32 %v7510, 16
        %v7656 = vrot.slane %v7654, 7
        %v7657 = vrot.slane %v7656, 4
        %v7659 = vshrl.u32 %v7511, 16
        %v7661 = vrot.slane %v7659, 7
        %v7662 = vshll.u32 %v7511, 16
        %v7664 = vor.u32 %v7661, %v7662
        %v7665 = vsel %vm1338, %v7657, %v7664
        %v7666 = vrot.slane %v7661, 4
        %v7668 = vshrl.u32 %v7512, 16
        %v7670 = vrot.slane %v7668, 7
        %v7671 = vshll.u32 %v7512, 16
        %v7673 = vor.u32 %v7670, %v7671
        %v7674 = vsel %vm1338, %v7666, %v7673
        %v7676 = vshrl.u32 %v7513, 16
        %v7678 = vrot.slane %v7676, 7
        %v7679 = vrot.slane %v7678, 4
        %v7681 = vshrl.u32 %v7514, 16
        %v7683 = vrot.slane %v7681, 7
        %v7684 = vshll.u32 %v7514, 16
        %v7686 = vor.u32 %v7683, %v7684
        %v7687 = vsel %vm1338, %v7679, %v7686
        %v7688 = vrot.slane %v7683, 4
        %v7690 = vshrl.u32 %v7515, 16
        %v7692 = vrot.slane %v7690, 7
        %v7693 = vshll.u32 %v7515, 16
        %v7695 = vor.u32 %v7692, %v7693
        %v7696 = vsel %vm1338, %v7688, %v7695
        %v7698 = vshrl.u32 %v7516, 16
        %v7700 = vrot.slane %v7698, 7
        %v7701 = vrot.slane %v7700, 4
        %v7703 = vshrl.u32 %v7517, 16
        %v7705 = vrot.slane %v7703, 7
        %v7706 = vshll.u32 %v7517, 16
        %v7708 = vor.u32 %v7705, %v7706
        %v7709 = vsel %vm1338, %v7701, %v7708
        %v7710 = vrot.slane %v7705, 4
        %v7712 = vshrl.u32 %v7518, 16
        %v7714 = vrot.slane %v7712, 7
        %v7715 = vshll.u32 %v7518, 16
        %v7717 = vor.u32 %v7714, %v7715
        %v7718 = vsel %vm1338, %v7710, %v7717
        %v7720 = vshrl.u32 %v7519, 16
        %v7722 = vrot.slane %v7720, 7
        %v7723 = vrot.slane %v7722, 4
        %v7725 = vshrl.u32 %v7520, 16
        %v7727 = vrot.slane %v7725, 7
        %v7728 = vshll.u32 %v7520, 16
        %v7730 = vor.u32 %v7727, %v7728
        %v7731 = vsel %vm1338, %v7723, %v7730
        %v7732 = vrot.slane %v7727, 4
        %v7734 = vshrl.u32 %v7521, 16
        %v7736 = vrot.slane %v7734, 7
        %v7737 = vshll.u32 %v7521, 16
        %v7739 = vor.u32 %v7736, %v7737
        %v7740 = vsel %vm1338, %v7732, %v7739
        %v7742 = vshrl.u32 %v7522, 16
        %v7744 = vrot.slane %v7742, 7
        %v7745 = vrot.slane %v7744, 4
        %v7747 = vshrl.u32 %v7523, 16
        %v7749 = vrot.slane %v7747, 7
        %v7750 = vshll.u32 %v7523, 16
        %v7752 = vor.u32 %v7749, %v7750
        %v7753 = vsel %vm1338, %v7745, %v7752
        %v7754 = vrot.slane %v7749, 4
        %v7756 = vshrl.u32 %v7524, 16
        %v7758 = vrot.slane %v7756, 7
        %v7759 = vshll.u32 %v7524, 16
        %v7761 = vor.u32 %v7758, %v7759
        %v7762 = vsel %vm1338, %v7754, %v7761
        %v7764 = vshrl.u32 %v7525, 16
        %v7766 = vrot.slane %v7764, 7
        %v7767 = vrot.slane %v7766, 4
        %v7769 = vshrl.u32 %v7526, 16
        %v7771 = vrot.slane %v7769, 7
        %v7772 = vshll.u32 %v7526, 16
        %v7774 = vor.u32 %v7771, %v7772
        %v7775 = vsel %vm1338, %v7767, %v7774
        %v7776 = vrot.slane %v7771, 4
        %v7778 = vshrl.u32 %v7527, 16
        %v7780 = vrot.slane %v7778, 7
        %v7781 = vshll.u32 %v7527, 16
        %v7783 = vor.u32 %v7780, %v7781
        %v7784 = vsel %vm1338, %v7776, %v7783
        %v7786 = vshrl.u32 %v7528, 16
        %v7788 = vrot.slane %v7786, 7
        %v7789 = vrot.slane %v7788, 4
        %v7791 = vshrl.u32 %v7529, 16
        %v7793 = vrot.slane %v7791, 7
        %v7794 = vshll.u32 %v7529, 16
        %v7796 = vor.u32 %v7793, %v7794
        %v7797 = vsel %vm1338, %v7789, %v7796
        %v7798 = vrot.slane %v7793, 4
        %v7800 = vshrl.u32 %v7530, 16
        %v7802 = vrot.slane %v7800, 7
        %v7803 = vshll.u32 %v7530, 16
        %v7805 = vor.u32 %v7802, %v7803
        %v7806 = vsel %vm1338, %v7798, %v7805
        %v7808 = vshrl.u32 %v7531, 16
        %v7810 = vrot.slane %v7808, 7
        %v7811 = vrot.slane %v7810, 4
        %v7813 = vshrl.u32 %v7532, 16
        %v7815 = vrot.slane %v7813, 7
        %v7816 = vshll.u32 %v7532, 16
        %v7818 = vor.u32 %v7815, %v7816
        %v7819 = vsel %vm1338, %v7811, %v7818
        %v7820 = vrot.slane %v7815, 4
        %v7822 = vshrl.u32 %v7533, 16
        %v7824 = vrot.slane %v7822, 7
        %v7825 = vshll.u32 %v7533, 16
        %v7827 = vor.u32 %v7824, %v7825
        %v7828 = vsel %vm1338, %v7820, %v7827
        %v7830 = vshrl.u32 %v7534, 16
        %v7832 = vrot.slane %v7830, 7
        %v7833 = vrot.slane %v7832, 4
        %v7835 = vshrl.u32 %v7535, 16
        %v7837 = vrot.slane %v7835, 7
        %v7838 = vshll.u32 %v7535, 16
        %v7840 = vor.u32 %v7837, %v7838
        %v7841 = vsel %vm1338, %v7833, %v7840
        %v7842 = vrot.slane %v7837, 4
        %v7844 = vshrl.u32 %v7536, 16
        %v7846 = vrot.slane %v7844, 7
        %v7847 = vshll.u32 %v7536, 16
        %v7849 = vor.u32 %v7846, %v7847
        %v7850 = vsel %vm1338, %v7842, %v7849
        %v7852 = vshrl.u32 %v7537, 16
        %v7854 = vrot.slane %v7852, 7
        %v7855 = vrot.slane %v7854, 4
        %v7857 = vshrl.u32 %v7538, 16
        %v7859 = vrot.slane %v7857, 7
        %v7860 = vshll.u32 %v7538, 16
        %v7862 = vor.u32 %v7859, %v7860
        %v7863 = vsel %vm1338, %v7855, %v7862
        %v7864 = vrot.slane %v7859, 4
        %v7866 = vshrl.u32 %v7539, 16
        %v7868 = vrot.slane %v7866, 7
        %v7869 = vshll.u32 %v7539, 16
        %v7871 = vor.u32 %v7868, %v7869
        %v7872 = vsel %vm1338, %v7864, %v7871
        %v7874 = vshrl.u32 %v7540, 16
        %v7876 = vrot.slane %v7874, 7
        %v7877 = vrot.slane %v7876, 4
        %v7879 = vshrl.u32 %v7541, 16
        %v7881 = vrot.slane %v7879, 7
        %v7882 = vshll.u32 %v7541, 16
        %v7884 = vor.u32 %v7881, %v7882
        %v7885 = vsel %vm1338, %v7877, %v7884
        %v7886 = vrot.slane %v7881, 4
        %v7888 = vshrl.u32 %v7542, 16
        %v7890 = vrot.slane %v7888, 7
        %v7891 = vshll.u32 %v7542, 16
        %v7893 = vor.u32 %v7890, %v7891
        %v7894 = vsel %vm1338, %v7886, %v7893
        %v7895 = vld [vmem:[%s7] sm:$0x3]
        %v7896 = vunpack.c.l.b16 %v7555
        %v7897 = vunpack.c.l.b16 %v7564
        %v7898 = vunpack.c.l.b16 %v7577
        %v7899 = vunpack.c.l.b16 %v7586
        %v7900 = vunpack.c.l.b16 %v7599
        %v7901 = vunpack.c.l.b16 %v7608
        %v7902 = vunpack.c.l.b16 %v7621
        %v7903 = vunpack.c.l.b16 %v7630
        %v7904 = vunpack.c.l.b16 %v7643
        %v7905 = vunpack.c.l.b16 %v7652
        %v7906 = vunpack.c.l.b16 %v7665
        %v7907 = vunpack.c.l.b16 %v7674
        %v7908 = vunpack.c.l.b16 %v7687
        %v7909 = vunpack.c.l.b16 %v7696
        %v7910 = vunpack.c.l.b16 %v7709
        %v7911 = vunpack.c.l.b16 %v7718
        %v7912 = vunpack.c.l.b16 %v7731
        %v7913 = vunpack.c.l.b16 %v7740
        %v7914 = vunpack.c.l.b16 %v7753
        %v7915 = vunpack.c.l.b16 %v7762
        %v7916 = vunpack.c.l.b16 %v7775
        %v7917 = vunpack.c.l.b16 %v7784
        %v7918 = vunpack.c.l.b16 %v7797
        %v7919 = vunpack.c.l.b16 %v7806
        %v7920 = vunpack.c.l.b16 %v7819
        %v7921 = vunpack.c.l.b16 %v7828
        %v7922 = vunpack.c.l.b16 %v7841
        %v7923 = vunpack.c.l.b16 %v7850
        %v7924 = vunpack.c.l.b16 %v7863
        %v7925 = vunpack.c.l.b16 %v7872
        %v7926 = vunpack.c.l.b16 %v7885
        %v7927 = vunpack.c.l.b16 %v7894
        %v7928 = vpack.c.b16 %v7897, %v7896
        %v7929 = vpack.c.b16 %v7899, %v7898
        %v7930 = vpack.c.b16 %v7901, %v7900
        %v7931 = vpack.c.b16 %v7903, %v7902
        %v7932 = vpack.c.b16 %v7905, %v7904
        %v7933 = vpack.c.b16 %v7907, %v7906
        %v7934 = vpack.c.b16 %v7909, %v7908
        %v7935 = vpack.c.b16 %v7911, %v7910
        %v7936 = vpack.c.b16 %v7913, %v7912
        %v7937 = vpack.c.b16 %v7915, %v7914
        %v7938 = vpack.c.b16 %v7917, %v7916
        %v7939 = vpack.c.b16 %v7919, %v7918
        %v7940 = vpack.c.b16 %v7921, %v7920
        %v7941 = vpack.c.b16 %v7923, %v7922
        %v7942 = vpack.c.b16 %v7925, %v7924
        %v7943 = vpack.c.b16 %v7927, %v7926
        %v7945 = vsel %vm709, %v7928, 0
        %v7948 = vsel %vm709, %v7929, 0
        %v7951 = vsel %vm709, %v7930, 0
        %v7954 = vsel %vm709, %v7931, 0
        %v7957 = vsel %vm709, %v7932, 0
        %v7960 = vsel %vm709, %v7933, 0
        %v7963 = vsel %vm709, %v7934, 0
        %v7966 = vsel %vm709, %v7935, 0
        %v7969 = vsel %vm709, %v7936, 0
        %v7972 = vsel %vm709, %v7937, 0
        %v7975 = vsel %vm709, %v7938, 0
        %v7978 = vsel %vm709, %v7939, 0
        %v7981 = vsel %vm709, %v7940, 0
        %v7984 = vsel %vm709, %v7941, 0
        %v7987 = vsel %vm709, %v7942, 0
        %v7990 = vsel %vm709, %v7943, 0
        %v7993 = vsel %vm758, %v7895, 0
        %7995 = vmatprep.subr.bf16.mxu0 0
        %7996 = vmatpush1.bf16.msra.mxu0 %v7993
        %7997 = vmatprep.subr.bf16.mxu0 0
        %7998 = vmatpush1.bf16.msra.mxu0 0
        %7999 = vmatprep.subr.bf16.mxu0 0
        %8000 = vmatpush1.bf16.msra.mxu0 0
        %8001 = vmatprep.subr.bf16.mxu0 0
        %8002 = vmatpush1.bf16.msra.mxu0 0
        %8003 = vmatprep.subr.bf16.mxu0 0
        %8004 = vmatpush1.bf16.msra.mxu0 0
        %8005 = vmatprep.subr.bf16.mxu0 0
        %8006 = vmatpush1.bf16.msra.mxu0 0
        %8007 = vmatprep.subr.bf16.mxu0 0
        %8008 = vmatpush1.bf16.msra.mxu0 0
        %8009 = vmatprep.subr.bf16.mxu0 0
        %8010 = vmatpush1.bf16.msra.mxu0 0
        %8011 = vmatprep.subr.bf16.mxu0 0
        %8012 = vmatpush1.bf16.msra.mxu0 0
        %8013 = vmatprep.subr.bf16.mxu0 0
        %8014 = vmatpush1.bf16.msra.mxu0 0
        %8015 = vmatprep.subr.bf16.mxu0 0
        %8016 = vmatpush1.bf16.msra.mxu0 0
        %8017 = vmatprep.subr.bf16.mxu0 0
        %8018 = vmatpush1.bf16.msra.mxu0 0
        %8019 = vmatprep.subr.bf16.mxu0 0
        %8020 = vmatpush1.bf16.msra.mxu0 0
        %8021 = vmatprep.subr.bf16.mxu0 0
        %8022 = vmatpush1.bf16.msra.mxu0 0
        %8023 = vmatprep.subr.bf16.mxu0 0
        %8024 = vmatpush1.bf16.msra.mxu0 0
        %8025 = vmatprep.subr.bf16.mxu0 0
        %8026 = vmatpush1.bf16.msra.mxu0 0
        %8027 = vmatprep.mubr.bf16.mxu0 0
        %8028 = vmatmul.mubr.bf16.gmra.mrb[0].mxu0 %v7945
        %v8029 = vpop.f32.mrb[0].mxu0
        %v8030 = vadd.f32 0.0, %v8029
        %v8031 = vpop.f32.mrb[0].mxu0
        %v8032 = vpop.f32.mrb[0].mxu0
        %v8033 = vadd.f32 0.0, %v8032
        %v8034 = vpop.f32.mrb[0].mxu0
        %8035 = vmatprep.mubr.bf16.mxu0 0
        %8036 = vmatmul.mubr.bf16.gmra.mrb[0].mxu0 %v7948
        %v8037 = vpop.f32.mrb[0].mxu0
        %v8038 = vadd.f32 0.0, %v8037
        %v8039 = vpop.f32.mrb[0].mxu0
        %v8040 = vpop.f32.mrb[0].mxu0
        %v8041 = vadd.f32 0.0, %v8040
        %v8042 = vpop.f32.mrb[0].mxu0
        %8043 = vmatprep.mubr.bf16.mxu0 0
        %8044 = vmatmul.mubr.bf16.gmra.mrb[0].mxu0 %v7951
        %v8045 = vpop.f32.mrb[0].mxu0
        %v8046 = vadd.f32 0.0, %v8045
        %v8047 = vpop.f32.mrb[0].mxu0
        %v8048 = vpop.f32.mrb[0].mxu0
        %v8049 = vadd.f32 0.0, %v8048
        %v8050 = vpop.f32.mrb[0].mxu0
        %8051 = vmatprep.mubr.bf16.mxu0 0
        %8052 = vmatmul.mubr.bf16.gmra.mrb[0].mxu0 %v7954
        %v8053 = vpop.f32.mrb[0].mxu0
        %v8054 = vadd.f32 0.0, %v8053
        %v8055 = vpop.f32.mrb[0].mxu0
        %v8056 = vpop.f32.mrb[0].mxu0
        %v8057 = vadd.f32 0.0, %v8056
        %v8058 = vpop.f32.mrb[0].mxu0
        %8059 = vmatprep.mubr.bf16.mxu0 0
        %8060 = vmatmul.mubr.bf16.gmra.mrb[0].mxu0 %v7957
        %v8061 = vpop.f32.mrb[0].mxu0
        %v8062 = vadd.f32 0.0, %v8061
        %v8063 = vpop.f32.mrb[0].mxu0
        %v8064 = vpop.f32.mrb[0].mxu0
        %v8065 = vadd.f32 0.0, %v8064
        %v8066 = vpop.f32.mrb[0].mxu0
        %8067 = vmatprep.mubr.bf16.mxu0 0
        %8068 = vmatmul.mubr.bf16.gmra.mrb[0].mxu0 %v7960
        %v8069 = vpop.f32.mrb[0].mxu0
        %v8070 = vadd.f32 0.0, %v8069
        %v8071 = vpop.f32.mrb[0].mxu0
        %v8072 = vpop.f32.mrb[0].mxu0
        %v8073 = vadd.f32 0.0, %v8072
        %v8074 = vpop.f32.mrb[0].mxu0
        %8075 = vmatprep.mubr.bf16.mxu0 0
        %8076 = vmatmul.mubr.bf16.gmra.mrb[0].mxu0 %v7963
        %v8077 = vpop.f32.mrb[0].mxu0
        %v8078 = vadd.f32 0.0, %v8077
        %v8079 = vpop.f32.mrb[0].mxu0
        %v8080 = vpop.f32.mrb[0].mxu0
        %v8081 = vadd.f32 0.0, %v8080
        %v8082 = vpop.f32.mrb[0].mxu0
        %8083 = vmatprep.mubr.bf16.mxu0 0
        %8084 = vmatmul.mubr.bf16.gmra.mrb[0].mxu0 %v7966
        %v8085 = vpop.f32.mrb[0].mxu0
        %v8086 = vadd.f32 0.0, %v8085
        %v8087 = vpop.f32.mrb[0].mxu0
        %v8088 = vpop.f32.mrb[0].mxu0
        %v8089 = vadd.f32 0.0, %v8088
        %v8090 = vpop.f32.mrb[0].mxu0
        %8091 = vmatprep.mubr.bf16.mxu0 0
        %8092 = vmatmul.mubr.bf16.gmra.mrb[0].mxu0 %v7969
        %v8093 = vpop.f32.mrb[0].mxu0
        %v8094 = vadd.f32 0.0, %v8093
        %v8095 = vpop.f32.mrb[0].mxu0
        %v8096 = vpop.f32.mrb[0].mxu0
        %v8097 = vadd.f32 0.0, %v8096
        %v8098 = vpop.f32.mrb[0].mxu0
        %8099 = vmatprep.mubr.bf16.mxu0 0
        %8100 = vmatmul.mubr.bf16.gmra.mrb[0].mxu0 %v7972
        %v8101 = vpop.f32.mrb[0].mxu0
        %v8102 = vadd.f32 0.0, %v8101
        %v8103 = vpop.f32.mrb[0].mxu0
        %v8104 = vpop.f32.mrb[0].mxu0
        %v8105 = vadd.f32 0.0, %v8104
        %v8106 = vpop.f32.mrb[0].mxu0
        %8107 = vmatprep.mubr.bf16.mxu0 0
        %8108 = vmatmul.mubr.bf16.gmra.mrb[0].mxu0 %v7975
        %v8109 = vpop.f32.mrb[0].mxu0
        %v8110 = vadd.f32 0.0, %v8109
        %v8111 = vpop.f32.mrb[0].mxu0
        %v8112 = vpop.f32.mrb[0].mxu0
        %v8113 = vadd.f32 0.0, %v8112
        %v8114 = vpop.f32.mrb[0].mxu0
        %8115 = vmatprep.mubr.bf16.mxu0 0
        %8116 = vmatmul.mubr.bf16.gmra.mrb[0].mxu0 %v7978
        %v8117 = vpop.f32.mrb[0].mxu0
        %v8118 = vadd.f32 0.0, %v8117
        %v8119 = vpop.f32.mrb[0].mxu0
        %v8120 = vpop.f32.mrb[0].mxu0
        %v8121 = vadd.f32 0.0, %v8120
        %v8122 = vpop.f32.mrb[0].mxu0
        %8123 = vmatprep.mubr.bf16.mxu0 0
        %8124 = vmatmul.mubr.bf16.gmra.mrb[0].mxu0 %v7981
        %v8125 = vpop.f32.mrb[0].mxu0
        %v8126 = vadd.f32 0.0, %v8125
        %v8127 = vpop.f32.mrb[0].mxu0
        %v8128 = vpop.f32.mrb[0].mxu0
        %v8129 = vadd.f32 0.0, %v8128
        %v8130 = vpop.f32.mrb[0].mxu0
        %8131 = vmatprep.mubr.bf16.mxu0 0
        %8132 = vmatmul.mubr.bf16.gmra.mrb[0].mxu0 %v7984
        %v8133 = vpop.f32.mrb[0].mxu0
        %v8134 = vadd.f32 0.0, %v8133
        %v8135 = vpop.f32.mrb[0].mxu0
        %v8136 = vpop.f32.mrb[0].mxu0
        %v8137 = vadd.f32 0.0, %v8136
        %v8138 = vpop.f32.mrb[0].mxu0
        %8139 = vmatprep.mubr.bf16.mxu0 0
        %8140 = vmatmul.mubr.bf16.gmra.mrb[0].mxu0 %v7987
        %v8141 = vpop.f32.mrb[0].mxu0
        %v8142 = vadd.f32 0.0, %v8141
        %v8143 = vpop.f32.mrb[0].mxu0
        %v8144 = vpop.f32.mrb[0].mxu0
        %v8145 = vadd.f32 0.0, %v8144
        %v8146 = vpop.f32.mrb[0].mxu0
        %8147 = vmatprep.mubr.bf16.mxu0 0
        %8148 = vmatmul.mubr.bf16.gmra.mrb[0].mxu0 %v7990
        %v8149 = vpop.f32.mrb[0].mxu0
        %v8150 = vadd.f32 0.0, %v8149
        %v8151 = vpop.f32.mrb[0].mxu0
        %v8152 = vpop.f32.mrb[0].mxu0
        %v8153 = vadd.f32 0.0, %v8152
        %v8154 = vpop.f32.mrb[0].mxu0
        %8155 = vdwg.mxu0
        %v8156 = vld [vmem:[%s8] sm:$0x1]
        %v8158 = vlaneseq
        %v8159 = vshrl.u32 %v8158, 7
        %v8160 = vsub.s32 0, %v8159
        %v8161 = vrot.slane %v8156, %v8160
        %v8163 = vmul.f32 %v8030, %v8161
        %v8164 = vmul.f32 %v8033, %v8161
        %v8165 = vmul.f32 %v8038, %v8161
        %v8166 = vmul.f32 %v8041, %v8161
        %v8167 = vmul.f32 %v8046, %v8161
        %v8168 = vmul.f32 %v8049, %v8161
        %v8169 = vmul.f32 %v8054, %v8161
        %v8170 = vmul.f32 %v8057, %v8161
        %v8171 = vmul.f32 %v8062, %v8161
        %v8172 = vmul.f32 %v8065, %v8161
        %v8173 = vmul.f32 %v8070, %v8161
        %v8174 = vmul.f32 %v8073, %v8161
        %v8175 = vmul.f32 %v8078, %v8161
        %v8176 = vmul.f32 %v8081, %v8161
        %v8177 = vmul.f32 %v8086, %v8161
        %v8178 = vmul.f32 %v8089, %v8161
        %v8179 = vmul.f32 %v8094, %v8161
        %v8180 = vmul.f32 %v8097, %v8161
        %v8181 = vmul.f32 %v8102, %v8161
        %v8182 = vmul.f32 %v8105, %v8161
        %v8183 = vmul.f32 %v8110, %v8161
        %v8184 = vmul.f32 %v8113, %v8161
        %v8185 = vmul.f32 %v8118, %v8161
        %v8186 = vmul.f32 %v8121, %v8161
        %v8187 = vmul.f32 %v8126, %v8161
        %v8188 = vmul.f32 %v8129, %v8161
        %v8189 = vmul.f32 %v8134, %v8161
        %v8190 = vmul.f32 %v8137, %v8161
        %v8191 = vmul.f32 %v8142, %v8161
        %v8192 = vmul.f32 %v8145, %v8161
        %v8193 = vmul.f32 %v8150, %v8161
        %v8194 = vmul.f32 %v8153, %v8161
        %v8195 = vld [vmem:[%s9] sm:$0x1]
        %v8197 = vlaneseq
        %v8198 = vshrl.u32 %v8197, 7
        %v8199 = vsub.s32 0, %v8198
        %v8200 = vrot.slane %v8195, %v8199
        %v8202 = vadd.f32 %v8163, %v8200
        %v8203 = vadd.f32 %v8164, %v8200
        %v8204 = vadd.f32 %v8165, %v8200
        %v8205 = vadd.f32 %v8166, %v8200
        %v8206 = vadd.f32 %v8167, %v8200
        %v8207 = vadd.f32 %v8168, %v8200
        %v8208 = vadd.f32 %v8169, %v8200
        %v8209 = vadd.f32 %v8170, %v8200
        %v8210 = vadd.f32 %v8171, %v8200
        %v8211 = vadd.f32 %v8172, %v8200
        %v8212 = vadd.f32 %v8173, %v8200
        %v8213 = vadd.f32 %v8174, %v8200
        %v8214 = vadd.f32 %v8175, %v8200
        %v8215 = vadd.f32 %v8176, %v8200
        %v8216 = vadd.f32 %v8177, %v8200
        %v8217 = vadd.f32 %v8178, %v8200
        %v8218 = vadd.f32 %v8179, %v8200
        %v8219 = vadd.f32 %v8180, %v8200
        %v8220 = vadd.f32 %v8181, %v8200
        %v8221 = vadd.f32 %v8182, %v8200
        %v8222 = vadd.f32 %v8183, %v8200
        %v8223 = vadd.f32 %v8184, %v8200
        %v8224 = vadd.f32 %v8185, %v8200
        %v8225 = vadd.f32 %v8186, %v8200
        %v8226 = vadd.f32 %v8187, %v8200
        %v8227 = vadd.f32 %v8188, %v8200
        %v8228 = vadd.f32 %v8189, %v8200
        %v8229 = vadd.f32 %v8190, %v8200
        %v8230 = vadd.f32 %v8191, %v8200
        %v8231 = vadd.f32 %v8192, %v8200
        %v8232 = vadd.f32 %v8193, %v8200
        %v8233 = vadd.f32 %v8194, %v8200
        %v8234 = vmax.f32 %v8202, 0.0
        %v8235 = vmax.f32 %v8203, 0.0
        %v8236 = vmax.f32 %v8204, 0.0
        %v8237 = vmax.f32 %v8205, 0.0
        %v8238 = vmax.f32 %v8206, 0.0
        %v8239 = vmax.f32 %v8207, 0.0
        %v8240 = vmax.f32 %v8208, 0.0
        %v8241 = vmax.f32 %v8209, 0.0
        %v8242 = vmax.f32 %v8210, 0.0
        %v8243 = vmax.f32 %v8211, 0.0
        %v8244 = vmax.f32 %v8212, 0.0
        %v8245 = vmax.f32 %v8213, 0.0
        %v8246 = vmax.f32 %v8214, 0.0
        %v8247 = vmax.f32 %v8215, 0.0
        %v8248 = vmax.f32 %v8216, 0.0
        %v8249 = vmax.f32 %v8217, 0.0
        %v8250 = vmax.f32 %v8218, 0.0
        %v8251 = vmax.f32 %v8219, 0.0
        %v8252 = vmax.f32 %v8220, 0.0
        %v8253 = vmax.f32 %v8221, 0.0
        %v8254 = vmax.f32 %v8222, 0.0
        %v8255 = vmax.f32 %v8223, 0.0
        %v8256 = vmax.f32 %v8224, 0.0
        %v8257 = vmax.f32 %v8225, 0.0
        %v8258 = vmax.f32 %v8226, 0.0
        %v8259 = vmax.f32 %v8227, 0.0
        %v8260 = vmax.f32 %v8228, 0.0
        %v8261 = vmax.f32 %v8229, 0.0
        %v8262 = vmax.f32 %v8230, 0.0
        %v8263 = vmax.f32 %v8231, 0.0
        %v8264 = vmax.f32 %v8232, 0.0
        %v8265 = vmax.f32 %v8233, 0.0
        %8298 = vrot.lane.b32.xlu0 %v6602, 8
        %v8299 = vpop.permute.xlu0 %8298
        %8300 = vrot.lane.b32.xlu0 %v6603, 8
        %v8301 = vpop.permute.xlu0 %8300
        %8302 = vrot.lane.b32.xlu0 %v6604, 8
        %v8303 = vpop.permute.xlu0 %8302
        %8304 = vrot.lane.b32.xlu0 %v6605, 8
        %v8305 = vpop.permute.xlu0 %8304
        %8306 = vrot.lane.b32.xlu0 %v6606, 8
        %v8307 = vpop.permute.xlu0 %8306
        %8308 = vrot.lane.b32.xlu0 %v6607, 8
        %v8309 = vpop.permute.xlu0 %8308
        %8310 = vrot.lane.b32.xlu0 %v6608, 8
        %v8311 = vpop.permute.xlu0 %8310
        %8312 = vrot.lane.b32.xlu0 %v6609, 8
        %v8313 = vpop.permute.xlu0 %8312
        %8314 = vrot.lane.b32.xlu0 %v6610, 8
        %v8315 = vpop.permute.xlu0 %8314
        %8316 = vrot.lane.b32.xlu0 %v6611, 8
        %v8317 = vpop.permute.xlu0 %8316
        %8318 = vrot.lane.b32.xlu0 %v6612, 8
        %v8319 = vpop.permute.xlu0 %8318
        %8320 = vrot.lane.b32.xlu0 %v6613, 8
        %v8321 = vpop.permute.xlu0 %8320
        %8322 = vrot.lane.b32.xlu0 %v6614, 8
        %v8323 = vpop.permute.xlu0 %8322
        %8324 = vrot.lane.b32.xlu0 %v6615, 8
        %v8325 = vpop.permute.xlu0 %8324
        %8326 = vrot.lane.b32.xlu0 %v6616, 8
        %v8327 = vpop.permute.xlu0 %8326
        %8328 = vrot.lane.b32.xlu0 %v6617, 8
        %v8329 = vpop.permute.xlu0 %8328
        %8330 = vrot.lane.b32.xlu0 %v6618, 8
        %v8331 = vpop.permute.xlu0 %8330
        %8332 = vrot.lane.b32.xlu0 %v6619, 8
        %v8333 = vpop.permute.xlu0 %8332
        %8334 = vrot.lane.b32.xlu0 %v6620, 8
        %v8335 = vpop.permute.xlu0 %8334
        %8336 = vrot.lane.b32.xlu0 %v6621, 8
        %v8337 = vpop.permute.xlu0 %8336
        %8338 = vrot.lane.b32.xlu0 %v6622, 8
        %v8339 = vpop.permute.xlu0 %8338
        %8340 = vrot.lane.b32.xlu0 %v6623, 8
        %v8341 = vpop.permute.xlu0 %8340
        %8342 = vrot.lane.b32.xlu0 %v6624, 8
        %v8343 = vpop.permute.xlu0 %8342
        %8344 = vrot.lane.b32.xlu0 %v6625, 8
        %v8345 = vpop.permute.xlu0 %8344
        %8346 = vrot.lane.b32.xlu0 %v6626, 8
        %v8347 = vpop.permute.xlu0 %8346
        %8348 = vrot.lane.b32.xlu0 %v6627, 8
        %v8349 = vpop.permute.xlu0 %8348
        %8350 = vrot.lane.b32.xlu0 %v6628, 8
        %v8351 = vpop.permute.xlu0 %8350
        %8352 = vrot.lane.b32.xlu0 %v6629, 8
        %v8353 = vpop.permute.xlu0 %8352
        %8354 = vrot.lane.b32.xlu0 %v6630, 8
        %v8355 = vpop.permute.xlu0 %8354
        %8356 = vrot.lane.b32.xlu0 %v6631, 8
        %v8357 = vpop.permute.xlu0 %8356
        %8358 = vrot.lane.b32.xlu0 %v6632, 8
        %v8359 = vpop.permute.xlu0 %8358
        %8360 = vrot.lane.b32.xlu0 %v6633, 8
        %v8361 = vpop.permute.xlu0 %8360
        %8426 = vrot.lane.b32.xlu0 %v8234, 24
        %v8427 = vpop.permute.xlu0 %8426
        %8428 = vrot.lane.b32.xlu0 %v8235, 24
        %v8429 = vpop.permute.xlu0 %8428
        %8430 = vrot.lane.b32.xlu0 %v8236, 24
        %v8431 = vpop.permute.xlu0 %8430
        %8432 = vrot.lane.b32.xlu0 %v8237, 24
        %v8433 = vpop.permute.xlu0 %8432
        %8434 = vrot.lane.b32.xlu0 %v8238, 24
        %v8435 = vpop.permute.xlu0 %8434
        %8436 = vrot.lane.b32.xlu0 %v8239, 24
        %v8437 = vpop.permute.xlu0 %8436
        %8438 = vrot.lane.b32.xlu0 %v8240, 24
        %v8439 = vpop.permute.xlu0 %8438
        %8440 = vrot.lane.b32.xlu0 %v8241, 24
        %v8441 = vpop.permute.xlu0 %8440
        %8442 = vrot.lane.b32.xlu0 %v8242, 24
        %v8443 = vpop.permute.xlu0 %8442
        %8444 = vrot.lane.b32.xlu0 %v8243, 24
        %v8445 = vpop.permute.xlu0 %8444
        %8446 = vrot.lane.b32.xlu0 %v8244, 24
        %v8447 = vpop.permute.xlu0 %8446
        %8448 = vrot.lane.b32.xlu0 %v8245, 24
        %v8449 = vpop.permute.xlu0 %8448
        %8450 = vrot.lane.b32.xlu0 %v8246, 24
        %v8451 = vpop.permute.xlu0 %8450
        %8452 = vrot.lane.b32.xlu0 %v8247, 24
        %v8453 = vpop.permute.xlu0 %8452
        %8454 = vrot.lane.b32.xlu0 %v8248, 24
        %v8455 = vpop.permute.xlu0 %8454
        %8456 = vrot.lane.b32.xlu0 %v8249, 24
        %v8457 = vpop.permute.xlu0 %8456
        %8458 = vrot.lane.b32.xlu0 %v8250, 24
        %v8459 = vpop.permute.xlu0 %8458
        %8460 = vrot.lane.b32.xlu0 %v8251, 24
        %v8461 = vpop.permute.xlu0 %8460
        %8462 = vrot.lane.b32.xlu0 %v8252, 24
        %v8463 = vpop.permute.xlu0 %8462
        %8464 = vrot.lane.b32.xlu0 %v8253, 24
        %v8465 = vpop.permute.xlu0 %8464
        %8466 = vrot.lane.b32.xlu0 %v8254, 24
        %v8467 = vpop.permute.xlu0 %8466
        %8468 = vrot.lane.b32.xlu0 %v8255, 24
        %v8469 = vpop.permute.xlu0 %8468
        %8470 = vrot.lane.b32.xlu0 %v8256, 24
        %v8471 = vpop.permute.xlu0 %8470
        %8472 = vrot.lane.b32.xlu0 %v8257, 24
        %v8473 = vpop.permute.xlu0 %8472
        %8474 = vrot.lane.b32.xlu0 %v8258, 24
        %v8475 = vpop.permute.xlu0 %8474
        %8476 = vrot.lane.b32.xlu0 %v8259, 24
        %v8477 = vpop.permute.xlu0 %8476
        %8478 = vrot.lane.b32.xlu0 %v8260, 24
        %v8479 = vpop.permute.xlu0 %8478
        %8480 = vrot.lane.b32.xlu0 %v8261, 24
        %v8481 = vpop.permute.xlu0 %8480
        %8482 = vrot.lane.b32.xlu0 %v8262, 24
        %v8483 = vpop.permute.xlu0 %8482
        %8484 = vrot.lane.b32.xlu0 %v8263, 24
        %v8485 = vpop.permute.xlu0 %8484
        %8486 = vrot.lane.b32.xlu0 %v8264, 24
        %v8487 = vpop.permute.xlu0 %8486
        %8488 = vrot.lane.b32.xlu0 %v8265, 24
        %v8489 = vpop.permute.xlu0 %8488
        %vm8522 = vcmask 64512
        %v8523 = vsel %vm8522, %v1001, %v8299
        %v8524 = vsel %vm8522, %v1002, %v8301
        %v8525 = vsel %vm8522, %v1003, %v8303
        %v8526 = vsel %vm8522, %v1004, %v8305
        %v8527 = vsel %vm8522, %v1005, %v8307
        %v8528 = vsel %vm8522, %v1006, %v8309
        %v8529 = vsel %vm8522, %v1007, %v8311
        %v8530 = vsel %vm8522, %v1008, %v8313
        %v8531 = vsel %vm8522, %v1009, %v8315
        %v8532 = vsel %vm8522, %v1010, %v8317
        %v8533 = vsel %vm8522, %v1011, %v8319
        %v8534 = vsel %vm8522, %v1012, %v8321
        %v8535 = vsel %vm8522, %v1013, %v8323
        %v8536 = vsel %vm8522, %v1014, %v8325
        %v8537 = vsel %vm8522, %v1015, %v8327
        %v8538 = vsel %vm8522, %v1016, %v8329
        %v8539 = vsel %vm8522, %v1017, %v8331
        %v8540 = vsel %vm8522, %v1018, %v8333
        %v8541 = vsel %vm8522, %v1019, %v8335
        %v8542 = vsel %vm8522, %v1020, %v8337
        %v8543 = vsel %vm8522, %v1021, %v8339
        %v8544 = vsel %vm8522, %v1022, %v8341
        %v8545 = vsel %vm8522, %v1023, %v8343
        %v8546 = vsel %vm8522, %v1024, %v8345
        %v8547 = vsel %vm8522, %v1025, %v8347
        %v8548 = vsel %vm8522, %v1026, %v8349
        %v8549 = vsel %vm8522, %v1027, %v8351
        %v8550 = vsel %vm8522, %v1028, %v8353
        %v8551 = vsel %vm8522, %v1029, %v8355
        %v8552 = vsel %vm8522, %v1030, %v8357
        %v8553 = vsel %vm8522, %v1031, %v8359
        %v8554 = vsel %vm8522, %v1032, %v8361
        %vm8555 = vcmask 195584
        %v8556 = vsel %vm8555, %v8523, %v8427
        %v8557 = vsel %vm8555, %v8524, %v8429
        %v8558 = vsel %vm8555, %v8525, %v8431
        %v8559 = vsel %vm8555, %v8526, %v8433
        %v8560 = vsel %vm8555, %v8527, %v8435
        %v8561 = vsel %vm8555, %v8528, %v8437
        %v8562 = vsel %vm8555, %v8529, %v8439
        %v8563 = vsel %vm8555, %v8530, %v8441
        %v8564 = vsel %vm8555, %v8531, %v8443
        %v8565 = vsel %vm8555, %v8532, %v8445
        %v8566 = vsel %vm8555, %v8533, %v8447
        %v8567 = vsel %vm8555, %v8534, %v8449
        %v8568 = vsel %vm8555, %v8535, %v8451
        %v8569 = vsel %vm8555, %v8536, %v8453
        %v8570 = vsel %vm8555, %v8537, %v8455
        %v8571 = vsel %vm8555, %v8538, %v8457
        %v8572 = vsel %vm8555, %v8539, %v8459
        %v8573 = vsel %vm8555, %v8540, %v8461
        %v8574 = vsel %vm8555, %v8541, %v8463
        %v8575 = vsel %vm8555, %v8542, %v8465
        %v8576 = vsel %vm8555, %v8543, %v8467
        %v8577 = vsel %vm8555, %v8544, %v8469
        %v8578 = vsel %vm8555, %v8545, %v8471
        %v8579 = vsel %vm8555, %v8546, %v8473
        %v8580 = vsel %vm8555, %v8547, %v8475
        %v8581 = vsel %vm8555, %v8548, %v8477
        %v8582 = vsel %vm8555, %v8549, %v8479
        %v8583 = vsel %vm8555, %v8550, %v8481
        %v8584 = vsel %vm8555, %v8551, %v8483
        %v8585 = vsel %vm8555, %v8552, %v8485
        %v8586 = vsel %vm8555, %v8553, %v8487
        %v8587 = vsel %vm8555, %v8554, %v8489
        %8588 = vst [vmem:[%s352] sm:$0xff] %v8556
        %8589 = vst [vmem:[%s352 + $0x8] sm:$0xff] %v8557
        %8590 = vst [vmem:[%s352 + $0x10] sm:$0xff] %v8558
        %8591 = vst [vmem:[%s352 + $0x18] sm:$0xff] %v8559
        %8592 = vst [vmem:[%s352 + $0x20] sm:$0xff] %v8560
        %8593 = vst [vmem:[%s352 + $0x28] sm:$0xff] %v8561
        %8594 = vst [vmem:[%s352 + $0x30] sm:$0xff] %v8562
        %8595 = vst [vmem:[%s352 + $0x38] sm:$0xff] %v8563
        %8596 = vst [vmem:[%s352 + $0x40] sm:$0xff] %v8564
        %8597 = vst [vmem:[%s352 + $0x48] sm:$0xff] %v8565
        %8598 = vst [vmem:[%s352 + $0x50] sm:$0xff] %v8566
        %8599 = vst [vmem:[%s352 + $0x58] sm:$0xff] %v8567
        %8600 = vst [vmem:[%s352 + $0x60] sm:$0xff] %v8568
        %8601 = vst [vmem:[%s352 + $0x68] sm:$0xff] %v8569
        %8602 = vst [vmem:[%s352 + $0x70] sm:$0xff] %v8570
        %8603 = vst [vmem:[%s352 + $0x78] sm:$0xff] %v8571
        %8604 = vst [vmem:[%s352 + $0x80] sm:$0xff] %v8572
        %8605 = vst [vmem:[%s352 + $0x88] sm:$0xff] %v8573
        %8606 = vst [vmem:[%s352 + $0x90] sm:$0xff] %v8574
        %8607 = vst [vmem:[%s352 + $0x98] sm:$0xff] %v8575
        %8608 = vst [vmem:[%s352 + $0xa0] sm:$0xff] %v8576
        %8609 = vst [vmem:[%s352 + $0xa8] sm:$0xff] %v8577
        %8610 = vst [vmem:[%s352 + $0xb0] sm:$0xff] %v8578
        %8611 = vst [vmem:[%s352 + $0xb8] sm:$0xff] %v8579
        %8612 = vst [vmem:[%s352 + $0xc0] sm:$0xff] %v8580
        %8613 = vst [vmem:[%s352 + $0xc8] sm:$0xff] %v8581
        %8614 = vst [vmem:[%s352 + $0xd0] sm:$0xff] %v8582
        %8615 = vst [vmem:[%s352 + $0xd8] sm:$0xff] %v8583
        %8616 = vst [vmem:[%s352 + $0xe0] sm:$0xff] %v8584
        %8617 = vst [vmem:[%s352 + $0xe8] sm:$0xff] %v8585
        %8618 = vst [vmem:[%s352 + $0xf0] sm:$0xff] %v8586
        %8619 = vst [vmem:[%s352 + $0xf8] sm:$0xff] %v8587
        %s8620 = sand.u32 %s247, 1
        %s8621 = scalar_lea.sflag [#allocation5], %s8620
        %s8622 = sand.u32 %s247, 1
        %s8623 = smul.addr %s8622, 256
        %s8624 = scalar_lea.vmem [#allocation4], %s8623
        // Predicated region
        $region61: #{tpu_custom_call.1} parent=59 // pred_check
          %p8625 = pneg %p257
        $region62: #{tpu_custom_call.1} parent=59 // pred_check_branch
          %8627 = sbr.rel (%p8625) target = $region64
        $region63: #{tpu_custom_call.1} parent=59 // pred_region
          %s8629 = ssub.s32 4096, 4096
          %8630 = vsyncadd %s8621, %s8629
          %s8631 = smul.addr %s24, 32
          %s8632 = smul.addr %s8631, 128
          %s8633 = scalar_lea.hbm %s10, %s8632
          %s8634 = sshll.u32 %s8624, 4
          %s8635 = int_to_ptr.vmem [resolvable:$true] %s8634
          %8640 = dma.vmem_to_hbm [thread:$0]  %s8635, 4096, %s8633, %s8621, 128, 128, 8
        $region64: #{tpu_custom_call.1} parent=59 // pred_fallthru
          _
      $region60: #{tpu_custom_call.1} parent=5 // pred_fallthru
        _
      %p8641 = scmp.le.s32.totalorder 2, %s19
      // Predicated region
      $region65: #{tpu_custom_call.1} parent=5 // pred_check
        %p8642 = pneg %p8641
      $region66: #{tpu_custom_call.1} parent=5 // pred_check_branch
        %8644 = sbr.rel (%p8642) target = $region68
      $region67: #{tpu_custom_call.1} parent=5 // pred_region
        %s8645 = ssub.s32 %s19, 2
        // Predicated region
        $region69: #{tpu_custom_call.1} parent=67 // pred_check
          %p8646 = pneg %p263
        $region70: #{tpu_custom_call.1} parent=67 // pred_check_branch
          %8648 = sbr.rel (%p8646) target = $region72
        $region71: #{tpu_custom_call.1} parent=67 // pred_region
          %s8649 = sand.u32 %s248, 1
          %s8650 = scalar_lea.sflag [#allocation5], %s8649
          %s8651 = sand.u32 %s248, 1
          %s8652 = smul.addr %s8651, 256
          %s8653 = scalar_lea.vmem [#allocation4], %s8652
          %8654 = dma.done %s8650, 4096
        $region72: #{tpu_custom_call.1} parent=67 // pred_fallthru
          _
      $region68: #{tpu_custom_call.1} parent=5 // pred_fallthru
        _
    $region6: #{tpu_custom_call.1} parent=1 // loop_footer
      %s23 = sadd.s32 1, %s19
    $region7: #{tpu_custom_call.1} parent=1 // loop_footer_branch
      %18 = sbr.rel target = $region3
    $region8: #{tpu_custom_call.1} parent=1 // loop_exit
      _
    %8655 = vsyncpa [#allocation5], 1
    %s8656 = scalar_lea.sflag [#allocation5], 1
    %8657 = vsyncpa %s8656, 1

</llo_original>
